<compile_context>
chip_gen: v7x
topology: tpu7x:2x2x1
jax: 0.10.0
libtpu: 0.0.40
codegen_flags: <defaults>
</compile_context>

<pallas_src>
import functools

import jax
import jax.numpy as jnp
from jax import lax
from jax.experimental import pallas as pl
from jax.experimental.pallas import tpu as pltpu


def _round_up(x, m):
    return ((x + m - 1) // m) * m


# ----------------------------- Pallas kernels ------------------------------

def _conv_relu_pool_kernel(p_ref, w_ref, b_ref, o_ref, *, n_pool_blocks):
    """Fused conv-as-GEMM + bias + ReLU + MaxPool for one M tile.

    p_ref : (pool*pool, K_pad, TM) bf16  im2col patches, pool-offset major
    w_ref : (Cout, K_pad)          bf16  flattened OIHW conv weight
    b_ref : (Cout, 1)              f32   bias (broadcast along lanes)
    o_ref : (Cout, TM)             bf16  pooled activation (lane-dense)
    """
    w = w_ref[...]
    acc = jnp.dot(w, p_ref[0], preferred_element_type=jnp.float32)
    for j in range(1, n_pool_blocks):
        acc = jnp.maximum(
            acc, jnp.dot(w, p_ref[j], preferred_element_type=jnp.float32))
    # max_j(W@P_j) + b then ReLU == MaxPool(ReLU(conv + b)) since both are
    # monotone and the bias is shared across pool offsets.
    o_ref[...] = jnp.maximum(acc + b_ref[...], 0.0).astype(o_ref.dtype)


def _fc_head_kernel(x_ref, w1_ref, b1_ref, w2_ref, b2_ref, o_ref):
    """tanh(x @ W1^T + b1) followed by fc2 as a lane reduction.

    x_ref  : (N, K1_pad)   bf16
    w1_ref : (K1_pad, 512) bf16
    b1_ref : (1, 512)      f32
    w2_ref : (1, 512)      bf16
    b2_ref : (1, 1)        f32
    o_ref  : (N, 1)        f32
    """
    h = jnp.dot(x_ref[...], w1_ref[...], preferred_element_type=jnp.float32)
    h = jnp.tanh(h + b1_ref[...])
    v = jnp.sum(h * w2_ref[...].astype(jnp.float32), axis=-1, keepdims=True)
    o_ref[...] = (v + b2_ref[...]).astype(o_ref.dtype)


# ------------------------------- wrappers -----------------------------------

def conv2d_relu_maxpool(x, w, b, pad, pool):
    """Conv2d(pad, stride 1) + ReLU + MaxPool2d(pool), NCHW in / NCHW out."""
    N, C, H, W = x.shape
    Cout, Cin, kh, kw = w.shape
    assert C == Cin
    OH = H + 2 * pad - kh + 1
    OW = W + 2 * pad - kw + 1
    Ho, Wo = OH // pool, OW // pool                    # MaxPool floor mode
    K = Cin * kh * kw
    K_pad = _round_up(K, 128)
    M = N * Ho * Wo
    TM = 512 if M > 512 else _round_up(M, 128)         # M tile (lane dim)
    M_pad = _round_up(M, TM)
    PP = pool * pool

    # ---- im2col with pool-offset-major column ordering (XLA glue, bf16) ----
    xb = x.astype(jnp.bfloat16)
    xp = jnp.pad(xb, ((0, 0), (0, 0), (pad, pad), (pad, pad)))
    cols = [xp[:, :, i:i + OH, j:j + OW] for i in range(kh) for j in range(kw)]
    pat = jnp.stack(cols, axis=0)                      # (kh*kw, N, C, OH, OW)
    pat = pat[:, :, :, :Ho * pool, :Wo * pool]         # floor-crop (no-op here)
    pat = pat.reshape(kh * kw, N, C, Ho, pool, Wo, pool)
    # -> (dh, dw, C, kh*kw, N, Ho, Wo): K order (c, ki, kj) matches OIHW flatten
    pat = pat.transpose(4, 6, 2, 0, 1, 3, 5)
    pat = pat.reshape(PP, K, M)
    pat = jnp.pad(pat, ((0, 0), (0, K_pad - K), (0, M_pad - M)))

    wmat = w.reshape(Cout, K).astype(jnp.bfloat16)
    wmat = jnp.pad(wmat, ((0, 0), (0, K_pad - K)))
    bcol = b.reshape(Cout, 1).astype(jnp.float32)

    grid_m = M_pad // TM
    out = pl.pallas_call(
        functools.partial(_conv_relu_pool_kernel, n_pool_blocks=PP),
        grid=(grid_m,),
        in_specs=[
            pl.BlockSpec((PP, K_pad, TM), lambda i: (0, 0, i)),
            pl.BlockSpec((Cout, K_pad), lambda i: (0, 0)),
            pl.BlockSpec((Cout, 1), lambda i: (0, 0)),
        ],
        out_specs=pl.BlockSpec((Cout, TM), lambda i: (0, i)),
        out_shape=jax.ShapeDtypeStruct((Cout, M_pad), jnp.bfloat16),
        compiler_params=pltpu.CompilerParams(
            dimension_semantics=("parallel",)),
    )(pat, wmat, bcol)

    # (Cout, N*Ho*Wo) -> (N, Cout, Ho, Wo)
    return out[:, :M].reshape(Cout, N, Ho, Wo).transpose(1, 0, 2, 3)


def fc_head(concat, w1, b1, w2, b2):
    """value = (tanh(concat @ W1^T + b1)) @ W2^T + b2, fused in one kernel."""
    N, K1 = concat.shape
    Hid = w1.shape[0]
    K1_pad = _round_up(K1, 128)
    xb = jnp.pad(concat.astype(jnp.bfloat16), ((0, 0), (0, K1_pad - K1)))
    w1t = jnp.pad(w1.T.astype(jnp.bfloat16), ((0, K1_pad - K1), (0, 0)))
    b1r = b1.reshape(1, Hid).astype(jnp.float32)
    w2r = w2.reshape(1, Hid).astype(jnp.bfloat16)
    b2r = b2.reshape(1, 1).astype(jnp.float32)
    return pl.pallas_call(
        _fc_head_kernel,
        out_shape=jax.ShapeDtypeStruct((N, 1), jnp.float32),
    )(xb, w1t, b1r, w2r, b2r)


# ----------------------------- Critic forward ------------------------------

def init_params(key):
    ks = jax.random.split(key, 12)

    def w(k, shape, scale=0.05):
        return scale * jax.random.normal(k, shape, jnp.float32)

    return {
        "scur_conv1_w": w(ks[0], (16, 4, 7, 7)),
        "scur_conv1_b": w(ks[1], (16,)),
        "scur_conv2_w": w(ks[2], (32, 16, 3, 3)),
        "scur_conv2_b": w(ks[3], (32,)),
        "ob_conv1_w": w(ks[4], (16, 4, 8, 8)),
        "ob_conv1_b": w(ks[5], (16,)),
        "ob_conv2_w": w(ks[6], (32, 16, 3, 3)),
        "ob_conv2_b": w(ks[7], (32,)),
        "fc1_w": w(ks[8], (512, 5 * 5 * 32 + 4 * 4 * 32)),
        "fc1_b": w(ks[9], (512,)),
        "fc2_w": w(ks[10], (1, 512)),
        "fc2_b": w(ks[11], (1,)),
    }


def critic_forward(params, scurge_state, observer_state):
    N = scurge_state.shape[0]
    # scur branch: Conv(4->16,k7,p1)+ReLU+Pool(3) -> Conv(16->32,k3,p1)+ReLU+Pool(4)
    x = conv2d_relu_maxpool(scurge_state, params["scur_conv1_w"],
                            params["scur_conv1_b"], pad=1, pool=3)
    x = conv2d_relu_maxpool(x, params["scur_conv2_w"],
                            params["scur_conv2_b"], pad=1, pool=4)
    x = x.reshape(N, -1)                                # (N, 800), (C,H,W) order
    # observer branch: Conv(4->16,k8,p1)+ReLU+Pool(2) -> Conv(16->32,k3,p1)+ReLU+Pool(2)
    y = conv2d_relu_maxpool(observer_state, params["ob_conv1_w"],
                            params["ob_conv1_b"], pad=1, pool=2)
    y = conv2d_relu_maxpool(y, params["ob_conv2_w"],
                            params["ob_conv2_b"], pad=1, pool=2)
    y = y.reshape(N, -1)                                # (N, 512)
    concat = jnp.concatenate([x, y], axis=1)            # (N, 1312)
    return fc_head(concat, params["fc1_w"], params["fc1_b"],
                   params["fc2_w"], params["fc2_b"])    # (N, 1)


# --------------------------- pure-JAX reference -----------------------------

def critic_reference(params, scurge_state, observer_state,
                     gemm_dtype=jnp.float32):
    """Reference forward; gemm_dtype=bfloat16 mimics the kernel's casts."""
    hp = lax.Precision.HIGHEST

    def q(t):
        return t.astype(gemm_dtype).astype(jnp.float32)

    def conv_relu(x, w, b, pad):
        out = lax.conv_general_dilated(
            q(x), q(w), window_strides=(1, 1),
            padding=[(pad, pad), (pad, pad)],
            dimension_numbers=("NCHW", "OIHW", "NCHW"), precision=hp)
        return jnp.maximum(out + b.reshape(1, -1, 1, 1), 0.0)

    def pool(x, k):
        return lax.reduce_window(x, -jnp.inf, lax.max,
                                 (1, 1, k, k), (1, 1, k, k), "VALID")

    N = scurge_state.shape[0]
    x = pool(conv_relu(scurge_state, params["scur_conv1_w"],
                       params["scur_conv1_b"], 1), 3)
    x = pool(conv_relu(x, params["scur_conv2_w"],
                       params["scur_conv2_b"], 1), 4).reshape(N, -1)
    y = pool(conv_relu(observer_state, params["ob_conv1_w"],
                       params["ob_conv1_b"], 1), 2)
    y = pool(conv_relu(y, params["ob_conv2_w"],
                       params["ob_conv2_b"], 1), 2).reshape(N, -1)
    concat = jnp.concatenate([x, y], axis=1)
    h = jnp.tanh(jnp.matmul(q(concat), q(params["fc1_w"]).T, precision=hp)
                 + params["fc1_b"])
    return jnp.matmul(h, q(params["fc2_w"]).T, precision=hp) + params["fc2_b"]


# ---------------------------------- main ------------------------------------

if __name__ == "__main__":
    key = jax.random.PRNGKey(0)
    kp, ks, ko = jax.random.split(key, 3)
    params = init_params(kp)

    # fc1 input size (5*5*32 + 4*4*32) pins the spatial sizes: 64x64 and 21x21.
    batch = 2
    scurge_state = jax.random.normal(ks, (batch, 4, 64, 64), jnp.float32)
    observer_state = jax.random.normal(ko, (batch, 4, 21, 21), jnp.float32)

    fwd = jax.jit(critic_forward)
    value = jax.block_until_ready(fwd(params, scurge_state, observer_state))
    assert value.shape == (batch, 1), value.shape

    # Tight check against a reference that mirrors the kernel's bf16 casts.
    ref_bf16 = jax.block_until_ready(
        critic_reference(params, scurge_state, observer_state, jnp.bfloat16))
    assert jnp.allclose(value, ref_bf16, rtol=5e-3, atol=5e-3), (value, ref_bf16)

    # Loose sanity check against the full-f32 reference (bf16 GEMM drift).
    ref_f32 = jax.block_until_ready(
        critic_reference(params, scurge_state, observer_state, jnp.float32))
    assert jnp.allclose(value, ref_f32, rtol=1e-1, atol=1e-1), (value, ref_f32)

    print("KERNEL_OK")
</pallas_src>

<mosaic_0001>
module attributes {stable_mosaic.version = 11 : i64} {
  func.func @_conv_relu_pool_kernel(%arg0: i32, %arg1: memref<9x256x512xbf16, #tpu.memory_space<vmem>>, %arg2: memref<16x256xbf16, #tpu.memory_space<vmem>>, %arg3: memref<16x1xf32, #tpu.memory_space<vmem>>, %arg4: memref<16x512xbf16, #tpu.memory_space<vmem>>) attributes {dimension_semantics = [#tpu.dimension_semantics<parallel>], iteration_bounds = array<i64: 2>, scalar_prefetch = 0 : i64, scratch_operands = 0 : i64, tpu.core_type = #tpu.core_type<tc>, window_params = [{transform_indices = @transform_0, window_bounds = array<i64: 9, 256, 512>}, {pipeline_mode = #tpu.pipeline_mode<synchronous>, transform_indices = @transform_1, window_bounds = array<i64: 16, 256>}, {pipeline_mode = #tpu.pipeline_mode<synchronous>, transform_indices = @transform_2, window_bounds = array<i64: 16, 1>}, {transform_indices = @transform_3, window_bounds = array<i64: 16, 512>}]} {
    %c0 = arith.constant 0 : index
    %c0_0 = arith.constant 0 : index
    %0 = vector.load %arg2[%c0, %c0_0] : memref<16x256xbf16, #tpu.memory_space<vmem>>, vector<16x256xbf16>
    %c0_1 = arith.constant 0 : index
    %c0_2 = arith.constant 0 : index
    %c0_3 = arith.constant 0 : index
    %1 = vector.load %arg1[%c0_1, %c0_2, %c0_3] : memref<9x256x512xbf16, #tpu.memory_space<vmem>>, vector<1x256x512xbf16>
    %2 = vector.shape_cast %1 : vector<1x256x512xbf16> to vector<256x512xbf16>
    %cst = arith.constant dense<0.000000e+00> : vector<16x512xf32>
    %3 = tpu.matmul %0, %2, %cst {dimension_numbers = #tpu.dot_dimension_numbers<[1], [0], [0], [1], [0, 0, 1, 1], [], []>} : vector<16x256xbf16>, vector<256x512xbf16>, vector<16x512xf32> -> vector<16x512xf32>
    %c1 = arith.constant 1 : index
    %c0_4 = arith.constant 0 : index
    %c0_5 = arith.constant 0 : index
    %4 = vector.load %arg1[%c1, %c0_4, %c0_5] : memref<9x256x512xbf16, #tpu.memory_space<vmem>>, vector<1x256x512xbf16>
    %5 = vector.shape_cast %4 : vector<1x256x512xbf16> to vector<256x512xbf16>
    %cst_6 = arith.constant dense<0.000000e+00> : vector<16x512xf32>
    %6 = tpu.matmul %0, %5, %cst_6 {dimension_numbers = #tpu.dot_dimension_numbers<[1], [0], [0], [1], [0, 0, 1, 1], [], []>} : vector<16x256xbf16>, vector<256x512xbf16>, vector<16x512xf32> -> vector<16x512xf32>
    %7 = arith.maximumf %3, %6 : vector<16x512xf32>
    %c2 = arith.constant 2 : index
    %c0_7 = arith.constant 0 : index
    %c0_8 = arith.constant 0 : index
    %8 = vector.load %arg1[%c2, %c0_7, %c0_8] : memref<9x256x512xbf16, #tpu.memory_space<vmem>>, vector<1x256x512xbf16>
    %9 = vector.shape_cast %8 : vector<1x256x512xbf16> to vector<256x512xbf16>
    %cst_9 = arith.constant dense<0.000000e+00> : vector<16x512xf32>
    %10 = tpu.matmul %0, %9, %cst_9 {dimension_numbers = #tpu.dot_dimension_numbers<[1], [0], [0], [1], [0, 0, 1, 1], [], []>} : vector<16x256xbf16>, vector<256x512xbf16>, vector<16x512xf32> -> vector<16x512xf32>
    %11 = arith.maximumf %7, %10 : vector<16x512xf32>
    %c3 = arith.constant 3 : index
    %c0_10 = arith.constant 0 : index
    %c0_11 = arith.constant 0 : index
    %12 = vector.load %arg1[%c3, %c0_10, %c0_11] : memref<9x256x512xbf16, #tpu.memory_space<vmem>>, vector<1x256x512xbf16>
    %13 = vector.shape_cast %12 : vector<1x256x512xbf16> to vector<256x512xbf16>
    %cst_12 = arith.constant dense<0.000000e+00> : vector<16x512xf32>
    %14 = tpu.matmul %0, %13, %cst_12 {dimension_numbers = #tpu.dot_dimension_numbers<[1], [0], [0], [1], [0, 0, 1, 1], [], []>} : vector<16x256xbf16>, vector<256x512xbf16>, vector<16x512xf32> -> vector<16x512xf32>
    %15 = arith.maximumf %11, %14 : vector<16x512xf32>
    %c4 = arith.constant 4 : index
    %c0_13 = arith.constant 0 : index
    %c0_14 = arith.constant 0 : index
    %16 = vector.load %arg1[%c4, %c0_13, %c0_14] : memref<9x256x512xbf16, #tpu.memory_space<vmem>>, vector<1x256x512xbf16>
    %17 = vector.shape_cast %16 : vector<1x256x512xbf16> to vector<256x512xbf16>
    %cst_15 = arith.constant dense<0.000000e+00> : vector<16x512xf32>
    %18 = tpu.matmul %0, %17, %cst_15 {dimension_numbers = #tpu.dot_dimension_numbers<[1], [0], [0], [1], [0, 0, 1, 1], [], []>} : vector<16x256xbf16>, vector<256x512xbf16>, vector<16x512xf32> -> vector<16x512xf32>
    %19 = arith.maximumf %15, %18 : vector<16x512xf32>
    %c5 = arith.constant 5 : index
    %c0_16 = arith.constant 0 : index
    %c0_17 = arith.constant 0 : index
    %20 = vector.load %arg1[%c5, %c0_16, %c0_17] : memref<9x256x512xbf16, #tpu.memory_space<vmem>>, vector<1x256x512xbf16>
    %21 = vector.shape_cast %20 : vector<1x256x512xbf16> to vector<256x512xbf16>
    %cst_18 = arith.constant dense<0.000000e+00> : vector<16x512xf32>
    %22 = tpu.matmul %0, %21, %cst_18 {dimension_numbers = #tpu.dot_dimension_numbers<[1], [0], [0], [1], [0, 0, 1, 1], [], []>} : vector<16x256xbf16>, vector<256x512xbf16>, vector<16x512xf32> -> vector<16x512xf32>
    %23 = arith.maximumf %19, %22 : vector<16x512xf32>
    %c6 = arith.constant 6 : index
    %c0_19 = arith.constant 0 : index
    %c0_20 = arith.constant 0 : index
    %24 = vector.load %arg1[%c6, %c0_19, %c0_20] : memref<9x256x512xbf16, #tpu.memory_space<vmem>>, vector<1x256x512xbf16>
    %25 = vector.shape_cast %24 : vector<1x256x512xbf16> to vector<256x512xbf16>
    %cst_21 = arith.constant dense<0.000000e+00> : vector<16x512xf32>
    %26 = tpu.matmul %0, %25, %cst_21 {dimension_numbers = #tpu.dot_dimension_numbers<[1], [0], [0], [1], [0, 0, 1, 1], [], []>} : vector<16x256xbf16>, vector<256x512xbf16>, vector<16x512xf32> -> vector<16x512xf32>
    %27 = arith.maximumf %23, %26 : vector<16x512xf32>
    %c7 = arith.constant 7 : index
    %c0_22 = arith.constant 0 : index
    %c0_23 = arith.constant 0 : index
    %28 = vector.load %arg1[%c7, %c0_22, %c0_23] : memref<9x256x512xbf16, #tpu.memory_space<vmem>>, vector<1x256x512xbf16>
    %29 = vector.shape_cast %28 : vector<1x256x512xbf16> to vector<256x512xbf16>
    %cst_24 = arith.constant dense<0.000000e+00> : vector<16x512xf32>
    %30 = tpu.matmul %0, %29, %cst_24 {dimension_numbers = #tpu.dot_dimension_numbers<[1], [0], [0], [1], [0, 0, 1, 1], [], []>} : vector<16x256xbf16>, vector<256x512xbf16>, vector<16x512xf32> -> vector<16x512xf32>
    %31 = arith.maximumf %27, %30 : vector<16x512xf32>
    %c8 = arith.constant 8 : index
    %c0_25 = arith.constant 0 : index
    %c0_26 = arith.constant 0 : index
    %32 = vector.load %arg1[%c8, %c0_25, %c0_26] : memref<9x256x512xbf16, #tpu.memory_space<vmem>>, vector<1x256x512xbf16>
    %33 = vector.shape_cast %32 : vector<1x256x512xbf16> to vector<256x512xbf16>
    %cst_27 = arith.constant dense<0.000000e+00> : vector<16x512xf32>
    %34 = tpu.matmul %0, %33, %cst_27 {dimension_numbers = #tpu.dot_dimension_numbers<[1], [0], [0], [1], [0, 0, 1, 1], [], []>} : vector<16x256xbf16>, vector<256x512xbf16>, vector<16x512xf32> -> vector<16x512xf32>
    %35 = arith.maximumf %31, %34 : vector<16x512xf32>
    %c0_28 = arith.constant 0 : index
    %c0_29 = arith.constant 0 : index
    %36 = vector.load %arg3[%c0_28, %c0_29] : memref<16x1xf32, #tpu.memory_space<vmem>>, vector<16x1xf32>
    %37 = vector.broadcast %36 : vector<16x1xf32> to vector<16x512xf32>
    %38 = arith.addf %35, %37 : vector<16x512xf32>
    %cst_30 = arith.constant 0.000000e+00 : f32
    %39 = vector.broadcast %cst_30 : f32 to vector<16x512xf32>
    %40 = arith.maximumf %38, %39 : vector<16x512xf32>
    %41 = arith.truncf %40 : vector<16x512xf32> to vector<16x512xbf16>
    %c0_31 = arith.constant 0 : index
    %c0_32 = arith.constant 0 : index
    %42 = vector.load %arg4[%c0_31, %c0_32] : memref<16x512xbf16, #tpu.memory_space<vmem>>, vector<16x512xbf16>
    tpu.vector_store %arg4[%c0_31, %c0_32], %41 {strides = array<i32>} : memref<16x512xbf16, #tpu.memory_space<vmem>>, vector<16x512xbf16>,
    return
  }
  func.func @transform_0(%arg0: i32) -> (i32, i32, i32) {
    %c0_i32 = arith.constant 0 : i32
    %c0_i32_0 = arith.constant 0 : i32
    %c0_i32_1 = arith.constant 0 : i32
    return %c0_i32, %c0_i32_0, %arg0 : i32, i32, i32
  }
  func.func @transform_1(%arg0: i32) -> (i32, i32) {
    %c0_i32 = arith.constant 0 : i32
    %c0_i32_0 = arith.constant 0 : i32
    %c0_i32_1 = arith.constant 0 : i32
    return %c0_i32, %c0_i32_0 : i32, i32
  }
  func.func @transform_2(%arg0: i32) -> (i32, i32) {
    %c0_i32 = arith.constant 0 : i32
    %c0_i32_0 = arith.constant 0 : i32
    %c0_i32_1 = arith.constant 0 : i32
    return %c0_i32, %c0_i32_0 : i32, i32
  }
  func.func @transform_3(%arg0: i32) -> (i32, i32) {
    %c0_i32 = arith.constant 0 : i32
    %c0_i32_0 = arith.constant 0 : i32
    return %c0_i32, %arg0 : i32, i32
  }
}

module attributes {stable_mosaic.version = 11 : i64} {
  func.func @_conv_relu_pool_kernel(%arg0: i32, %arg1: memref<16x256x128xbf16, #tpu.memory_space<vmem>>, %arg2: memref<32x256xbf16, #tpu.memory_space<vmem>>, %arg3: memref<32x1xf32, #tpu.memory_space<vmem>>, %arg4: memref<32x128xbf16, #tpu.memory_space<vmem>>) attributes {dimension_semantics = [#tpu.dimension_semantics<parallel>], iteration_bounds = array<i64: 1>, scalar_prefetch = 0 : i64, scratch_operands = 0 : i64, tpu.core_type = #tpu.core_type<tc>, window_params = [{transform_indices = @transform_0, window_bounds = array<i64: 16, 256, 128>}, {pipeline_mode = #tpu.pipeline_mode<synchronous>, transform_indices = @transform_1, window_bounds = array<i64: 32, 256>}, {pipeline_mode = #tpu.pipeline_mode<synchronous>, transform_indices = @transform_2, window_bounds = array<i64: 32, 1>}, {transform_indices = @transform_3, window_bounds = array<i64: 32, 128>}]} {
    %c0 = arith.constant 0 : index
    %c0_0 = arith.constant 0 : index
    %0 = vector.load %arg2[%c0, %c0_0] : memref<32x256xbf16, #tpu.memory_space<vmem>>, vector<32x256xbf16>
    %c0_1 = arith.constant 0 : index
    %c0_2 = arith.constant 0 : index
    %c0_3 = arith.constant 0 : index
    %1 = vector.load %arg1[%c0_1, %c0_2, %c0_3] : memref<16x256x128xbf16, #tpu.memory_space<vmem>>, vector<1x256x128xbf16>
    %2 = vector.shape_cast %1 : vector<1x256x128xbf16> to vector<256x128xbf16>
    %cst = arith.constant dense<0.000000e+00> : vector<32x128xf32>
    %3 = tpu.matmul %0, %2, %cst {dimension_numbers = #tpu.dot_dimension_numbers<[1], [0], [0], [1], [0, 0, 1, 1], [], []>} : vector<32x256xbf16>, vector<256x128xbf16>, vector<32x128xf32> -> vector<32x128xf32>
    %c1 = arith.constant 1 : index
    %c0_4 = arith.constant 0 : index
    %c0_5 = arith.constant 0 : index
    %4 = vector.load %arg1[%c1, %c0_4, %c0_5] : memref<16x256x128xbf16, #tpu.memory_space<vmem>>, vector<1x256x128xbf16>
    %5 = vector.shape_cast %4 : vector<1x256x128xbf16> to vector<256x128xbf16>
    %cst_6 = arith.constant dense<0.000000e+00> : vector<32x128xf32>
    %6 = tpu.matmul %0, %5, %cst_6 {dimension_numbers = #tpu.dot_dimension_numbers<[1], [0], [0], [1], [0, 0, 1, 1], [], []>} : vector<32x256xbf16>, vector<256x128xbf16>, vector<32x128xf32> -> vector<32x128xf32>
    %7 = arith.maximumf %3, %6 : vector<32x128xf32>
    %c2 = arith.constant 2 : index
    %c0_7 = arith.constant 0 : index
    %c0_8 = arith.constant 0 : index
    %8 = vector.load %arg1[%c2, %c0_7, %c0_8] : memref<16x256x128xbf16, #tpu.memory_space<vmem>>, vector<1x256x128xbf16>
    %9 = vector.shape_cast %8 : vector<1x256x128xbf16> to vector<256x128xbf16>
    %cst_9 = arith.constant dense<0.000000e+00> : vector<32x128xf32>
    %10 = tpu.matmul %0, %9, %cst_9 {dimension_numbers = #tpu.dot_dimension_numbers<[1], [0], [0], [1], [0, 0, 1, 1], [], []>} : vector<32x256xbf16>, vector<256x128xbf16>, vector<32x128xf32> -> vector<32x128xf32>
    %11 = arith.maximumf %7, %10 : vector<32x128xf32>
    %c3 = arith.constant 3 : index
    %c0_10 = arith.constant 0 : index
    %c0_11 = arith.constant 0 : index
    %12 = vector.load %arg1[%c3, %c0_10, %c0_11] : memref<16x256x128xbf16, #tpu.memory_space<vmem>>, vector<1x256x128xbf16>
    %13 = vector.shape_cast %12 : vector<1x256x128xbf16> to vector<256x128xbf16>
    %cst_12 = arith.constant dense<0.000000e+00> : vector<32x128xf32>
    %14 = tpu.matmul %0, %13, %cst_12 {dimension_numbers = #tpu.dot_dimension_numbers<[1], [0], [0], [1], [0, 0, 1, 1], [], []>} : vector<32x256xbf16>, vector<256x128xbf16>, vector<32x128xf32> -> vector<32x128xf32>
    %15 = arith.maximumf %11, %14 : vector<32x128xf32>
    %c4 = arith.constant 4 : index
    %c0_13 = arith.constant 0 : index
    %c0_14 = arith.constant 0 : index
    %16 = vector.load %arg1[%c4, %c0_13, %c0_14] : memref<16x256x128xbf16, #tpu.memory_space<vmem>>, vector<1x256x128xbf16>
    %17 = vector.shape_cast %16 : vector<1x256x128xbf16> to vector<256x128xbf16>
    %cst_15 = arith.constant dense<0.000000e+00> : vector<32x128xf32>
    %18 = tpu.matmul %0, %17, %cst_15 {dimension_numbers = #tpu.dot_dimension_numbers<[1], [0], [0], [1], [0, 0, 1, 1], [], []>} : vector<32x256xbf16>, vector<256x128xbf16>, vector<32x128xf32> -> vector<32x128xf32>
    %19 = arith.maximumf %15, %18 : vector<32x128xf32>
    %c5 = arith.constant 5 : index
    %c0_16 = arith.constant 0 : index
    %c0_17 = arith.constant 0 : index
    %20 = vector.load %arg1[%c5, %c0_16, %c0_17] : memref<16x256x128xbf16, #tpu.memory_space<vmem>>, vector<1x256x128xbf16>
    %21 = vector.shape_cast %20 : vector<1x256x128xbf16> to vector<256x128xbf16>
    %cst_18 = arith.constant dense<0.000000e+00> : vector<32x128xf32>
    %22 = tpu.matmul %0, %21, %cst_18 {dimension_numbers = #tpu.dot_dimension_numbers<[1], [0], [0], [1], [0, 0, 1, 1], [], []>} : vector<32x256xbf16>, vector<256x128xbf16>, vector<32x128xf32> -> vector<32x128xf32>
    %23 = arith.maximumf %19, %22 : vector<32x128xf32>
    %c6 = arith.constant 6 : index
    %c0_19 = arith.constant 0 : index
    %c0_20 = arith.constant 0 : index
    %24 = vector.load %arg1[%c6, %c0_19, %c0_20] : memref<16x256x128xbf16, #tpu.memory_space<vmem>>, vector<1x256x128xbf16>
    %25 = vector.shape_cast %24 : vector<1x256x128xbf16> to vector<256x128xbf16>
    %cst_21 = arith.constant dense<0.000000e+00> : vector<32x128xf32>
    %26 = tpu.matmul %0, %25, %cst_21 {dimension_numbers = #tpu.dot_dimension_numbers<[1], [0], [0], [1], [0, 0, 1, 1], [], []>} : vector<32x256xbf16>, vector<256x128xbf16>, vector<32x128xf32> -> vector<32x128xf32>
    %27 = arith.maximumf %23, %26 : vector<32x128xf32>
    %c7 = arith.constant 7 : index
    %c0_22 = arith.constant 0 : index
    %c0_23 = arith.constant 0 : index
    %28 = vector.load %arg1[%c7, %c0_22, %c0_23] : memref<16x256x128xbf16, #tpu.memory_space<vmem>>, vector<1x256x128xbf16>
    %29 = vector.shape_cast %28 : vector<1x256x128xbf16> to vector<256x128xbf16>
    %cst_24 = arith.constant dense<0.000000e+00> : vector<32x128xf32>
    %30 = tpu.matmul %0, %29, %cst_24 {dimension_numbers = #tpu.dot_dimension_numbers<[1], [0], [0], [1], [0, 0, 1, 1], [], []>} : vector<32x256xbf16>, vector<256x128xbf16>, vector<32x128xf32> -> vector<32x128xf32>
    %31 = arith.maximumf %27, %30 : vector<32x128xf32>
    %c8 = arith.constant 8 : index
    %c0_25 = arith.constant 0 : index
    %c0_26 = arith.constant 0 : index
    %32 = vector.load %arg1[%c8, %c0_25, %c0_26] : memref<16x256x128xbf16, #tpu.memory_space<vmem>>, vector<1x256x128xbf16>
    %33 = vector.shape_cast %32 : vector<1x256x128xbf16> to vector<256x128xbf16>
    %cst_27 = arith.constant dense<0.000000e+00> : vector<32x128xf32>
    %34 = tpu.matmul %0, %33, %cst_27 {dimension_numbers = #tpu.dot_dimension_numbers<[1], [0], [0], [1], [0, 0, 1, 1], [], []>} : vector<32x256xbf16>, vector<256x128xbf16>, vector<32x128xf32> -> vector<32x128xf32>
    %35 = arith.maximumf %31, %34 : vector<32x128xf32>
    %c9 = arith.constant 9 : index
    %c0_28 = arith.constant 0 : index
    %c0_29 = arith.constant 0 : index
    %36 = vector.load %arg1[%c9, %c0_28, %c0_29] : memref<16x256x128xbf16, #tpu.memory_space<vmem>>, vector<1x256x128xbf16>
    %37 = vector.shape_cast %36 : vector<1x256x128xbf16> to vector<256x128xbf16>
    %cst_30 = arith.constant dense<0.000000e+00> : vector<32x128xf32>
    %38 = tpu.matmul %0, %37, %cst_30 {dimension_numbers = #tpu.dot_dimension_numbers<[1], [0], [0], [1], [0, 0, 1, 1], [], []>} : vector<32x256xbf16>, vector<256x128xbf16>, vector<32x128xf32> -> vector<32x128xf32>
    %39 = arith.maximumf %35, %38 : vector<32x128xf32>
    %c10 = arith.constant 10 : index
    %c0_31 = arith.constant 0 : index
    %c0_32 = arith.constant 0 : index
    %40 = vector.load %arg1[%c10, %c0_31, %c0_32] : memref<16x256x128xbf16, #tpu.memory_space<vmem>>, vector<1x256x128xbf16>
    %41 = vector.shape_cast %40 : vector<1x256x128xbf16> to vector<256x128xbf16>
    %cst_33 = arith.constant dense<0.000000e+00> : vector<32x128xf32>
    %42 = tpu.matmul %0, %41, %cst_33 {dimension_numbers = #tpu.dot_dimension_numbers<[1], [0], [0], [1], [0, 0, 1, 1], [], []>} : vector<32x256xbf16>, vector<256x128xbf16>, vector<32x128xf32> -> vector<32x128xf32>
    %43 = arith.maximumf %39, %42 : vector<32x128xf32>
    %c11 = arith.constant 11 : index
    %c0_34 = arith.constant 0 : index
    %c0_35 = arith.constant 0 : index
    %44 = vector.load %arg1[%c11, %c0_34, %c0_35] : memref<16x256x128xbf16, #tpu.memory_space<vmem>>, vector<1x256x128xbf16>
    %45 = vector.shape_cast %44 : vector<1x256x128xbf16> to vector<256x128xbf16>
    %cst_36 = arith.constant dense<0.000000e+00> : vector<32x128xf32>
    %46 = tpu.matmul %0, %45, %cst_36 {dimension_numbers = #tpu.dot_dimension_numbers<[1], [0], [0], [1], [0, 0, 1, 1], [], []>} : vector<32x256xbf16>, vector<256x128xbf16>, vector<32x128xf32> -> vector<32x128xf32>
    %47 = arith.maximumf %43, %46 : vector<32x128xf32>
    %c12 = arith.constant 12 : index
    %c0_37 = arith.constant 0 : index
    %c0_38 = arith.constant 0 : index
    %48 = vector.load %arg1[%c12, %c0_37, %c0_38] : memref<16x256x128xbf16, #tpu.memory_space<vmem>>, vector<1x256x128xbf16>
    %49 = vector.shape_cast %48 : vector<1x256x128xbf16> to vector<256x128xbf16>
    %cst_39 = arith.constant dense<0.000000e+00> : vector<32x128xf32>
    %50 = tpu.matmul %0, %49, %cst_39 {dimension_numbers = #tpu.dot_dimension_numbers<[1], [0], [0], [1], [0, 0, 1, 1], [], []>} : vector<32x256xbf16>, vector<256x128xbf16>, vector<32x128xf32> -> vector<32x128xf32>
    %51 = arith.maximumf %47, %50 : vector<32x128xf32>
    %c13 = arith.constant 13 : index
    %c0_40 = arith.constant 0 : index
    %c0_41 = arith.constant 0 : index
    %52 = vector.load %arg1[%c13, %c0_40, %c0_41] : memref<16x256x128xbf16, #tpu.memory_space<vmem>>, vector<1x256x128xbf16>
    %53 = vector.shape_cast %52 : vector<1x256x128xbf16> to vector<256x128xbf16>
    %cst_42 = arith.constant dense<0.000000e+00> : vector<32x128xf32>
    %54 = tpu.matmul %0, %53, %cst_42 {dimension_numbers = #tpu.dot_dimension_numbers<[1], [0], [0], [1], [0, 0, 1, 1], [], []>} : vector<32x256xbf16>, vector<256x128xbf16>, vector<32x128xf32> -> vector<32x128xf32>
    %55 = arith.maximumf %51, %54 : vector<32x128xf32>
    %c14 = arith.constant 14 : index
    %c0_43 = arith.constant 0 : index
    %c0_44 = arith.constant 0 : index
    %56 = vector.load %arg1[%c14, %c0_43, %c0_44] : memref<16x256x128xbf16, #tpu.memory_space<vmem>>, vector<1x256x128xbf16>
    %57 = vector.shape_cast %56 : vector<1x256x128xbf16> to vector<256x128xbf16>
    %cst_45 = arith.constant dense<0.000000e+00> : vector<32x128xf32>
    %58 = tpu.matmul %0, %57, %cst_45 {dimension_numbers = #tpu.dot_dimension_numbers<[1], [0], [0], [1], [0, 0, 1, 1], [], []>} : vector<32x256xbf16>, vector<256x128xbf16>, vector<32x128xf32> -> vector<32x128xf32>
    %59 = arith.maximumf %55, %58 : vector<32x128xf32>
    %c15 = arith.constant 15 : index
    %c0_46 = arith.constant 0 : index
    %c0_47 = arith.constant 0 : index
    %60 = vector.load %arg1[%c15, %c0_46, %c0_47] : memref<16x256x128xbf16, #tpu.memory_space<vmem>>, vector<1x256x128xbf16>
    %61 = vector.shape_cast %60 : vector<1x256x128xbf16> to vector<256x128xbf16>
    %cst_48 = arith.constant dense<0.000000e+00> : vector<32x128xf32>
    %62 = tpu.matmul %0, %61, %cst_48 {dimension_numbers = #tpu.dot_dimension_numbers<[1], [0], [0], [1], [0, 0, 1, 1], [], []>} : vector<32x256xbf16>, vector<256x128xbf16>, vector<32x128xf32> -> vector<32x128xf32>
    %63 = arith.maximumf %59, %62 : vector<32x128xf32>
    %c0_49 = arith.constant 0 : index
    %c0_50 = arith.constant 0 : index
    %64 = vector.load %arg3[%c0_49, %c0_50] : memref<32x1xf32, #tpu.memory_space<vmem>>, vector<32x1xf32>
    %65 = vector.broadcast %64 : vector<32x1xf32> to vector<32x128xf32>
    %66 = arith.addf %63, %65 : vector<32x128xf32>
    %cst_51 = arith.constant 0.000000e+00 : f32
    %67 = vector.broadcast %cst_51 : f32 to vector<32x128xf32>
    %68 = arith.maximumf %66, %67 : vector<32x128xf32>
    %69 = arith.truncf %68 : vector<32x128xf32> to vector<32x128xbf16>
    %c0_52 = arith.constant 0 : index
    %c0_53 = arith.constant 0 : index
    %70 = vector.load %arg4[%c0_52, %c0_53] : memref<32x128xbf16, #tpu.memory_space<vmem>>, vector<32x128xbf16>
    tpu.vector_store %arg4[%c0_52, %c0_53], %69 {strides = array<i32>} : memref<32x128xbf16, #tpu.memory_space<vmem>>, vector<32x128xbf16>,
    return
  }
  func.func @transform_0(%arg0: i32) -> (i32, i32, i32) {
    %c0_i32 = arith.constant 0 : i32
    %c0_i32_0 = arith.constant 0 : i32
    %c0_i32_1 = arith.constant 0 : i32
    return %c0_i32, %c0_i32_0, %arg0 : i32, i32, i32
  }
  func.func @transform_1(%arg0: i32) -> (i32, i32) {
    %c0_i32 = arith.constant 0 : i32
    %c0_i32_0 = arith.constant 0 : i32
    %c0_i32_1 = arith.constant 0 : i32
    return %c0_i32, %c0_i32_0 : i32, i32
  }
  func.func @transform_2(%arg0: i32) -> (i32, i32) {
    %c0_i32 = arith.constant 0 : i32
    %c0_i32_0 = arith.constant 0 : i32
    %c0_i32_1 = arith.constant 0 : i32
    return %c0_i32, %c0_i32_0 : i32, i32
  }
  func.func @transform_3(%arg0: i32) -> (i32, i32) {
    %c0_i32 = arith.constant 0 : i32
    %c0_i32_0 = arith.constant 0 : i32
    return %c0_i32, %arg0 : i32, i32
  }
}

module attributes {stable_mosaic.version = 11 : i64} {
  func.func @_conv_relu_pool_kernel(%arg0: i32, %arg1: memref<4x256x128xbf16, #tpu.memory_space<vmem>>, %arg2: memref<16x256xbf16, #tpu.memory_space<vmem>>, %arg3: memref<16x1xf32, #tpu.memory_space<vmem>>, %arg4: memref<16x128xbf16, #tpu.memory_space<vmem>>) attributes {dimension_semantics = [#tpu.dimension_semantics<parallel>], iteration_bounds = array<i64: 1>, scalar_prefetch = 0 : i64, scratch_operands = 0 : i64, tpu.core_type = #tpu.core_type<tc>, window_params = [{transform_indices = @transform_0, window_bounds = array<i64: 4, 256, 128>}, {pipeline_mode = #tpu.pipeline_mode<synchronous>, transform_indices = @transform_1, window_bounds = array<i64: 16, 256>}, {pipeline_mode = #tpu.pipeline_mode<synchronous>, transform_indices = @transform_2, window_bounds = array<i64: 16, 1>}, {transform_indices = @transform_3, window_bounds = array<i64: 16, 128>}]} {
    %c0 = arith.constant 0 : index
    %c0_0 = arith.constant 0 : index
    %0 = vector.load %arg2[%c0, %c0_0] : memref<16x256xbf16, #tpu.memory_space<vmem>>, vector<16x256xbf16>
    %c0_1 = arith.constant 0 : index
    %c0_2 = arith.constant 0 : index
    %c0_3 = arith.constant 0 : index
    %1 = vector.load %arg1[%c0_1, %c0_2, %c0_3] : memref<4x256x128xbf16, #tpu.memory_space<vmem>>, vector<1x256x128xbf16>
    %2 = vector.shape_cast %1 : vector<1x256x128xbf16> to vector<256x128xbf16>
    %cst = arith.constant dense<0.000000e+00> : vector<16x128xf32>
    %3 = tpu.matmul %0, %2, %cst {dimension_numbers = #tpu.dot_dimension_numbers<[1], [0], [0], [1], [0, 0, 1, 1], [], []>} : vector<16x256xbf16>, vector<256x128xbf16>, vector<16x128xf32> -> vector<16x128xf32>
    %c1 = arith.constant 1 : index
    %c0_4 = arith.constant 0 : index
    %c0_5 = arith.constant 0 : index
    %4 = vector.load %arg1[%c1, %c0_4, %c0_5] : memref<4x256x128xbf16, #tpu.memory_space<vmem>>, vector<1x256x128xbf16>
    %5 = vector.shape_cast %4 : vector<1x256x128xbf16> to vector<256x128xbf16>
    %cst_6 = arith.constant dense<0.000000e+00> : vector<16x128xf32>
    %6 = tpu.matmul %0, %5, %cst_6 {dimension_numbers = #tpu.dot_dimension_numbers<[1], [0], [0], [1], [0, 0, 1, 1], [], []>} : vector<16x256xbf16>, vector<256x128xbf16>, vector<16x128xf32> -> vector<16x128xf32>
    %7 = arith.maximumf %3, %6 : vector<16x128xf32>
    %c2 = arith.constant 2 : index
    %c0_7 = arith.constant 0 : index
    %c0_8 = arith.constant 0 : index
    %8 = vector.load %arg1[%c2, %c0_7, %c0_8] : memref<4x256x128xbf16, #tpu.memory_space<vmem>>, vector<1x256x128xbf16>
    %9 = vector.shape_cast %8 : vector<1x256x128xbf16> to vector<256x128xbf16>
    %cst_9 = arith.constant dense<0.000000e+00> : vector<16x128xf32>
    %10 = tpu.matmul %0, %9, %cst_9 {dimension_numbers = #tpu.dot_dimension_numbers<[1], [0], [0], [1], [0, 0, 1, 1], [], []>} : vector<16x256xbf16>, vector<256x128xbf16>, vector<16x128xf32> -> vector<16x128xf32>
    %11 = arith.maximumf %7, %10 : vector<16x128xf32>
    %c3 = arith.constant 3 : index
    %c0_10 = arith.constant 0 : index
    %c0_11 = arith.constant 0 : index
    %12 = vector.load %arg1[%c3, %c0_10, %c0_11] : memref<4x256x128xbf16, #tpu.memory_space<vmem>>, vector<1x256x128xbf16>
    %13 = vector.shape_cast %12 : vector<1x256x128xbf16> to vector<256x128xbf16>
    %cst_12 = arith.constant dense<0.000000e+00> : vector<16x128xf32>
    %14 = tpu.matmul %0, %13, %cst_12 {dimension_numbers = #tpu.dot_dimension_numbers<[1], [0], [0], [1], [0, 0, 1, 1], [], []>} : vector<16x256xbf16>, vector<256x128xbf16>, vector<16x128xf32> -> vector<16x128xf32>
    %15 = arith.maximumf %11, %14 : vector<16x128xf32>
    %c0_13 = arith.constant 0 : index
    %c0_14 = arith.constant 0 : index
    %16 = vector.load %arg3[%c0_13, %c0_14] : memref<16x1xf32, #tpu.memory_space<vmem>>, vector<16x1xf32>
    %17 = vector.broadcast %16 : vector<16x1xf32> to vector<16x128xf32>
    %18 = arith.addf %15, %17 : vector<16x128xf32>
    %cst_15 = arith.constant 0.000000e+00 : f32
    %19 = vector.broadcast %cst_15 : f32 to vector<16x128xf32>
    %20 = arith.maximumf %18, %19 : vector<16x128xf32>
    %21 = arith.truncf %20 : vector<16x128xf32> to vector<16x128xbf16>
    %c0_16 = arith.constant 0 : index
    %c0_17 = arith.constant 0 : index
    %22 = vector.load %arg4[%c0_16, %c0_17] : memref<16x128xbf16, #tpu.memory_space<vmem>>, vector<16x128xbf16>
    tpu.vector_store %arg4[%c0_16, %c0_17], %21 {strides = array<i32>} : memref<16x128xbf16, #tpu.memory_space<vmem>>, vector<16x128xbf16>,
    return
  }
  func.func @transform_0(%arg0: i32) -> (i32, i32, i32) {
    %c0_i32 = arith.constant 0 : i32
    %c0_i32_0 = arith.constant 0 : i32
    %c0_i32_1 = arith.constant 0 : i32
    return %c0_i32, %c0_i32_0, %arg0 : i32, i32, i32
  }
  func.func @transform_1(%arg0: i32) -> (i32, i32) {
    %c0_i32 = arith.constant 0 : i32
    %c0_i32_0 = arith.constant 0 : i32
    %c0_i32_1 = arith.constant 0 : i32
    return %c0_i32, %c0_i32_0 : i32, i32
  }
  func.func @transform_2(%arg0: i32) -> (i32, i32) {
    %c0_i32 = arith.constant 0 : i32
    %c0_i32_0 = arith.constant 0 : i32
    %c0_i32_1 = arith.constant 0 : i32
    return %c0_i32, %c0_i32_0 : i32, i32
  }
  func.func @transform_3(%arg0: i32) -> (i32, i32) {
    %c0_i32 = arith.constant 0 : i32
    %c0_i32_0 = arith.constant 0 : i32
    return %c0_i32, %arg0 : i32, i32
  }
}

module attributes {stable_mosaic.version = 11 : i64} {
  func.func @_conv_relu_pool_kernel(%arg0: i32, %arg1: memref<4x256x128xbf16, #tpu.memory_space<vmem>>, %arg2: memref<32x256xbf16, #tpu.memory_space<vmem>>, %arg3: memref<32x1xf32, #tpu.memory_space<vmem>>, %arg4: memref<32x128xbf16, #tpu.memory_space<vmem>>) attributes {dimension_semantics = [#tpu.dimension_semantics<parallel>], iteration_bounds = array<i64: 1>, scalar_prefetch = 0 : i64, scratch_operands = 0 : i64, tpu.core_type = #tpu.core_type<tc>, window_params = [{transform_indices = @transform_0, window_bounds = array<i64: 4, 256, 128>}, {pipeline_mode = #tpu.pipeline_mode<synchronous>, transform_indices = @transform_1, window_bounds = array<i64: 32, 256>}, {pipeline_mode = #tpu.pipeline_mode<synchronous>, transform_indices = @transform_2, window_bounds = array<i64: 32, 1>}, {transform_indices = @transform_3, window_bounds = array<i64: 32, 128>}]} {
    %c0 = arith.constant 0 : index
    %c0_0 = arith.constant 0 : index
    %0 = vector.load %arg2[%c0, %c0_0] : memref<32x256xbf16, #tpu.memory_space<vmem>>, vector<32x256xbf16>
    %c0_1 = arith.constant 0 : index
    %c0_2 = arith.constant 0 : index
    %c0_3 = arith.constant 0 : index
    %1 = vector.load %arg1[%c0_1, %c0_2, %c0_3] : memref<4x256x128xbf16, #tpu.memory_space<vmem>>, vector<1x256x128xbf16>
    %2 = vector.shape_cast %1 : vector<1x256x128xbf16> to vector<256x128xbf16>
    %cst = arith.constant dense<0.000000e+00> : vector<32x128xf32>
    %3 = tpu.matmul %0, %2, %cst {dimension_numbers = #tpu.dot_dimension_numbers<[1], [0], [0], [1], [0, 0, 1, 1], [], []>} : vector<32x256xbf16>, vector<256x128xbf16>, vector<32x128xf32> -> vector<32x128xf32>
    %c1 = arith.constant 1 : index
    %c0_4 = arith.constant 0 : index
    %c0_5 = arith.constant 0 : index
    %4 = vector.load %arg1[%c1, %c0_4, %c0_5] : memref<4x256x128xbf16, #tpu.memory_space<vmem>>, vector<1x256x128xbf16>
    %5 = vector.shape_cast %4 : vector<1x256x128xbf16> to vector<256x128xbf16>
    %cst_6 = arith.constant dense<0.000000e+00> : vector<32x128xf32>
    %6 = tpu.matmul %0, %5, %cst_6 {dimension_numbers = #tpu.dot_dimension_numbers<[1], [0], [0], [1], [0, 0, 1, 1], [], []>} : vector<32x256xbf16>, vector<256x128xbf16>, vector<32x128xf32> -> vector<32x128xf32>
    %7 = arith.maximumf %3, %6 : vector<32x128xf32>
    %c2 = arith.constant 2 : index
    %c0_7 = arith.constant 0 : index
    %c0_8 = arith.constant 0 : index
    %8 = vector.load %arg1[%c2, %c0_7, %c0_8] : memref<4x256x128xbf16, #tpu.memory_space<vmem>>, vector<1x256x128xbf16>
    %9 = vector.shape_cast %8 : vector<1x256x128xbf16> to vector<256x128xbf16>
    %cst_9 = arith.constant dense<0.000000e+00> : vector<32x128xf32>
    %10 = tpu.matmul %0, %9, %cst_9 {dimension_numbers = #tpu.dot_dimension_numbers<[1], [0], [0], [1], [0, 0, 1, 1], [], []>} : vector<32x256xbf16>, vector<256x128xbf16>, vector<32x128xf32> -> vector<32x128xf32>
    %11 = arith.maximumf %7, %10 : vector<32x128xf32>
    %c3 = arith.constant 3 : index
    %c0_10 = arith.constant 0 : index
    %c0_11 = arith.constant 0 : index
    %12 = vector.load %arg1[%c3, %c0_10, %c0_11] : memref<4x256x128xbf16, #tpu.memory_space<vmem>>, vector<1x256x128xbf16>
    %13 = vector.shape_cast %12 : vector<1x256x128xbf16> to vector<256x128xbf16>
    %cst_12 = arith.constant dense<0.000000e+00> : vector<32x128xf32>
    %14 = tpu.matmul %0, %13, %cst_12 {dimension_numbers = #tpu.dot_dimension_numbers<[1], [0], [0], [1], [0, 0, 1, 1], [], []>} : vector<32x256xbf16>, vector<256x128xbf16>, vector<32x128xf32> -> vector<32x128xf32>
    %15 = arith.maximumf %11, %14 : vector<32x128xf32>
    %c0_13 = arith.constant 0 : index
    %c0_14 = arith.constant 0 : index
    %16 = vector.load %arg3[%c0_13, %c0_14] : memref<32x1xf32, #tpu.memory_space<vmem>>, vector<32x1xf32>
    %17 = vector.broadcast %16 : vector<32x1xf32> to vector<32x128xf32>
    %18 = arith.addf %15, %17 : vector<32x128xf32>
    %cst_15 = arith.constant 0.000000e+00 : f32
    %19 = vector.broadcast %cst_15 : f32 to vector<32x128xf32>
    %20 = arith.maximumf %18, %19 : vector<32x128xf32>
    %21 = arith.truncf %20 : vector<32x128xf32> to vector<32x128xbf16>
    %c0_16 = arith.constant 0 : index
    %c0_17 = arith.constant 0 : index
    %22 = vector.load %arg4[%c0_16, %c0_17] : memref<32x128xbf16, #tpu.memory_space<vmem>>, vector<32x128xbf16>
    tpu.vector_store %arg4[%c0_16, %c0_17], %21 {strides = array<i32>} : memref<32x128xbf16, #tpu.memory_space<vmem>>, vector<32x128xbf16>,
    return
  }
  func.func @transform_0(%arg0: i32) -> (i32, i32, i32) {
    %c0_i32 = arith.constant 0 : i32
    %c0_i32_0 = arith.constant 0 : i32
    %c0_i32_1 = arith.constant 0 : i32
    return %c0_i32, %c0_i32_0, %arg0 : i32, i32, i32
  }
  func.func @transform_1(%arg0: i32) -> (i32, i32) {
    %c0_i32 = arith.constant 0 : i32
    %c0_i32_0 = arith.constant 0 : i32
    %c0_i32_1 = arith.constant 0 : i32
    return %c0_i32, %c0_i32_0 : i32, i32
  }
  func.func @transform_2(%arg0: i32) -> (i32, i32) {
    %c0_i32 = arith.constant 0 : i32
    %c0_i32_0 = arith.constant 0 : i32
    %c0_i32_1 = arith.constant 0 : i32
    return %c0_i32, %c0_i32_0 : i32, i32
  }
  func.func @transform_3(%arg0: i32) -> (i32, i32) {
    %c0_i32 = arith.constant 0 : i32
    %c0_i32_0 = arith.constant 0 : i32
    return %c0_i32, %arg0 : i32, i32
  }
}

module attributes {stable_mosaic.version = 11 : i64} {
  func.func @_fc_head_kernel(%arg0: memref<2x1408xbf16, #tpu.memory_space<vmem>>, %arg1: memref<1408x512xbf16, #tpu.memory_space<vmem>>, %arg2: memref<1x512xf32, #tpu.memory_space<vmem>>, %arg3: memref<1x512xbf16, #tpu.memory_space<vmem>>, %arg4: memref<1x1xf32, #tpu.memory_space<vmem>>, %arg5: memref<2x1xf32, #tpu.memory_space<vmem>>) attributes {dimension_semantics = [], scalar_prefetch = 0 : i64, scratch_operands = 0 : i64, tpu.core_type = #tpu.core_type<tc>} {
    %c0 = arith.constant 0 : index
    %c0_0 = arith.constant 0 : index
    %0 = vector.load %arg0[%c0, %c0_0] : memref<2x1408xbf16, #tpu.memory_space<vmem>>, vector<2x1408xbf16>
    %c0_1 = arith.constant 0 : index
    %c0_2 = arith.constant 0 : index
    %1 = vector.load %arg1[%c0_1, %c0_2] : memref<1408x512xbf16, #tpu.memory_space<vmem>>, vector<1408x512xbf16>
    %cst = arith.constant dense<0.000000e+00> : vector<2x512xf32>
    %2 = tpu.matmul %0, %1, %cst {dimension_numbers = #tpu.dot_dimension_numbers<[1], [0], [0], [1], [0, 0, 1, 1], [], []>} : vector<2x1408xbf16>, vector<1408x512xbf16>, vector<2x512xf32> -> vector<2x512xf32>
    %c0_3 = arith.constant 0 : index
    %c0_4 = arith.constant 0 : index
    %3 = vector.load %arg2[%c0_3, %c0_4] : memref<1x512xf32, #tpu.memory_space<vmem>>, vector<1x512xf32>
    %4 = vector.broadcast %3 : vector<1x512xf32> to vector<2x512xf32>
    %5 = arith.addf %2, %4 : vector<2x512xf32>
    %6 = math.tanh %5 : vector<2x512xf32>
    %c0_5 = arith.constant 0 : index
    %c0_6 = arith.constant 0 : index
    %7 = vector.load %arg3[%c0_5, %c0_6] : memref<1x512xbf16, #tpu.memory_space<vmem>>, vector<1x512xbf16>
    %8 = arith.extf %7 : vector<1x512xbf16> to vector<1x512xf32>
    %9 = vector.broadcast %8 : vector<1x512xf32> to vector<2x512xf32>
    %10 = arith.mulf %6, %9 : vector<2x512xf32>
    %cst_7 = arith.constant dense<0.000000e+00> : vector<2xf32>
    %11 = vector.multi_reduction <add>, %10, %cst_7 [1] : vector<2x512xf32> to vector<2xf32>
    %12 = vector.shape_cast %11 : vector<2xf32> to vector<2x1xf32>
    %c0_8 = arith.constant 0 : index
    %c0_9 = arith.constant 0 : index
    %13 = vector.load %arg4[%c0_8, %c0_9] : memref<1x1xf32, #tpu.memory_space<vmem>>, vector<1x1xf32>
    %14 = vector.broadcast %13 : vector<1x1xf32> to vector<2x1xf32>
    %15 = arith.addf %12, %14 : vector<2x1xf32>
    %c0_10 = arith.constant 0 : index
    %c0_11 = arith.constant 0 : index
    %16 = vector.load %arg5[%c0_10, %c0_11] : memref<2x1xf32, #tpu.memory_space<vmem>>, vector<2x1xf32>
    tpu.vector_store %arg5[%c0_10, %c0_11], %15 {strides = array<i32>} : memref<2x1xf32, #tpu.memory_space<vmem>>, vector<2x1xf32>,
    return
  }
}

</mosaic_0001>

<llo_original>
// kernel: critic_forward.5
$region0: #{critic_forward.5}
  #allocation0 [shape = 'u32[]', space=smem, size = 0x4, offset = 0x4, fixed_abs, tag = 'smem constant byte address 0x4 - core index']
  #allocation1 [shape = 'u32[144,128]{1,0:T(1,128)}', space=vmem, size = 0x12000, scoped, tag = 'internal scratch']
  %s0 = inlined_call_operand.vmem [shape: bf16[9,256,1024], index: 0, kind: input, shape index: {}]
  %s1 = inlined_call_operand.vmem [shape: bf16[16,256], index: 1, kind: input, shape index: {}]
  %s2 = inlined_call_operand.vmem [shape: f32[16,1], index: 2, kind: input, shape index: {}]
  %s3 = inlined_call_operand.vmem [shape: bf16[16,1024], index: 3, kind: output, shape index: {}]
  %s4 = sld [smem:[#allocation0]]
  $region87: #{critic_forward.5} parent=0
    _
  %s6 = ssub.s32 1, %s4
  %s7 = scalar_select 0, %s6, %s4
  $region1: #{critic_forward.5} parent=0
    #allocation2 [shape = 'u8[4718592]{0}', space=vmem, size = 0x480000, scoped, tag = 'input window, operand 0']
    #allocation3 [shape = 'u8[32768]{0}', space=vmem, size = 0x8000, scoped, tag = 'output window, operand 0']
    loop: start=0, step=1, limit=4
    $region2: #{critic_forward.5} parent=1 // loop_pre_header
      _
    $region3: #{critic_forward.5} parent=1 // loop_header
      %s9 = sphi 0, %s13
      %p10 = scmp.ge.s32.totalorder %s9, 4
      %s19 = sphi 0, %s21
      %s22 = sphi 0, %s19
      %s23 = sphi 0, %s22
      %s39 = sphi 0, %s23
      %s43 = sphi 0, %s43
      %s45 = sphi 0, %s43
      %s46 = sphi 0, %s45
      %s60 = sphi 0, %s46
      %s64 = sphi 0, %s64
      %s66 = sphi 0, %s64
      %s67 = sphi 0, %s66
      %s81 = sphi 0, %s67
      %s87 = sphi 0, %s89
      %s90 = sphi 0, %s87
      %s91 = sphi 0, %s90
      %s107 = sphi 0, %s91
    $region4: #{critic_forward.5} parent=1 // loop_header_branch
      %12 = sbr.rel (%p10) target = $region8
    $region5: #{critic_forward.5} parent=1 // loop_body
      %s14 = ssub.s32 %s9, 1
      %s15 = ssub.s32 %s9, 2
      %s16 = sadd.s32 %s9, 1
      %s17 = ssub.s32 %s9, %s16
      %p18 = scmp.eq.s32.totalorder %s17, 0
      %s20 = sadd.s32 %s19, 1
      %s21 = scalar_select %p18, %s19, %s20
      %p24 = pneg %p18
      %p25 = scmp.eq.s32.totalorder %s9, 1
      %p26 = por %p24, %p25
      %p27 = scmp.ne.s32.totalorder %s19, %s22
      %p28 = scmp.eq.s32.totalorder %s9, 0
      %p29 = por %p27, %p28
      %p30 = scmp.ne.s32.totalorder %s19, %s22
      %p31 = scmp.eq.s32.totalorder %s14, 1
      %p32 = por %p30, %p31
      %p33 = scmp.ne.s32.totalorder %s22, %s23
      %p34 = scmp.eq.s32.totalorder %s14, 0
      %p35 = por %p33, %p34
      %p36 = scmp.ne.s32.totalorder %s22, %s23
      %p37 = scmp.eq.s32.totalorder %s15, 1
      %p38 = por %p36, %p37
      %p40 = scmp.ne.s32.totalorder %s23, %s39
      %p41 = scmp.eq.s32.totalorder %s15, 0
      %p42 = por %p40, %p41
      %s44 = sadd.s32 %s43, 1
      %p47 = scmp.eq.s32.totalorder %s9, 1
      %p48 = scmp.ne.s32.totalorder %s43, %s45
      %p49 = scmp.eq.s32.totalorder %s9, 0
      %p50 = por %p48, %p49
      %p51 = scmp.ne.s32.totalorder %s43, %s45
      %p52 = scmp.eq.s32.totalorder %s14, 1
      %p53 = por %p51, %p52
      %p54 = scmp.ne.s32.totalorder %s45, %s46
      %p55 = scmp.eq.s32.totalorder %s14, 0
      %p56 = por %p54, %p55
      %p57 = scmp.ne.s32.totalorder %s45, %s46
      %p58 = scmp.eq.s32.totalorder %s15, 1
      %p59 = por %p57, %p58
      %p61 = scmp.ne.s32.totalorder %s46, %s60
      %p62 = scmp.eq.s32.totalorder %s15, 0
      %p63 = por %p61, %p62
      %s65 = sadd.s32 %s64, 1
      %p68 = scmp.eq.s32.totalorder %s9, 1
      %p69 = scmp.ne.s32.totalorder %s64, %s66
      %p70 = scmp.eq.s32.totalorder %s9, 0
      %p71 = por %p69, %p70
      %p72 = scmp.ne.s32.totalorder %s64, %s66
      %p73 = scmp.eq.s32.totalorder %s14, 1
      %p74 = por %p72, %p73
      %p75 = scmp.ne.s32.totalorder %s66, %s67
      %p76 = scmp.eq.s32.totalorder %s14, 0
      %p77 = por %p75, %p76
      %p78 = scmp.ne.s32.totalorder %s66, %s67
      %p79 = scmp.eq.s32.totalorder %s15, 1
      %p80 = por %p78, %p79
      %p82 = scmp.ne.s32.totalorder %s67, %s81
      %p83 = scmp.eq.s32.totalorder %s15, 0
      %p84 = por %p82, %p83
      %s85 = ssub.s32 %s9, %s16
      %p86 = scmp.eq.s32.totalorder %s85, 0
      %s88 = sadd.s32 %s87, 1
      %s89 = scalar_select %p86, %s87, %s88
      %p92 = pneg %p86
      %p93 = scmp.eq.s32.totalorder %s9, 1
      %p94 = por %p92, %p93
      %p95 = scmp.ne.s32.totalorder %s87, %s90
      %p96 = scmp.eq.s32.totalorder %s9, 0
      %p97 = por %p95, %p96
      %p98 = scmp.ne.s32.totalorder %s87, %s90
      %p99 = scmp.eq.s32.totalorder %s14, 1
      %p100 = por %p98, %p99
      %p101 = scmp.ne.s32.totalorder %s90, %s91
      %p102 = scmp.eq.s32.totalorder %s14, 0
      %p103 = por %p101, %p102
      %p104 = scmp.ne.s32.totalorder %s90, %s91
      %p105 = scmp.eq.s32.totalorder %s15, 1
      %p106 = por %p104, %p105
      %p108 = scmp.ne.s32.totalorder %s91, %s107
      %p109 = scmp.eq.s32.totalorder %s15, 0
      %p110 = por %p108, %p109
      %p111 = scmp.le.s32.totalorder 1, %s9
      %p112 = scmp.lt.s32.totalorder %s9, 3
      %p113 = pnand %p111, %p112
      %p114 = pneg %p113
      // Predicated region
      $region9: #{critic_forward.5} parent=5 // pred_check
        _
      $region10: #{critic_forward.5} parent=5 // pred_check_branch
        %116 = sbr.rel (%p113) target = $region12
      $region11: #{critic_forward.5} parent=5 // pred_region
        %s117 = ssub.s32 %s9, 1
        // Predicated region
        $region13: #{critic_forward.5} parent=11 // pred_check
          %p118 = pneg %p56
        $region14: #{critic_forward.5} parent=11 // pred_check_branch
          %120 = sbr.rel (%p118) target = $region16
        $region15: #{critic_forward.5} parent=11 // pred_region
          _
        $region16: #{critic_forward.5} parent=11 // pred_fallthru
          _
        // Predicated region
        $region17: #{critic_forward.5} parent=11 // pred_check
          %p121 = pneg %p77
        $region18: #{critic_forward.5} parent=11 // pred_check_branch
          %123 = sbr.rel (%p121) target = $region20
        $region19: #{critic_forward.5} parent=11 // pred_region
          _
        $region20: #{critic_forward.5} parent=11 // pred_fallthru
          _
      $region12: #{critic_forward.5} parent=5 // pred_fallthru
        _
      %p124 = scmp.lt.s32.totalorder %s9, 2
      // Predicated region
      $region21: #{critic_forward.5} parent=5 // pred_check
        %p125 = pneg %p124
      $region22: #{critic_forward.5} parent=5 // pred_check_branch
        %127 = sbr.rel (%p125) target = $region24
      $region23: #{critic_forward.5} parent=5 // pred_region
        // Predicated region
        $region25: #{critic_forward.5} parent=23 // pred_check
          %p128 = pneg %p29
        $region26: #{critic_forward.5} parent=23 // pred_check_branch
          %130 = sbr.rel (%p128) target = $region28
        $region27: #{critic_forward.5} parent=23 // pred_region
          %s131 = sand.u32 %s19, 1
          %s132 = sand.u32 %s19, 1
          %s133 = smul.addr %s132, 4608
          %s134 = scalar_lea.vmem [#allocation2], %s133
          %s135 = smul.u32 4, %s9
          %s136 = smul.addr %s135, 4
          %s137 = scalar_lea.vmem %s0, %s136
          // Predicated region
          $region29: #{critic_forward.5} parent=27 // pred_check
            _
          $region30: #{critic_forward.5} parent=27 // pred_check_branch
            %139 = sbr.rel (0) target = $region32
          $region31: #{critic_forward.5} parent=27 // pred_region
            // Predicated region
            $region33: #{critic_forward.5} parent=31 // pred_check
              _
            $region34: #{critic_forward.5} parent=31 // pred_check_branch
              %141 = sbr.rel (0) target = $region36
            $region35: #{critic_forward.5} parent=31 // pred_region
              loop: start=0, step=1, limit=1
              $region37: #{critic_forward.5} parent=35 // loop_pre_header
                _
              $region38: #{critic_forward.5} parent=35 // loop_header
                %s143 = sphi 0, %s147
                %p144 = scmp.ge.s32.totalorder %s143, 1
                %s148 = sphi %s137, %s137
                %s149 = sphi %s134, %s134
              $region39: #{critic_forward.5} parent=35 // loop_header_branch
                %146 = sbr.rel (%p144) target = $region43
              $region40: #{critic_forward.5} parent=35 // loop_body
                %v150 = vld [vmem:[%s148] sm:$0xff]
                %151 = vst [vmem:[%s149] sm:$0xff] %v150
                %v152 = vld [vmem:[%s148 + $0x8] sm:$0xff]
                %153 = vst [vmem:[%s149 + $0x8] sm:$0xff] %v152
                %v154 = vld [vmem:[%s148 + $0x20] sm:$0xff]
                %155 = vst [vmem:[%s149 + $0x10] sm:$0xff] %v154
                %v156 = vld [vmem:[%s148 + $0x28] sm:$0xff]
                %157 = vst [vmem:[%s149 + $0x18] sm:$0xff] %v156
                %v158 = vld [vmem:[%s148 + $0x40] sm:$0xff]
                %159 = vst [vmem:[%s149 + $0x20] sm:$0xff] %v158
                %v160 = vld [vmem:[%s148 + $0x48] sm:$0xff]
                %161 = vst [vmem:[%s149 + $0x28] sm:$0xff] %v160
                %v162 = vld [vmem:[%s148 + $0x60] sm:$0xff]
                %163 = vst [vmem:[%s149 + $0x30] sm:$0xff] %v162
                %v164 = vld [vmem:[%s148 + $0x68] sm:$0xff]
                %165 = vst [vmem:[%s149 + $0x38] sm:$0xff] %v164
                %v166 = vld [vmem:[%s148 + $0x80] sm:$0xff]
                %167 = vst [vmem:[%s149 + $0x40] sm:$0xff] %v166
                %v168 = vld [vmem:[%s148 + $0x88] sm:$0xff]
                %169 = vst [vmem:[%s149 + $0x48] sm:$0xff] %v168
                %v170 = vld [vmem:[%s148 + $0xa0] sm:$0xff]
                %171 = vst [vmem:[%s149 + $0x50] sm:$0xff] %v170
                %v172 = vld [vmem:[%s148 + $0xa8] sm:$0xff]
                %173 = vst [vmem:[%s149 + $0x58] sm:$0xff] %v172
                %v174 = vld [vmem:[%s148 + $0xc0] sm:$0xff]
                %175 = vst [vmem:[%s149 + $0x60] sm:$0xff] %v174
                %v176 = vld [vmem:[%s148 + $0xc8] sm:$0xff]
                %177 = vst [vmem:[%s149 + $0x68] sm:$0xff] %v176
                %v178 = vld [vmem:[%s148 + $0xe0] sm:$0xff]
                %179 = vst [vmem:[%s149 + $0x70] sm:$0xff] %v178
                %v180 = vld [vmem:[%s148 + $0xe8] sm:$0xff]
                %181 = vst [vmem:[%s149 + $0x78] sm:$0xff] %v180
                %v182 = vld [vmem:[%s148 + $0x100] sm:$0xff]
                %183 = vst [vmem:[%s149 + $0x80] sm:$0xff] %v182
                %v184 = vld [vmem:[%s148 + $0x108] sm:$0xff]
                %185 = vst [vmem:[%s149 + $0x88] sm:$0xff] %v184
                %v186 = vld [vmem:[%s148 + $0x120] sm:$0xff]
                %187 = vst [vmem:[%s149 + $0x90] sm:$0xff] %v186
                %v188 = vld [vmem:[%s148 + $0x128] sm:$0xff]
                %189 = vst [vmem:[%s149 + $0x98] sm:$0xff] %v188
                %v190 = vld [vmem:[%s148 + $0x140] sm:$0xff]
                %191 = vst [vmem:[%s149 + $0xa0] sm:$0xff] %v190
                %v192 = vld [vmem:[%s148 + $0x148] sm:$0xff]
                %193 = vst [vmem:[%s149 + $0xa8] sm:$0xff] %v192
                %v194 = vld [vmem:[%s148 + $0x160] sm:$0xff]
                %195 = vst [vmem:[%s149 + $0xb0] sm:$0xff] %v194
                %v196 = vld [vmem:[%s148 + $0x168] sm:$0xff]
                %197 = vst [vmem:[%s149 + $0xb8] sm:$0xff] %v196
                %v198 = vld [vmem:[%s148 + $0x180] sm:$0xff]
                %199 = vst [vmem:[%s149 + $0xc0] sm:$0xff] %v198
                %v200 = vld [vmem:[%s148 + $0x188] sm:$0xff]
                %201 = vst [vmem:[%s149 + $0xc8] sm:$0xff] %v200
                %v202 = vld [vmem:[%s148 + $0x1a0] sm:$0xff]
                %203 = vst [vmem:[%s149 + $0xd0] sm:$0xff] %v202
                %v204 = vld [vmem:[%s148 + $0x1a8] sm:$0xff]
                %205 = vst [vmem:[%s149 + $0xd8] sm:$0xff] %v204
                %v206 = vld [vmem:[%s148 + $0x1c0] sm:$0xff]
                %207 = vst [vmem:[%s149 + $0xe0] sm:$0xff] %v206
                %v208 = vld [vmem:[%s148 + $0x1c8] sm:$0xff]
                %209 = vst [vmem:[%s149 + $0xe8] sm:$0xff] %v208
                %v210 = vld [vmem:[%s148 + $0x1e0] sm:$0xff]
                %211 = vst [vmem:[%s149 + $0xf0] sm:$0xff] %v210
                %v212 = vld [vmem:[%s148 + $0x1e8] sm:$0xff]
                %213 = vst [vmem:[%s149 + $0xf8] sm:$0xff] %v212
                %v214 = vld [vmem:[%s148 + $0x200] sm:$0xff]
                %215 = vst [vmem:[%s149 + $0x100] sm:$0xff] %v214
                %v216 = vld [vmem:[%s148 + $0x208] sm:$0xff]
                %217 = vst [vmem:[%s149 + $0x108] sm:$0xff] %v216
                %v218 = vld [vmem:[%s148 + $0x220] sm:$0xff]
                %219 = vst [vmem:[%s149 + $0x110] sm:$0xff] %v218
                %v220 = vld [vmem:[%s148 + $0x228] sm:$0xff]
                %221 = vst [vmem:[%s149 + $0x118] sm:$0xff] %v220
                %v222 = vld [vmem:[%s148 + $0x240] sm:$0xff]
                %223 = vst [vmem:[%s149 + $0x120] sm:$0xff] %v222
                %v224 = vld [vmem:[%s148 + $0x248] sm:$0xff]
                %225 = vst [vmem:[%s149 + $0x128] sm:$0xff] %v224
                %v226 = vld [vmem:[%s148 + $0x260] sm:$0xff]
                %227 = vst [vmem:[%s149 + $0x130] sm:$0xff] %v226
                %v228 = vld [vmem:[%s148 + $0x268] sm:$0xff]
                %229 = vst [vmem:[%s149 + $0x138] sm:$0xff] %v228
                %v230 = vld [vmem:[%s148 + $0x280] sm:$0xff]
                %231 = vst [vmem:[%s149 + $0x140] sm:$0xff] %v230
                %v232 = vld [vmem:[%s148 + $0x288] sm:$0xff]
                %233 = vst [vmem:[%s149 + $0x148] sm:$0xff] %v232
                %v234 = vld [vmem:[%s148 + $0x2a0] sm:$0xff]
                %235 = vst [vmem:[%s149 + $0x150] sm:$0xff] %v234
                %v236 = vld [vmem:[%s148 + $0x2a8] sm:$0xff]
                %237 = vst [vmem:[%s149 + $0x158] sm:$0xff] %v236
                %v238 = vld [vmem:[%s148 + $0x2c0] sm:$0xff]
                %239 = vst [vmem:[%s149 + $0x160] sm:$0xff] %v238
                %v240 = vld [vmem:[%s148 + $0x2c8] sm:$0xff]
                %241 = vst [vmem:[%s149 + $0x168] sm:$0xff] %v240
                %v242 = vld [vmem:[%s148 + $0x2e0] sm:$0xff]
                %243 = vst [vmem:[%s149 + $0x170] sm:$0xff] %v242
                %v244 = vld [vmem:[%s148 + $0x2e8] sm:$0xff]
                %245 = vst [vmem:[%s149 + $0x178] sm:$0xff] %v244
                %v246 = vld [vmem:[%s148 + $0x300] sm:$0xff]
                %247 = vst [vmem:[%s149 + $0x180] sm:$0xff] %v246
                %v248 = vld [vmem:[%s148 + $0x308] sm:$0xff]
                %249 = vst [vmem:[%s149 + $0x188] sm:$0xff] %v248
                %v250 = vld [vmem:[%s148 + $0x320] sm:$0xff]
                %251 = vst [vmem:[%s149 + $0x190] sm:$0xff] %v250
                %v252 = vld [vmem:[%s148 + $0x328] sm:$0xff]
                %253 = vst [vmem:[%s149 + $0x198] sm:$0xff] %v252
                %v254 = vld [vmem:[%s148 + $0x340] sm:$0xff]
                %255 = vst [vmem:[%s149 + $0x1a0] sm:$0xff] %v254
                %v256 = vld [vmem:[%s148 + $0x348] sm:$0xff]
                %257 = vst [vmem:[%s149 + $0x1a8] sm:$0xff] %v256
                %v258 = vld [vmem:[%s148 + $0x360] sm:$0xff]
                %259 = vst [vmem:[%s149 + $0x1b0] sm:$0xff] %v258
                %v260 = vld [vmem:[%s148 + $0x368] sm:$0xff]
                %261 = vst [vmem:[%s149 + $0x1b8] sm:$0xff] %v260
                %v262 = vld [vmem:[%s148 + $0x380] sm:$0xff]
                %263 = vst [vmem:[%s149 + $0x1c0] sm:$0xff] %v262
                %v264 = vld [vmem:[%s148 + $0x388] sm:$0xff]
                %265 = vst [vmem:[%s149 + $0x1c8] sm:$0xff] %v264
                %v266 = vld [vmem:[%s148 + $0x3a0] sm:$0xff]
                %267 = vst [vmem:[%s149 + $0x1d0] sm:$0xff] %v266
                %v268 = vld [vmem:[%s148 + $0x3a8] sm:$0xff]
                %269 = vst [vmem:[%s149 + $0x1d8] sm:$0xff] %v268
                %v270 = vld [vmem:[%s148 + $0x3c0] sm:$0xff]
                %271 = vst [vmem:[%s149 + $0x1e0] sm:$0xff] %v270
                %v272 = vld [vmem:[%s148 + $0x3c8] sm:$0xff]
                %273 = vst [vmem:[%s149 + $0x1e8] sm:$0xff] %v272
                %v274 = vld [vmem:[%s148 + $0x3e0] sm:$0xff]
                %275 = vst [vmem:[%s149 + $0x1f0] sm:$0xff] %v274
                %v276 = vld [vmem:[%s148 + $0x3e8] sm:$0xff]
                %277 = vst [vmem:[%s149 + $0x1f8] sm:$0xff] %v276
                %v278 = vld [vmem:[%s148 + $0x400] sm:$0xff]
                %279 = vst [vmem:[%s149 + $0x200] sm:$0xff] %v278
                %v280 = vld [vmem:[%s148 + $0x408] sm:$0xff]
                %281 = vst [vmem:[%s149 + $0x208] sm:$0xff] %v280
                %v282 = vld [vmem:[%s148 + $0x420] sm:$0xff]
                %283 = vst [vmem:[%s149 + $0x210] sm:$0xff] %v282
                %v284 = vld [vmem:[%s148 + $0x428] sm:$0xff]
                %285 = vst [vmem:[%s149 + $0x218] sm:$0xff] %v284
                %v286 = vld [vmem:[%s148 + $0x440] sm:$0xff]
                %287 = vst [vmem:[%s149 + $0x220] sm:$0xff] %v286
                %v288 = vld [vmem:[%s148 + $0x448] sm:$0xff]
                %289 = vst [vmem:[%s149 + $0x228] sm:$0xff] %v288
                %v290 = vld [vmem:[%s148 + $0x460] sm:$0xff]
                %291 = vst [vmem:[%s149 + $0x230] sm:$0xff] %v290
                %v292 = vld [vmem:[%s148 + $0x468] sm:$0xff]
                %293 = vst [vmem:[%s149 + $0x238] sm:$0xff] %v292
                %v294 = vld [vmem:[%s148 + $0x480] sm:$0xff]
                %295 = vst [vmem:[%s149 + $0x240] sm:$0xff] %v294
                %v296 = vld [vmem:[%s148 + $0x488] sm:$0xff]
                %297 = vst [vmem:[%s149 + $0x248] sm:$0xff] %v296
                %v298 = vld [vmem:[%s148 + $0x4a0] sm:$0xff]
                %299 = vst [vmem:[%s149 + $0x250] sm:$0xff] %v298
                %v300 = vld [vmem:[%s148 + $0x4a8] sm:$0xff]
                %301 = vst [vmem:[%s149 + $0x258] sm:$0xff] %v300
                %v302 = vld [vmem:[%s148 + $0x4c0] sm:$0xff]
                %303 = vst [vmem:[%s149 + $0x260] sm:$0xff] %v302
                %v304 = vld [vmem:[%s148 + $0x4c8] sm:$0xff]
                %305 = vst [vmem:[%s149 + $0x268] sm:$0xff] %v304
                %v306 = vld [vmem:[%s148 + $0x4e0] sm:$0xff]
                %307 = vst [vmem:[%s149 + $0x270] sm:$0xff] %v306
                %v308 = vld [vmem:[%s148 + $0x4e8] sm:$0xff]
                %309 = vst [vmem:[%s149 + $0x278] sm:$0xff] %v308
                %v310 = vld [vmem:[%s148 + $0x500] sm:$0xff]
                %311 = vst [vmem:[%s149 + $0x280] sm:$0xff] %v310
                %v312 = vld [vmem:[%s148 + $0x508] sm:$0xff]
                %313 = vst [vmem:[%s149 + $0x288] sm:$0xff] %v312
                %v314 = vld [vmem:[%s148 + $0x520] sm:$0xff]
                %315 = vst [vmem:[%s149 + $0x290] sm:$0xff] %v314
                %v316 = vld [vmem:[%s148 + $0x528] sm:$0xff]
                %317 = vst [vmem:[%s149 + $0x298] sm:$0xff] %v316
                %v318 = vld [vmem:[%s148 + $0x540] sm:$0xff]
                %319 = vst [vmem:[%s149 + $0x2a0] sm:$0xff] %v318
                %v320 = vld [vmem:[%s148 + $0x548] sm:$0xff]
                %321 = vst [vmem:[%s149 + $0x2a8] sm:$0xff] %v320
                %v322 = vld [vmem:[%s148 + $0x560] sm:$0xff]
                %323 = vst [vmem:[%s149 + $0x2b0] sm:$0xff] %v322
                %v324 = vld [vmem:[%s148 + $0x568] sm:$0xff]
                %325 = vst [vmem:[%s149 + $0x2b8] sm:$0xff] %v324
                %v326 = vld [vmem:[%s148 + $0x580] sm:$0xff]
                %327 = vst [vmem:[%s149 + $0x2c0] sm:$0xff] %v326
                %v328 = vld [vmem:[%s148 + $0x588] sm:$0xff]
                %329 = vst [vmem:[%s149 + $0x2c8] sm:$0xff] %v328
                %v330 = vld [vmem:[%s148 + $0x5a0] sm:$0xff]
                %331 = vst [vmem:[%s149 + $0x2d0] sm:$0xff] %v330
                %v332 = vld [vmem:[%s148 + $0x5a8] sm:$0xff]
                %333 = vst [vmem:[%s149 + $0x2d8] sm:$0xff] %v332
                %v334 = vld [vmem:[%s148 + $0x5c0] sm:$0xff]
                %335 = vst [vmem:[%s149 + $0x2e0] sm:$0xff] %v334
                %v336 = vld [vmem:[%s148 + $0x5c8] sm:$0xff]
                %337 = vst [vmem:[%s149 + $0x2e8] sm:$0xff] %v336
                %v338 = vld [vmem:[%s148 + $0x5e0] sm:$0xff]
                %339 = vst [vmem:[%s149 + $0x2f0] sm:$0xff] %v338
                %v340 = vld [vmem:[%s148 + $0x5e8] sm:$0xff]
                %341 = vst [vmem:[%s149 + $0x2f8] sm:$0xff] %v340
                %v342 = vld [vmem:[%s148 + $0x600] sm:$0xff]
                %343 = vst [vmem:[%s149 + $0x300] sm:$0xff] %v342
                %v344 = vld [vmem:[%s148 + $0x608] sm:$0xff]
                %345 = vst [vmem:[%s149 + $0x308] sm:$0xff] %v344
                %v346 = vld [vmem:[%s148 + $0x620] sm:$0xff]
                %347 = vst [vmem:[%s149 + $0x310] sm:$0xff] %v346
                %v348 = vld [vmem:[%s148 + $0x628] sm:$0xff]
                %349 = vst [vmem:[%s149 + $0x318] sm:$0xff] %v348
                %v350 = vld [vmem:[%s148 + $0x640] sm:$0xff]
                %351 = vst [vmem:[%s149 + $0x320] sm:$0xff] %v350
                %v352 = vld [vmem:[%s148 + $0x648] sm:$0xff]
                %353 = vst [vmem:[%s149 + $0x328] sm:$0xff] %v352
                %v354 = vld [vmem:[%s148 + $0x660] sm:$0xff]
                %355 = vst [vmem:[%s149 + $0x330] sm:$0xff] %v354
                %v356 = vld [vmem:[%s148 + $0x668] sm:$0xff]
                %357 = vst [vmem:[%s149 + $0x338] sm:$0xff] %v356
                %v358 = vld [vmem:[%s148 + $0x680] sm:$0xff]
                %359 = vst [vmem:[%s149 + $0x340] sm:$0xff] %v358
                %v360 = vld [vmem:[%s148 + $0x688] sm:$0xff]
                %361 = vst [vmem:[%s149 + $0x348] sm:$0xff] %v360
                %v362 = vld [vmem:[%s148 + $0x6a0] sm:$0xff]
                %363 = vst [vmem:[%s149 + $0x350] sm:$0xff] %v362
                %v364 = vld [vmem:[%s148 + $0x6a8] sm:$0xff]
                %365 = vst [vmem:[%s149 + $0x358] sm:$0xff] %v364
                %v366 = vld [vmem:[%s148 + $0x6c0] sm:$0xff]
                %367 = vst [vmem:[%s149 + $0x360] sm:$0xff] %v366
                %v368 = vld [vmem:[%s148 + $0x6c8] sm:$0xff]
                %369 = vst [vmem:[%s149 + $0x368] sm:$0xff] %v368
                %v370 = vld [vmem:[%s148 + $0x6e0] sm:$0xff]
                %371 = vst [vmem:[%s149 + $0x370] sm:$0xff] %v370
                %v372 = vld [vmem:[%s148 + $0x6e8] sm:$0xff]
                %373 = vst [vmem:[%s149 + $0x378] sm:$0xff] %v372
                %v374 = vld [vmem:[%s148 + $0x700] sm:$0xff]
                %375 = vst [vmem:[%s149 + $0x380] sm:$0xff] %v374
                %v376 = vld [vmem:[%s148 + $0x708] sm:$0xff]
                %377 = vst [vmem:[%s149 + $0x388] sm:$0xff] %v376
                %v378 = vld [vmem:[%s148 + $0x720] sm:$0xff]
                %379 = vst [vmem:[%s149 + $0x390] sm:$0xff] %v378
                %v380 = vld [vmem:[%s148 + $0x728] sm:$0xff]
                %381 = vst [vmem:[%s149 + $0x398] sm:$0xff] %v380
                %v382 = vld [vmem:[%s148 + $0x740] sm:$0xff]
                %383 = vst [vmem:[%s149 + $0x3a0] sm:$0xff] %v382
                %v384 = vld [vmem:[%s148 + $0x748] sm:$0xff]
                %385 = vst [vmem:[%s149 + $0x3a8] sm:$0xff] %v384
                %v386 = vld [vmem:[%s148 + $0x760] sm:$0xff]
                %387 = vst [vmem:[%s149 + $0x3b0] sm:$0xff] %v386
                %v388 = vld [vmem:[%s148 + $0x768] sm:$0xff]
                %389 = vst [vmem:[%s149 + $0x3b8] sm:$0xff] %v388
                %v390 = vld [vmem:[%s148 + $0x780] sm:$0xff]
                %391 = vst [vmem:[%s149 + $0x3c0] sm:$0xff] %v390
                %v392 = vld [vmem:[%s148 + $0x788] sm:$0xff]
                %393 = vst [vmem:[%s149 + $0x3c8] sm:$0xff] %v392
                %v394 = vld [vmem:[%s148 + $0x7a0] sm:$0xff]
                %395 = vst [vmem:[%s149 + $0x3d0] sm:$0xff] %v394
                %v396 = vld [vmem:[%s148 + $0x7a8] sm:$0xff]
                %397 = vst [vmem:[%s149 + $0x3d8] sm:$0xff] %v396
                %v398 = vld [vmem:[%s148 + $0x7c0] sm:$0xff]
                %399 = vst [vmem:[%s149 + $0x3e0] sm:$0xff] %v398
                %v400 = vld [vmem:[%s148 + $0x7c8] sm:$0xff]
                %401 = vst [vmem:[%s149 + $0x3e8] sm:$0xff] %v400
                %v402 = vld [vmem:[%s148 + $0x7e0] sm:$0xff]
                %403 = vst [vmem:[%s149 + $0x3f0] sm:$0xff] %v402
                %v404 = vld [vmem:[%s148 + $0x7e8] sm:$0xff]
                %405 = vst [vmem:[%s149 + $0x3f8] sm:$0xff] %v404
                %v406 = vld [vmem:[%s148 + $0x800] sm:$0xff]
                %407 = vst [vmem:[%s149 + $0x400] sm:$0xff] %v406
                %v408 = vld [vmem:[%s148 + $0x808] sm:$0xff]
                %409 = vst [vmem:[%s149 + $0x408] sm:$0xff] %v408
                %v410 = vld [vmem:[%s148 + $0x820] sm:$0xff]
                %411 = vst [vmem:[%s149 + $0x410] sm:$0xff] %v410
                %v412 = vld [vmem:[%s148 + $0x828] sm:$0xff]
                %413 = vst [vmem:[%s149 + $0x418] sm:$0xff] %v412
                %v414 = vld [vmem:[%s148 + $0x840] sm:$0xff]
                %415 = vst [vmem:[%s149 + $0x420] sm:$0xff] %v414
                %v416 = vld [vmem:[%s148 + $0x848] sm:$0xff]
                %417 = vst [vmem:[%s149 + $0x428] sm:$0xff] %v416
                %v418 = vld [vmem:[%s148 + $0x860] sm:$0xff]
                %419 = vst [vmem:[%s149 + $0x430] sm:$0xff] %v418
                %v420 = vld [vmem:[%s148 + $0x868] sm:$0xff]
                %421 = vst [vmem:[%s149 + $0x438] sm:$0xff] %v420
                %v422 = vld [vmem:[%s148 + $0x880] sm:$0xff]
                %423 = vst [vmem:[%s149 + $0x440] sm:$0xff] %v422
                %v424 = vld [vmem:[%s148 + $0x888] sm:$0xff]
                %425 = vst [vmem:[%s149 + $0x448] sm:$0xff] %v424
                %v426 = vld [vmem:[%s148 + $0x8a0] sm:$0xff]
                %427 = vst [vmem:[%s149 + $0x450] sm:$0xff] %v426
                %v428 = vld [vmem:[%s148 + $0x8a8] sm:$0xff]
                %429 = vst [vmem:[%s149 + $0x458] sm:$0xff] %v428
                %v430 = vld [vmem:[%s148 + $0x8c0] sm:$0xff]
                %431 = vst [vmem:[%s149 + $0x460] sm:$0xff] %v430
                %v432 = vld [vmem:[%s148 + $0x8c8] sm:$0xff]
                %433 = vst [vmem:[%s149 + $0x468] sm:$0xff] %v432
                %v434 = vld [vmem:[%s148 + $0x8e0] sm:$0xff]
                %435 = vst [vmem:[%s149 + $0x470] sm:$0xff] %v434
                %v436 = vld [vmem:[%s148 + $0x8e8] sm:$0xff]
                %437 = vst [vmem:[%s149 + $0x478] sm:$0xff] %v436
                %v438 = vld [vmem:[%s148 + $0x900] sm:$0xff]
                %439 = vst [vmem:[%s149 + $0x480] sm:$0xff] %v438
                %v440 = vld [vmem:[%s148 + $0x908] sm:$0xff]
                %441 = vst [vmem:[%s149 + $0x488] sm:$0xff] %v440
                %v442 = vld [vmem:[%s148 + $0x920] sm:$0xff]
                %443 = vst [vmem:[%s149 + $0x490] sm:$0xff] %v442
                %v444 = vld [vmem:[%s148 + $0x928] sm:$0xff]
                %445 = vst [vmem:[%s149 + $0x498] sm:$0xff] %v444
                %v446 = vld [vmem:[%s148 + $0x940] sm:$0xff]
                %447 = vst [vmem:[%s149 + $0x4a0] sm:$0xff] %v446
                %v448 = vld [vmem:[%s148 + $0x948] sm:$0xff]
                %449 = vst [vmem:[%s149 + $0x4a8] sm:$0xff] %v448
                %v450 = vld [vmem:[%s148 + $0x960] sm:$0xff]
                %451 = vst [vmem:[%s149 + $0x4b0] sm:$0xff] %v450
                %v452 = vld [vmem:[%s148 + $0x968] sm:$0xff]
                %453 = vst [vmem:[%s149 + $0x4b8] sm:$0xff] %v452
                %v454 = vld [vmem:[%s148 + $0x980] sm:$0xff]
                %455 = vst [vmem:[%s149 + $0x4c0] sm:$0xff] %v454
                %v456 = vld [vmem:[%s148 + $0x988] sm:$0xff]
                %457 = vst [vmem:[%s149 + $0x4c8] sm:$0xff] %v456
                %v458 = vld [vmem:[%s148 + $0x9a0] sm:$0xff]
                %459 = vst [vmem:[%s149 + $0x4d0] sm:$0xff] %v458
                %v460 = vld [vmem:[%s148 + $0x9a8] sm:$0xff]
                %461 = vst [vmem:[%s149 + $0x4d8] sm:$0xff] %v460
                %v462 = vld [vmem:[%s148 + $0x9c0] sm:$0xff]
                %463 = vst [vmem:[%s149 + $0x4e0] sm:$0xff] %v462
                %v464 = vld [vmem:[%s148 + $0x9c8] sm:$0xff]
                %465 = vst [vmem:[%s149 + $0x4e8] sm:$0xff] %v464
                %v466 = vld [vmem:[%s148 + $0x9e0] sm:$0xff]
                %467 = vst [vmem:[%s149 + $0x4f0] sm:$0xff] %v466
                %v468 = vld [vmem:[%s148 + $0x9e8] sm:$0xff]
                %469 = vst [vmem:[%s149 + $0x4f8] sm:$0xff] %v468
                %v470 = vld [vmem:[%s148 + $0xa00] sm:$0xff]
                %471 = vst [vmem:[%s149 + $0x500] sm:$0xff] %v470
                %v472 = vld [vmem:[%s148 + $0xa08] sm:$0xff]
                %473 = vst [vmem:[%s149 + $0x508] sm:$0xff] %v472
                %v474 = vld [vmem:[%s148 + $0xa20] sm:$0xff]
                %475 = vst [vmem:[%s149 + $0x510] sm:$0xff] %v474
                %v476 = vld [vmem:[%s148 + $0xa28] sm:$0xff]
                %477 = vst [vmem:[%s149 + $0x518] sm:$0xff] %v476
                %v478 = vld [vmem:[%s148 + $0xa40] sm:$0xff]
                %479 = vst [vmem:[%s149 + $0x520] sm:$0xff] %v478
                %v480 = vld [vmem:[%s148 + $0xa48] sm:$0xff]
                %481 = vst [vmem:[%s149 + $0x528] sm:$0xff] %v480
                %v482 = vld [vmem:[%s148 + $0xa60] sm:$0xff]
                %483 = vst [vmem:[%s149 + $0x530] sm:$0xff] %v482
                %v484 = vld [vmem:[%s148 + $0xa68] sm:$0xff]
                %485 = vst [vmem:[%s149 + $0x538] sm:$0xff] %v484
                %v486 = vld [vmem:[%s148 + $0xa80] sm:$0xff]
                %487 = vst [vmem:[%s149 + $0x540] sm:$0xff] %v486
                %v488 = vld [vmem:[%s148 + $0xa88] sm:$0xff]
                %489 = vst [vmem:[%s149 + $0x548] sm:$0xff] %v488
                %v490 = vld [vmem:[%s148 + $0xaa0] sm:$0xff]
                %491 = vst [vmem:[%s149 + $0x550] sm:$0xff] %v490
                %v492 = vld [vmem:[%s148 + $0xaa8] sm:$0xff]
                %493 = vst [vmem:[%s149 + $0x558] sm:$0xff] %v492
                %v494 = vld [vmem:[%s148 + $0xac0] sm:$0xff]
                %495 = vst [vmem:[%s149 + $0x560] sm:$0xff] %v494
                %v496 = vld [vmem:[%s148 + $0xac8] sm:$0xff]
                %497 = vst [vmem:[%s149 + $0x568] sm:$0xff] %v496
                %v498 = vld [vmem:[%s148 + $0xae0] sm:$0xff]
                %499 = vst [vmem:[%s149 + $0x570] sm:$0xff] %v498
                %v500 = vld [vmem:[%s148 + $0xae8] sm:$0xff]
                %501 = vst [vmem:[%s149 + $0x578] sm:$0xff] %v500
                %v502 = vld [vmem:[%s148 + $0xb00] sm:$0xff]
                %503 = vst [vmem:[%s149 + $0x580] sm:$0xff] %v502
                %v504 = vld [vmem:[%s148 + $0xb08] sm:$0xff]
                %505 = vst [vmem:[%s149 + $0x588] sm:$0xff] %v504
                %v506 = vld [vmem:[%s148 + $0xb20] sm:$0xff]
                %507 = vst [vmem:[%s149 + $0x590] sm:$0xff] %v506
                %v508 = vld [vmem:[%s148 + $0xb28] sm:$0xff]
                %509 = vst [vmem:[%s149 + $0x598] sm:$0xff] %v508
                %v510 = vld [vmem:[%s148 + $0xb40] sm:$0xff]
                %511 = vst [vmem:[%s149 + $0x5a0] sm:$0xff] %v510
                %v512 = vld [vmem:[%s148 + $0xb48] sm:$0xff]
                %513 = vst [vmem:[%s149 + $0x5a8] sm:$0xff] %v512
                %v514 = vld [vmem:[%s148 + $0xb60] sm:$0xff]
                %515 = vst [vmem:[%s149 + $0x5b0] sm:$0xff] %v514
                %v516 = vld [vmem:[%s148 + $0xb68] sm:$0xff]
                %517 = vst [vmem:[%s149 + $0x5b8] sm:$0xff] %v516
                %v518 = vld [vmem:[%s148 + $0xb80] sm:$0xff]
                %519 = vst [vmem:[%s149 + $0x5c0] sm:$0xff] %v518
                %v520 = vld [vmem:[%s148 + $0xb88] sm:$0xff]
                %521 = vst [vmem:[%s149 + $0x5c8] sm:$0xff] %v520
                %v522 = vld [vmem:[%s148 + $0xba0] sm:$0xff]
                %523 = vst [vmem:[%s149 + $0x5d0] sm:$0xff] %v522
                %v524 = vld [vmem:[%s148 + $0xba8] sm:$0xff]
                %525 = vst [vmem:[%s149 + $0x5d8] sm:$0xff] %v524
                %v526 = vld [vmem:[%s148 + $0xbc0] sm:$0xff]
                %527 = vst [vmem:[%s149 + $0x5e0] sm:$0xff] %v526
                %v528 = vld [vmem:[%s148 + $0xbc8] sm:$0xff]
                %529 = vst [vmem:[%s149 + $0x5e8] sm:$0xff] %v528
                %v530 = vld [vmem:[%s148 + $0xbe0] sm:$0xff]
                %531 = vst [vmem:[%s149 + $0x5f0] sm:$0xff] %v530
                %v532 = vld [vmem:[%s148 + $0xbe8] sm:$0xff]
                %533 = vst [vmem:[%s149 + $0x5f8] sm:$0xff] %v532
                %v534 = vld [vmem:[%s148 + $0xc00] sm:$0xff]
                %535 = vst [vmem:[%s149 + $0x600] sm:$0xff] %v534
                %v536 = vld [vmem:[%s148 + $0xc08] sm:$0xff]
                %537 = vst [vmem:[%s149 + $0x608] sm:$0xff] %v536
                %v538 = vld [vmem:[%s148 + $0xc20] sm:$0xff]
                %539 = vst [vmem:[%s149 + $0x610] sm:$0xff] %v538
                %v540 = vld [vmem:[%s148 + $0xc28] sm:$0xff]
                %541 = vst [vmem:[%s149 + $0x618] sm:$0xff] %v540
                %v542 = vld [vmem:[%s148 + $0xc40] sm:$0xff]
                %543 = vst [vmem:[%s149 + $0x620] sm:$0xff] %v542
                %v544 = vld [vmem:[%s148 + $0xc48] sm:$0xff]
                %545 = vst [vmem:[%s149 + $0x628] sm:$0xff] %v544
                %v546 = vld [vmem:[%s148 + $0xc60] sm:$0xff]
                %547 = vst [vmem:[%s149 + $0x630] sm:$0xff] %v546
                %v548 = vld [vmem:[%s148 + $0xc68] sm:$0xff]
                %549 = vst [vmem:[%s149 + $0x638] sm:$0xff] %v548
                %v550 = vld [vmem:[%s148 + $0xc80] sm:$0xff]
                %551 = vst [vmem:[%s149 + $0x640] sm:$0xff] %v550
                %v552 = vld [vmem:[%s148 + $0xc88] sm:$0xff]
                %553 = vst [vmem:[%s149 + $0x648] sm:$0xff] %v552
                %v554 = vld [vmem:[%s148 + $0xca0] sm:$0xff]
                %555 = vst [vmem:[%s149 + $0x650] sm:$0xff] %v554
                %v556 = vld [vmem:[%s148 + $0xca8] sm:$0xff]
                %557 = vst [vmem:[%s149 + $0x658] sm:$0xff] %v556
                %v558 = vld [vmem:[%s148 + $0xcc0] sm:$0xff]
                %559 = vst [vmem:[%s149 + $0x660] sm:$0xff] %v558
                %v560 = vld [vmem:[%s148 + $0xcc8] sm:$0xff]
                %561 = vst [vmem:[%s149 + $0x668] sm:$0xff] %v560
                %v562 = vld [vmem:[%s148 + $0xce0] sm:$0xff]
                %563 = vst [vmem:[%s149 + $0x670] sm:$0xff] %v562
                %v564 = vld [vmem:[%s148 + $0xce8] sm:$0xff]
                %565 = vst [vmem:[%s149 + $0x678] sm:$0xff] %v564
                %v566 = vld [vmem:[%s148 + $0xd00] sm:$0xff]
                %567 = vst [vmem:[%s149 + $0x680] sm:$0xff] %v566
                %v568 = vld [vmem:[%s148 + $0xd08] sm:$0xff]
                %569 = vst [vmem:[%s149 + $0x688] sm:$0xff] %v568
                %v570 = vld [vmem:[%s148 + $0xd20] sm:$0xff]
                %571 = vst [vmem:[%s149 + $0x690] sm:$0xff] %v570
                %v572 = vld [vmem:[%s148 + $0xd28] sm:$0xff]
                %573 = vst [vmem:[%s149 + $0x698] sm:$0xff] %v572
                %v574 = vld [vmem:[%s148 + $0xd40] sm:$0xff]
                %575 = vst [vmem:[%s149 + $0x6a0] sm:$0xff] %v574
                %v576 = vld [vmem:[%s148 + $0xd48] sm:$0xff]
                %577 = vst [vmem:[%s149 + $0x6a8] sm:$0xff] %v576
                %v578 = vld [vmem:[%s148 + $0xd60] sm:$0xff]
                %579 = vst [vmem:[%s149 + $0x6b0] sm:$0xff] %v578
                %v580 = vld [vmem:[%s148 + $0xd68] sm:$0xff]
                %581 = vst [vmem:[%s149 + $0x6b8] sm:$0xff] %v580
                %v582 = vld [vmem:[%s148 + $0xd80] sm:$0xff]
                %583 = vst [vmem:[%s149 + $0x6c0] sm:$0xff] %v582
                %v584 = vld [vmem:[%s148 + $0xd88] sm:$0xff]
                %585 = vst [vmem:[%s149 + $0x6c8] sm:$0xff] %v584
                %v586 = vld [vmem:[%s148 + $0xda0] sm:$0xff]
                %587 = vst [vmem:[%s149 + $0x6d0] sm:$0xff] %v586
                %v588 = vld [vmem:[%s148 + $0xda8] sm:$0xff]
                %589 = vst [vmem:[%s149 + $0x6d8] sm:$0xff] %v588
                %v590 = vld [vmem:[%s148 + $0xdc0] sm:$0xff]
                %591 = vst [vmem:[%s149 + $0x6e0] sm:$0xff] %v590
                %v592 = vld [vmem:[%s148 + $0xdc8] sm:$0xff]
                %593 = vst [vmem:[%s149 + $0x6e8] sm:$0xff] %v592
                %v594 = vld [vmem:[%s148 + $0xde0] sm:$0xff]
                %595 = vst [vmem:[%s149 + $0x6f0] sm:$0xff] %v594
                %v596 = vld [vmem:[%s148 + $0xde8] sm:$0xff]
                %597 = vst [vmem:[%s149 + $0x6f8] sm:$0xff] %v596
                %v598 = vld [vmem:[%s148 + $0xe00] sm:$0xff]
                %599 = vst [vmem:[%s149 + $0x700] sm:$0xff] %v598
                %v600 = vld [vmem:[%s148 + $0xe08] sm:$0xff]
                %601 = vst [vmem:[%s149 + $0x708] sm:$0xff] %v600
                %v602 = vld [vmem:[%s148 + $0xe20] sm:$0xff]
                %603 = vst [vmem:[%s149 + $0x710] sm:$0xff] %v602
                %v604 = vld [vmem:[%s148 + $0xe28] sm:$0xff]
                %605 = vst [vmem:[%s149 + $0x718] sm:$0xff] %v604
                %v606 = vld [vmem:[%s148 + $0xe40] sm:$0xff]
                %607 = vst [vmem:[%s149 + $0x720] sm:$0xff] %v606
                %v608 = vld [vmem:[%s148 + $0xe48] sm:$0xff]
                %609 = vst [vmem:[%s149 + $0x728] sm:$0xff] %v608
                %v610 = vld [vmem:[%s148 + $0xe60] sm:$0xff]
                %611 = vst [vmem:[%s149 + $0x730] sm:$0xff] %v610
                %v612 = vld [vmem:[%s148 + $0xe68] sm:$0xff]
                %613 = vst [vmem:[%s149 + $0x738] sm:$0xff] %v612
                %v614 = vld [vmem:[%s148 + $0xe80] sm:$0xff]
                %615 = vst [vmem:[%s149 + $0x740] sm:$0xff] %v614
                %v616 = vld [vmem:[%s148 + $0xe88] sm:$0xff]
                %617 = vst [vmem:[%s149 + $0x748] sm:$0xff] %v616
                %v618 = vld [vmem:[%s148 + $0xea0] sm:$0xff]
                %619 = vst [vmem:[%s149 + $0x750] sm:$0xff] %v618
                %v620 = vld [vmem:[%s148 + $0xea8] sm:$0xff]
                %621 = vst [vmem:[%s149 + $0x758] sm:$0xff] %v620
                %v622 = vld [vmem:[%s148 + $0xec0] sm:$0xff]
                %623 = vst [vmem:[%s149 + $0x760] sm:$0xff] %v622
                %v624 = vld [vmem:[%s148 + $0xec8] sm:$0xff]
                %625 = vst [vmem:[%s149 + $0x768] sm:$0xff] %v624
                %v626 = vld [vmem:[%s148 + $0xee0] sm:$0xff]
                %627 = vst [vmem:[%s149 + $0x770] sm:$0xff] %v626
                %v628 = vld [vmem:[%s148 + $0xee8] sm:$0xff]
                %629 = vst [vmem:[%s149 + $0x778] sm:$0xff] %v628
                %v630 = vld [vmem:[%s148 + $0xf00] sm:$0xff]
                %631 = vst [vmem:[%s149 + $0x780] sm:$0xff] %v630
                %v632 = vld [vmem:[%s148 + $0xf08] sm:$0xff]
                %633 = vst [vmem:[%s149 + $0x788] sm:$0xff] %v632
                %v634 = vld [vmem:[%s148 + $0xf20] sm:$0xff]
                %635 = vst [vmem:[%s149 + $0x790] sm:$0xff] %v634
                %v636 = vld [vmem:[%s148 + $0xf28] sm:$0xff]
                %637 = vst [vmem:[%s149 + $0x798] sm:$0xff] %v636
                %v638 = vld [vmem:[%s148 + $0xf40] sm:$0xff]
                %639 = vst [vmem:[%s149 + $0x7a0] sm:$0xff] %v638
                %v640 = vld [vmem:[%s148 + $0xf48] sm:$0xff]
                %641 = vst [vmem:[%s149 + $0x7a8] sm:$0xff] %v640
                %v642 = vld [vmem:[%s148 + $0xf60] sm:$0xff]
                %643 = vst [vmem:[%s149 + $0x7b0] sm:$0xff] %v642
                %v644 = vld [vmem:[%s148 + $0xf68] sm:$0xff]
                %645 = vst [vmem:[%s149 + $0x7b8] sm:$0xff] %v644
                %v646 = vld [vmem:[%s148 + $0xf80] sm:$0xff]
                %647 = vst [vmem:[%s149 + $0x7c0] sm:$0xff] %v646
                %v648 = vld [vmem:[%s148 + $0xf88] sm:$0xff]
                %649 = vst [vmem:[%s149 + $0x7c8] sm:$0xff] %v648
                %v650 = vld [vmem:[%s148 + $0xfa0] sm:$0xff]
                %651 = vst [vmem:[%s149 + $0x7d0] sm:$0xff] %v650
                %v652 = vld [vmem:[%s148 + $0xfa8] sm:$0xff]
                %653 = vst [vmem:[%s149 + $0x7d8] sm:$0xff] %v652
                %v654 = vld [vmem:[%s148 + $0xfc0] sm:$0xff]
                %655 = vst [vmem:[%s149 + $0x7e0] sm:$0xff] %v654
                %v656 = vld [vmem:[%s148 + $0xfc8] sm:$0xff]
                %657 = vst [vmem:[%s149 + $0x7e8] sm:$0xff] %v656
                %v658 = vld [vmem:[%s148 + $0xfe0] sm:$0xff]
                %659 = vst [vmem:[%s149 + $0x7f0] sm:$0xff] %v658
                %v660 = vld [vmem:[%s148 + $0xfe8] sm:$0xff]
                %661 = vst [vmem:[%s149 + $0x7f8] sm:$0xff] %v660
                %v662 = vld [vmem:[%s148 + $0x1000] sm:$0xff]
                %663 = vst [vmem:[%s149 + $0x800] sm:$0xff] %v662
                %v664 = vld [vmem:[%s148 + $0x1008] sm:$0xff]
                %665 = vst [vmem:[%s149 + $0x808] sm:$0xff] %v664
                %v666 = vld [vmem:[%s148 + $0x1020] sm:$0xff]
                %667 = vst [vmem:[%s149 + $0x810] sm:$0xff] %v666
                %v668 = vld [vmem:[%s148 + $0x1028] sm:$0xff]
                %669 = vst [vmem:[%s149 + $0x818] sm:$0xff] %v668
                %v670 = vld [vmem:[%s148 + $0x1040] sm:$0xff]
                %671 = vst [vmem:[%s149 + $0x820] sm:$0xff] %v670
                %v672 = vld [vmem:[%s148 + $0x1048] sm:$0xff]
                %673 = vst [vmem:[%s149 + $0x828] sm:$0xff] %v672
                %v674 = vld [vmem:[%s148 + $0x1060] sm:$0xff]
                %675 = vst [vmem:[%s149 + $0x830] sm:$0xff] %v674
                %v676 = vld [vmem:[%s148 + $0x1068] sm:$0xff]
                %677 = vst [vmem:[%s149 + $0x838] sm:$0xff] %v676
                %v678 = vld [vmem:[%s148 + $0x1080] sm:$0xff]
                %679 = vst [vmem:[%s149 + $0x840] sm:$0xff] %v678
                %v680 = vld [vmem:[%s148 + $0x1088] sm:$0xff]
                %681 = vst [vmem:[%s149 + $0x848] sm:$0xff] %v680
                %v682 = vld [vmem:[%s148 + $0x10a0] sm:$0xff]
                %683 = vst [vmem:[%s149 + $0x850] sm:$0xff] %v682
                %v684 = vld [vmem:[%s148 + $0x10a8] sm:$0xff]
                %685 = vst [vmem:[%s149 + $0x858] sm:$0xff] %v684
                %v686 = vld [vmem:[%s148 + $0x10c0] sm:$0xff]
                %687 = vst [vmem:[%s149 + $0x860] sm:$0xff] %v686
                %v688 = vld [vmem:[%s148 + $0x10c8] sm:$0xff]
                %689 = vst [vmem:[%s149 + $0x868] sm:$0xff] %v688
                %v690 = vld [vmem:[%s148 + $0x10e0] sm:$0xff]
                %691 = vst [vmem:[%s149 + $0x870] sm:$0xff] %v690
                %v692 = vld [vmem:[%s148 + $0x10e8] sm:$0xff]
                %693 = vst [vmem:[%s149 + $0x878] sm:$0xff] %v692
                %v694 = vld [vmem:[%s148 + $0x1100] sm:$0xff]
                %695 = vst [vmem:[%s149 + $0x880] sm:$0xff] %v694
                %v696 = vld [vmem:[%s148 + $0x1108] sm:$0xff]
                %697 = vst [vmem:[%s149 + $0x888] sm:$0xff] %v696
                %v698 = vld [vmem:[%s148 + $0x1120] sm:$0xff]
                %699 = vst [vmem:[%s149 + $0x890] sm:$0xff] %v698
                %v700 = vld [vmem:[%s148 + $0x1128] sm:$0xff]
                %701 = vst [vmem:[%s149 + $0x898] sm:$0xff] %v700
                %v702 = vld [vmem:[%s148 + $0x1140] sm:$0xff]
                %703 = vst [vmem:[%s149 + $0x8a0] sm:$0xff] %v702
                %v704 = vld [vmem:[%s148 + $0x1148] sm:$0xff]
                %705 = vst [vmem:[%s149 + $0x8a8] sm:$0xff] %v704
                %v706 = vld [vmem:[%s148 + $0x1160] sm:$0xff]
                %707 = vst [vmem:[%s149 + $0x8b0] sm:$0xff] %v706
                %v708 = vld [vmem:[%s148 + $0x1168] sm:$0xff]
                %709 = vst [vmem:[%s149 + $0x8b8] sm:$0xff] %v708
                %v710 = vld [vmem:[%s148 + $0x1180] sm:$0xff]
                %711 = vst [vmem:[%s149 + $0x8c0] sm:$0xff] %v710
                %v712 = vld [vmem:[%s148 + $0x1188] sm:$0xff]
                %713 = vst [vmem:[%s149 + $0x8c8] sm:$0xff] %v712
                %v714 = vld [vmem:[%s148 + $0x11a0] sm:$0xff]
                %715 = vst [vmem:[%s149 + $0x8d0] sm:$0xff] %v714
                %v716 = vld [vmem:[%s148 + $0x11a8] sm:$0xff]
                %717 = vst [vmem:[%s149 + $0x8d8] sm:$0xff] %v716
                %v718 = vld [vmem:[%s148 + $0x11c0] sm:$0xff]
                %719 = vst [vmem:[%s149 + $0x8e0] sm:$0xff] %v718
                %v720 = vld [vmem:[%s148 + $0x11c8] sm:$0xff]
                %721 = vst [vmem:[%s149 + $0x8e8] sm:$0xff] %v720
                %v722 = vld [vmem:[%s148 + $0x11e0] sm:$0xff]
                %723 = vst [vmem:[%s149 + $0x8f0] sm:$0xff] %v722
                %v724 = vld [vmem:[%s148 + $0x11e8] sm:$0xff]
                %725 = vst [vmem:[%s149 + $0x8f8] sm:$0xff] %v724
                %v726 = vld [vmem:[%s148 + $0x1200] sm:$0xff]
                %727 = vst [vmem:[%s149 + $0x900] sm:$0xff] %v726
                %v728 = vld [vmem:[%s148 + $0x1208] sm:$0xff]
                %729 = vst [vmem:[%s149 + $0x908] sm:$0xff] %v728
                %v730 = vld [vmem:[%s148 + $0x1220] sm:$0xff]
                %731 = vst [vmem:[%s149 + $0x910] sm:$0xff] %v730
                %v732 = vld [vmem:[%s148 + $0x1228] sm:$0xff]
                %733 = vst [vmem:[%s149 + $0x918] sm:$0xff] %v732
                %v734 = vld [vmem:[%s148 + $0x1240] sm:$0xff]
                %735 = vst [vmem:[%s149 + $0x920] sm:$0xff] %v734
                %v736 = vld [vmem:[%s148 + $0x1248] sm:$0xff]
                %737 = vst [vmem:[%s149 + $0x928] sm:$0xff] %v736
                %v738 = vld [vmem:[%s148 + $0x1260] sm:$0xff]
                %739 = vst [vmem:[%s149 + $0x930] sm:$0xff] %v738
                %v740 = vld [vmem:[%s148 + $0x1268] sm:$0xff]
                %741 = vst [vmem:[%s149 + $0x938] sm:$0xff] %v740
                %v742 = vld [vmem:[%s148 + $0x1280] sm:$0xff]
                %743 = vst [vmem:[%s149 + $0x940] sm:$0xff] %v742
                %v744 = vld [vmem:[%s148 + $0x1288] sm:$0xff]
                %745 = vst [vmem:[%s149 + $0x948] sm:$0xff] %v744
                %v746 = vld [vmem:[%s148 + $0x12a0] sm:$0xff]
                %747 = vst [vmem:[%s149 + $0x950] sm:$0xff] %v746
                %v748 = vld [vmem:[%s148 + $0x12a8] sm:$0xff]
                %749 = vst [vmem:[%s149 + $0x958] sm:$0xff] %v748
                %v750 = vld [vmem:[%s148 + $0x12c0] sm:$0xff]
                %751 = vst [vmem:[%s149 + $0x960] sm:$0xff] %v750
                %v752 = vld [vmem:[%s148 + $0x12c8] sm:$0xff]
                %753 = vst [vmem:[%s149 + $0x968] sm:$0xff] %v752
                %v754 = vld [vmem:[%s148 + $0x12e0] sm:$0xff]
                %755 = vst [vmem:[%s149 + $0x970] sm:$0xff] %v754
                %v756 = vld [vmem:[%s148 + $0x12e8] sm:$0xff]
                %757 = vst [vmem:[%s149 + $0x978] sm:$0xff] %v756
                %v758 = vld [vmem:[%s148 + $0x1300] sm:$0xff]
                %759 = vst [vmem:[%s149 + $0x980] sm:$0xff] %v758
                %v760 = vld [vmem:[%s148 + $0x1308] sm:$0xff]
                %761 = vst [vmem:[%s149 + $0x988] sm:$0xff] %v760
                %v762 = vld [vmem:[%s148 + $0x1320] sm:$0xff]
                %763 = vst [vmem:[%s149 + $0x990] sm:$0xff] %v762
                %v764 = vld [vmem:[%s148 + $0x1328] sm:$0xff]
                %765 = vst [vmem:[%s149 + $0x998] sm:$0xff] %v764
                %v766 = vld [vmem:[%s148 + $0x1340] sm:$0xff]
                %767 = vst [vmem:[%s149 + $0x9a0] sm:$0xff] %v766
                %v768 = vld [vmem:[%s148 + $0x1348] sm:$0xff]
                %769 = vst [vmem:[%s149 + $0x9a8] sm:$0xff] %v768
                %v770 = vld [vmem:[%s148 + $0x1360] sm:$0xff]
                %771 = vst [vmem:[%s149 + $0x9b0] sm:$0xff] %v770
                %v772 = vld [vmem:[%s148 + $0x1368] sm:$0xff]
                %773 = vst [vmem:[%s149 + $0x9b8] sm:$0xff] %v772
                %v774 = vld [vmem:[%s148 + $0x1380] sm:$0xff]
                %775 = vst [vmem:[%s149 + $0x9c0] sm:$0xff] %v774
                %v776 = vld [vmem:[%s148 + $0x1388] sm:$0xff]
                %777 = vst [vmem:[%s149 + $0x9c8] sm:$0xff] %v776
                %v778 = vld [vmem:[%s148 + $0x13a0] sm:$0xff]
                %779 = vst [vmem:[%s149 + $0x9d0] sm:$0xff] %v778
                %v780 = vld [vmem:[%s148 + $0x13a8] sm:$0xff]
                %781 = vst [vmem:[%s149 + $0x9d8] sm:$0xff] %v780
                %v782 = vld [vmem:[%s148 + $0x13c0] sm:$0xff]
                %783 = vst [vmem:[%s149 + $0x9e0] sm:$0xff] %v782
                %v784 = vld [vmem:[%s148 + $0x13c8] sm:$0xff]
                %785 = vst [vmem:[%s149 + $0x9e8] sm:$0xff] %v784
                %v786 = vld [vmem:[%s148 + $0x13e0] sm:$0xff]
                %787 = vst [vmem:[%s149 + $0x9f0] sm:$0xff] %v786
                %v788 = vld [vmem:[%s148 + $0x13e8] sm:$0xff]
                %789 = vst [vmem:[%s149 + $0x9f8] sm:$0xff] %v788
                %v790 = vld [vmem:[%s148 + $0x1400] sm:$0xff]
                %791 = vst [vmem:[%s149 + $0xa00] sm:$0xff] %v790
                %v792 = vld [vmem:[%s148 + $0x1408] sm:$0xff]
                %793 = vst [vmem:[%s149 + $0xa08] sm:$0xff] %v792
                %v794 = vld [vmem:[%s148 + $0x1420] sm:$0xff]
                %795 = vst [vmem:[%s149 + $0xa10] sm:$0xff] %v794
                %v796 = vld [vmem:[%s148 + $0x1428] sm:$0xff]
                %797 = vst [vmem:[%s149 + $0xa18] sm:$0xff] %v796
                %v798 = vld [vmem:[%s148 + $0x1440] sm:$0xff]
                %799 = vst [vmem:[%s149 + $0xa20] sm:$0xff] %v798
                %v800 = vld [vmem:[%s148 + $0x1448] sm:$0xff]
                %801 = vst [vmem:[%s149 + $0xa28] sm:$0xff] %v800
                %v802 = vld [vmem:[%s148 + $0x1460] sm:$0xff]
                %803 = vst [vmem:[%s149 + $0xa30] sm:$0xff] %v802
                %v804 = vld [vmem:[%s148 + $0x1468] sm:$0xff]
                %805 = vst [vmem:[%s149 + $0xa38] sm:$0xff] %v804
                %v806 = vld [vmem:[%s148 + $0x1480] sm:$0xff]
                %807 = vst [vmem:[%s149 + $0xa40] sm:$0xff] %v806
                %v808 = vld [vmem:[%s148 + $0x1488] sm:$0xff]
                %809 = vst [vmem:[%s149 + $0xa48] sm:$0xff] %v808
                %v810 = vld [vmem:[%s148 + $0x14a0] sm:$0xff]
                %811 = vst [vmem:[%s149 + $0xa50] sm:$0xff] %v810
                %v812 = vld [vmem:[%s148 + $0x14a8] sm:$0xff]
                %813 = vst [vmem:[%s149 + $0xa58] sm:$0xff] %v812
                %v814 = vld [vmem:[%s148 + $0x14c0] sm:$0xff]
                %815 = vst [vmem:[%s149 + $0xa60] sm:$0xff] %v814
                %v816 = vld [vmem:[%s148 + $0x14c8] sm:$0xff]
                %817 = vst [vmem:[%s149 + $0xa68] sm:$0xff] %v816
                %v818 = vld [vmem:[%s148 + $0x14e0] sm:$0xff]
                %819 = vst [vmem:[%s149 + $0xa70] sm:$0xff] %v818
                %v820 = vld [vmem:[%s148 + $0x14e8] sm:$0xff]
                %821 = vst [vmem:[%s149 + $0xa78] sm:$0xff] %v820
                %v822 = vld [vmem:[%s148 + $0x1500] sm:$0xff]
                %823 = vst [vmem:[%s149 + $0xa80] sm:$0xff] %v822
                %v824 = vld [vmem:[%s148 + $0x1508] sm:$0xff]
                %825 = vst [vmem:[%s149 + $0xa88] sm:$0xff] %v824
                %v826 = vld [vmem:[%s148 + $0x1520] sm:$0xff]
                %827 = vst [vmem:[%s149 + $0xa90] sm:$0xff] %v826
                %v828 = vld [vmem:[%s148 + $0x1528] sm:$0xff]
                %829 = vst [vmem:[%s149 + $0xa98] sm:$0xff] %v828
                %v830 = vld [vmem:[%s148 + $0x1540] sm:$0xff]
                %831 = vst [vmem:[%s149 + $0xaa0] sm:$0xff] %v830
                %v832 = vld [vmem:[%s148 + $0x1548] sm:$0xff]
                %833 = vst [vmem:[%s149 + $0xaa8] sm:$0xff] %v832
                %v834 = vld [vmem:[%s148 + $0x1560] sm:$0xff]
                %835 = vst [vmem:[%s149 + $0xab0] sm:$0xff] %v834
                %v836 = vld [vmem:[%s148 + $0x1568] sm:$0xff]
                %837 = vst [vmem:[%s149 + $0xab8] sm:$0xff] %v836
                %v838 = vld [vmem:[%s148 + $0x1580] sm:$0xff]
                %839 = vst [vmem:[%s149 + $0xac0] sm:$0xff] %v838
                %v840 = vld [vmem:[%s148 + $0x1588] sm:$0xff]
                %841 = vst [vmem:[%s149 + $0xac8] sm:$0xff] %v840
                %v842 = vld [vmem:[%s148 + $0x15a0] sm:$0xff]
                %843 = vst [vmem:[%s149 + $0xad0] sm:$0xff] %v842
                %v844 = vld [vmem:[%s148 + $0x15a8] sm:$0xff]
                %845 = vst [vmem:[%s149 + $0xad8] sm:$0xff] %v844
                %v846 = vld [vmem:[%s148 + $0x15c0] sm:$0xff]
                %847 = vst [vmem:[%s149 + $0xae0] sm:$0xff] %v846
                %v848 = vld [vmem:[%s148 + $0x15c8] sm:$0xff]
                %849 = vst [vmem:[%s149 + $0xae8] sm:$0xff] %v848
                %v850 = vld [vmem:[%s148 + $0x15e0] sm:$0xff]
                %851 = vst [vmem:[%s149 + $0xaf0] sm:$0xff] %v850
                %v852 = vld [vmem:[%s148 + $0x15e8] sm:$0xff]
                %853 = vst [vmem:[%s149 + $0xaf8] sm:$0xff] %v852
                %v854 = vld [vmem:[%s148 + $0x1600] sm:$0xff]
                %855 = vst [vmem:[%s149 + $0xb00] sm:$0xff] %v854
                %v856 = vld [vmem:[%s148 + $0x1608] sm:$0xff]
                %857 = vst [vmem:[%s149 + $0xb08] sm:$0xff] %v856
                %v858 = vld [vmem:[%s148 + $0x1620] sm:$0xff]
                %859 = vst [vmem:[%s149 + $0xb10] sm:$0xff] %v858
                %v860 = vld [vmem:[%s148 + $0x1628] sm:$0xff]
                %861 = vst [vmem:[%s149 + $0xb18] sm:$0xff] %v860
                %v862 = vld [vmem:[%s148 + $0x1640] sm:$0xff]
                %863 = vst [vmem:[%s149 + $0xb20] sm:$0xff] %v862
                %v864 = vld [vmem:[%s148 + $0x1648] sm:$0xff]
                %865 = vst [vmem:[%s149 + $0xb28] sm:$0xff] %v864
                %v866 = vld [vmem:[%s148 + $0x1660] sm:$0xff]
                %867 = vst [vmem:[%s149 + $0xb30] sm:$0xff] %v866
                %v868 = vld [vmem:[%s148 + $0x1668] sm:$0xff]
                %869 = vst [vmem:[%s149 + $0xb38] sm:$0xff] %v868
                %v870 = vld [vmem:[%s148 + $0x1680] sm:$0xff]
                %871 = vst [vmem:[%s149 + $0xb40] sm:$0xff] %v870
                %v872 = vld [vmem:[%s148 + $0x1688] sm:$0xff]
                %873 = vst [vmem:[%s149 + $0xb48] sm:$0xff] %v872
                %v874 = vld [vmem:[%s148 + $0x16a0] sm:$0xff]
                %875 = vst [vmem:[%s149 + $0xb50] sm:$0xff] %v874
                %v876 = vld [vmem:[%s148 + $0x16a8] sm:$0xff]
                %877 = vst [vmem:[%s149 + $0xb58] sm:$0xff] %v876
                %v878 = vld [vmem:[%s148 + $0x16c0] sm:$0xff]
                %879 = vst [vmem:[%s149 + $0xb60] sm:$0xff] %v878
                %v880 = vld [vmem:[%s148 + $0x16c8] sm:$0xff]
                %881 = vst [vmem:[%s149 + $0xb68] sm:$0xff] %v880
                %v882 = vld [vmem:[%s148 + $0x16e0] sm:$0xff]
                %883 = vst [vmem:[%s149 + $0xb70] sm:$0xff] %v882
                %v884 = vld [vmem:[%s148 + $0x16e8] sm:$0xff]
                %885 = vst [vmem:[%s149 + $0xb78] sm:$0xff] %v884
                %v886 = vld [vmem:[%s148 + $0x1700] sm:$0xff]
                %887 = vst [vmem:[%s149 + $0xb80] sm:$0xff] %v886
                %v888 = vld [vmem:[%s148 + $0x1708] sm:$0xff]
                %889 = vst [vmem:[%s149 + $0xb88] sm:$0xff] %v888
                %v890 = vld [vmem:[%s148 + $0x1720] sm:$0xff]
                %891 = vst [vmem:[%s149 + $0xb90] sm:$0xff] %v890
                %v892 = vld [vmem:[%s148 + $0x1728] sm:$0xff]
                %893 = vst [vmem:[%s149 + $0xb98] sm:$0xff] %v892
                %v894 = vld [vmem:[%s148 + $0x1740] sm:$0xff]
                %895 = vst [vmem:[%s149 + $0xba0] sm:$0xff] %v894
                %v896 = vld [vmem:[%s148 + $0x1748] sm:$0xff]
                %897 = vst [vmem:[%s149 + $0xba8] sm:$0xff] %v896
                %v898 = vld [vmem:[%s148 + $0x1760] sm:$0xff]
                %899 = vst [vmem:[%s149 + $0xbb0] sm:$0xff] %v898
                %v900 = vld [vmem:[%s148 + $0x1768] sm:$0xff]
                %901 = vst [vmem:[%s149 + $0xbb8] sm:$0xff] %v900
                %v902 = vld [vmem:[%s148 + $0x1780] sm:$0xff]
                %903 = vst [vmem:[%s149 + $0xbc0] sm:$0xff] %v902
                %v904 = vld [vmem:[%s148 + $0x1788] sm:$0xff]
                %905 = vst [vmem:[%s149 + $0xbc8] sm:$0xff] %v904
                %v906 = vld [vmem:[%s148 + $0x17a0] sm:$0xff]
                %907 = vst [vmem:[%s149 + $0xbd0] sm:$0xff] %v906
                %v908 = vld [vmem:[%s148 + $0x17a8] sm:$0xff]
                %909 = vst [vmem:[%s149 + $0xbd8] sm:$0xff] %v908
                %v910 = vld [vmem:[%s148 + $0x17c0] sm:$0xff]
                %911 = vst [vmem:[%s149 + $0xbe0] sm:$0xff] %v910
                %v912 = vld [vmem:[%s148 + $0x17c8] sm:$0xff]
                %913 = vst [vmem:[%s149 + $0xbe8] sm:$0xff] %v912
                %v914 = vld [vmem:[%s148 + $0x17e0] sm:$0xff]
                %915 = vst [vmem:[%s149 + $0xbf0] sm:$0xff] %v914
                %v916 = vld [vmem:[%s148 + $0x17e8] sm:$0xff]
                %917 = vst [vmem:[%s149 + $0xbf8] sm:$0xff] %v916
                %v918 = vld [vmem:[%s148 + $0x1800] sm:$0xff]
                %919 = vst [vmem:[%s149 + $0xc00] sm:$0xff] %v918
                %v920 = vld [vmem:[%s148 + $0x1808] sm:$0xff]
                %921 = vst [vmem:[%s149 + $0xc08] sm:$0xff] %v920
                %v922 = vld [vmem:[%s148 + $0x1820] sm:$0xff]
                %923 = vst [vmem:[%s149 + $0xc10] sm:$0xff] %v922
                %v924 = vld [vmem:[%s148 + $0x1828] sm:$0xff]
                %925 = vst [vmem:[%s149 + $0xc18] sm:$0xff] %v924
                %v926 = vld [vmem:[%s148 + $0x1840] sm:$0xff]
                %927 = vst [vmem:[%s149 + $0xc20] sm:$0xff] %v926
                %v928 = vld [vmem:[%s148 + $0x1848] sm:$0xff]
                %929 = vst [vmem:[%s149 + $0xc28] sm:$0xff] %v928
                %v930 = vld [vmem:[%s148 + $0x1860] sm:$0xff]
                %931 = vst [vmem:[%s149 + $0xc30] sm:$0xff] %v930
                %v932 = vld [vmem:[%s148 + $0x1868] sm:$0xff]
                %933 = vst [vmem:[%s149 + $0xc38] sm:$0xff] %v932
                %v934 = vld [vmem:[%s148 + $0x1880] sm:$0xff]
                %935 = vst [vmem:[%s149 + $0xc40] sm:$0xff] %v934
                %v936 = vld [vmem:[%s148 + $0x1888] sm:$0xff]
                %937 = vst [vmem:[%s149 + $0xc48] sm:$0xff] %v936
                %v938 = vld [vmem:[%s148 + $0x18a0] sm:$0xff]
                %939 = vst [vmem:[%s149 + $0xc50] sm:$0xff] %v938
                %v940 = vld [vmem:[%s148 + $0x18a8] sm:$0xff]
                %941 = vst [vmem:[%s149 + $0xc58] sm:$0xff] %v940
                %v942 = vld [vmem:[%s148 + $0x18c0] sm:$0xff]
                %943 = vst [vmem:[%s149 + $0xc60] sm:$0xff] %v942
                %v944 = vld [vmem:[%s148 + $0x18c8] sm:$0xff]
                %945 = vst [vmem:[%s149 + $0xc68] sm:$0xff] %v944
                %v946 = vld [vmem:[%s148 + $0x18e0] sm:$0xff]
                %947 = vst [vmem:[%s149 + $0xc70] sm:$0xff] %v946
                %v948 = vld [vmem:[%s148 + $0x18e8] sm:$0xff]
                %949 = vst [vmem:[%s149 + $0xc78] sm:$0xff] %v948
                %v950 = vld [vmem:[%s148 + $0x1900] sm:$0xff]
                %951 = vst [vmem:[%s149 + $0xc80] sm:$0xff] %v950
                %v952 = vld [vmem:[%s148 + $0x1908] sm:$0xff]
                %953 = vst [vmem:[%s149 + $0xc88] sm:$0xff] %v952
                %v954 = vld [vmem:[%s148 + $0x1920] sm:$0xff]
                %955 = vst [vmem:[%s149 + $0xc90] sm:$0xff] %v954
                %v956 = vld [vmem:[%s148 + $0x1928] sm:$0xff]
                %957 = vst [vmem:[%s149 + $0xc98] sm:$0xff] %v956
                %v958 = vld [vmem:[%s148 + $0x1940] sm:$0xff]
                %959 = vst [vmem:[%s149 + $0xca0] sm:$0xff] %v958
                %v960 = vld [vmem:[%s148 + $0x1948] sm:$0xff]
                %961 = vst [vmem:[%s149 + $0xca8] sm:$0xff] %v960
                %v962 = vld [vmem:[%s148 + $0x1960] sm:$0xff]
                %963 = vst [vmem:[%s149 + $0xcb0] sm:$0xff] %v962
                %v964 = vld [vmem:[%s148 + $0x1968] sm:$0xff]
                %965 = vst [vmem:[%s149 + $0xcb8] sm:$0xff] %v964
                %v966 = vld [vmem:[%s148 + $0x1980] sm:$0xff]
                %967 = vst [vmem:[%s149 + $0xcc0] sm:$0xff] %v966
                %v968 = vld [vmem:[%s148 + $0x1988] sm:$0xff]
                %969 = vst [vmem:[%s149 + $0xcc8] sm:$0xff] %v968
                %v970 = vld [vmem:[%s148 + $0x19a0] sm:$0xff]
                %971 = vst [vmem:[%s149 + $0xcd0] sm:$0xff] %v970
                %v972 = vld [vmem:[%s148 + $0x19a8] sm:$0xff]
                %973 = vst [vmem:[%s149 + $0xcd8] sm:$0xff] %v972
                %v974 = vld [vmem:[%s148 + $0x19c0] sm:$0xff]
                %975 = vst [vmem:[%s149 + $0xce0] sm:$0xff] %v974
                %v976 = vld [vmem:[%s148 + $0x19c8] sm:$0xff]
                %977 = vst [vmem:[%s149 + $0xce8] sm:$0xff] %v976
                %v978 = vld [vmem:[%s148 + $0x19e0] sm:$0xff]
                %979 = vst [vmem:[%s149 + $0xcf0] sm:$0xff] %v978
                %v980 = vld [vmem:[%s148 + $0x19e8] sm:$0xff]
                %981 = vst [vmem:[%s149 + $0xcf8] sm:$0xff] %v980
                %v982 = vld [vmem:[%s148 + $0x1a00] sm:$0xff]
                %983 = vst [vmem:[%s149 + $0xd00] sm:$0xff] %v982
                %v984 = vld [vmem:[%s148 + $0x1a08] sm:$0xff]
                %985 = vst [vmem:[%s149 + $0xd08] sm:$0xff] %v984
                %v986 = vld [vmem:[%s148 + $0x1a20] sm:$0xff]
                %987 = vst [vmem:[%s149 + $0xd10] sm:$0xff] %v986
                %v988 = vld [vmem:[%s148 + $0x1a28] sm:$0xff]
                %989 = vst [vmem:[%s149 + $0xd18] sm:$0xff] %v988
                %v990 = vld [vmem:[%s148 + $0x1a40] sm:$0xff]
                %991 = vst [vmem:[%s149 + $0xd20] sm:$0xff] %v990
                %v992 = vld [vmem:[%s148 + $0x1a48] sm:$0xff]
                %993 = vst [vmem:[%s149 + $0xd28] sm:$0xff] %v992
                %v994 = vld [vmem:[%s148 + $0x1a60] sm:$0xff]
                %995 = vst [vmem:[%s149 + $0xd30] sm:$0xff] %v994
                %v996 = vld [vmem:[%s148 + $0x1a68] sm:$0xff]
                %997 = vst [vmem:[%s149 + $0xd38] sm:$0xff] %v996
                %v998 = vld [vmem:[%s148 + $0x1a80] sm:$0xff]
                %999 = vst [vmem:[%s149 + $0xd40] sm:$0xff] %v998
                %v1000 = vld [vmem:[%s148 + $0x1a88] sm:$0xff]
                %1001 = vst [vmem:[%s149 + $0xd48] sm:$0xff] %v1000
                %v1002 = vld [vmem:[%s148 + $0x1aa0] sm:$0xff]
                %1003 = vst [vmem:[%s149 + $0xd50] sm:$0xff] %v1002
                %v1004 = vld [vmem:[%s148 + $0x1aa8] sm:$0xff]
                %1005 = vst [vmem:[%s149 + $0xd58] sm:$0xff] %v1004
                %v1006 = vld [vmem:[%s148 + $0x1ac0] sm:$0xff]
                %1007 = vst [vmem:[%s149 + $0xd60] sm:$0xff] %v1006
                %v1008 = vld [vmem:[%s148 + $0x1ac8] sm:$0xff]
                %1009 = vst [vmem:[%s149 + $0xd68] sm:$0xff] %v1008
                %v1010 = vld [vmem:[%s148 + $0x1ae0] sm:$0xff]
                %1011 = vst [vmem:[%s149 + $0xd70] sm:$0xff] %v1010
                %v1012 = vld [vmem:[%s148 + $0x1ae8] sm:$0xff]
                %1013 = vst [vmem:[%s149 + $0xd78] sm:$0xff] %v1012
                %v1014 = vld [vmem:[%s148 + $0x1b00] sm:$0xff]
                %1015 = vst [vmem:[%s149 + $0xd80] sm:$0xff] %v1014
                %v1016 = vld [vmem:[%s148 + $0x1b08] sm:$0xff]
                %1017 = vst [vmem:[%s149 + $0xd88] sm:$0xff] %v1016
                %v1018 = vld [vmem:[%s148 + $0x1b20] sm:$0xff]
                %1019 = vst [vmem:[%s149 + $0xd90] sm:$0xff] %v1018
                %v1020 = vld [vmem:[%s148 + $0x1b28] sm:$0xff]
                %1021 = vst [vmem:[%s149 + $0xd98] sm:$0xff] %v1020
                %v1022 = vld [vmem:[%s148 + $0x1b40] sm:$0xff]
                %1023 = vst [vmem:[%s149 + $0xda0] sm:$0xff] %v1022
                %v1024 = vld [vmem:[%s148 + $0x1b48] sm:$0xff]
                %1025 = vst [vmem:[%s149 + $0xda8] sm:$0xff] %v1024
                %v1026 = vld [vmem:[%s148 + $0x1b60] sm:$0xff]
                %1027 = vst [vmem:[%s149 + $0xdb0] sm:$0xff] %v1026
                %v1028 = vld [vmem:[%s148 + $0x1b68] sm:$0xff]
                %1029 = vst [vmem:[%s149 + $0xdb8] sm:$0xff] %v1028
                %v1030 = vld [vmem:[%s148 + $0x1b80] sm:$0xff]
                %1031 = vst [vmem:[%s149 + $0xdc0] sm:$0xff] %v1030
                %v1032 = vld [vmem:[%s148 + $0x1b88] sm:$0xff]
                %1033 = vst [vmem:[%s149 + $0xdc8] sm:$0xff] %v1032
                %v1034 = vld [vmem:[%s148 + $0x1ba0] sm:$0xff]
                %1035 = vst [vmem:[%s149 + $0xdd0] sm:$0xff] %v1034
                %v1036 = vld [vmem:[%s148 + $0x1ba8] sm:$0xff]
                %1037 = vst [vmem:[%s149 + $0xdd8] sm:$0xff] %v1036
                %v1038 = vld [vmem:[%s148 + $0x1bc0] sm:$0xff]
                %1039 = vst [vmem:[%s149 + $0xde0] sm:$0xff] %v1038
                %v1040 = vld [vmem:[%s148 + $0x1bc8] sm:$0xff]
                %1041 = vst [vmem:[%s149 + $0xde8] sm:$0xff] %v1040
                %v1042 = vld [vmem:[%s148 + $0x1be0] sm:$0xff]
                %1043 = vst [vmem:[%s149 + $0xdf0] sm:$0xff] %v1042
                %v1044 = vld [vmem:[%s148 + $0x1be8] sm:$0xff]
                %1045 = vst [vmem:[%s149 + $0xdf8] sm:$0xff] %v1044
                %v1046 = vld [vmem:[%s148 + $0x1c00] sm:$0xff]
                %1047 = vst [vmem:[%s149 + $0xe00] sm:$0xff] %v1046
                %v1048 = vld [vmem:[%s148 + $0x1c08] sm:$0xff]
                %1049 = vst [vmem:[%s149 + $0xe08] sm:$0xff] %v1048
                %v1050 = vld [vmem:[%s148 + $0x1c20] sm:$0xff]
                %1051 = vst [vmem:[%s149 + $0xe10] sm:$0xff] %v1050
                %v1052 = vld [vmem:[%s148 + $0x1c28] sm:$0xff]
                %1053 = vst [vmem:[%s149 + $0xe18] sm:$0xff] %v1052
                %v1054 = vld [vmem:[%s148 + $0x1c40] sm:$0xff]
                %1055 = vst [vmem:[%s149 + $0xe20] sm:$0xff] %v1054
                %v1056 = vld [vmem:[%s148 + $0x1c48] sm:$0xff]
                %1057 = vst [vmem:[%s149 + $0xe28] sm:$0xff] %v1056
                %v1058 = vld [vmem:[%s148 + $0x1c60] sm:$0xff]
                %1059 = vst [vmem:[%s149 + $0xe30] sm:$0xff] %v1058
                %v1060 = vld [vmem:[%s148 + $0x1c68] sm:$0xff]
                %1061 = vst [vmem:[%s149 + $0xe38] sm:$0xff] %v1060
                %v1062 = vld [vmem:[%s148 + $0x1c80] sm:$0xff]
                %1063 = vst [vmem:[%s149 + $0xe40] sm:$0xff] %v1062
                %v1064 = vld [vmem:[%s148 + $0x1c88] sm:$0xff]
                %1065 = vst [vmem:[%s149 + $0xe48] sm:$0xff] %v1064
                %v1066 = vld [vmem:[%s148 + $0x1ca0] sm:$0xff]
                %1067 = vst [vmem:[%s149 + $0xe50] sm:$0xff] %v1066
                %v1068 = vld [vmem:[%s148 + $0x1ca8] sm:$0xff]
                %1069 = vst [vmem:[%s149 + $0xe58] sm:$0xff] %v1068
                %v1070 = vld [vmem:[%s148 + $0x1cc0] sm:$0xff]
                %1071 = vst [vmem:[%s149 + $0xe60] sm:$0xff] %v1070
                %v1072 = vld [vmem:[%s148 + $0x1cc8] sm:$0xff]
                %1073 = vst [vmem:[%s149 + $0xe68] sm:$0xff] %v1072
                %v1074 = vld [vmem:[%s148 + $0x1ce0] sm:$0xff]
                %1075 = vst [vmem:[%s149 + $0xe70] sm:$0xff] %v1074
                %v1076 = vld [vmem:[%s148 + $0x1ce8] sm:$0xff]
                %1077 = vst [vmem:[%s149 + $0xe78] sm:$0xff] %v1076
                %v1078 = vld [vmem:[%s148 + $0x1d00] sm:$0xff]
                %1079 = vst [vmem:[%s149 + $0xe80] sm:$0xff] %v1078
                %v1080 = vld [vmem:[%s148 + $0x1d08] sm:$0xff]
                %1081 = vst [vmem:[%s149 + $0xe88] sm:$0xff] %v1080
                %v1082 = vld [vmem:[%s148 + $0x1d20] sm:$0xff]
                %1083 = vst [vmem:[%s149 + $0xe90] sm:$0xff] %v1082
                %v1084 = vld [vmem:[%s148 + $0x1d28] sm:$0xff]
                %1085 = vst [vmem:[%s149 + $0xe98] sm:$0xff] %v1084
                %v1086 = vld [vmem:[%s148 + $0x1d40] sm:$0xff]
                %1087 = vst [vmem:[%s149 + $0xea0] sm:$0xff] %v1086
                %v1088 = vld [vmem:[%s148 + $0x1d48] sm:$0xff]
                %1089 = vst [vmem:[%s149 + $0xea8] sm:$0xff] %v1088
                %v1090 = vld [vmem:[%s148 + $0x1d60] sm:$0xff]
                %1091 = vst [vmem:[%s149 + $0xeb0] sm:$0xff] %v1090
                %v1092 = vld [vmem:[%s148 + $0x1d68] sm:$0xff]
                %1093 = vst [vmem:[%s149 + $0xeb8] sm:$0xff] %v1092
                %v1094 = vld [vmem:[%s148 + $0x1d80] sm:$0xff]
                %1095 = vst [vmem:[%s149 + $0xec0] sm:$0xff] %v1094
                %v1096 = vld [vmem:[%s148 + $0x1d88] sm:$0xff]
                %1097 = vst [vmem:[%s149 + $0xec8] sm:$0xff] %v1096
                %v1098 = vld [vmem:[%s148 + $0x1da0] sm:$0xff]
                %1099 = vst [vmem:[%s149 + $0xed0] sm:$0xff] %v1098
                %v1100 = vld [vmem:[%s148 + $0x1da8] sm:$0xff]
                %1101 = vst [vmem:[%s149 + $0xed8] sm:$0xff] %v1100
                %v1102 = vld [vmem:[%s148 + $0x1dc0] sm:$0xff]
                %1103 = vst [vmem:[%s149 + $0xee0] sm:$0xff] %v1102
                %v1104 = vld [vmem:[%s148 + $0x1dc8] sm:$0xff]
                %1105 = vst [vmem:[%s149 + $0xee8] sm:$0xff] %v1104
                %v1106 = vld [vmem:[%s148 + $0x1de0] sm:$0xff]
                %1107 = vst [vmem:[%s149 + $0xef0] sm:$0xff] %v1106
                %v1108 = vld [vmem:[%s148 + $0x1de8] sm:$0xff]
                %1109 = vst [vmem:[%s149 + $0xef8] sm:$0xff] %v1108
                %v1110 = vld [vmem:[%s148 + $0x1e00] sm:$0xff]
                %1111 = vst [vmem:[%s149 + $0xf00] sm:$0xff] %v1110
                %v1112 = vld [vmem:[%s148 + $0x1e08] sm:$0xff]
                %1113 = vst [vmem:[%s149 + $0xf08] sm:$0xff] %v1112
                %v1114 = vld [vmem:[%s148 + $0x1e20] sm:$0xff]
                %1115 = vst [vmem:[%s149 + $0xf10] sm:$0xff] %v1114
                %v1116 = vld [vmem:[%s148 + $0x1e28] sm:$0xff]
                %1117 = vst [vmem:[%s149 + $0xf18] sm:$0xff] %v1116
                %v1118 = vld [vmem:[%s148 + $0x1e40] sm:$0xff]
                %1119 = vst [vmem:[%s149 + $0xf20] sm:$0xff] %v1118
                %v1120 = vld [vmem:[%s148 + $0x1e48] sm:$0xff]
                %1121 = vst [vmem:[%s149 + $0xf28] sm:$0xff] %v1120
                %v1122 = vld [vmem:[%s148 + $0x1e60] sm:$0xff]
                %1123 = vst [vmem:[%s149 + $0xf30] sm:$0xff] %v1122
                %v1124 = vld [vmem:[%s148 + $0x1e68] sm:$0xff]
                %1125 = vst [vmem:[%s149 + $0xf38] sm:$0xff] %v1124
                %v1126 = vld [vmem:[%s148 + $0x1e80] sm:$0xff]
                %1127 = vst [vmem:[%s149 + $0xf40] sm:$0xff] %v1126
                %v1128 = vld [vmem:[%s148 + $0x1e88] sm:$0xff]
                %1129 = vst [vmem:[%s149 + $0xf48] sm:$0xff] %v1128
                %v1130 = vld [vmem:[%s148 + $0x1ea0] sm:$0xff]
                %1131 = vst [vmem:[%s149 + $0xf50] sm:$0xff] %v1130
                %v1132 = vld [vmem:[%s148 + $0x1ea8] sm:$0xff]
                %1133 = vst [vmem:[%s149 + $0xf58] sm:$0xff] %v1132
                %v1134 = vld [vmem:[%s148 + $0x1ec0] sm:$0xff]
                %1135 = vst [vmem:[%s149 + $0xf60] sm:$0xff] %v1134
                %v1136 = vld [vmem:[%s148 + $0x1ec8] sm:$0xff]
                %1137 = vst [vmem:[%s149 + $0xf68] sm:$0xff] %v1136
                %v1138 = vld [vmem:[%s148 + $0x1ee0] sm:$0xff]
                %1139 = vst [vmem:[%s149 + $0xf70] sm:$0xff] %v1138
                %v1140 = vld [vmem:[%s148 + $0x1ee8] sm:$0xff]
                %1141 = vst [vmem:[%s149 + $0xf78] sm:$0xff] %v1140
                %v1142 = vld [vmem:[%s148 + $0x1f00] sm:$0xff]
                %1143 = vst [vmem:[%s149 + $0xf80] sm:$0xff] %v1142
                %v1144 = vld [vmem:[%s148 + $0x1f08] sm:$0xff]
                %1145 = vst [vmem:[%s149 + $0xf88] sm:$0xff] %v1144
                %v1146 = vld [vmem:[%s148 + $0x1f20] sm:$0xff]
                %1147 = vst [vmem:[%s149 + $0xf90] sm:$0xff] %v1146
                %v1148 = vld [vmem:[%s148 + $0x1f28] sm:$0xff]
                %1149 = vst [vmem:[%s149 + $0xf98] sm:$0xff] %v1148
                %v1150 = vld [vmem:[%s148 + $0x1f40] sm:$0xff]
                %1151 = vst [vmem:[%s149 + $0xfa0] sm:$0xff] %v1150
                %v1152 = vld [vmem:[%s148 + $0x1f48] sm:$0xff]
                %1153 = vst [vmem:[%s149 + $0xfa8] sm:$0xff] %v1152
                %v1154 = vld [vmem:[%s148 + $0x1f60] sm:$0xff]
                %1155 = vst [vmem:[%s149 + $0xfb0] sm:$0xff] %v1154
                %v1156 = vld [vmem:[%s148 + $0x1f68] sm:$0xff]
                %1157 = vst [vmem:[%s149 + $0xfb8] sm:$0xff] %v1156
                %v1158 = vld [vmem:[%s148 + $0x1f80] sm:$0xff]
                %1159 = vst [vmem:[%s149 + $0xfc0] sm:$0xff] %v1158
                %v1160 = vld [vmem:[%s148 + $0x1f88] sm:$0xff]
                %1161 = vst [vmem:[%s149 + $0xfc8] sm:$0xff] %v1160
                %v1162 = vld [vmem:[%s148 + $0x1fa0] sm:$0xff]
                %1163 = vst [vmem:[%s149 + $0xfd0] sm:$0xff] %v1162
                %v1164 = vld [vmem:[%s148 + $0x1fa8] sm:$0xff]
                %1165 = vst [vmem:[%s149 + $0xfd8] sm:$0xff] %v1164
                %v1166 = vld [vmem:[%s148 + $0x1fc0] sm:$0xff]
                %1167 = vst [vmem:[%s149 + $0xfe0] sm:$0xff] %v1166
                %v1168 = vld [vmem:[%s148 + $0x1fc8] sm:$0xff]
                %1169 = vst [vmem:[%s149 + $0xfe8] sm:$0xff] %v1168
                %v1170 = vld [vmem:[%s148 + $0x1fe0] sm:$0xff]
                %1171 = vst [vmem:[%s149 + $0xff0] sm:$0xff] %v1170
                %v1172 = vld [vmem:[%s148 + $0x1fe8] sm:$0xff]
                %1173 = vst [vmem:[%s149 + $0xff8] sm:$0xff] %v1172
                %v1174 = vld [vmem:[%s148 + $0x2000] sm:$0xff]
                %1175 = vst [vmem:[%s149 + $0x1000] sm:$0xff] %v1174
                %v1176 = vld [vmem:[%s148 + $0x2008] sm:$0xff]
                %1177 = vst [vmem:[%s149 + $0x1008] sm:$0xff] %v1176
                %v1178 = vld [vmem:[%s148 + $0x2020] sm:$0xff]
                %1179 = vst [vmem:[%s149 + $0x1010] sm:$0xff] %v1178
                %v1180 = vld [vmem:[%s148 + $0x2028] sm:$0xff]
                %1181 = vst [vmem:[%s149 + $0x1018] sm:$0xff] %v1180
                %v1182 = vld [vmem:[%s148 + $0x2040] sm:$0xff]
                %1183 = vst [vmem:[%s149 + $0x1020] sm:$0xff] %v1182
                %v1184 = vld [vmem:[%s148 + $0x2048] sm:$0xff]
                %1185 = vst [vmem:[%s149 + $0x1028] sm:$0xff] %v1184
                %v1186 = vld [vmem:[%s148 + $0x2060] sm:$0xff]
                %1187 = vst [vmem:[%s149 + $0x1030] sm:$0xff] %v1186
                %v1188 = vld [vmem:[%s148 + $0x2068] sm:$0xff]
                %1189 = vst [vmem:[%s149 + $0x1038] sm:$0xff] %v1188
                %v1190 = vld [vmem:[%s148 + $0x2080] sm:$0xff]
                %1191 = vst [vmem:[%s149 + $0x1040] sm:$0xff] %v1190
                %v1192 = vld [vmem:[%s148 + $0x2088] sm:$0xff]
                %1193 = vst [vmem:[%s149 + $0x1048] sm:$0xff] %v1192
                %v1194 = vld [vmem:[%s148 + $0x20a0] sm:$0xff]
                %1195 = vst [vmem:[%s149 + $0x1050] sm:$0xff] %v1194
                %v1196 = vld [vmem:[%s148 + $0x20a8] sm:$0xff]
                %1197 = vst [vmem:[%s149 + $0x1058] sm:$0xff] %v1196
                %v1198 = vld [vmem:[%s148 + $0x20c0] sm:$0xff]
                %1199 = vst [vmem:[%s149 + $0x1060] sm:$0xff] %v1198
                %v1200 = vld [vmem:[%s148 + $0x20c8] sm:$0xff]
                %1201 = vst [vmem:[%s149 + $0x1068] sm:$0xff] %v1200
                %v1202 = vld [vmem:[%s148 + $0x20e0] sm:$0xff]
                %1203 = vst [vmem:[%s149 + $0x1070] sm:$0xff] %v1202
                %v1204 = vld [vmem:[%s148 + $0x20e8] sm:$0xff]
                %1205 = vst [vmem:[%s149 + $0x1078] sm:$0xff] %v1204
                %v1206 = vld [vmem:[%s148 + $0x2100] sm:$0xff]
                %1207 = vst [vmem:[%s149 + $0x1080] sm:$0xff] %v1206
                %v1208 = vld [vmem:[%s148 + $0x2108] sm:$0xff]
                %1209 = vst [vmem:[%s149 + $0x1088] sm:$0xff] %v1208
                %v1210 = vld [vmem:[%s148 + $0x2120] sm:$0xff]
                %1211 = vst [vmem:[%s149 + $0x1090] sm:$0xff] %v1210
                %v1212 = vld [vmem:[%s148 + $0x2128] sm:$0xff]
                %1213 = vst [vmem:[%s149 + $0x1098] sm:$0xff] %v1212
                %v1214 = vld [vmem:[%s148 + $0x2140] sm:$0xff]
                %1215 = vst [vmem:[%s149 + $0x10a0] sm:$0xff] %v1214
                %v1216 = vld [vmem:[%s148 + $0x2148] sm:$0xff]
                %1217 = vst [vmem:[%s149 + $0x10a8] sm:$0xff] %v1216
                %v1218 = vld [vmem:[%s148 + $0x2160] sm:$0xff]
                %1219 = vst [vmem:[%s149 + $0x10b0] sm:$0xff] %v1218
                %v1220 = vld [vmem:[%s148 + $0x2168] sm:$0xff]
                %1221 = vst [vmem:[%s149 + $0x10b8] sm:$0xff] %v1220
                %v1222 = vld [vmem:[%s148 + $0x2180] sm:$0xff]
                %1223 = vst [vmem:[%s149 + $0x10c0] sm:$0xff] %v1222
                %v1224 = vld [vmem:[%s148 + $0x2188] sm:$0xff]
                %1225 = vst [vmem:[%s149 + $0x10c8] sm:$0xff] %v1224
                %v1226 = vld [vmem:[%s148 + $0x21a0] sm:$0xff]
                %1227 = vst [vmem:[%s149 + $0x10d0] sm:$0xff] %v1226
                %v1228 = vld [vmem:[%s148 + $0x21a8] sm:$0xff]
                %1229 = vst [vmem:[%s149 + $0x10d8] sm:$0xff] %v1228
                %v1230 = vld [vmem:[%s148 + $0x21c0] sm:$0xff]
                %1231 = vst [vmem:[%s149 + $0x10e0] sm:$0xff] %v1230
                %v1232 = vld [vmem:[%s148 + $0x21c8] sm:$0xff]
                %1233 = vst [vmem:[%s149 + $0x10e8] sm:$0xff] %v1232
                %v1234 = vld [vmem:[%s148 + $0x21e0] sm:$0xff]
                %1235 = vst [vmem:[%s149 + $0x10f0] sm:$0xff] %v1234
                %v1236 = vld [vmem:[%s148 + $0x21e8] sm:$0xff]
                %1237 = vst [vmem:[%s149 + $0x10f8] sm:$0xff] %v1236
                %v1238 = vld [vmem:[%s148 + $0x2200] sm:$0xff]
                %1239 = vst [vmem:[%s149 + $0x1100] sm:$0xff] %v1238
                %v1240 = vld [vmem:[%s148 + $0x2208] sm:$0xff]
                %1241 = vst [vmem:[%s149 + $0x1108] sm:$0xff] %v1240
                %v1242 = vld [vmem:[%s148 + $0x2220] sm:$0xff]
                %1243 = vst [vmem:[%s149 + $0x1110] sm:$0xff] %v1242
                %v1244 = vld [vmem:[%s148 + $0x2228] sm:$0xff]
                %1245 = vst [vmem:[%s149 + $0x1118] sm:$0xff] %v1244
                %v1246 = vld [vmem:[%s148 + $0x2240] sm:$0xff]
                %1247 = vst [vmem:[%s149 + $0x1120] sm:$0xff] %v1246
                %v1248 = vld [vmem:[%s148 + $0x2248] sm:$0xff]
                %1249 = vst [vmem:[%s149 + $0x1128] sm:$0xff] %v1248
                %v1250 = vld [vmem:[%s148 + $0x2260] sm:$0xff]
                %1251 = vst [vmem:[%s149 + $0x1130] sm:$0xff] %v1250
                %v1252 = vld [vmem:[%s148 + $0x2268] sm:$0xff]
                %1253 = vst [vmem:[%s149 + $0x1138] sm:$0xff] %v1252
                %v1254 = vld [vmem:[%s148 + $0x2280] sm:$0xff]
                %1255 = vst [vmem:[%s149 + $0x1140] sm:$0xff] %v1254
                %v1256 = vld [vmem:[%s148 + $0x2288] sm:$0xff]
                %1257 = vst [vmem:[%s149 + $0x1148] sm:$0xff] %v1256
                %v1258 = vld [vmem:[%s148 + $0x22a0] sm:$0xff]
                %1259 = vst [vmem:[%s149 + $0x1150] sm:$0xff] %v1258
                %v1260 = vld [vmem:[%s148 + $0x22a8] sm:$0xff]
                %1261 = vst [vmem:[%s149 + $0x1158] sm:$0xff] %v1260
                %v1262 = vld [vmem:[%s148 + $0x22c0] sm:$0xff]
                %1263 = vst [vmem:[%s149 + $0x1160] sm:$0xff] %v1262
                %v1264 = vld [vmem:[%s148 + $0x22c8] sm:$0xff]
                %1265 = vst [vmem:[%s149 + $0x1168] sm:$0xff] %v1264
                %v1266 = vld [vmem:[%s148 + $0x22e0] sm:$0xff]
                %1267 = vst [vmem:[%s149 + $0x1170] sm:$0xff] %v1266
                %v1268 = vld [vmem:[%s148 + $0x22e8] sm:$0xff]
                %1269 = vst [vmem:[%s149 + $0x1178] sm:$0xff] %v1268
                %v1270 = vld [vmem:[%s148 + $0x2300] sm:$0xff]
                %1271 = vst [vmem:[%s149 + $0x1180] sm:$0xff] %v1270
                %v1272 = vld [vmem:[%s148 + $0x2308] sm:$0xff]
                %1273 = vst [vmem:[%s149 + $0x1188] sm:$0xff] %v1272
                %v1274 = vld [vmem:[%s148 + $0x2320] sm:$0xff]
                %1275 = vst [vmem:[%s149 + $0x1190] sm:$0xff] %v1274
                %v1276 = vld [vmem:[%s148 + $0x2328] sm:$0xff]
                %1277 = vst [vmem:[%s149 + $0x1198] sm:$0xff] %v1276
                %v1278 = vld [vmem:[%s148 + $0x2340] sm:$0xff]
                %1279 = vst [vmem:[%s149 + $0x11a0] sm:$0xff] %v1278
                %v1280 = vld [vmem:[%s148 + $0x2348] sm:$0xff]
                %1281 = vst [vmem:[%s149 + $0x11a8] sm:$0xff] %v1280
                %v1282 = vld [vmem:[%s148 + $0x2360] sm:$0xff]
                %1283 = vst [vmem:[%s149 + $0x11b0] sm:$0xff] %v1282
                %v1284 = vld [vmem:[%s148 + $0x2368] sm:$0xff]
                %1285 = vst [vmem:[%s149 + $0x11b8] sm:$0xff] %v1284
                %v1286 = vld [vmem:[%s148 + $0x2380] sm:$0xff]
                %1287 = vst [vmem:[%s149 + $0x11c0] sm:$0xff] %v1286
                %v1288 = vld [vmem:[%s148 + $0x2388] sm:$0xff]
                %1289 = vst [vmem:[%s149 + $0x11c8] sm:$0xff] %v1288
                %v1290 = vld [vmem:[%s148 + $0x23a0] sm:$0xff]
                %1291 = vst [vmem:[%s149 + $0x11d0] sm:$0xff] %v1290
                %v1292 = vld [vmem:[%s148 + $0x23a8] sm:$0xff]
                %1293 = vst [vmem:[%s149 + $0x11d8] sm:$0xff] %v1292
                %v1294 = vld [vmem:[%s148 + $0x23c0] sm:$0xff]
                %1295 = vst [vmem:[%s149 + $0x11e0] sm:$0xff] %v1294
                %v1296 = vld [vmem:[%s148 + $0x23c8] sm:$0xff]
                %1297 = vst [vmem:[%s149 + $0x11e8] sm:$0xff] %v1296
                %v1298 = vld [vmem:[%s148 + $0x23e0] sm:$0xff]
                %1299 = vst [vmem:[%s149 + $0x11f0] sm:$0xff] %v1298
                %v1300 = vld [vmem:[%s148 + $0x23e8] sm:$0xff]
                %1301 = vst [vmem:[%s149 + $0x11f8] sm:$0xff] %v1300
              $region41: #{critic_forward.5} parent=35 // loop_footer
                %s147 = sadd.s32 1, %s143
              $region42: #{critic_forward.5} parent=35 // loop_footer_branch
                %142 = sbr.rel target = $region38
              $region43: #{critic_forward.5} parent=35 // loop_exit
                _
            $region36: #{critic_forward.5} parent=31 // pred_fallthru
              _
            // Predicated region
            $region44: #{critic_forward.5} parent=31 // pred_check
              _
            $region45: #{critic_forward.5} parent=31 // pred_check_branch
              %1303 = sbr.rel target = $region47
            $region46: #{critic_forward.5} parent=31 // pred_region
              _
            $region47: #{critic_forward.5} parent=31 // pred_fallthru
              _
          $region32: #{critic_forward.5} parent=27 // pred_fallthru
            _
          %1304 = vnop
        $region28: #{critic_forward.5} parent=23 // pred_fallthru
          _
      $region24: #{critic_forward.5} parent=5 // pred_fallthru
        _
      %p1305 = scmp.le.s32.totalorder 1, %s9
      %p1306 = scmp.lt.s32.totalorder %s9, 3
      %p1307 = pnand %p1305, %p1306
      %p1308 = pneg %p1307
      // Predicated region
      $region48: #{critic_forward.5} parent=5 // pred_check
        _
      $region49: #{critic_forward.5} parent=5 // pred_check_branch
        %1310 = sbr.rel (%p1307) target = $region51
      $region50: #{critic_forward.5} parent=5 // pred_region
        %s1311 = ssub.s32 %s9, 1
        %s1312 = sand.u32 %s22, 1
        %s1313 = sand.u32 %s22, 1
        %s1314 = smul.addr %s1313, 4608
        %s1315 = scalar_lea.vmem [#allocation2], %s1314
        // Predicated region
        $region52: #{critic_forward.5} parent=50 // pred_check
          %p1316 = pneg %p35
        $region53: #{critic_forward.5} parent=50 // pred_check_branch
          %1318 = sbr.rel (%p1316) target = $region55
        $region54: #{critic_forward.5} parent=50 // pred_region
          _
        $region55: #{critic_forward.5} parent=50 // pred_fallthru
          _
        %s1319 = sand.u32 %s22, 1
        %s1320 = sand.u32 %s22, 1
        %s1321 = smul.addr %s1320, 4608
        %s1322 = scalar_lea.vmem [#allocation2], %s1321
        %p1323 = pneg %p35
        %p1324 = pneg %p32
        %p1325 = pneg %p56
        %p1326 = pneg %p53
        %p1327 = pneg %p77
        %p1328 = pneg %p74
        %p1329 = pneg %p103
        %p1330 = pneg %p100
        %s1331 = sand.u32 %s90, 1
        %s1332 = sand.u32 %s90, 1
        %s1333 = smul.addr %s1332, 32
        %s1334 = scalar_lea.vmem [#allocation3], %s1333
        %s1335 = smul.u32 4, %s14
        %s1336 = smul.u32 4, %s14
        %v1337 = vld [vmem:[%s1] sm:$0xff]
        %v1338 = vld [vmem:[%s1 + $0x8] sm:$0xff]
        %v1339 = vld [vmem:[%s1315] sm:$0xff]
        %v1340 = vld [vmem:[%s1315 + $0x8] sm:$0xff]
        %v1341 = vld [vmem:[%s1315 + $0x10] sm:$0xff]
        %v1342 = vld [vmem:[%s1315 + $0x18] sm:$0xff]
        %v1343 = vld [vmem:[%s1315 + $0x20] sm:$0xff]
        %v1344 = vld [vmem:[%s1315 + $0x28] sm:$0xff]
        %v1345 = vld [vmem:[%s1315 + $0x30] sm:$0xff]
        %v1346 = vld [vmem:[%s1315 + $0x38] sm:$0xff]
        %v1347 = vld [vmem:[%s1315 + $0x40] sm:$0xff]
        %v1348 = vld [vmem:[%s1315 + $0x48] sm:$0xff]
        %v1349 = vld [vmem:[%s1315 + $0x50] sm:$0xff]
        %v1350 = vld [vmem:[%s1315 + $0x58] sm:$0xff]
        %v1351 = vld [vmem:[%s1315 + $0x60] sm:$0xff]
        %v1352 = vld [vmem:[%s1315 + $0x68] sm:$0xff]
        %v1353 = vld [vmem:[%s1315 + $0x70] sm:$0xff]
        %v1354 = vld [vmem:[%s1315 + $0x78] sm:$0xff]
        %v1355 = vld [vmem:[%s1315 + $0x80] sm:$0xff]
        %v1356 = vld [vmem:[%s1315 + $0x88] sm:$0xff]
        %v1357 = vld [vmem:[%s1315 + $0x90] sm:$0xff]
        %v1358 = vld [vmem:[%s1315 + $0x98] sm:$0xff]
        %v1359 = vld [vmem:[%s1315 + $0xa0] sm:$0xff]
        %v1360 = vld [vmem:[%s1315 + $0xa8] sm:$0xff]
        %v1361 = vld [vmem:[%s1315 + $0xb0] sm:$0xff]
        %v1362 = vld [vmem:[%s1315 + $0xb8] sm:$0xff]
        %v1363 = vld [vmem:[%s1315 + $0xc0] sm:$0xff]
        %v1364 = vld [vmem:[%s1315 + $0xc8] sm:$0xff]
        %v1365 = vld [vmem:[%s1315 + $0xd0] sm:$0xff]
        %v1366 = vld [vmem:[%s1315 + $0xd8] sm:$0xff]
        %v1367 = vld [vmem:[%s1315 + $0xe0] sm:$0xff]
        %v1368 = vld [vmem:[%s1315 + $0xe8] sm:$0xff]
        %v1369 = vld [vmem:[%s1315 + $0xf0] sm:$0xff]
        %v1370 = vld [vmem:[%s1315 + $0xf8] sm:$0xff]
        %v1371 = vld [vmem:[%s1315 + $0x100] sm:$0xff]
        %v1372 = vld [vmem:[%s1315 + $0x108] sm:$0xff]
        %v1373 = vld [vmem:[%s1315 + $0x110] sm:$0xff]
        %v1374 = vld [vmem:[%s1315 + $0x118] sm:$0xff]
        %v1375 = vld [vmem:[%s1315 + $0x120] sm:$0xff]
        %v1376 = vld [vmem:[%s1315 + $0x128] sm:$0xff]
        %v1377 = vld [vmem:[%s1315 + $0x130] sm:$0xff]
        %v1378 = vld [vmem:[%s1315 + $0x138] sm:$0xff]
        %v1379 = vld [vmem:[%s1315 + $0x140] sm:$0xff]
        %v1380 = vld [vmem:[%s1315 + $0x148] sm:$0xff]
        %v1381 = vld [vmem:[%s1315 + $0x150] sm:$0xff]
        %v1382 = vld [vmem:[%s1315 + $0x158] sm:$0xff]
        %v1383 = vld [vmem:[%s1315 + $0x160] sm:$0xff]
        %v1384 = vld [vmem:[%s1315 + $0x168] sm:$0xff]
        %v1385 = vld [vmem:[%s1315 + $0x170] sm:$0xff]
        %v1386 = vld [vmem:[%s1315 + $0x178] sm:$0xff]
        %v1387 = vld [vmem:[%s1315 + $0x180] sm:$0xff]
        %v1388 = vld [vmem:[%s1315 + $0x188] sm:$0xff]
        %v1389 = vld [vmem:[%s1315 + $0x190] sm:$0xff]
        %v1390 = vld [vmem:[%s1315 + $0x198] sm:$0xff]
        %v1391 = vld [vmem:[%s1315 + $0x1a0] sm:$0xff]
        %v1392 = vld [vmem:[%s1315 + $0x1a8] sm:$0xff]
        %v1393 = vld [vmem:[%s1315 + $0x1b0] sm:$0xff]
        %v1394 = vld [vmem:[%s1315 + $0x1b8] sm:$0xff]
        %v1395 = vld [vmem:[%s1315 + $0x1c0] sm:$0xff]
        %v1396 = vld [vmem:[%s1315 + $0x1c8] sm:$0xff]
        %v1397 = vld [vmem:[%s1315 + $0x1d0] sm:$0xff]
        %v1398 = vld [vmem:[%s1315 + $0x1d8] sm:$0xff]
        %v1399 = vld [vmem:[%s1315 + $0x1e0] sm:$0xff]
        %v1400 = vld [vmem:[%s1315 + $0x1e8] sm:$0xff]
        %v1401 = vld [vmem:[%s1315 + $0x1f0] sm:$0xff]
        %v1402 = vld [vmem:[%s1315 + $0x1f8] sm:$0xff]
        %v1405 = vunpack.c.l.b16 %v1337
        %v1406 = vunpack.c.h.b16 %v1337
        %v1407 = vunpack.c.l.b16 %v1338
        %v1408 = vunpack.c.h.b16 %v1338
        %v1409 = vpack.c.b16 %v1407, %v1405
        %v1410 = vpack.c.b16 %v1408, %v1406
        %v1477 = vunpack.c.l.b16 %v1339
        %v1478 = vunpack.c.h.b16 %v1339
        %v1479 = vunpack.c.l.b16 %v1340
        %v1480 = vunpack.c.h.b16 %v1340
        %v1481 = vunpack.c.l.b16 %v1341
        %v1482 = vunpack.c.h.b16 %v1341
        %v1483 = vunpack.c.l.b16 %v1342
        %v1484 = vunpack.c.h.b16 %v1342
        %v1485 = vunpack.c.l.b16 %v1343
        %v1486 = vunpack.c.h.b16 %v1343
        %v1487 = vunpack.c.l.b16 %v1344
        %v1488 = vunpack.c.h.b16 %v1344
        %v1489 = vunpack.c.l.b16 %v1345
        %v1490 = vunpack.c.h.b16 %v1345
        %v1491 = vunpack.c.l.b16 %v1346
        %v1492 = vunpack.c.h.b16 %v1346
        %v1493 = vunpack.c.l.b16 %v1347
        %v1494 = vunpack.c.h.b16 %v1347
        %v1495 = vunpack.c.l.b16 %v1348
        %v1496 = vunpack.c.h.b16 %v1348
        %v1497 = vunpack.c.l.b16 %v1349
        %v1498 = vunpack.c.h.b16 %v1349
        %v1499 = vunpack.c.l.b16 %v1350
        %v1500 = vunpack.c.h.b16 %v1350
        %v1501 = vunpack.c.l.b16 %v1351
        %v1502 = vunpack.c.h.b16 %v1351
        %v1503 = vunpack.c.l.b16 %v1352
        %v1504 = vunpack.c.h.b16 %v1352
        %v1505 = vunpack.c.l.b16 %v1353
        %v1506 = vunpack.c.h.b16 %v1353
        %v1507 = vunpack.c.l.b16 %v1354
        %v1508 = vunpack.c.h.b16 %v1354
        %v1509 = vunpack.c.l.b16 %v1355
        %v1510 = vunpack.c.h.b16 %v1355
        %v1511 = vunpack.c.l.b16 %v1356
        %v1512 = vunpack.c.h.b16 %v1356
        %v1513 = vunpack.c.l.b16 %v1357
        %v1514 = vunpack.c.h.b16 %v1357
        %v1515 = vunpack.c.l.b16 %v1358
        %v1516 = vunpack.c.h.b16 %v1358
        %v1517 = vunpack.c.l.b16 %v1359
        %v1518 = vunpack.c.h.b16 %v1359
        %v1519 = vunpack.c.l.b16 %v1360
        %v1520 = vunpack.c.h.b16 %v1360
        %v1521 = vunpack.c.l.b16 %v1361
        %v1522 = vunpack.c.h.b16 %v1361
        %v1523 = vunpack.c.l.b16 %v1362
        %v1524 = vunpack.c.h.b16 %v1362
        %v1525 = vunpack.c.l.b16 %v1363
        %v1526 = vunpack.c.h.b16 %v1363
        %v1527 = vunpack.c.l.b16 %v1364
        %v1528 = vunpack.c.h.b16 %v1364
        %v1529 = vunpack.c.l.b16 %v1365
        %v1530 = vunpack.c.h.b16 %v1365
        %v1531 = vunpack.c.l.b16 %v1366
        %v1532 = vunpack.c.h.b16 %v1366
        %v1533 = vunpack.c.l.b16 %v1367
        %v1534 = vunpack.c.h.b16 %v1367
        %v1535 = vunpack.c.l.b16 %v1368
        %v1536 = vunpack.c.h.b16 %v1368
        %v1537 = vunpack.c.l.b16 %v1369
        %v1538 = vunpack.c.h.b16 %v1369
        %v1539 = vunpack.c.l.b16 %v1370
        %v1540 = vunpack.c.h.b16 %v1370
        %v1541 = vunpack.c.l.b16 %v1371
        %v1542 = vunpack.c.h.b16 %v1371
        %v1543 = vunpack.c.l.b16 %v1372
        %v1544 = vunpack.c.h.b16 %v1372
        %v1545 = vunpack.c.l.b16 %v1373
        %v1546 = vunpack.c.h.b16 %v1373
        %v1547 = vunpack.c.l.b16 %v1374
        %v1548 = vunpack.c.h.b16 %v1374
        %v1549 = vunpack.c.l.b16 %v1375
        %v1550 = vunpack.c.h.b16 %v1375
        %v1551 = vunpack.c.l.b16 %v1376
        %v1552 = vunpack.c.h.b16 %v1376
        %v1553 = vunpack.c.l.b16 %v1377
        %v1554 = vunpack.c.h.b16 %v1377
        %v1555 = vunpack.c.l.b16 %v1378
        %v1556 = vunpack.c.h.b16 %v1378
        %v1557 = vunpack.c.l.b16 %v1379
        %v1558 = vunpack.c.h.b16 %v1379
        %v1559 = vunpack.c.l.b16 %v1380
        %v1560 = vunpack.c.h.b16 %v1380
        %v1561 = vunpack.c.l.b16 %v1381
        %v1562 = vunpack.c.h.b16 %v1381
        %v1563 = vunpack.c.l.b16 %v1382
        %v1564 = vunpack.c.h.b16 %v1382
        %v1565 = vunpack.c.l.b16 %v1383
        %v1566 = vunpack.c.h.b16 %v1383
        %v1567 = vunpack.c.l.b16 %v1384
        %v1568 = vunpack.c.h.b16 %v1384
        %v1569 = vunpack.c.l.b16 %v1385
        %v1570 = vunpack.c.h.b16 %v1385
        %v1571 = vunpack.c.l.b16 %v1386
        %v1572 = vunpack.c.h.b16 %v1386
        %v1573 = vunpack.c.l.b16 %v1387
        %v1574 = vunpack.c.h.b16 %v1387
        %v1575 = vunpack.c.l.b16 %v1388
        %v1576 = vunpack.c.h.b16 %v1388
        %v1577 = vunpack.c.l.b16 %v1389
        %v1578 = vunpack.c.h.b16 %v1389
        %v1579 = vunpack.c.l.b16 %v1390
        %v1580 = vunpack.c.h.b16 %v1390
        %v1581 = vunpack.c.l.b16 %v1391
        %v1582 = vunpack.c.h.b16 %v1391
        %v1583 = vunpack.c.l.b16 %v1392
        %v1584 = vunpack.c.h.b16 %v1392
        %v1585 = vunpack.c.l.b16 %v1393
        %v1586 = vunpack.c.h.b16 %v1393
        %v1587 = vunpack.c.l.b16 %v1394
        %v1588 = vunpack.c.h.b16 %v1394
        %v1589 = vunpack.c.l.b16 %v1395
        %v1590 = vunpack.c.h.b16 %v1395
        %v1591 = vunpack.c.l.b16 %v1396
        %v1592 = vunpack.c.h.b16 %v1396
        %v1593 = vunpack.c.l.b16 %v1397
        %v1594 = vunpack.c.h.b16 %v1397
        %v1595 = vunpack.c.l.b16 %v1398
        %v1596 = vunpack.c.h.b16 %v1398
        %v1597 = vunpack.c.l.b16 %v1399
        %v1598 = vunpack.c.h.b16 %v1399
        %v1599 = vunpack.c.l.b16 %v1400
        %v1600 = vunpack.c.h.b16 %v1400
        %v1601 = vunpack.c.l.b16 %v1401
        %v1602 = vunpack.c.h.b16 %v1401
        %v1603 = vunpack.c.l.b16 %v1402
        %v1604 = vunpack.c.h.b16 %v1402
        %v1605 = vpack.c.b16 %v1481, %v1477
        %v1606 = vpack.c.b16 %v1482, %v1478
        %v1607 = vpack.c.b16 %v1483, %v1479
        %v1608 = vpack.c.b16 %v1484, %v1480
        %v1609 = vpack.c.b16 %v1489, %v1485
        %v1610 = vpack.c.b16 %v1490, %v1486
        %v1611 = vpack.c.b16 %v1491, %v1487
        %v1612 = vpack.c.b16 %v1492, %v1488
        %v1613 = vpack.c.b16 %v1497, %v1493
        %v1614 = vpack.c.b16 %v1498, %v1494
        %v1615 = vpack.c.b16 %v1499, %v1495
        %v1616 = vpack.c.b16 %v1500, %v1496
        %v1617 = vpack.c.b16 %v1505, %v1501
        %v1618 = vpack.c.b16 %v1506, %v1502
        %v1619 = vpack.c.b16 %v1507, %v1503
        %v1620 = vpack.c.b16 %v1508, %v1504
        %v1621 = vpack.c.b16 %v1513, %v1509
        %v1622 = vpack.c.b16 %v1514, %v1510
        %v1623 = vpack.c.b16 %v1515, %v1511
        %v1624 = vpack.c.b16 %v1516, %v1512
        %v1625 = vpack.c.b16 %v1521, %v1517
        %v1626 = vpack.c.b16 %v1522, %v1518
        %v1627 = vpack.c.b16 %v1523, %v1519
        %v1628 = vpack.c.b16 %v1524, %v1520
        %v1629 = vpack.c.b16 %v1529, %v1525
        %v1630 = vpack.c.b16 %v1530, %v1526
        %v1631 = vpack.c.b16 %v1531, %v1527
        %v1632 = vpack.c.b16 %v1532, %v1528
        %v1633 = vpack.c.b16 %v1537, %v1533
        %v1634 = vpack.c.b16 %v1538, %v1534
        %v1635 = vpack.c.b16 %v1539, %v1535
        %v1636 = vpack.c.b16 %v1540, %v1536
        %v1637 = vpack.c.b16 %v1545, %v1541
        %v1638 = vpack.c.b16 %v1546, %v1542
        %v1639 = vpack.c.b16 %v1547, %v1543
        %v1640 = vpack.c.b16 %v1548, %v1544
        %v1641 = vpack.c.b16 %v1553, %v1549
        %v1642 = vpack.c.b16 %v1554, %v1550
        %v1643 = vpack.c.b16 %v1555, %v1551
        %v1644 = vpack.c.b16 %v1556, %v1552
        %v1645 = vpack.c.b16 %v1561, %v1557
        %v1646 = vpack.c.b16 %v1562, %v1558
        %v1647 = vpack.c.b16 %v1563, %v1559
        %v1648 = vpack.c.b16 %v1564, %v1560
        %v1649 = vpack.c.b16 %v1569, %v1565
        %v1650 = vpack.c.b16 %v1570, %v1566
        %v1651 = vpack.c.b16 %v1571, %v1567
        %v1652 = vpack.c.b16 %v1572, %v1568
        %v1653 = vpack.c.b16 %v1577, %v1573
        %v1654 = vpack.c.b16 %v1578, %v1574
        %v1655 = vpack.c.b16 %v1579, %v1575
        %v1656 = vpack.c.b16 %v1580, %v1576
        %v1657 = vpack.c.b16 %v1585, %v1581
        %v1658 = vpack.c.b16 %v1586, %v1582
        %v1659 = vpack.c.b16 %v1587, %v1583
        %v1660 = vpack.c.b16 %v1588, %v1584
        %v1661 = vpack.c.b16 %v1593, %v1589
        %v1662 = vpack.c.b16 %v1594, %v1590
        %v1663 = vpack.c.b16 %v1595, %v1591
        %v1664 = vpack.c.b16 %v1596, %v1592
        %v1665 = vpack.c.b16 %v1601, %v1597
        %v1666 = vpack.c.b16 %v1602, %v1598
        %v1667 = vpack.c.b16 %v1603, %v1599
        %v1668 = vpack.c.b16 %v1604, %v1600
        %1733 = vmatprep.subr.bf16.mxu0 %v1606
        %1734 = vmatpush1.bf16.msra.mxu0 %v1605
        %1735 = vmatprep.subr.bf16.mxu0 %v1610
        %1736 = vmatpush1.bf16.msra.mxu0 %v1609
        %1737 = vmatprep.subr.bf16.mxu0 %v1614
        %1738 = vmatpush1.bf16.msra.mxu0 %v1613
        %1739 = vmatprep.subr.bf16.mxu0 %v1618
        %1740 = vmatpush1.bf16.msra.mxu0 %v1617
        %1741 = vmatprep.subr.bf16.mxu0 %v1622
        %1742 = vmatpush1.bf16.msra.mxu0 %v1621
        %1743 = vmatprep.subr.bf16.mxu0 %v1626
        %1744 = vmatpush1.bf16.msra.mxu0 %v1625
        %1745 = vmatprep.subr.bf16.mxu0 %v1630
        %1746 = vmatpush1.bf16.msra.mxu0 %v1629
        %1747 = vmatprep.subr.bf16.mxu0 %v1634
        %1748 = vmatpush1.bf16.msra.mxu0 %v1633
        %1749 = vmatprep.subr.bf16.mxu0 %v1638
        %1750 = vmatpush1.bf16.msra.mxu0 %v1637
        %1751 = vmatprep.subr.bf16.mxu0 %v1642
        %1752 = vmatpush1.bf16.msra.mxu0 %v1641
        %1753 = vmatprep.subr.bf16.mxu0 %v1646
        %1754 = vmatpush1.bf16.msra.mxu0 %v1645
        %1755 = vmatprep.subr.bf16.mxu0 %v1650
        %1756 = vmatpush1.bf16.msra.mxu0 %v1649
        %1757 = vmatprep.subr.bf16.mxu0 %v1654
        %1758 = vmatpush1.bf16.msra.mxu0 %v1653
        %1759 = vmatprep.subr.bf16.mxu0 %v1658
        %1760 = vmatpush1.bf16.msra.mxu0 %v1657
        %1761 = vmatprep.subr.bf16.mxu0 %v1662
        %1762 = vmatpush1.bf16.msra.mxu0 %v1661
        %1763 = vmatprep.subr.bf16.mxu0 %v1666
        %1764 = vmatpush1.bf16.msra.mxu0 %v1665
        %1765 = vmatprep.mubr.bf16.mxu0 %v1410
        %1766 = vmatmul.mubr.bf16.gmra.mrb[0].mxu0 %v1409
        %v1767 = vpop.f32.mrb[0].mxu0
        %v1768 = vadd.f32 0.0, %v1767
        %v1769 = vpop.f32.mrb[0].mxu0
        %v1770 = vadd.f32 0.0, %v1769
        %v1771 = vpop.f32.mrb[0].mxu0
        %v1772 = vadd.f32 0.0, %v1771
        %v1773 = vpop.f32.mrb[0].mxu0
        %v1774 = vadd.f32 0.0, %v1773
        %1775 = vdwg.mxu0
        %1776 = vmatprep.subr.bf16.mxu0 %v1608
        %1777 = vmatpush1.bf16.msra.mxu0 %v1607
        %1778 = vmatprep.subr.bf16.mxu0 %v1612
        %1779 = vmatpush1.bf16.msra.mxu0 %v1611
        %1780 = vmatprep.subr.bf16.mxu0 %v1616
        %1781 = vmatpush1.bf16.msra.mxu0 %v1615
        %1782 = vmatprep.subr.bf16.mxu0 %v1620
        %1783 = vmatpush1.bf16.msra.mxu0 %v1619
        %1784 = vmatprep.subr.bf16.mxu0 %v1624
        %1785 = vmatpush1.bf16.msra.mxu0 %v1623
        %1786 = vmatprep.subr.bf16.mxu0 %v1628
        %1787 = vmatpush1.bf16.msra.mxu0 %v1627
        %1788 = vmatprep.subr.bf16.mxu0 %v1632
        %1789 = vmatpush1.bf16.msra.mxu0 %v1631
        %1790 = vmatprep.subr.bf16.mxu0 %v1636
        %1791 = vmatpush1.bf16.msra.mxu0 %v1635
        %1792 = vmatprep.subr.bf16.mxu0 %v1640
        %1793 = vmatpush1.bf16.msra.mxu0 %v1639
        %1794 = vmatprep.subr.bf16.mxu0 %v1644
        %1795 = vmatpush1.bf16.msra.mxu0 %v1643
        %1796 = vmatprep.subr.bf16.mxu0 %v1648
        %1797 = vmatpush1.bf16.msra.mxu0 %v1647
        %1798 = vmatprep.subr.bf16.mxu0 %v1652
        %1799 = vmatpush1.bf16.msra.mxu0 %v1651
        %1800 = vmatprep.subr.bf16.mxu0 %v1656
        %1801 = vmatpush1.bf16.msra.mxu0 %v1655
        %1802 = vmatprep.subr.bf16.mxu0 %v1660
        %1803 = vmatpush1.bf16.msra.mxu0 %v1659
        %1804 = vmatprep.subr.bf16.mxu0 %v1664
        %1805 = vmatpush1.bf16.msra.mxu0 %v1663
        %1806 = vmatprep.subr.bf16.mxu0 %v1668
        %1807 = vmatpush1.bf16.msra.mxu0 %v1667
        %1808 = vmatprep.mubr.bf16.mxu0 %v1410
        %1809 = vmatmul.mubr.bf16.gmra.mrb[0].mxu0 %v1409
        %v1810 = vpop.f32.mrb[0].mxu0
        %v1811 = vadd.f32 0.0, %v1810
        %v1812 = vpop.f32.mrb[0].mxu0
        %v1813 = vadd.f32 0.0, %v1812
        %v1814 = vpop.f32.mrb[0].mxu0
        %v1815 = vadd.f32 0.0, %v1814
        %v1816 = vpop.f32.mrb[0].mxu0
        %v1817 = vadd.f32 0.0, %v1816
        %1818 = vdwg.mxu0
        %s1819 = scalar_lea.vmem %s1315, 512 [#allocation2]
        %v1820 = vld [vmem:[%s1819] sm:$0xff]
        %v1821 = vld [vmem:[%s1819 + $0x8] sm:$0xff]
        %v1822 = vld [vmem:[%s1819 + $0x10] sm:$0xff]
        %v1823 = vld [vmem:[%s1819 + $0x18] sm:$0xff]
        %v1824 = vld [vmem:[%s1819 + $0x20] sm:$0xff]
        %v1825 = vld [vmem:[%s1819 + $0x28] sm:$0xff]
        %v1826 = vld [vmem:[%s1819 + $0x30] sm:$0xff]
        %v1827 = vld [vmem:[%s1819 + $0x38] sm:$0xff]
        %v1828 = vld [vmem:[%s1819 + $0x40] sm:$0xff]
        %v1829 = vld [vmem:[%s1819 + $0x48] sm:$0xff]
        %v1830 = vld [vmem:[%s1819 + $0x50] sm:$0xff]
        %v1831 = vld [vmem:[%s1819 + $0x58] sm:$0xff]
        %v1832 = vld [vmem:[%s1819 + $0x60] sm:$0xff]
        %v1833 = vld [vmem:[%s1819 + $0x68] sm:$0xff]
        %v1834 = vld [vmem:[%s1819 + $0x70] sm:$0xff]
        %v1835 = vld [vmem:[%s1819 + $0x78] sm:$0xff]
        %v1836 = vld [vmem:[%s1819 + $0x80] sm:$0xff]
        %v1837 = vld [vmem:[%s1819 + $0x88] sm:$0xff]
        %v1838 = vld [vmem:[%s1819 + $0x90] sm:$0xff]
        %v1839 = vld [vmem:[%s1819 + $0x98] sm:$0xff]
        %v1840 = vld [vmem:[%s1819 + $0xa0] sm:$0xff]
        %v1841 = vld [vmem:[%s1819 + $0xa8] sm:$0xff]
        %v1842 = vld [vmem:[%s1819 + $0xb0] sm:$0xff]
        %v1843 = vld [vmem:[%s1819 + $0xb8] sm:$0xff]
        %v1844 = vld [vmem:[%s1819 + $0xc0] sm:$0xff]
        %v1845 = vld [vmem:[%s1819 + $0xc8] sm:$0xff]
        %v1846 = vld [vmem:[%s1819 + $0xd0] sm:$0xff]
        %v1847 = vld [vmem:[%s1819 + $0xd8] sm:$0xff]
        %v1848 = vld [vmem:[%s1819 + $0xe0] sm:$0xff]
        %v1849 = vld [vmem:[%s1819 + $0xe8] sm:$0xff]
        %v1850 = vld [vmem:[%s1819 + $0xf0] sm:$0xff]
        %v1851 = vld [vmem:[%s1819 + $0xf8] sm:$0xff]
        %v1852 = vld [vmem:[%s1819 + $0x100] sm:$0xff]
        %v1853 = vld [vmem:[%s1819 + $0x108] sm:$0xff]
        %v1854 = vld [vmem:[%s1819 + $0x110] sm:$0xff]
        %v1855 = vld [vmem:[%s1819 + $0x118] sm:$0xff]
        %v1856 = vld [vmem:[%s1819 + $0x120] sm:$0xff]
        %v1857 = vld [vmem:[%s1819 + $0x128] sm:$0xff]
        %v1858 = vld [vmem:[%s1819 + $0x130] sm:$0xff]
        %v1859 = vld [vmem:[%s1819 + $0x138] sm:$0xff]
        %v1860 = vld [vmem:[%s1819 + $0x140] sm:$0xff]
        %v1861 = vld [vmem:[%s1819 + $0x148] sm:$0xff]
        %v1862 = vld [vmem:[%s1819 + $0x150] sm:$0xff]
        %v1863 = vld [vmem:[%s1819 + $0x158] sm:$0xff]
        %v1864 = vld [vmem:[%s1819 + $0x160] sm:$0xff]
        %v1865 = vld [vmem:[%s1819 + $0x168] sm:$0xff]
        %v1866 = vld [vmem:[%s1819 + $0x170] sm:$0xff]
        %v1867 = vld [vmem:[%s1819 + $0x178] sm:$0xff]
        %v1868 = vld [vmem:[%s1819 + $0x180] sm:$0xff]
        %v1869 = vld [vmem:[%s1819 + $0x188] sm:$0xff]
        %v1870 = vld [vmem:[%s1819 + $0x190] sm:$0xff]
        %v1871 = vld [vmem:[%s1819 + $0x198] sm:$0xff]
        %v1872 = vld [vmem:[%s1819 + $0x1a0] sm:$0xff]
        %v1873 = vld [vmem:[%s1819 + $0x1a8] sm:$0xff]
        %v1874 = vld [vmem:[%s1819 + $0x1b0] sm:$0xff]
        %v1875 = vld [vmem:[%s1819 + $0x1b8] sm:$0xff]
        %v1876 = vld [vmem:[%s1819 + $0x1c0] sm:$0xff]
        %v1877 = vld [vmem:[%s1819 + $0x1c8] sm:$0xff]
        %v1878 = vld [vmem:[%s1819 + $0x1d0] sm:$0xff]
        %v1879 = vld [vmem:[%s1819 + $0x1d8] sm:$0xff]
        %v1880 = vld [vmem:[%s1819 + $0x1e0] sm:$0xff]
        %v1881 = vld [vmem:[%s1819 + $0x1e8] sm:$0xff]
        %v1882 = vld [vmem:[%s1819 + $0x1f0] sm:$0xff]
        %v1883 = vld [vmem:[%s1819 + $0x1f8] sm:$0xff]
        %v1948 = vunpack.c.l.b16 %v1820
        %v1949 = vunpack.c.h.b16 %v1820
        %v1950 = vunpack.c.l.b16 %v1821
        %v1951 = vunpack.c.h.b16 %v1821
        %v1952 = vunpack.c.l.b16 %v1822
        %v1953 = vunpack.c.h.b16 %v1822
        %v1954 = vunpack.c.l.b16 %v1823
        %v1955 = vunpack.c.h.b16 %v1823
        %v1956 = vunpack.c.l.b16 %v1824
        %v1957 = vunpack.c.h.b16 %v1824
        %v1958 = vunpack.c.l.b16 %v1825
        %v1959 = vunpack.c.h.b16 %v1825
        %v1960 = vunpack.c.l.b16 %v1826
        %v1961 = vunpack.c.h.b16 %v1826
        %v1962 = vunpack.c.l.b16 %v1827
        %v1963 = vunpack.c.h.b16 %v1827
        %v1964 = vunpack.c.l.b16 %v1828
        %v1965 = vunpack.c.h.b16 %v1828
        %v1966 = vunpack.c.l.b16 %v1829
        %v1967 = vunpack.c.h.b16 %v1829
        %v1968 = vunpack.c.l.b16 %v1830
        %v1969 = vunpack.c.h.b16 %v1830
        %v1970 = vunpack.c.l.b16 %v1831
        %v1971 = vunpack.c.h.b16 %v1831
        %v1972 = vunpack.c.l.b16 %v1832
        %v1973 = vunpack.c.h.b16 %v1832
        %v1974 = vunpack.c.l.b16 %v1833
        %v1975 = vunpack.c.h.b16 %v1833
        %v1976 = vunpack.c.l.b16 %v1834
        %v1977 = vunpack.c.h.b16 %v1834
        %v1978 = vunpack.c.l.b16 %v1835
        %v1979 = vunpack.c.h.b16 %v1835
        %v1980 = vunpack.c.l.b16 %v1836
        %v1981 = vunpack.c.h.b16 %v1836
        %v1982 = vunpack.c.l.b16 %v1837
        %v1983 = vunpack.c.h.b16 %v1837
        %v1984 = vunpack.c.l.b16 %v1838
        %v1985 = vunpack.c.h.b16 %v1838
        %v1986 = vunpack.c.l.b16 %v1839
        %v1987 = vunpack.c.h.b16 %v1839
        %v1988 = vunpack.c.l.b16 %v1840
        %v1989 = vunpack.c.h.b16 %v1840
        %v1990 = vunpack.c.l.b16 %v1841
        %v1991 = vunpack.c.h.b16 %v1841
        %v1992 = vunpack.c.l.b16 %v1842
        %v1993 = vunpack.c.h.b16 %v1842
        %v1994 = vunpack.c.l.b16 %v1843
        %v1995 = vunpack.c.h.b16 %v1843
        %v1996 = vunpack.c.l.b16 %v1844
        %v1997 = vunpack.c.h.b16 %v1844
        %v1998 = vunpack.c.l.b16 %v1845
        %v1999 = vunpack.c.h.b16 %v1845
        %v2000 = vunpack.c.l.b16 %v1846
        %v2001 = vunpack.c.h.b16 %v1846
        %v2002 = vunpack.c.l.b16 %v1847
        %v2003 = vunpack.c.h.b16 %v1847
        %v2004 = vunpack.c.l.b16 %v1848
        %v2005 = vunpack.c.h.b16 %v1848
        %v2006 = vunpack.c.l.b16 %v1849
        %v2007 = vunpack.c.h.b16 %v1849
        %v2008 = vunpack.c.l.b16 %v1850
        %v2009 = vunpack.c.h.b16 %v1850
        %v2010 = vunpack.c.l.b16 %v1851
        %v2011 = vunpack.c.h.b16 %v1851
        %v2012 = vunpack.c.l.b16 %v1852
        %v2013 = vunpack.c.h.b16 %v1852
        %v2014 = vunpack.c.l.b16 %v1853
        %v2015 = vunpack.c.h.b16 %v1853
        %v2016 = vunpack.c.l.b16 %v1854
        %v2017 = vunpack.c.h.b16 %v1854
        %v2018 = vunpack.c.l.b16 %v1855
        %v2019 = vunpack.c.h.b16 %v1855
        %v2020 = vunpack.c.l.b16 %v1856
        %v2021 = vunpack.c.h.b16 %v1856
        %v2022 = vunpack.c.l.b16 %v1857
        %v2023 = vunpack.c.h.b16 %v1857
        %v2024 = vunpack.c.l.b16 %v1858
        %v2025 = vunpack.c.h.b16 %v1858
        %v2026 = vunpack.c.l.b16 %v1859
        %v2027 = vunpack.c.h.b16 %v1859
        %v2028 = vunpack.c.l.b16 %v1860
        %v2029 = vunpack.c.h.b16 %v1860
        %v2030 = vunpack.c.l.b16 %v1861
        %v2031 = vunpack.c.h.b16 %v1861
        %v2032 = vunpack.c.l.b16 %v1862
        %v2033 = vunpack.c.h.b16 %v1862
        %v2034 = vunpack.c.l.b16 %v1863
        %v2035 = vunpack.c.h.b16 %v1863
        %v2036 = vunpack.c.l.b16 %v1864
        %v2037 = vunpack.c.h.b16 %v1864
        %v2038 = vunpack.c.l.b16 %v1865
        %v2039 = vunpack.c.h.b16 %v1865
        %v2040 = vunpack.c.l.b16 %v1866
        %v2041 = vunpack.c.h.b16 %v1866
        %v2042 = vunpack.c.l.b16 %v1867
        %v2043 = vunpack.c.h.b16 %v1867
        %v2044 = vunpack.c.l.b16 %v1868
        %v2045 = vunpack.c.h.b16 %v1868
        %v2046 = vunpack.c.l.b16 %v1869
        %v2047 = vunpack.c.h.b16 %v1869
        %v2048 = vunpack.c.l.b16 %v1870
        %v2049 = vunpack.c.h.b16 %v1870
        %v2050 = vunpack.c.l.b16 %v1871
        %v2051 = vunpack.c.h.b16 %v1871
        %v2052 = vunpack.c.l.b16 %v1872
        %v2053 = vunpack.c.h.b16 %v1872
        %v2054 = vunpack.c.l.b16 %v1873
        %v2055 = vunpack.c.h.b16 %v1873
        %v2056 = vunpack.c.l.b16 %v1874
        %v2057 = vunpack.c.h.b16 %v1874
        %v2058 = vunpack.c.l.b16 %v1875
        %v2059 = vunpack.c.h.b16 %v1875
        %v2060 = vunpack.c.l.b16 %v1876
        %v2061 = vunpack.c.h.b16 %v1876
        %v2062 = vunpack.c.l.b16 %v1877
        %v2063 = vunpack.c.h.b16 %v1877
        %v2064 = vunpack.c.l.b16 %v1878
        %v2065 = vunpack.c.h.b16 %v1878
        %v2066 = vunpack.c.l.b16 %v1879
        %v2067 = vunpack.c.h.b16 %v1879
        %v2068 = vunpack.c.l.b16 %v1880
        %v2069 = vunpack.c.h.b16 %v1880
        %v2070 = vunpack.c.l.b16 %v1881
        %v2071 = vunpack.c.h.b16 %v1881
        %v2072 = vunpack.c.l.b16 %v1882
        %v2073 = vunpack.c.h.b16 %v1882
        %v2074 = vunpack.c.l.b16 %v1883
        %v2075 = vunpack.c.h.b16 %v1883
        %v2076 = vpack.c.b16 %v1952, %v1948
        %v2077 = vpack.c.b16 %v1953, %v1949
        %v2078 = vpack.c.b16 %v1954, %v1950
        %v2079 = vpack.c.b16 %v1955, %v1951
        %v2080 = vpack.c.b16 %v1960, %v1956
        %v2081 = vpack.c.b16 %v1961, %v1957
        %v2082 = vpack.c.b16 %v1962, %v1958
        %v2083 = vpack.c.b16 %v1963, %v1959
        %v2084 = vpack.c.b16 %v1968, %v1964
        %v2085 = vpack.c.b16 %v1969, %v1965
        %v2086 = vpack.c.b16 %v1970, %v1966
        %v2087 = vpack.c.b16 %v1971, %v1967
        %v2088 = vpack.c.b16 %v1976, %v1972
        %v2089 = vpack.c.b16 %v1977, %v1973
        %v2090 = vpack.c.b16 %v1978, %v1974
        %v2091 = vpack.c.b16 %v1979, %v1975
        %v2092 = vpack.c.b16 %v1984, %v1980
        %v2093 = vpack.c.b16 %v1985, %v1981
        %v2094 = vpack.c.b16 %v1986, %v1982
        %v2095 = vpack.c.b16 %v1987, %v1983
        %v2096 = vpack.c.b16 %v1992, %v1988
        %v2097 = vpack.c.b16 %v1993, %v1989
        %v2098 = vpack.c.b16 %v1994, %v1990
        %v2099 = vpack.c.b16 %v1995, %v1991
        %v2100 = vpack.c.b16 %v2000, %v1996
        %v2101 = vpack.c.b16 %v2001, %v1997
        %v2102 = vpack.c.b16 %v2002, %v1998
        %v2103 = vpack.c.b16 %v2003, %v1999
        %v2104 = vpack.c.b16 %v2008, %v2004
        %v2105 = vpack.c.b16 %v2009, %v2005
        %v2106 = vpack.c.b16 %v2010, %v2006
        %v2107 = vpack.c.b16 %v2011, %v2007
        %v2108 = vpack.c.b16 %v2016, %v2012
        %v2109 = vpack.c.b16 %v2017, %v2013
        %v2110 = vpack.c.b16 %v2018, %v2014
        %v2111 = vpack.c.b16 %v2019, %v2015
        %v2112 = vpack.c.b16 %v2024, %v2020
        %v2113 = vpack.c.b16 %v2025, %v2021
        %v2114 = vpack.c.b16 %v2026, %v2022
        %v2115 = vpack.c.b16 %v2027, %v2023
        %v2116 = vpack.c.b16 %v2032, %v2028
        %v2117 = vpack.c.b16 %v2033, %v2029
        %v2118 = vpack.c.b16 %v2034, %v2030
        %v2119 = vpack.c.b16 %v2035, %v2031
        %v2120 = vpack.c.b16 %v2040, %v2036
        %v2121 = vpack.c.b16 %v2041, %v2037
        %v2122 = vpack.c.b16 %v2042, %v2038
        %v2123 = vpack.c.b16 %v2043, %v2039
        %v2124 = vpack.c.b16 %v2048, %v2044
        %v2125 = vpack.c.b16 %v2049, %v2045
        %v2126 = vpack.c.b16 %v2050, %v2046
        %v2127 = vpack.c.b16 %v2051, %v2047
        %v2128 = vpack.c.b16 %v2056, %v2052
        %v2129 = vpack.c.b16 %v2057, %v2053
        %v2130 = vpack.c.b16 %v2058, %v2054
        %v2131 = vpack.c.b16 %v2059, %v2055
        %v2132 = vpack.c.b16 %v2064, %v2060
        %v2133 = vpack.c.b16 %v2065, %v2061
        %v2134 = vpack.c.b16 %v2066, %v2062
        %v2135 = vpack.c.b16 %v2067, %v2063
        %v2136 = vpack.c.b16 %v2072, %v2068
        %v2137 = vpack.c.b16 %v2073, %v2069
        %v2138 = vpack.c.b16 %v2074, %v2070
        %v2139 = vpack.c.b16 %v2075, %v2071
        %2204 = vmatprep.subr.bf16.mxu0 %v2077
        %2205 = vmatpush1.bf16.msra.mxu0 %v2076
        %2206 = vmatprep.subr.bf16.mxu0 %v2081
        %2207 = vmatpush1.bf16.msra.mxu0 %v2080
        %2208 = vmatprep.subr.bf16.mxu0 %v2085
        %2209 = vmatpush1.bf16.msra.mxu0 %v2084
        %2210 = vmatprep.subr.bf16.mxu0 %v2089
        %2211 = vmatpush1.bf16.msra.mxu0 %v2088
        %2212 = vmatprep.subr.bf16.mxu0 %v2093
        %2213 = vmatpush1.bf16.msra.mxu0 %v2092
        %2214 = vmatprep.subr.bf16.mxu0 %v2097
        %2215 = vmatpush1.bf16.msra.mxu0 %v2096
        %2216 = vmatprep.subr.bf16.mxu0 %v2101
        %2217 = vmatpush1.bf16.msra.mxu0 %v2100
        %2218 = vmatprep.subr.bf16.mxu0 %v2105
        %2219 = vmatpush1.bf16.msra.mxu0 %v2104
        %2220 = vmatprep.subr.bf16.mxu0 %v2109
        %2221 = vmatpush1.bf16.msra.mxu0 %v2108
        %2222 = vmatprep.subr.bf16.mxu0 %v2113
        %2223 = vmatpush1.bf16.msra.mxu0 %v2112
        %2224 = vmatprep.subr.bf16.mxu0 %v2117
        %2225 = vmatpush1.bf16.msra.mxu0 %v2116
        %2226 = vmatprep.subr.bf16.mxu0 %v2121
        %2227 = vmatpush1.bf16.msra.mxu0 %v2120
        %2228 = vmatprep.subr.bf16.mxu0 %v2125
        %2229 = vmatpush1.bf16.msra.mxu0 %v2124
        %2230 = vmatprep.subr.bf16.mxu0 %v2129
        %2231 = vmatpush1.bf16.msra.mxu0 %v2128
        %2232 = vmatprep.subr.bf16.mxu0 %v2133
        %2233 = vmatpush1.bf16.msra.mxu0 %v2132
        %2234 = vmatprep.subr.bf16.mxu0 %v2137
        %2235 = vmatpush1.bf16.msra.mxu0 %v2136
        %2236 = vmatprep.mubr.bf16.mxu0 %v1410
        %2237 = vmatmul.mubr.bf16.gmra.mrb[0].mxu0 %v1409
        %v2238 = vpop.f32.mrb[0].mxu0
        %v2239 = vadd.f32 0.0, %v2238
        %v2240 = vpop.f32.mrb[0].mxu0
        %v2241 = vadd.f32 0.0, %v2240
        %v2242 = vpop.f32.mrb[0].mxu0
        %v2243 = vadd.f32 0.0, %v2242
        %v2244 = vpop.f32.mrb[0].mxu0
        %v2245 = vadd.f32 0.0, %v2244
        %2246 = vdwg.mxu0
        %2247 = vmatprep.subr.bf16.mxu0 %v2079
        %2248 = vmatpush1.bf16.msra.mxu0 %v2078
        %2249 = vmatprep.subr.bf16.mxu0 %v2083
        %2250 = vmatpush1.bf16.msra.mxu0 %v2082
        %2251 = vmatprep.subr.bf16.mxu0 %v2087
        %2252 = vmatpush1.bf16.msra.mxu0 %v2086
        %2253 = vmatprep.subr.bf16.mxu0 %v2091
        %2254 = vmatpush1.bf16.msra.mxu0 %v2090
        %2255 = vmatprep.subr.bf16.mxu0 %v2095
        %2256 = vmatpush1.bf16.msra.mxu0 %v2094
        %2257 = vmatprep.subr.bf16.mxu0 %v2099
        %2258 = vmatpush1.bf16.msra.mxu0 %v2098
        %2259 = vmatprep.subr.bf16.mxu0 %v2103
        %2260 = vmatpush1.bf16.msra.mxu0 %v2102
        %2261 = vmatprep.subr.bf16.mxu0 %v2107
        %2262 = vmatpush1.bf16.msra.mxu0 %v2106
        %2263 = vmatprep.subr.bf16.mxu0 %v2111
        %2264 = vmatpush1.bf16.msra.mxu0 %v2110
        %2265 = vmatprep.subr.bf16.mxu0 %v2115
        %2266 = vmatpush1.bf16.msra.mxu0 %v2114
        %2267 = vmatprep.subr.bf16.mxu0 %v2119
        %2268 = vmatpush1.bf16.msra.mxu0 %v2118
        %2269 = vmatprep.subr.bf16.mxu0 %v2123
        %2270 = vmatpush1.bf16.msra.mxu0 %v2122
        %2271 = vmatprep.subr.bf16.mxu0 %v2127
        %2272 = vmatpush1.bf16.msra.mxu0 %v2126
        %2273 = vmatprep.subr.bf16.mxu0 %v2131
        %2274 = vmatpush1.bf16.msra.mxu0 %v2130
        %2275 = vmatprep.subr.bf16.mxu0 %v2135
        %2276 = vmatpush1.bf16.msra.mxu0 %v2134
        %2277 = vmatprep.subr.bf16.mxu0 %v2139
        %2278 = vmatpush1.bf16.msra.mxu0 %v2138
        %2279 = vmatprep.mubr.bf16.mxu0 %v1410
        %2280 = vmatmul.mubr.bf16.gmra.mrb[0].mxu0 %v1409
        %v2281 = vpop.f32.mrb[0].mxu0
        %v2282 = vadd.f32 0.0, %v2281
        %v2283 = vpop.f32.mrb[0].mxu0
        %v2284 = vadd.f32 0.0, %v2283
        %v2285 = vpop.f32.mrb[0].mxu0
        %v2286 = vadd.f32 0.0, %v2285
        %v2287 = vpop.f32.mrb[0].mxu0
        %v2288 = vadd.f32 0.0, %v2287
        %2289 = vdwg.mxu0
        %v2290 = vmax.f32 %v1768, %v2239
        %v2291 = vmax.f32 %v1770, %v2241
        %v2292 = vmax.f32 %v1811, %v2282
        %v2293 = vmax.f32 %v1813, %v2284
        %v2294 = vmax.f32 %v1772, %v2243
        %v2295 = vmax.f32 %v1774, %v2245
        %v2296 = vmax.f32 %v1815, %v2286
        %v2297 = vmax.f32 %v1817, %v2288
        %s2298 = scalar_lea.vmem %s1315, 1024 [#allocation2]
        %v2299 = vld [vmem:[%s2298] sm:$0xff]
        %v2300 = vld [vmem:[%s2298 + $0x8] sm:$0xff]
        %v2301 = vld [vmem:[%s2298 + $0x10] sm:$0xff]
        %v2302 = vld [vmem:[%s2298 + $0x18] sm:$0xff]
        %v2303 = vld [vmem:[%s2298 + $0x20] sm:$0xff]
        %v2304 = vld [vmem:[%s2298 + $0x28] sm:$0xff]
        %v2305 = vld [vmem:[%s2298 + $0x30] sm:$0xff]
        %v2306 = vld [vmem:[%s2298 + $0x38] sm:$0xff]
        %v2307 = vld [vmem:[%s2298 + $0x40] sm:$0xff]
        %v2308 = vld [vmem:[%s2298 + $0x48] sm:$0xff]
        %v2309 = vld [vmem:[%s2298 + $0x50] sm:$0xff]
        %v2310 = vld [vmem:[%s2298 + $0x58] sm:$0xff]
        %v2311 = vld [vmem:[%s2298 + $0x60] sm:$0xff]
        %v2312 = vld [vmem:[%s2298 + $0x68] sm:$0xff]
        %v2313 = vld [vmem:[%s2298 + $0x70] sm:$0xff]
        %v2314 = vld [vmem:[%s2298 + $0x78] sm:$0xff]
        %v2315 = vld [vmem:[%s2298 + $0x80] sm:$0xff]
        %v2316 = vld [vmem:[%s2298 + $0x88] sm:$0xff]
        %v2317 = vld [vmem:[%s2298 + $0x90] sm:$0xff]
        %v2318 = vld [vmem:[%s2298 + $0x98] sm:$0xff]
        %v2319 = vld [vmem:[%s2298 + $0xa0] sm:$0xff]
        %v2320 = vld [vmem:[%s2298 + $0xa8] sm:$0xff]
        %v2321 = vld [vmem:[%s2298 + $0xb0] sm:$0xff]
        %v2322 = vld [vmem:[%s2298 + $0xb8] sm:$0xff]
        %v2323 = vld [vmem:[%s2298 + $0xc0] sm:$0xff]
        %v2324 = vld [vmem:[%s2298 + $0xc8] sm:$0xff]
        %v2325 = vld [vmem:[%s2298 + $0xd0] sm:$0xff]
        %v2326 = vld [vmem:[%s2298 + $0xd8] sm:$0xff]
        %v2327 = vld [vmem:[%s2298 + $0xe0] sm:$0xff]
        %v2328 = vld [vmem:[%s2298 + $0xe8] sm:$0xff]
        %v2329 = vld [vmem:[%s2298 + $0xf0] sm:$0xff]
        %v2330 = vld [vmem:[%s2298 + $0xf8] sm:$0xff]
        %v2331 = vld [vmem:[%s2298 + $0x100] sm:$0xff]
        %v2332 = vld [vmem:[%s2298 + $0x108] sm:$0xff]
        %v2333 = vld [vmem:[%s2298 + $0x110] sm:$0xff]
        %v2334 = vld [vmem:[%s2298 + $0x118] sm:$0xff]
        %v2335 = vld [vmem:[%s2298 + $0x120] sm:$0xff]
        %v2336 = vld [vmem:[%s2298 + $0x128] sm:$0xff]
        %v2337 = vld [vmem:[%s2298 + $0x130] sm:$0xff]
        %v2338 = vld [vmem:[%s2298 + $0x138] sm:$0xff]
        %v2339 = vld [vmem:[%s2298 + $0x140] sm:$0xff]
        %v2340 = vld [vmem:[%s2298 + $0x148] sm:$0xff]
        %v2341 = vld [vmem:[%s2298 + $0x150] sm:$0xff]
        %v2342 = vld [vmem:[%s2298 + $0x158] sm:$0xff]
        %v2343 = vld [vmem:[%s2298 + $0x160] sm:$0xff]
        %v2344 = vld [vmem:[%s2298 + $0x168] sm:$0xff]
        %v2345 = vld [vmem:[%s2298 + $0x170] sm:$0xff]
        %v2346 = vld [vmem:[%s2298 + $0x178] sm:$0xff]
        %v2347 = vld [vmem:[%s2298 + $0x180] sm:$0xff]
        %v2348 = vld [vmem:[%s2298 + $0x188] sm:$0xff]
        %v2349 = vld [vmem:[%s2298 + $0x190] sm:$0xff]
        %v2350 = vld [vmem:[%s2298 + $0x198] sm:$0xff]
        %v2351 = vld [vmem:[%s2298 + $0x1a0] sm:$0xff]
        %v2352 = vld [vmem:[%s2298 + $0x1a8] sm:$0xff]
        %v2353 = vld [vmem:[%s2298 + $0x1b0] sm:$0xff]
        %v2354 = vld [vmem:[%s2298 + $0x1b8] sm:$0xff]
        %v2355 = vld [vmem:[%s2298 + $0x1c0] sm:$0xff]
        %v2356 = vld [vmem:[%s2298 + $0x1c8] sm:$0xff]
        %v2357 = vld [vmem:[%s2298 + $0x1d0] sm:$0xff]
        %v2358 = vld [vmem:[%s2298 + $0x1d8] sm:$0xff]
        %v2359 = vld [vmem:[%s2298 + $0x1e0] sm:$0xff]
        %v2360 = vld [vmem:[%s2298 + $0x1e8] sm:$0xff]
        %v2361 = vld [vmem:[%s2298 + $0x1f0] sm:$0xff]
        %v2362 = vld [vmem:[%s2298 + $0x1f8] sm:$0xff]
        %v2427 = vunpack.c.l.b16 %v2299
        %v2428 = vunpack.c.h.b16 %v2299
        %v2429 = vunpack.c.l.b16 %v2300
        %v2430 = vunpack.c.h.b16 %v2300
        %v2431 = vunpack.c.l.b16 %v2301
        %v2432 = vunpack.c.h.b16 %v2301
        %v2433 = vunpack.c.l.b16 %v2302
        %v2434 = vunpack.c.h.b16 %v2302
        %v2435 = vunpack.c.l.b16 %v2303
        %v2436 = vunpack.c.h.b16 %v2303
        %v2437 = vunpack.c.l.b16 %v2304
        %v2438 = vunpack.c.h.b16 %v2304
        %v2439 = vunpack.c.l.b16 %v2305
        %v2440 = vunpack.c.h.b16 %v2305
        %v2441 = vunpack.c.l.b16 %v2306
        %v2442 = vunpack.c.h.b16 %v2306
        %v2443 = vunpack.c.l.b16 %v2307
        %v2444 = vunpack.c.h.b16 %v2307
        %v2445 = vunpack.c.l.b16 %v2308
        %v2446 = vunpack.c.h.b16 %v2308
        %v2447 = vunpack.c.l.b16 %v2309
        %v2448 = vunpack.c.h.b16 %v2309
        %v2449 = vunpack.c.l.b16 %v2310
        %v2450 = vunpack.c.h.b16 %v2310
        %v2451 = vunpack.c.l.b16 %v2311
        %v2452 = vunpack.c.h.b16 %v2311
        %v2453 = vunpack.c.l.b16 %v2312
        %v2454 = vunpack.c.h.b16 %v2312
        %v2455 = vunpack.c.l.b16 %v2313
        %v2456 = vunpack.c.h.b16 %v2313
        %v2457 = vunpack.c.l.b16 %v2314
        %v2458 = vunpack.c.h.b16 %v2314
        %v2459 = vunpack.c.l.b16 %v2315
        %v2460 = vunpack.c.h.b16 %v2315
        %v2461 = vunpack.c.l.b16 %v2316
        %v2462 = vunpack.c.h.b16 %v2316
        %v2463 = vunpack.c.l.b16 %v2317
        %v2464 = vunpack.c.h.b16 %v2317
        %v2465 = vunpack.c.l.b16 %v2318
        %v2466 = vunpack.c.h.b16 %v2318
        %v2467 = vunpack.c.l.b16 %v2319
        %v2468 = vunpack.c.h.b16 %v2319
        %v2469 = vunpack.c.l.b16 %v2320
        %v2470 = vunpack.c.h.b16 %v2320
        %v2471 = vunpack.c.l.b16 %v2321
        %v2472 = vunpack.c.h.b16 %v2321
        %v2473 = vunpack.c.l.b16 %v2322
        %v2474 = vunpack.c.h.b16 %v2322
        %v2475 = vunpack.c.l.b16 %v2323
        %v2476 = vunpack.c.h.b16 %v2323
        %v2477 = vunpack.c.l.b16 %v2324
        %v2478 = vunpack.c.h.b16 %v2324
        %v2479 = vunpack.c.l.b16 %v2325
        %v2480 = vunpack.c.h.b16 %v2325
        %v2481 = vunpack.c.l.b16 %v2326
        %v2482 = vunpack.c.h.b16 %v2326
        %v2483 = vunpack.c.l.b16 %v2327
        %v2484 = vunpack.c.h.b16 %v2327
        %v2485 = vunpack.c.l.b16 %v2328
        %v2486 = vunpack.c.h.b16 %v2328
        %v2487 = vunpack.c.l.b16 %v2329
        %v2488 = vunpack.c.h.b16 %v2329
        %v2489 = vunpack.c.l.b16 %v2330
        %v2490 = vunpack.c.h.b16 %v2330
        %v2491 = vunpack.c.l.b16 %v2331
        %v2492 = vunpack.c.h.b16 %v2331
        %v2493 = vunpack.c.l.b16 %v2332
        %v2494 = vunpack.c.h.b16 %v2332
        %v2495 = vunpack.c.l.b16 %v2333
        %v2496 = vunpack.c.h.b16 %v2333
        %v2497 = vunpack.c.l.b16 %v2334
        %v2498 = vunpack.c.h.b16 %v2334
        %v2499 = vunpack.c.l.b16 %v2335
        %v2500 = vunpack.c.h.b16 %v2335
        %v2501 = vunpack.c.l.b16 %v2336
        %v2502 = vunpack.c.h.b16 %v2336
        %v2503 = vunpack.c.l.b16 %v2337
        %v2504 = vunpack.c.h.b16 %v2337
        %v2505 = vunpack.c.l.b16 %v2338
        %v2506 = vunpack.c.h.b16 %v2338
        %v2507 = vunpack.c.l.b16 %v2339
        %v2508 = vunpack.c.h.b16 %v2339
        %v2509 = vunpack.c.l.b16 %v2340
        %v2510 = vunpack.c.h.b16 %v2340
        %v2511 = vunpack.c.l.b16 %v2341
        %v2512 = vunpack.c.h.b16 %v2341
        %v2513 = vunpack.c.l.b16 %v2342
        %v2514 = vunpack.c.h.b16 %v2342
        %v2515 = vunpack.c.l.b16 %v2343
        %v2516 = vunpack.c.h.b16 %v2343
        %v2517 = vunpack.c.l.b16 %v2344
        %v2518 = vunpack.c.h.b16 %v2344
        %v2519 = vunpack.c.l.b16 %v2345
        %v2520 = vunpack.c.h.b16 %v2345
        %v2521 = vunpack.c.l.b16 %v2346
        %v2522 = vunpack.c.h.b16 %v2346
        %v2523 = vunpack.c.l.b16 %v2347
        %v2524 = vunpack.c.h.b16 %v2347
        %v2525 = vunpack.c.l.b16 %v2348
        %v2526 = vunpack.c.h.b16 %v2348
        %v2527 = vunpack.c.l.b16 %v2349
        %v2528 = vunpack.c.h.b16 %v2349
        %v2529 = vunpack.c.l.b16 %v2350
        %v2530 = vunpack.c.h.b16 %v2350
        %v2531 = vunpack.c.l.b16 %v2351
        %v2532 = vunpack.c.h.b16 %v2351
        %v2533 = vunpack.c.l.b16 %v2352
        %v2534 = vunpack.c.h.b16 %v2352
        %v2535 = vunpack.c.l.b16 %v2353
        %v2536 = vunpack.c.h.b16 %v2353
        %v2537 = vunpack.c.l.b16 %v2354
        %v2538 = vunpack.c.h.b16 %v2354
        %v2539 = vunpack.c.l.b16 %v2355
        %v2540 = vunpack.c.h.b16 %v2355
        %v2541 = vunpack.c.l.b16 %v2356
        %v2542 = vunpack.c.h.b16 %v2356
        %v2543 = vunpack.c.l.b16 %v2357
        %v2544 = vunpack.c.h.b16 %v2357
        %v2545 = vunpack.c.l.b16 %v2358
        %v2546 = vunpack.c.h.b16 %v2358
        %v2547 = vunpack.c.l.b16 %v2359
        %v2548 = vunpack.c.h.b16 %v2359
        %v2549 = vunpack.c.l.b16 %v2360
        %v2550 = vunpack.c.h.b16 %v2360
        %v2551 = vunpack.c.l.b16 %v2361
        %v2552 = vunpack.c.h.b16 %v2361
        %v2553 = vunpack.c.l.b16 %v2362
        %v2554 = vunpack.c.h.b16 %v2362
        %v2555 = vpack.c.b16 %v2431, %v2427
        %v2556 = vpack.c.b16 %v2432, %v2428
        %v2557 = vpack.c.b16 %v2433, %v2429
        %v2558 = vpack.c.b16 %v2434, %v2430
        %v2559 = vpack.c.b16 %v2439, %v2435
        %v2560 = vpack.c.b16 %v2440, %v2436
        %v2561 = vpack.c.b16 %v2441, %v2437
        %v2562 = vpack.c.b16 %v2442, %v2438
        %v2563 = vpack.c.b16 %v2447, %v2443
        %v2564 = vpack.c.b16 %v2448, %v2444
        %v2565 = vpack.c.b16 %v2449, %v2445
        %v2566 = vpack.c.b16 %v2450, %v2446
        %v2567 = vpack.c.b16 %v2455, %v2451
        %v2568 = vpack.c.b16 %v2456, %v2452
        %v2569 = vpack.c.b16 %v2457, %v2453
        %v2570 = vpack.c.b16 %v2458, %v2454
        %v2571 = vpack.c.b16 %v2463, %v2459
        %v2572 = vpack.c.b16 %v2464, %v2460
        %v2573 = vpack.c.b16 %v2465, %v2461
        %v2574 = vpack.c.b16 %v2466, %v2462
        %v2575 = vpack.c.b16 %v2471, %v2467
        %v2576 = vpack.c.b16 %v2472, %v2468
        %v2577 = vpack.c.b16 %v2473, %v2469
        %v2578 = vpack.c.b16 %v2474, %v2470
        %v2579 = vpack.c.b16 %v2479, %v2475
        %v2580 = vpack.c.b16 %v2480, %v2476
        %v2581 = vpack.c.b16 %v2481, %v2477
        %v2582 = vpack.c.b16 %v2482, %v2478
        %v2583 = vpack.c.b16 %v2487, %v2483
        %v2584 = vpack.c.b16 %v2488, %v2484
        %v2585 = vpack.c.b16 %v2489, %v2485
        %v2586 = vpack.c.b16 %v2490, %v2486
        %v2587 = vpack.c.b16 %v2495, %v2491
        %v2588 = vpack.c.b16 %v2496, %v2492
        %v2589 = vpack.c.b16 %v2497, %v2493
        %v2590 = vpack.c.b16 %v2498, %v2494
        %v2591 = vpack.c.b16 %v2503, %v2499
        %v2592 = vpack.c.b16 %v2504, %v2500
        %v2593 = vpack.c.b16 %v2505, %v2501
        %v2594 = vpack.c.b16 %v2506, %v2502
        %v2595 = vpack.c.b16 %v2511, %v2507
        %v2596 = vpack.c.b16 %v2512, %v2508
        %v2597 = vpack.c.b16 %v2513, %v2509
        %v2598 = vpack.c.b16 %v2514, %v2510
        %v2599 = vpack.c.b16 %v2519, %v2515
        %v2600 = vpack.c.b16 %v2520, %v2516
        %v2601 = vpack.c.b16 %v2521, %v2517
        %v2602 = vpack.c.b16 %v2522, %v2518
        %v2603 = vpack.c.b16 %v2527, %v2523
        %v2604 = vpack.c.b16 %v2528, %v2524
        %v2605 = vpack.c.b16 %v2529, %v2525
        %v2606 = vpack.c.b16 %v2530, %v2526
        %v2607 = vpack.c.b16 %v2535, %v2531
        %v2608 = vpack.c.b16 %v2536, %v2532
        %v2609 = vpack.c.b16 %v2537, %v2533
        %v2610 = vpack.c.b16 %v2538, %v2534
        %v2611 = vpack.c.b16 %v2543, %v2539
        %v2612 = vpack.c.b16 %v2544, %v2540
        %v2613 = vpack.c.b16 %v2545, %v2541
        %v2614 = vpack.c.b16 %v2546, %v2542
        %v2615 = vpack.c.b16 %v2551, %v2547
        %v2616 = vpack.c.b16 %v2552, %v2548
        %v2617 = vpack.c.b16 %v2553, %v2549
        %v2618 = vpack.c.b16 %v2554, %v2550
        %2683 = vmatprep.subr.bf16.mxu0 %v2556
        %2684 = vmatpush1.bf16.msra.mxu0 %v2555
        %2685 = vmatprep.subr.bf16.mxu0 %v2560
        %2686 = vmatpush1.bf16.msra.mxu0 %v2559
        %2687 = vmatprep.subr.bf16.mxu0 %v2564
        %2688 = vmatpush1.bf16.msra.mxu0 %v2563
        %2689 = vmatprep.subr.bf16.mxu0 %v2568
        %2690 = vmatpush1.bf16.msra.mxu0 %v2567
        %2691 = vmatprep.subr.bf16.mxu0 %v2572
        %2692 = vmatpush1.bf16.msra.mxu0 %v2571
        %2693 = vmatprep.subr.bf16.mxu0 %v2576
        %2694 = vmatpush1.bf16.msra.mxu0 %v2575
        %2695 = vmatprep.subr.bf16.mxu0 %v2580
        %2696 = vmatpush1.bf16.msra.mxu0 %v2579
        %2697 = vmatprep.subr.bf16.mxu0 %v2584
        %2698 = vmatpush1.bf16.msra.mxu0 %v2583
        %2699 = vmatprep.subr.bf16.mxu0 %v2588
        %2700 = vmatpush1.bf16.msra.mxu0 %v2587
        %2701 = vmatprep.subr.bf16.mxu0 %v2592
        %2702 = vmatpush1.bf16.msra.mxu0 %v2591
        %2703 = vmatprep.subr.bf16.mxu0 %v2596
        %2704 = vmatpush1.bf16.msra.mxu0 %v2595
        %2705 = vmatprep.subr.bf16.mxu0 %v2600
        %2706 = vmatpush1.bf16.msra.mxu0 %v2599
        %2707 = vmatprep.subr.bf16.mxu0 %v2604
        %2708 = vmatpush1.bf16.msra.mxu0 %v2603
        %2709 = vmatprep.subr.bf16.mxu0 %v2608
        %2710 = vmatpush1.bf16.msra.mxu0 %v2607
        %2711 = vmatprep.subr.bf16.mxu0 %v2612
        %2712 = vmatpush1.bf16.msra.mxu0 %v2611
        %2713 = vmatprep.subr.bf16.mxu0 %v2616
        %2714 = vmatpush1.bf16.msra.mxu0 %v2615
        %2715 = vmatprep.mubr.bf16.mxu0 %v1410
        %2716 = vmatmul.mubr.bf16.gmra.mrb[0].mxu0 %v1409
        %v2717 = vpop.f32.mrb[0].mxu0
        %v2718 = vadd.f32 0.0, %v2717
        %v2719 = vpop.f32.mrb[0].mxu0
        %v2720 = vadd.f32 0.0, %v2719
        %v2721 = vpop.f32.mrb[0].mxu0
        %v2722 = vadd.f32 0.0, %v2721
        %v2723 = vpop.f32.mrb[0].mxu0
        %v2724 = vadd.f32 0.0, %v2723
        %2725 = vdwg.mxu0
        %2726 = vmatprep.subr.bf16.mxu0 %v2558
        %2727 = vmatpush1.bf16.msra.mxu0 %v2557
        %2728 = vmatprep.subr.bf16.mxu0 %v2562
        %2729 = vmatpush1.bf16.msra.mxu0 %v2561
        %2730 = vmatprep.subr.bf16.mxu0 %v2566
        %2731 = vmatpush1.bf16.msra.mxu0 %v2565
        %2732 = vmatprep.subr.bf16.mxu0 %v2570
        %2733 = vmatpush1.bf16.msra.mxu0 %v2569
        %2734 = vmatprep.subr.bf16.mxu0 %v2574
        %2735 = vmatpush1.bf16.msra.mxu0 %v2573
        %2736 = vmatprep.subr.bf16.mxu0 %v2578
        %2737 = vmatpush1.bf16.msra.mxu0 %v2577
        %2738 = vmatprep.subr.bf16.mxu0 %v2582
        %2739 = vmatpush1.bf16.msra.mxu0 %v2581
        %2740 = vmatprep.subr.bf16.mxu0 %v2586
        %2741 = vmatpush1.bf16.msra.mxu0 %v2585
        %2742 = vmatprep.subr.bf16.mxu0 %v2590
        %2743 = vmatpush1.bf16.msra.mxu0 %v2589
        %2744 = vmatprep.subr.bf16.mxu0 %v2594
        %2745 = vmatpush1.bf16.msra.mxu0 %v2593
        %2746 = vmatprep.subr.bf16.mxu0 %v2598
        %2747 = vmatpush1.bf16.msra.mxu0 %v2597
        %2748 = vmatprep.subr.bf16.mxu0 %v2602
        %2749 = vmatpush1.bf16.msra.mxu0 %v2601
        %2750 = vmatprep.subr.bf16.mxu0 %v2606
        %2751 = vmatpush1.bf16.msra.mxu0 %v2605
        %2752 = vmatprep.subr.bf16.mxu0 %v2610
        %2753 = vmatpush1.bf16.msra.mxu0 %v2609
        %2754 = vmatprep.subr.bf16.mxu0 %v2614
        %2755 = vmatpush1.bf16.msra.mxu0 %v2613
        %2756 = vmatprep.subr.bf16.mxu0 %v2618
        %2757 = vmatpush1.bf16.msra.mxu0 %v2617
        %2758 = vmatprep.mubr.bf16.mxu0 %v1410
        %2759 = vmatmul.mubr.bf16.gmra.mrb[0].mxu0 %v1409
        %v2760 = vpop.f32.mrb[0].mxu0
        %v2761 = vadd.f32 0.0, %v2760
        %v2762 = vpop.f32.mrb[0].mxu0
        %v2763 = vadd.f32 0.0, %v2762
        %v2764 = vpop.f32.mrb[0].mxu0
        %v2765 = vadd.f32 0.0, %v2764
        %v2766 = vpop.f32.mrb[0].mxu0
        %v2767 = vadd.f32 0.0, %v2766
        %2768 = vdwg.mxu0
        %v2769 = vmax.f32 %v2290, %v2718
        %v2770 = vmax.f32 %v2291, %v2720
        %v2771 = vmax.f32 %v2292, %v2761
        %v2772 = vmax.f32 %v2293, %v2763
        %v2773 = vmax.f32 %v2294, %v2722
        %v2774 = vmax.f32 %v2295, %v2724
        %v2775 = vmax.f32 %v2296, %v2765
        %v2776 = vmax.f32 %v2297, %v2767
        %s2777 = scalar_lea.vmem %s1315, 1536 [#allocation2]
        %v2778 = vld [vmem:[%s2777] sm:$0xff]
        %v2779 = vld [vmem:[%s2777 + $0x8] sm:$0xff]
        %v2780 = vld [vmem:[%s2777 + $0x10] sm:$0xff]
        %v2781 = vld [vmem:[%s2777 + $0x18] sm:$0xff]
        %v2782 = vld [vmem:[%s2777 + $0x20] sm:$0xff]
        %v2783 = vld [vmem:[%s2777 + $0x28] sm:$0xff]
        %v2784 = vld [vmem:[%s2777 + $0x30] sm:$0xff]
        %v2785 = vld [vmem:[%s2777 + $0x38] sm:$0xff]
        %v2786 = vld [vmem:[%s2777 + $0x40] sm:$0xff]
        %v2787 = vld [vmem:[%s2777 + $0x48] sm:$0xff]
        %v2788 = vld [vmem:[%s2777 + $0x50] sm:$0xff]
        %v2789 = vld [vmem:[%s2777 + $0x58] sm:$0xff]
        %v2790 = vld [vmem:[%s2777 + $0x60] sm:$0xff]
        %v2791 = vld [vmem:[%s2777 + $0x68] sm:$0xff]
        %v2792 = vld [vmem:[%s2777 + $0x70] sm:$0xff]
        %v2793 = vld [vmem:[%s2777 + $0x78] sm:$0xff]
        %v2794 = vld [vmem:[%s2777 + $0x80] sm:$0xff]
        %v2795 = vld [vmem:[%s2777 + $0x88] sm:$0xff]
        %v2796 = vld [vmem:[%s2777 + $0x90] sm:$0xff]
        %v2797 = vld [vmem:[%s2777 + $0x98] sm:$0xff]
        %v2798 = vld [vmem:[%s2777 + $0xa0] sm:$0xff]
        %v2799 = vld [vmem:[%s2777 + $0xa8] sm:$0xff]
        %v2800 = vld [vmem:[%s2777 + $0xb0] sm:$0xff]
        %v2801 = vld [vmem:[%s2777 + $0xb8] sm:$0xff]
        %v2802 = vld [vmem:[%s2777 + $0xc0] sm:$0xff]
        %v2803 = vld [vmem:[%s2777 + $0xc8] sm:$0xff]
        %v2804 = vld [vmem:[%s2777 + $0xd0] sm:$0xff]
        %v2805 = vld [vmem:[%s2777 + $0xd8] sm:$0xff]
        %v2806 = vld [vmem:[%s2777 + $0xe0] sm:$0xff]
        %v2807 = vld [vmem:[%s2777 + $0xe8] sm:$0xff]
        %v2808 = vld [vmem:[%s2777 + $0xf0] sm:$0xff]
        %v2809 = vld [vmem:[%s2777 + $0xf8] sm:$0xff]
        %v2810 = vld [vmem:[%s2777 + $0x100] sm:$0xff]
        %v2811 = vld [vmem:[%s2777 + $0x108] sm:$0xff]
        %v2812 = vld [vmem:[%s2777 + $0x110] sm:$0xff]
        %v2813 = vld [vmem:[%s2777 + $0x118] sm:$0xff]
        %v2814 = vld [vmem:[%s2777 + $0x120] sm:$0xff]
        %v2815 = vld [vmem:[%s2777 + $0x128] sm:$0xff]
        %v2816 = vld [vmem:[%s2777 + $0x130] sm:$0xff]
        %v2817 = vld [vmem:[%s2777 + $0x138] sm:$0xff]
        %v2818 = vld [vmem:[%s2777 + $0x140] sm:$0xff]
        %v2819 = vld [vmem:[%s2777 + $0x148] sm:$0xff]
        %v2820 = vld [vmem:[%s2777 + $0x150] sm:$0xff]
        %v2821 = vld [vmem:[%s2777 + $0x158] sm:$0xff]
        %v2822 = vld [vmem:[%s2777 + $0x160] sm:$0xff]
        %v2823 = vld [vmem:[%s2777 + $0x168] sm:$0xff]
        %v2824 = vld [vmem:[%s2777 + $0x170] sm:$0xff]
        %v2825 = vld [vmem:[%s2777 + $0x178] sm:$0xff]
        %v2826 = vld [vmem:[%s2777 + $0x180] sm:$0xff]
        %v2827 = vld [vmem:[%s2777 + $0x188] sm:$0xff]
        %v2828 = vld [vmem:[%s2777 + $0x190] sm:$0xff]
        %v2829 = vld [vmem:[%s2777 + $0x198] sm:$0xff]
        %v2830 = vld [vmem:[%s2777 + $0x1a0] sm:$0xff]
        %v2831 = vld [vmem:[%s2777 + $0x1a8] sm:$0xff]
        %v2832 = vld [vmem:[%s2777 + $0x1b0] sm:$0xff]
        %v2833 = vld [vmem:[%s2777 + $0x1b8] sm:$0xff]
        %v2834 = vld [vmem:[%s2777 + $0x1c0] sm:$0xff]
        %v2835 = vld [vmem:[%s2777 + $0x1c8] sm:$0xff]
        %v2836 = vld [vmem:[%s2777 + $0x1d0] sm:$0xff]
        %v2837 = vld [vmem:[%s2777 + $0x1d8] sm:$0xff]
        %v2838 = vld [vmem:[%s2777 + $0x1e0] sm:$0xff]
        %v2839 = vld [vmem:[%s2777 + $0x1e8] sm:$0xff]
        %v2840 = vld [vmem:[%s2777 + $0x1f0] sm:$0xff]
        %v2841 = vld [vmem:[%s2777 + $0x1f8] sm:$0xff]
        %v2906 = vunpack.c.l.b16 %v2778
        %v2907 = vunpack.c.h.b16 %v2778
        %v2908 = vunpack.c.l.b16 %v2779
        %v2909 = vunpack.c.h.b16 %v2779
        %v2910 = vunpack.c.l.b16 %v2780
        %v2911 = vunpack.c.h.b16 %v2780
        %v2912 = vunpack.c.l.b16 %v2781
        %v2913 = vunpack.c.h.b16 %v2781
        %v2914 = vunpack.c.l.b16 %v2782
        %v2915 = vunpack.c.h.b16 %v2782
        %v2916 = vunpack.c.l.b16 %v2783
        %v2917 = vunpack.c.h.b16 %v2783
        %v2918 = vunpack.c.l.b16 %v2784
        %v2919 = vunpack.c.h.b16 %v2784
        %v2920 = vunpack.c.l.b16 %v2785
        %v2921 = vunpack.c.h.b16 %v2785
        %v2922 = vunpack.c.l.b16 %v2786
        %v2923 = vunpack.c.h.b16 %v2786
        %v2924 = vunpack.c.l.b16 %v2787
        %v2925 = vunpack.c.h.b16 %v2787
        %v2926 = vunpack.c.l.b16 %v2788
        %v2927 = vunpack.c.h.b16 %v2788
        %v2928 = vunpack.c.l.b16 %v2789
        %v2929 = vunpack.c.h.b16 %v2789
        %v2930 = vunpack.c.l.b16 %v2790
        %v2931 = vunpack.c.h.b16 %v2790
        %v2932 = vunpack.c.l.b16 %v2791
        %v2933 = vunpack.c.h.b16 %v2791
        %v2934 = vunpack.c.l.b16 %v2792
        %v2935 = vunpack.c.h.b16 %v2792
        %v2936 = vunpack.c.l.b16 %v2793
        %v2937 = vunpack.c.h.b16 %v2793
        %v2938 = vunpack.c.l.b16 %v2794
        %v2939 = vunpack.c.h.b16 %v2794
        %v2940 = vunpack.c.l.b16 %v2795
        %v2941 = vunpack.c.h.b16 %v2795
        %v2942 = vunpack.c.l.b16 %v2796
        %v2943 = vunpack.c.h.b16 %v2796
        %v2944 = vunpack.c.l.b16 %v2797
        %v2945 = vunpack.c.h.b16 %v2797
        %v2946 = vunpack.c.l.b16 %v2798
        %v2947 = vunpack.c.h.b16 %v2798
        %v2948 = vunpack.c.l.b16 %v2799
        %v2949 = vunpack.c.h.b16 %v2799
        %v2950 = vunpack.c.l.b16 %v2800
        %v2951 = vunpack.c.h.b16 %v2800
        %v2952 = vunpack.c.l.b16 %v2801
        %v2953 = vunpack.c.h.b16 %v2801
        %v2954 = vunpack.c.l.b16 %v2802
        %v2955 = vunpack.c.h.b16 %v2802
        %v2956 = vunpack.c.l.b16 %v2803
        %v2957 = vunpack.c.h.b16 %v2803
        %v2958 = vunpack.c.l.b16 %v2804
        %v2959 = vunpack.c.h.b16 %v2804
        %v2960 = vunpack.c.l.b16 %v2805
        %v2961 = vunpack.c.h.b16 %v2805
        %v2962 = vunpack.c.l.b16 %v2806
        %v2963 = vunpack.c.h.b16 %v2806
        %v2964 = vunpack.c.l.b16 %v2807
        %v2965 = vunpack.c.h.b16 %v2807
        %v2966 = vunpack.c.l.b16 %v2808
        %v2967 = vunpack.c.h.b16 %v2808
        %v2968 = vunpack.c.l.b16 %v2809
        %v2969 = vunpack.c.h.b16 %v2809
        %v2970 = vunpack.c.l.b16 %v2810
        %v2971 = vunpack.c.h.b16 %v2810
        %v2972 = vunpack.c.l.b16 %v2811
        %v2973 = vunpack.c.h.b16 %v2811
        %v2974 = vunpack.c.l.b16 %v2812
        %v2975 = vunpack.c.h.b16 %v2812
        %v2976 = vunpack.c.l.b16 %v2813
        %v2977 = vunpack.c.h.b16 %v2813
        %v2978 = vunpack.c.l.b16 %v2814
        %v2979 = vunpack.c.h.b16 %v2814
        %v2980 = vunpack.c.l.b16 %v2815
        %v2981 = vunpack.c.h.b16 %v2815
        %v2982 = vunpack.c.l.b16 %v2816
        %v2983 = vunpack.c.h.b16 %v2816
        %v2984 = vunpack.c.l.b16 %v2817
        %v2985 = vunpack.c.h.b16 %v2817
        %v2986 = vunpack.c.l.b16 %v2818
        %v2987 = vunpack.c.h.b16 %v2818
        %v2988 = vunpack.c.l.b16 %v2819
        %v2989 = vunpack.c.h.b16 %v2819
        %v2990 = vunpack.c.l.b16 %v2820
        %v2991 = vunpack.c.h.b16 %v2820
        %v2992 = vunpack.c.l.b16 %v2821
        %v2993 = vunpack.c.h.b16 %v2821
        %v2994 = vunpack.c.l.b16 %v2822
        %v2995 = vunpack.c.h.b16 %v2822
        %v2996 = vunpack.c.l.b16 %v2823
        %v2997 = vunpack.c.h.b16 %v2823
        %v2998 = vunpack.c.l.b16 %v2824
        %v2999 = vunpack.c.h.b16 %v2824
        %v3000 = vunpack.c.l.b16 %v2825
        %v3001 = vunpack.c.h.b16 %v2825
        %v3002 = vunpack.c.l.b16 %v2826
        %v3003 = vunpack.c.h.b16 %v2826
        %v3004 = vunpack.c.l.b16 %v2827
        %v3005 = vunpack.c.h.b16 %v2827
        %v3006 = vunpack.c.l.b16 %v2828
        %v3007 = vunpack.c.h.b16 %v2828
        %v3008 = vunpack.c.l.b16 %v2829
        %v3009 = vunpack.c.h.b16 %v2829
        %v3010 = vunpack.c.l.b16 %v2830
        %v3011 = vunpack.c.h.b16 %v2830
        %v3012 = vunpack.c.l.b16 %v2831
        %v3013 = vunpack.c.h.b16 %v2831
        %v3014 = vunpack.c.l.b16 %v2832
        %v3015 = vunpack.c.h.b16 %v2832
        %v3016 = vunpack.c.l.b16 %v2833
        %v3017 = vunpack.c.h.b16 %v2833
        %v3018 = vunpack.c.l.b16 %v2834
        %v3019 = vunpack.c.h.b16 %v2834
        %v3020 = vunpack.c.l.b16 %v2835
        %v3021 = vunpack.c.h.b16 %v2835
        %v3022 = vunpack.c.l.b16 %v2836
        %v3023 = vunpack.c.h.b16 %v2836
        %v3024 = vunpack.c.l.b16 %v2837
        %v3025 = vunpack.c.h.b16 %v2837
        %v3026 = vunpack.c.l.b16 %v2838
        %v3027 = vunpack.c.h.b16 %v2838
        %v3028 = vunpack.c.l.b16 %v2839
        %v3029 = vunpack.c.h.b16 %v2839
        %v3030 = vunpack.c.l.b16 %v2840
        %v3031 = vunpack.c.h.b16 %v2840
        %v3032 = vunpack.c.l.b16 %v2841
        %v3033 = vunpack.c.h.b16 %v2841
        %v3034 = vpack.c.b16 %v2910, %v2906
        %v3035 = vpack.c.b16 %v2911, %v2907
        %v3036 = vpack.c.b16 %v2912, %v2908
        %v3037 = vpack.c.b16 %v2913, %v2909
        %v3038 = vpack.c.b16 %v2918, %v2914
        %v3039 = vpack.c.b16 %v2919, %v2915
        %v3040 = vpack.c.b16 %v2920, %v2916
        %v3041 = vpack.c.b16 %v2921, %v2917
        %v3042 = vpack.c.b16 %v2926, %v2922
        %v3043 = vpack.c.b16 %v2927, %v2923
        %v3044 = vpack.c.b16 %v2928, %v2924
        %v3045 = vpack.c.b16 %v2929, %v2925
        %v3046 = vpack.c.b16 %v2934, %v2930
        %v3047 = vpack.c.b16 %v2935, %v2931
        %v3048 = vpack.c.b16 %v2936, %v2932
        %v3049 = vpack.c.b16 %v2937, %v2933
        %v3050 = vpack.c.b16 %v2942, %v2938
        %v3051 = vpack.c.b16 %v2943, %v2939
        %v3052 = vpack.c.b16 %v2944, %v2940
        %v3053 = vpack.c.b16 %v2945, %v2941
        %v3054 = vpack.c.b16 %v2950, %v2946
        %v3055 = vpack.c.b16 %v2951, %v2947
        %v3056 = vpack.c.b16 %v2952, %v2948
        %v3057 = vpack.c.b16 %v2953, %v2949
        %v3058 = vpack.c.b16 %v2958, %v2954
        %v3059 = vpack.c.b16 %v2959, %v2955
        %v3060 = vpack.c.b16 %v2960, %v2956
        %v3061 = vpack.c.b16 %v2961, %v2957
        %v3062 = vpack.c.b16 %v2966, %v2962
        %v3063 = vpack.c.b16 %v2967, %v2963
        %v3064 = vpack.c.b16 %v2968, %v2964
        %v3065 = vpack.c.b16 %v2969, %v2965
        %v3066 = vpack.c.b16 %v2974, %v2970
        %v3067 = vpack.c.b16 %v2975, %v2971
        %v3068 = vpack.c.b16 %v2976, %v2972
        %v3069 = vpack.c.b16 %v2977, %v2973
        %v3070 = vpack.c.b16 %v2982, %v2978
        %v3071 = vpack.c.b16 %v2983, %v2979
        %v3072 = vpack.c.b16 %v2984, %v2980
        %v3073 = vpack.c.b16 %v2985, %v2981
        %v3074 = vpack.c.b16 %v2990, %v2986
        %v3075 = vpack.c.b16 %v2991, %v2987
        %v3076 = vpack.c.b16 %v2992, %v2988
        %v3077 = vpack.c.b16 %v2993, %v2989
        %v3078 = vpack.c.b16 %v2998, %v2994
        %v3079 = vpack.c.b16 %v2999, %v2995
        %v3080 = vpack.c.b16 %v3000, %v2996
        %v3081 = vpack.c.b16 %v3001, %v2997
        %v3082 = vpack.c.b16 %v3006, %v3002
        %v3083 = vpack.c.b16 %v3007, %v3003
        %v3084 = vpack.c.b16 %v3008, %v3004
        %v3085 = vpack.c.b16 %v3009, %v3005
        %v3086 = vpack.c.b16 %v3014, %v3010
        %v3087 = vpack.c.b16 %v3015, %v3011
        %v3088 = vpack.c.b16 %v3016, %v3012
        %v3089 = vpack.c.b16 %v3017, %v3013
        %v3090 = vpack.c.b16 %v3022, %v3018
        %v3091 = vpack.c.b16 %v3023, %v3019
        %v3092 = vpack.c.b16 %v3024, %v3020
        %v3093 = vpack.c.b16 %v3025, %v3021
        %v3094 = vpack.c.b16 %v3030, %v3026
        %v3095 = vpack.c.b16 %v3031, %v3027
        %v3096 = vpack.c.b16 %v3032, %v3028
        %v3097 = vpack.c.b16 %v3033, %v3029
        %3162 = vmatprep.subr.bf16.mxu0 %v3035
        %3163 = vmatpush1.bf16.msra.mxu0 %v3034
        %3164 = vmatprep.subr.bf16.mxu0 %v3039
        %3165 = vmatpush1.bf16.msra.mxu0 %v3038
        %3166 = vmatprep.subr.bf16.mxu0 %v3043
        %3167 = vmatpush1.bf16.msra.mxu0 %v3042
        %3168 = vmatprep.subr.bf16.mxu0 %v3047
        %3169 = vmatpush1.bf16.msra.mxu0 %v3046
        %3170 = vmatprep.subr.bf16.mxu0 %v3051
        %3171 = vmatpush1.bf16.msra.mxu0 %v3050
        %3172 = vmatprep.subr.bf16.mxu0 %v3055
        %3173 = vmatpush1.bf16.msra.mxu0 %v3054
        %3174 = vmatprep.subr.bf16.mxu0 %v3059
        %3175 = vmatpush1.bf16.msra.mxu0 %v3058
        %3176 = vmatprep.subr.bf16.mxu0 %v3063
        %3177 = vmatpush1.bf16.msra.mxu0 %v3062
        %3178 = vmatprep.subr.bf16.mxu0 %v3067
        %3179 = vmatpush1.bf16.msra.mxu0 %v3066
        %3180 = vmatprep.subr.bf16.mxu0 %v3071
        %3181 = vmatpush1.bf16.msra.mxu0 %v3070
        %3182 = vmatprep.subr.bf16.mxu0 %v3075
        %3183 = vmatpush1.bf16.msra.mxu0 %v3074
        %3184 = vmatprep.subr.bf16.mxu0 %v3079
        %3185 = vmatpush1.bf16.msra.mxu0 %v3078
        %3186 = vmatprep.subr.bf16.mxu0 %v3083
        %3187 = vmatpush1.bf16.msra.mxu0 %v3082
        %3188 = vmatprep.subr.bf16.mxu0 %v3087
        %3189 = vmatpush1.bf16.msra.mxu0 %v3086
        %3190 = vmatprep.subr.bf16.mxu0 %v3091
        %3191 = vmatpush1.bf16.msra.mxu0 %v3090
        %3192 = vmatprep.subr.bf16.mxu0 %v3095
        %3193 = vmatpush1.bf16.msra.mxu0 %v3094
        %3194 = vmatprep.mubr.bf16.mxu0 %v1410
        %3195 = vmatmul.mubr.bf16.gmra.mrb[0].mxu0 %v1409
        %v3196 = vpop.f32.mrb[0].mxu0
        %v3197 = vadd.f32 0.0, %v3196
        %v3198 = vpop.f32.mrb[0].mxu0
        %v3199 = vadd.f32 0.0, %v3198
        %v3200 = vpop.f32.mrb[0].mxu0
        %v3201 = vadd.f32 0.0, %v3200
        %v3202 = vpop.f32.mrb[0].mxu0
        %v3203 = vadd.f32 0.0, %v3202
        %3204 = vdwg.mxu0
        %3205 = vmatprep.subr.bf16.mxu0 %v3037
        %3206 = vmatpush1.bf16.msra.mxu0 %v3036
        %3207 = vmatprep.subr.bf16.mxu0 %v3041
        %3208 = vmatpush1.bf16.msra.mxu0 %v3040
        %3209 = vmatprep.subr.bf16.mxu0 %v3045
        %3210 = vmatpush1.bf16.msra.mxu0 %v3044
        %3211 = vmatprep.subr.bf16.mxu0 %v3049
        %3212 = vmatpush1.bf16.msra.mxu0 %v3048
        %3213 = vmatprep.subr.bf16.mxu0 %v3053
        %3214 = vmatpush1.bf16.msra.mxu0 %v3052
        %3215 = vmatprep.subr.bf16.mxu0 %v3057
        %3216 = vmatpush1.bf16.msra.mxu0 %v3056
        %3217 = vmatprep.subr.bf16.mxu0 %v3061
        %3218 = vmatpush1.bf16.msra.mxu0 %v3060
        %3219 = vmatprep.subr.bf16.mxu0 %v3065
        %3220 = vmatpush1.bf16.msra.mxu0 %v3064
        %3221 = vmatprep.subr.bf16.mxu0 %v3069
        %3222 = vmatpush1.bf16.msra.mxu0 %v3068
        %3223 = vmatprep.subr.bf16.mxu0 %v3073
        %3224 = vmatpush1.bf16.msra.mxu0 %v3072
        %3225 = vmatprep.subr.bf16.mxu0 %v3077
        %3226 = vmatpush1.bf16.msra.mxu0 %v3076
        %3227 = vmatprep.subr.bf16.mxu0 %v3081
        %3228 = vmatpush1.bf16.msra.mxu0 %v3080
        %3229 = vmatprep.subr.bf16.mxu0 %v3085
        %3230 = vmatpush1.bf16.msra.mxu0 %v3084
        %3231 = vmatprep.subr.bf16.mxu0 %v3089
        %3232 = vmatpush1.bf16.msra.mxu0 %v3088
        %3233 = vmatprep.subr.bf16.mxu0 %v3093
        %3234 = vmatpush1.bf16.msra.mxu0 %v3092
        %3235 = vmatprep.subr.bf16.mxu0 %v3097
        %3236 = vmatpush1.bf16.msra.mxu0 %v3096
        %3237 = vmatprep.mubr.bf16.mxu0 %v1410
        %3238 = vmatmul.mubr.bf16.gmra.mrb[0].mxu0 %v1409
        %v3239 = vpop.f32.mrb[0].mxu0
        %v3240 = vadd.f32 0.0, %v3239
        %v3241 = vpop.f32.mrb[0].mxu0
        %v3242 = vadd.f32 0.0, %v3241
        %v3243 = vpop.f32.mrb[0].mxu0
        %v3244 = vadd.f32 0.0, %v3243
        %v3245 = vpop.f32.mrb[0].mxu0
        %v3246 = vadd.f32 0.0, %v3245
        %3247 = vdwg.mxu0
        %v3248 = vmax.f32 %v2769, %v3197
        %v3249 = vmax.f32 %v2770, %v3199
        %v3250 = vmax.f32 %v2771, %v3240
        %v3251 = vmax.f32 %v2772, %v3242
        %v3252 = vmax.f32 %v2773, %v3201
        %v3253 = vmax.f32 %v2774, %v3203
        %v3254 = vmax.f32 %v2775, %v3244
        %v3255 = vmax.f32 %v2776, %v3246
        %s3256 = scalar_lea.vmem %s1315, 2048 [#allocation2]
        %v3257 = vld [vmem:[%s3256] sm:$0xff]
        %v3258 = vld [vmem:[%s3256 + $0x8] sm:$0xff]
        %v3259 = vld [vmem:[%s3256 + $0x10] sm:$0xff]
        %v3260 = vld [vmem:[%s3256 + $0x18] sm:$0xff]
        %v3261 = vld [vmem:[%s3256 + $0x20] sm:$0xff]
        %v3262 = vld [vmem:[%s3256 + $0x28] sm:$0xff]
        %v3263 = vld [vmem:[%s3256 + $0x30] sm:$0xff]
        %v3264 = vld [vmem:[%s3256 + $0x38] sm:$0xff]
        %v3265 = vld [vmem:[%s3256 + $0x40] sm:$0xff]
        %v3266 = vld [vmem:[%s3256 + $0x48] sm:$0xff]
        %v3267 = vld [vmem:[%s3256 + $0x50] sm:$0xff]
        %v3268 = vld [vmem:[%s3256 + $0x58] sm:$0xff]
        %v3269 = vld [vmem:[%s3256 + $0x60] sm:$0xff]
        %v3270 = vld [vmem:[%s3256 + $0x68] sm:$0xff]
        %v3271 = vld [vmem:[%s3256 + $0x70] sm:$0xff]
        %v3272 = vld [vmem:[%s3256 + $0x78] sm:$0xff]
        %v3273 = vld [vmem:[%s3256 + $0x80] sm:$0xff]
        %v3274 = vld [vmem:[%s3256 + $0x88] sm:$0xff]
        %v3275 = vld [vmem:[%s3256 + $0x90] sm:$0xff]
        %v3276 = vld [vmem:[%s3256 + $0x98] sm:$0xff]
        %v3277 = vld [vmem:[%s3256 + $0xa0] sm:$0xff]
        %v3278 = vld [vmem:[%s3256 + $0xa8] sm:$0xff]
        %v3279 = vld [vmem:[%s3256 + $0xb0] sm:$0xff]
        %v3280 = vld [vmem:[%s3256 + $0xb8] sm:$0xff]
        %v3281 = vld [vmem:[%s3256 + $0xc0] sm:$0xff]
        %v3282 = vld [vmem:[%s3256 + $0xc8] sm:$0xff]
        %v3283 = vld [vmem:[%s3256 + $0xd0] sm:$0xff]
        %v3284 = vld [vmem:[%s3256 + $0xd8] sm:$0xff]
        %v3285 = vld [vmem:[%s3256 + $0xe0] sm:$0xff]
        %v3286 = vld [vmem:[%s3256 + $0xe8] sm:$0xff]
        %v3287 = vld [vmem:[%s3256 + $0xf0] sm:$0xff]
        %v3288 = vld [vmem:[%s3256 + $0xf8] sm:$0xff]
        %v3289 = vld [vmem:[%s3256 + $0x100] sm:$0xff]
        %v3290 = vld [vmem:[%s3256 + $0x108] sm:$0xff]
        %v3291 = vld [vmem:[%s3256 + $0x110] sm:$0xff]
        %v3292 = vld [vmem:[%s3256 + $0x118] sm:$0xff]
        %v3293 = vld [vmem:[%s3256 + $0x120] sm:$0xff]
        %v3294 = vld [vmem:[%s3256 + $0x128] sm:$0xff]
        %v3295 = vld [vmem:[%s3256 + $0x130] sm:$0xff]
        %v3296 = vld [vmem:[%s3256 + $0x138] sm:$0xff]
        %v3297 = vld [vmem:[%s3256 + $0x140] sm:$0xff]
        %v3298 = vld [vmem:[%s3256 + $0x148] sm:$0xff]
        %v3299 = vld [vmem:[%s3256 + $0x150] sm:$0xff]
        %v3300 = vld [vmem:[%s3256 + $0x158] sm:$0xff]
        %v3301 = vld [vmem:[%s3256 + $0x160] sm:$0xff]
        %v3302 = vld [vmem:[%s3256 + $0x168] sm:$0xff]
        %v3303 = vld [vmem:[%s3256 + $0x170] sm:$0xff]
        %v3304 = vld [vmem:[%s3256 + $0x178] sm:$0xff]
        %v3305 = vld [vmem:[%s3256 + $0x180] sm:$0xff]
        %v3306 = vld [vmem:[%s3256 + $0x188] sm:$0xff]
        %v3307 = vld [vmem:[%s3256 + $0x190] sm:$0xff]
        %v3308 = vld [vmem:[%s3256 + $0x198] sm:$0xff]
        %v3309 = vld [vmem:[%s3256 + $0x1a0] sm:$0xff]
        %v3310 = vld [vmem:[%s3256 + $0x1a8] sm:$0xff]
        %v3311 = vld [vmem:[%s3256 + $0x1b0] sm:$0xff]
        %v3312 = vld [vmem:[%s3256 + $0x1b8] sm:$0xff]
        %v3313 = vld [vmem:[%s3256 + $0x1c0] sm:$0xff]
        %v3314 = vld [vmem:[%s3256 + $0x1c8] sm:$0xff]
        %v3315 = vld [vmem:[%s3256 + $0x1d0] sm:$0xff]
        %v3316 = vld [vmem:[%s3256 + $0x1d8] sm:$0xff]
        %v3317 = vld [vmem:[%s3256 + $0x1e0] sm:$0xff]
        %v3318 = vld [vmem:[%s3256 + $0x1e8] sm:$0xff]
        %v3319 = vld [vmem:[%s3256 + $0x1f0] sm:$0xff]
        %v3320 = vld [vmem:[%s3256 + $0x1f8] sm:$0xff]
        %v3385 = vunpack.c.l.b16 %v3257
        %v3386 = vunpack.c.h.b16 %v3257
        %v3387 = vunpack.c.l.b16 %v3258
        %v3388 = vunpack.c.h.b16 %v3258
        %v3389 = vunpack.c.l.b16 %v3259
        %v3390 = vunpack.c.h.b16 %v3259
        %v3391 = vunpack.c.l.b16 %v3260
        %v3392 = vunpack.c.h.b16 %v3260
        %v3393 = vunpack.c.l.b16 %v3261
        %v3394 = vunpack.c.h.b16 %v3261
        %v3395 = vunpack.c.l.b16 %v3262
        %v3396 = vunpack.c.h.b16 %v3262
        %v3397 = vunpack.c.l.b16 %v3263
        %v3398 = vunpack.c.h.b16 %v3263
        %v3399 = vunpack.c.l.b16 %v3264
        %v3400 = vunpack.c.h.b16 %v3264
        %v3401 = vunpack.c.l.b16 %v3265
        %v3402 = vunpack.c.h.b16 %v3265
        %v3403 = vunpack.c.l.b16 %v3266
        %v3404 = vunpack.c.h.b16 %v3266
        %v3405 = vunpack.c.l.b16 %v3267
        %v3406 = vunpack.c.h.b16 %v3267
        %v3407 = vunpack.c.l.b16 %v3268
        %v3408 = vunpack.c.h.b16 %v3268
        %v3409 = vunpack.c.l.b16 %v3269
        %v3410 = vunpack.c.h.b16 %v3269
        %v3411 = vunpack.c.l.b16 %v3270
        %v3412 = vunpack.c.h.b16 %v3270
        %v3413 = vunpack.c.l.b16 %v3271
        %v3414 = vunpack.c.h.b16 %v3271
        %v3415 = vunpack.c.l.b16 %v3272
        %v3416 = vunpack.c.h.b16 %v3272
        %v3417 = vunpack.c.l.b16 %v3273
        %v3418 = vunpack.c.h.b16 %v3273
        %v3419 = vunpack.c.l.b16 %v3274
        %v3420 = vunpack.c.h.b16 %v3274
        %v3421 = vunpack.c.l.b16 %v3275
        %v3422 = vunpack.c.h.b16 %v3275
        %v3423 = vunpack.c.l.b16 %v3276
        %v3424 = vunpack.c.h.b16 %v3276
        %v3425 = vunpack.c.l.b16 %v3277
        %v3426 = vunpack.c.h.b16 %v3277
        %v3427 = vunpack.c.l.b16 %v3278
        %v3428 = vunpack.c.h.b16 %v3278
        %v3429 = vunpack.c.l.b16 %v3279
        %v3430 = vunpack.c.h.b16 %v3279
        %v3431 = vunpack.c.l.b16 %v3280
        %v3432 = vunpack.c.h.b16 %v3280
        %v3433 = vunpack.c.l.b16 %v3281
        %v3434 = vunpack.c.h.b16 %v3281
        %v3435 = vunpack.c.l.b16 %v3282
        %v3436 = vunpack.c.h.b16 %v3282
        %v3437 = vunpack.c.l.b16 %v3283
        %v3438 = vunpack.c.h.b16 %v3283
        %v3439 = vunpack.c.l.b16 %v3284
        %v3440 = vunpack.c.h.b16 %v3284
        %v3441 = vunpack.c.l.b16 %v3285
        %v3442 = vunpack.c.h.b16 %v3285
        %v3443 = vunpack.c.l.b16 %v3286
        %v3444 = vunpack.c.h.b16 %v3286
        %v3445 = vunpack.c.l.b16 %v3287
        %v3446 = vunpack.c.h.b16 %v3287
        %v3447 = vunpack.c.l.b16 %v3288
        %v3448 = vunpack.c.h.b16 %v3288
        %v3449 = vunpack.c.l.b16 %v3289
        %v3450 = vunpack.c.h.b16 %v3289
        %v3451 = vunpack.c.l.b16 %v3290
        %v3452 = vunpack.c.h.b16 %v3290
        %v3453 = vunpack.c.l.b16 %v3291
        %v3454 = vunpack.c.h.b16 %v3291
        %v3455 = vunpack.c.l.b16 %v3292
        %v3456 = vunpack.c.h.b16 %v3292
        %v3457 = vunpack.c.l.b16 %v3293
        %v3458 = vunpack.c.h.b16 %v3293
        %v3459 = vunpack.c.l.b16 %v3294
        %v3460 = vunpack.c.h.b16 %v3294
        %v3461 = vunpack.c.l.b16 %v3295
        %v3462 = vunpack.c.h.b16 %v3295
        %v3463 = vunpack.c.l.b16 %v3296
        %v3464 = vunpack.c.h.b16 %v3296
        %v3465 = vunpack.c.l.b16 %v3297
        %v3466 = vunpack.c.h.b16 %v3297
        %v3467 = vunpack.c.l.b16 %v3298
        %v3468 = vunpack.c.h.b16 %v3298
        %v3469 = vunpack.c.l.b16 %v3299
        %v3470 = vunpack.c.h.b16 %v3299
        %v3471 = vunpack.c.l.b16 %v3300
        %v3472 = vunpack.c.h.b16 %v3300
        %v3473 = vunpack.c.l.b16 %v3301
        %v3474 = vunpack.c.h.b16 %v3301
        %v3475 = vunpack.c.l.b16 %v3302
        %v3476 = vunpack.c.h.b16 %v3302
        %v3477 = vunpack.c.l.b16 %v3303
        %v3478 = vunpack.c.h.b16 %v3303
        %v3479 = vunpack.c.l.b16 %v3304
        %v3480 = vunpack.c.h.b16 %v3304
        %v3481 = vunpack.c.l.b16 %v3305
        %v3482 = vunpack.c.h.b16 %v3305
        %v3483 = vunpack.c.l.b16 %v3306
        %v3484 = vunpack.c.h.b16 %v3306
        %v3485 = vunpack.c.l.b16 %v3307
        %v3486 = vunpack.c.h.b16 %v3307
        %v3487 = vunpack.c.l.b16 %v3308
        %v3488 = vunpack.c.h.b16 %v3308
        %v3489 = vunpack.c.l.b16 %v3309
        %v3490 = vunpack.c.h.b16 %v3309
        %v3491 = vunpack.c.l.b16 %v3310
        %v3492 = vunpack.c.h.b16 %v3310
        %v3493 = vunpack.c.l.b16 %v3311
        %v3494 = vunpack.c.h.b16 %v3311
        %v3495 = vunpack.c.l.b16 %v3312
        %v3496 = vunpack.c.h.b16 %v3312
        %v3497 = vunpack.c.l.b16 %v3313
        %v3498 = vunpack.c.h.b16 %v3313
        %v3499 = vunpack.c.l.b16 %v3314
        %v3500 = vunpack.c.h.b16 %v3314
        %v3501 = vunpack.c.l.b16 %v3315
        %v3502 = vunpack.c.h.b16 %v3315
        %v3503 = vunpack.c.l.b16 %v3316
        %v3504 = vunpack.c.h.b16 %v3316
        %v3505 = vunpack.c.l.b16 %v3317
        %v3506 = vunpack.c.h.b16 %v3317
        %v3507 = vunpack.c.l.b16 %v3318
        %v3508 = vunpack.c.h.b16 %v3318
        %v3509 = vunpack.c.l.b16 %v3319
        %v3510 = vunpack.c.h.b16 %v3319
        %v3511 = vunpack.c.l.b16 %v3320
        %v3512 = vunpack.c.h.b16 %v3320
        %v3513 = vpack.c.b16 %v3389, %v3385
        %v3514 = vpack.c.b16 %v3390, %v3386
        %v3515 = vpack.c.b16 %v3391, %v3387
        %v3516 = vpack.c.b16 %v3392, %v3388
        %v3517 = vpack.c.b16 %v3397, %v3393
        %v3518 = vpack.c.b16 %v3398, %v3394
        %v3519 = vpack.c.b16 %v3399, %v3395
        %v3520 = vpack.c.b16 %v3400, %v3396
        %v3521 = vpack.c.b16 %v3405, %v3401
        %v3522 = vpack.c.b16 %v3406, %v3402
        %v3523 = vpack.c.b16 %v3407, %v3403
        %v3524 = vpack.c.b16 %v3408, %v3404
        %v3525 = vpack.c.b16 %v3413, %v3409
        %v3526 = vpack.c.b16 %v3414, %v3410
        %v3527 = vpack.c.b16 %v3415, %v3411
        %v3528 = vpack.c.b16 %v3416, %v3412
        %v3529 = vpack.c.b16 %v3421, %v3417
        %v3530 = vpack.c.b16 %v3422, %v3418
        %v3531 = vpack.c.b16 %v3423, %v3419
        %v3532 = vpack.c.b16 %v3424, %v3420
        %v3533 = vpack.c.b16 %v3429, %v3425
        %v3534 = vpack.c.b16 %v3430, %v3426
        %v3535 = vpack.c.b16 %v3431, %v3427
        %v3536 = vpack.c.b16 %v3432, %v3428
        %v3537 = vpack.c.b16 %v3437, %v3433
        %v3538 = vpack.c.b16 %v3438, %v3434
        %v3539 = vpack.c.b16 %v3439, %v3435
        %v3540 = vpack.c.b16 %v3440, %v3436
        %v3541 = vpack.c.b16 %v3445, %v3441
        %v3542 = vpack.c.b16 %v3446, %v3442
        %v3543 = vpack.c.b16 %v3447, %v3443
        %v3544 = vpack.c.b16 %v3448, %v3444
        %v3545 = vpack.c.b16 %v3453, %v3449
        %v3546 = vpack.c.b16 %v3454, %v3450
        %v3547 = vpack.c.b16 %v3455, %v3451
        %v3548 = vpack.c.b16 %v3456, %v3452
        %v3549 = vpack.c.b16 %v3461, %v3457
        %v3550 = vpack.c.b16 %v3462, %v3458
        %v3551 = vpack.c.b16 %v3463, %v3459
        %v3552 = vpack.c.b16 %v3464, %v3460
        %v3553 = vpack.c.b16 %v3469, %v3465
        %v3554 = vpack.c.b16 %v3470, %v3466
        %v3555 = vpack.c.b16 %v3471, %v3467
        %v3556 = vpack.c.b16 %v3472, %v3468
        %v3557 = vpack.c.b16 %v3477, %v3473
        %v3558 = vpack.c.b16 %v3478, %v3474
        %v3559 = vpack.c.b16 %v3479, %v3475
        %v3560 = vpack.c.b16 %v3480, %v3476
        %v3561 = vpack.c.b16 %v3485, %v3481
        %v3562 = vpack.c.b16 %v3486, %v3482
        %v3563 = vpack.c.b16 %v3487, %v3483
        %v3564 = vpack.c.b16 %v3488, %v3484
        %v3565 = vpack.c.b16 %v3493, %v3489
        %v3566 = vpack.c.b16 %v3494, %v3490
        %v3567 = vpack.c.b16 %v3495, %v3491
        %v3568 = vpack.c.b16 %v3496, %v3492
        %v3569 = vpack.c.b16 %v3501, %v3497
        %v3570 = vpack.c.b16 %v3502, %v3498
        %v3571 = vpack.c.b16 %v3503, %v3499
        %v3572 = vpack.c.b16 %v3504, %v3500
        %v3573 = vpack.c.b16 %v3509, %v3505
        %v3574 = vpack.c.b16 %v3510, %v3506
        %v3575 = vpack.c.b16 %v3511, %v3507
        %v3576 = vpack.c.b16 %v3512, %v3508
        %3641 = vmatprep.subr.bf16.mxu0 %v3514
        %3642 = vmatpush1.bf16.msra.mxu0 %v3513
        %3643 = vmatprep.subr.bf16.mxu0 %v3518
        %3644 = vmatpush1.bf16.msra.mxu0 %v3517
        %3645 = vmatprep.subr.bf16.mxu0 %v3522
        %3646 = vmatpush1.bf16.msra.mxu0 %v3521
        %3647 = vmatprep.subr.bf16.mxu0 %v3526
        %3648 = vmatpush1.bf16.msra.mxu0 %v3525
        %3649 = vmatprep.subr.bf16.mxu0 %v3530
        %3650 = vmatpush1.bf16.msra.mxu0 %v3529
        %3651 = vmatprep.subr.bf16.mxu0 %v3534
        %3652 = vmatpush1.bf16.msra.mxu0 %v3533
        %3653 = vmatprep.subr.bf16.mxu0 %v3538
        %3654 = vmatpush1.bf16.msra.mxu0 %v3537
        %3655 = vmatprep.subr.bf16.mxu0 %v3542
        %3656 = vmatpush1.bf16.msra.mxu0 %v3541
        %3657 = vmatprep.subr.bf16.mxu0 %v3546
        %3658 = vmatpush1.bf16.msra.mxu0 %v3545
        %3659 = vmatprep.subr.bf16.mxu0 %v3550
        %3660 = vmatpush1.bf16.msra.mxu0 %v3549
        %3661 = vmatprep.subr.bf16.mxu0 %v3554
        %3662 = vmatpush1.bf16.msra.mxu0 %v3553
        %3663 = vmatprep.subr.bf16.mxu0 %v3558
        %3664 = vmatpush1.bf16.msra.mxu0 %v3557
        %3665 = vmatprep.subr.bf16.mxu0 %v3562
        %3666 = vmatpush1.bf16.msra.mxu0 %v3561
        %3667 = vmatprep.subr.bf16.mxu0 %v3566
        %3668 = vmatpush1.bf16.msra.mxu0 %v3565
        %3669 = vmatprep.subr.bf16.mxu0 %v3570
        %3670 = vmatpush1.bf16.msra.mxu0 %v3569
        %3671 = vmatprep.subr.bf16.mxu0 %v3574
        %3672 = vmatpush1.bf16.msra.mxu0 %v3573
        %3673 = vmatprep.mubr.bf16.mxu0 %v1410
        %3674 = vmatmul.mubr.bf16.gmra.mrb[0].mxu0 %v1409
        %v3675 = vpop.f32.mrb[0].mxu0
        %v3676 = vadd.f32 0.0, %v3675
        %v3677 = vpop.f32.mrb[0].mxu0
        %v3678 = vadd.f32 0.0, %v3677
        %v3679 = vpop.f32.mrb[0].mxu0
        %v3680 = vadd.f32 0.0, %v3679
        %v3681 = vpop.f32.mrb[0].mxu0
        %v3682 = vadd.f32 0.0, %v3681
        %3683 = vdwg.mxu0
        %3684 = vmatprep.subr.bf16.mxu0 %v3516
        %3685 = vmatpush1.bf16.msra.mxu0 %v3515
        %3686 = vmatprep.subr.bf16.mxu0 %v3520
        %3687 = vmatpush1.bf16.msra.mxu0 %v3519
        %3688 = vmatprep.subr.bf16.mxu0 %v3524
        %3689 = vmatpush1.bf16.msra.mxu0 %v3523
        %3690 = vmatprep.subr.bf16.mxu0 %v3528
        %3691 = vmatpush1.bf16.msra.mxu0 %v3527
        %3692 = vmatprep.subr.bf16.mxu0 %v3532
        %3693 = vmatpush1.bf16.msra.mxu0 %v3531
        %3694 = vmatprep.subr.bf16.mxu0 %v3536
        %3695 = vmatpush1.bf16.msra.mxu0 %v3535
        %3696 = vmatprep.subr.bf16.mxu0 %v3540
        %3697 = vmatpush1.bf16.msra.mxu0 %v3539
        %3698 = vmatprep.subr.bf16.mxu0 %v3544
        %3699 = vmatpush1.bf16.msra.mxu0 %v3543
        %3700 = vmatprep.subr.bf16.mxu0 %v3548
        %3701 = vmatpush1.bf16.msra.mxu0 %v3547
        %3702 = vmatprep.subr.bf16.mxu0 %v3552
        %3703 = vmatpush1.bf16.msra.mxu0 %v3551
        %3704 = vmatprep.subr.bf16.mxu0 %v3556
        %3705 = vmatpush1.bf16.msra.mxu0 %v3555
        %3706 = vmatprep.subr.bf16.mxu0 %v3560
        %3707 = vmatpush1.bf16.msra.mxu0 %v3559
        %3708 = vmatprep.subr.bf16.mxu0 %v3564
        %3709 = vmatpush1.bf16.msra.mxu0 %v3563
        %3710 = vmatprep.subr.bf16.mxu0 %v3568
        %3711 = vmatpush1.bf16.msra.mxu0 %v3567
        %3712 = vmatprep.subr.bf16.mxu0 %v3572
        %3713 = vmatpush1.bf16.msra.mxu0 %v3571
        %3714 = vmatprep.subr.bf16.mxu0 %v3576
        %3715 = vmatpush1.bf16.msra.mxu0 %v3575
        %3716 = vmatprep.mubr.bf16.mxu0 %v1410
        %3717 = vmatmul.mubr.bf16.gmra.mrb[0].mxu0 %v1409
        %v3718 = vpop.f32.mrb[0].mxu0
        %v3719 = vadd.f32 0.0, %v3718
        %v3720 = vpop.f32.mrb[0].mxu0
        %v3721 = vadd.f32 0.0, %v3720
        %v3722 = vpop.f32.mrb[0].mxu0
        %v3723 = vadd.f32 0.0, %v3722
        %v3724 = vpop.f32.mrb[0].mxu0
        %v3725 = vadd.f32 0.0, %v3724
        %3726 = vdwg.mxu0
        %v3727 = vmax.f32 %v3248, %v3676
        %v3728 = vmax.f32 %v3249, %v3678
        %v3729 = vmax.f32 %v3250, %v3719
        %v3730 = vmax.f32 %v3251, %v3721
        %v3731 = vmax.f32 %v3252, %v3680
        %v3732 = vmax.f32 %v3253, %v3682
        %v3733 = vmax.f32 %v3254, %v3723
        %v3734 = vmax.f32 %v3255, %v3725
        %s3735 = scalar_lea.vmem %s1315, 2560 [#allocation2]
        %v3736 = vld [vmem:[%s3735] sm:$0xff]
        %v3737 = vld [vmem:[%s3735 + $0x8] sm:$0xff]
        %v3738 = vld [vmem:[%s3735 + $0x10] sm:$0xff]
        %v3739 = vld [vmem:[%s3735 + $0x18] sm:$0xff]
        %v3740 = vld [vmem:[%s3735 + $0x20] sm:$0xff]
        %v3741 = vld [vmem:[%s3735 + $0x28] sm:$0xff]
        %v3742 = vld [vmem:[%s3735 + $0x30] sm:$0xff]
        %v3743 = vld [vmem:[%s3735 + $0x38] sm:$0xff]
        %v3744 = vld [vmem:[%s3735 + $0x40] sm:$0xff]
        %v3745 = vld [vmem:[%s3735 + $0x48] sm:$0xff]
        %v3746 = vld [vmem:[%s3735 + $0x50] sm:$0xff]
        %v3747 = vld [vmem:[%s3735 + $0x58] sm:$0xff]
        %v3748 = vld [vmem:[%s3735 + $0x60] sm:$0xff]
        %v3749 = vld [vmem:[%s3735 + $0x68] sm:$0xff]
        %v3750 = vld [vmem:[%s3735 + $0x70] sm:$0xff]
        %v3751 = vld [vmem:[%s3735 + $0x78] sm:$0xff]
        %v3752 = vld [vmem:[%s3735 + $0x80] sm:$0xff]
        %v3753 = vld [vmem:[%s3735 + $0x88] sm:$0xff]
        %v3754 = vld [vmem:[%s3735 + $0x90] sm:$0xff]
        %v3755 = vld [vmem:[%s3735 + $0x98] sm:$0xff]
        %v3756 = vld [vmem:[%s3735 + $0xa0] sm:$0xff]
        %v3757 = vld [vmem:[%s3735 + $0xa8] sm:$0xff]
        %v3758 = vld [vmem:[%s3735 + $0xb0] sm:$0xff]
        %v3759 = vld [vmem:[%s3735 + $0xb8] sm:$0xff]
        %v3760 = vld [vmem:[%s3735 + $0xc0] sm:$0xff]
        %v3761 = vld [vmem:[%s3735 + $0xc8] sm:$0xff]
        %v3762 = vld [vmem:[%s3735 + $0xd0] sm:$0xff]
        %v3763 = vld [vmem:[%s3735 + $0xd8] sm:$0xff]
        %v3764 = vld [vmem:[%s3735 + $0xe0] sm:$0xff]
        %v3765 = vld [vmem:[%s3735 + $0xe8] sm:$0xff]
        %v3766 = vld [vmem:[%s3735 + $0xf0] sm:$0xff]
        %v3767 = vld [vmem:[%s3735 + $0xf8] sm:$0xff]
        %v3768 = vld [vmem:[%s3735 + $0x100] sm:$0xff]
        %v3769 = vld [vmem:[%s3735 + $0x108] sm:$0xff]
        %v3770 = vld [vmem:[%s3735 + $0x110] sm:$0xff]
        %v3771 = vld [vmem:[%s3735 + $0x118] sm:$0xff]
        %v3772 = vld [vmem:[%s3735 + $0x120] sm:$0xff]
        %v3773 = vld [vmem:[%s3735 + $0x128] sm:$0xff]
        %v3774 = vld [vmem:[%s3735 + $0x130] sm:$0xff]
        %v3775 = vld [vmem:[%s3735 + $0x138] sm:$0xff]
        %v3776 = vld [vmem:[%s3735 + $0x140] sm:$0xff]
        %v3777 = vld [vmem:[%s3735 + $0x148] sm:$0xff]
        %v3778 = vld [vmem:[%s3735 + $0x150] sm:$0xff]
        %v3779 = vld [vmem:[%s3735 + $0x158] sm:$0xff]
        %v3780 = vld [vmem:[%s3735 + $0x160] sm:$0xff]
        %v3781 = vld [vmem:[%s3735 + $0x168] sm:$0xff]
        %v3782 = vld [vmem:[%s3735 + $0x170] sm:$0xff]
        %v3783 = vld [vmem:[%s3735 + $0x178] sm:$0xff]
        %v3784 = vld [vmem:[%s3735 + $0x180] sm:$0xff]
        %v3785 = vld [vmem:[%s3735 + $0x188] sm:$0xff]
        %v3786 = vld [vmem:[%s3735 + $0x190] sm:$0xff]
        %v3787 = vld [vmem:[%s3735 + $0x198] sm:$0xff]
        %v3788 = vld [vmem:[%s3735 + $0x1a0] sm:$0xff]
        %v3789 = vld [vmem:[%s3735 + $0x1a8] sm:$0xff]
        %v3790 = vld [vmem:[%s3735 + $0x1b0] sm:$0xff]
        %v3791 = vld [vmem:[%s3735 + $0x1b8] sm:$0xff]
        %v3792 = vld [vmem:[%s3735 + $0x1c0] sm:$0xff]
        %v3793 = vld [vmem:[%s3735 + $0x1c8] sm:$0xff]
        %v3794 = vld [vmem:[%s3735 + $0x1d0] sm:$0xff]
        %v3795 = vld [vmem:[%s3735 + $0x1d8] sm:$0xff]
        %v3796 = vld [vmem:[%s3735 + $0x1e0] sm:$0xff]
        %v3797 = vld [vmem:[%s3735 + $0x1e8] sm:$0xff]
        %v3798 = vld [vmem:[%s3735 + $0x1f0] sm:$0xff]
        %v3799 = vld [vmem:[%s3735 + $0x1f8] sm:$0xff]
        %v3864 = vunpack.c.l.b16 %v3736
        %v3865 = vunpack.c.h.b16 %v3736
        %v3866 = vunpack.c.l.b16 %v3737
        %v3867 = vunpack.c.h.b16 %v3737
        %v3868 = vunpack.c.l.b16 %v3738
        %v3869 = vunpack.c.h.b16 %v3738
        %v3870 = vunpack.c.l.b16 %v3739
        %v3871 = vunpack.c.h.b16 %v3739
        %v3872 = vunpack.c.l.b16 %v3740
        %v3873 = vunpack.c.h.b16 %v3740
        %v3874 = vunpack.c.l.b16 %v3741
        %v3875 = vunpack.c.h.b16 %v3741
        %v3876 = vunpack.c.l.b16 %v3742
        %v3877 = vunpack.c.h.b16 %v3742
        %v3878 = vunpack.c.l.b16 %v3743
        %v3879 = vunpack.c.h.b16 %v3743
        %v3880 = vunpack.c.l.b16 %v3744
        %v3881 = vunpack.c.h.b16 %v3744
        %v3882 = vunpack.c.l.b16 %v3745
        %v3883 = vunpack.c.h.b16 %v3745
        %v3884 = vunpack.c.l.b16 %v3746
        %v3885 = vunpack.c.h.b16 %v3746
        %v3886 = vunpack.c.l.b16 %v3747
        %v3887 = vunpack.c.h.b16 %v3747
        %v3888 = vunpack.c.l.b16 %v3748
        %v3889 = vunpack.c.h.b16 %v3748
        %v3890 = vunpack.c.l.b16 %v3749
        %v3891 = vunpack.c.h.b16 %v3749
        %v3892 = vunpack.c.l.b16 %v3750
        %v3893 = vunpack.c.h.b16 %v3750
        %v3894 = vunpack.c.l.b16 %v3751
        %v3895 = vunpack.c.h.b16 %v3751
        %v3896 = vunpack.c.l.b16 %v3752
        %v3897 = vunpack.c.h.b16 %v3752
        %v3898 = vunpack.c.l.b16 %v3753
        %v3899 = vunpack.c.h.b16 %v3753
        %v3900 = vunpack.c.l.b16 %v3754
        %v3901 = vunpack.c.h.b16 %v3754
        %v3902 = vunpack.c.l.b16 %v3755
        %v3903 = vunpack.c.h.b16 %v3755
        %v3904 = vunpack.c.l.b16 %v3756
        %v3905 = vunpack.c.h.b16 %v3756
        %v3906 = vunpack.c.l.b16 %v3757
        %v3907 = vunpack.c.h.b16 %v3757
        %v3908 = vunpack.c.l.b16 %v3758
        %v3909 = vunpack.c.h.b16 %v3758
        %v3910 = vunpack.c.l.b16 %v3759
        %v3911 = vunpack.c.h.b16 %v3759
        %v3912 = vunpack.c.l.b16 %v3760
        %v3913 = vunpack.c.h.b16 %v3760
        %v3914 = vunpack.c.l.b16 %v3761
        %v3915 = vunpack.c.h.b16 %v3761
        %v3916 = vunpack.c.l.b16 %v3762
        %v3917 = vunpack.c.h.b16 %v3762
        %v3918 = vunpack.c.l.b16 %v3763
        %v3919 = vunpack.c.h.b16 %v3763
        %v3920 = vunpack.c.l.b16 %v3764
        %v3921 = vunpack.c.h.b16 %v3764
        %v3922 = vunpack.c.l.b16 %v3765
        %v3923 = vunpack.c.h.b16 %v3765
        %v3924 = vunpack.c.l.b16 %v3766
        %v3925 = vunpack.c.h.b16 %v3766
        %v3926 = vunpack.c.l.b16 %v3767
        %v3927 = vunpack.c.h.b16 %v3767
        %v3928 = vunpack.c.l.b16 %v3768
        %v3929 = vunpack.c.h.b16 %v3768
        %v3930 = vunpack.c.l.b16 %v3769
        %v3931 = vunpack.c.h.b16 %v3769
        %v3932 = vunpack.c.l.b16 %v3770
        %v3933 = vunpack.c.h.b16 %v3770
        %v3934 = vunpack.c.l.b16 %v3771
        %v3935 = vunpack.c.h.b16 %v3771
        %v3936 = vunpack.c.l.b16 %v3772
        %v3937 = vunpack.c.h.b16 %v3772
        %v3938 = vunpack.c.l.b16 %v3773
        %v3939 = vunpack.c.h.b16 %v3773
        %v3940 = vunpack.c.l.b16 %v3774
        %v3941 = vunpack.c.h.b16 %v3774
        %v3942 = vunpack.c.l.b16 %v3775
        %v3943 = vunpack.c.h.b16 %v3775
        %v3944 = vunpack.c.l.b16 %v3776
        %v3945 = vunpack.c.h.b16 %v3776
        %v3946 = vunpack.c.l.b16 %v3777
        %v3947 = vunpack.c.h.b16 %v3777
        %v3948 = vunpack.c.l.b16 %v3778
        %v3949 = vunpack.c.h.b16 %v3778
        %v3950 = vunpack.c.l.b16 %v3779
        %v3951 = vunpack.c.h.b16 %v3779
        %v3952 = vunpack.c.l.b16 %v3780
        %v3953 = vunpack.c.h.b16 %v3780
        %v3954 = vunpack.c.l.b16 %v3781
        %v3955 = vunpack.c.h.b16 %v3781
        %v3956 = vunpack.c.l.b16 %v3782
        %v3957 = vunpack.c.h.b16 %v3782
        %v3958 = vunpack.c.l.b16 %v3783
        %v3959 = vunpack.c.h.b16 %v3783
        %v3960 = vunpack.c.l.b16 %v3784
        %v3961 = vunpack.c.h.b16 %v3784
        %v3962 = vunpack.c.l.b16 %v3785
        %v3963 = vunpack.c.h.b16 %v3785
        %v3964 = vunpack.c.l.b16 %v3786
        %v3965 = vunpack.c.h.b16 %v3786
        %v3966 = vunpack.c.l.b16 %v3787
        %v3967 = vunpack.c.h.b16 %v3787
        %v3968 = vunpack.c.l.b16 %v3788
        %v3969 = vunpack.c.h.b16 %v3788
        %v3970 = vunpack.c.l.b16 %v3789
        %v3971 = vunpack.c.h.b16 %v3789
        %v3972 = vunpack.c.l.b16 %v3790
        %v3973 = vunpack.c.h.b16 %v3790
        %v3974 = vunpack.c.l.b16 %v3791
        %v3975 = vunpack.c.h.b16 %v3791
        %v3976 = vunpack.c.l.b16 %v3792
        %v3977 = vunpack.c.h.b16 %v3792
        %v3978 = vunpack.c.l.b16 %v3793
        %v3979 = vunpack.c.h.b16 %v3793
        %v3980 = vunpack.c.l.b16 %v3794
        %v3981 = vunpack.c.h.b16 %v3794
        %v3982 = vunpack.c.l.b16 %v3795
        %v3983 = vunpack.c.h.b16 %v3795
        %v3984 = vunpack.c.l.b16 %v3796
        %v3985 = vunpack.c.h.b16 %v3796
        %v3986 = vunpack.c.l.b16 %v3797
        %v3987 = vunpack.c.h.b16 %v3797
        %v3988 = vunpack.c.l.b16 %v3798
        %v3989 = vunpack.c.h.b16 %v3798
        %v3990 = vunpack.c.l.b16 %v3799
        %v3991 = vunpack.c.h.b16 %v3799
        %v3992 = vpack.c.b16 %v3868, %v3864
        %v3993 = vpack.c.b16 %v3869, %v3865
        %v3994 = vpack.c.b16 %v3870, %v3866
        %v3995 = vpack.c.b16 %v3871, %v3867
        %v3996 = vpack.c.b16 %v3876, %v3872
        %v3997 = vpack.c.b16 %v3877, %v3873
        %v3998 = vpack.c.b16 %v3878, %v3874
        %v3999 = vpack.c.b16 %v3879, %v3875
        %v4000 = vpack.c.b16 %v3884, %v3880
        %v4001 = vpack.c.b16 %v3885, %v3881
        %v4002 = vpack.c.b16 %v3886, %v3882
        %v4003 = vpack.c.b16 %v3887, %v3883
        %v4004 = vpack.c.b16 %v3892, %v3888
        %v4005 = vpack.c.b16 %v3893, %v3889
        %v4006 = vpack.c.b16 %v3894, %v3890
        %v4007 = vpack.c.b16 %v3895, %v3891
        %v4008 = vpack.c.b16 %v3900, %v3896
        %v4009 = vpack.c.b16 %v3901, %v3897
        %v4010 = vpack.c.b16 %v3902, %v3898
        %v4011 = vpack.c.b16 %v3903, %v3899
        %v4012 = vpack.c.b16 %v3908, %v3904
        %v4013 = vpack.c.b16 %v3909, %v3905
        %v4014 = vpack.c.b16 %v3910, %v3906
        %v4015 = vpack.c.b16 %v3911, %v3907
        %v4016 = vpack.c.b16 %v3916, %v3912
        %v4017 = vpack.c.b16 %v3917, %v3913
        %v4018 = vpack.c.b16 %v3918, %v3914
        %v4019 = vpack.c.b16 %v3919, %v3915
        %v4020 = vpack.c.b16 %v3924, %v3920
        %v4021 = vpack.c.b16 %v3925, %v3921
        %v4022 = vpack.c.b16 %v3926, %v3922
        %v4023 = vpack.c.b16 %v3927, %v3923
        %v4024 = vpack.c.b16 %v3932, %v3928
        %v4025 = vpack.c.b16 %v3933, %v3929
        %v4026 = vpack.c.b16 %v3934, %v3930
        %v4027 = vpack.c.b16 %v3935, %v3931
        %v4028 = vpack.c.b16 %v3940, %v3936
        %v4029 = vpack.c.b16 %v3941, %v3937
        %v4030 = vpack.c.b16 %v3942, %v3938
        %v4031 = vpack.c.b16 %v3943, %v3939
        %v4032 = vpack.c.b16 %v3948, %v3944
        %v4033 = vpack.c.b16 %v3949, %v3945
        %v4034 = vpack.c.b16 %v3950, %v3946
        %v4035 = vpack.c.b16 %v3951, %v3947
        %v4036 = vpack.c.b16 %v3956, %v3952
        %v4037 = vpack.c.b16 %v3957, %v3953
        %v4038 = vpack.c.b16 %v3958, %v3954
        %v4039 = vpack.c.b16 %v3959, %v3955
        %v4040 = vpack.c.b16 %v3964, %v3960
        %v4041 = vpack.c.b16 %v3965, %v3961
        %v4042 = vpack.c.b16 %v3966, %v3962
        %v4043 = vpack.c.b16 %v3967, %v3963
        %v4044 = vpack.c.b16 %v3972, %v3968
        %v4045 = vpack.c.b16 %v3973, %v3969
        %v4046 = vpack.c.b16 %v3974, %v3970
        %v4047 = vpack.c.b16 %v3975, %v3971
        %v4048 = vpack.c.b16 %v3980, %v3976
        %v4049 = vpack.c.b16 %v3981, %v3977
        %v4050 = vpack.c.b16 %v3982, %v3978
        %v4051 = vpack.c.b16 %v3983, %v3979
        %v4052 = vpack.c.b16 %v3988, %v3984
        %v4053 = vpack.c.b16 %v3989, %v3985
        %v4054 = vpack.c.b16 %v3990, %v3986
        %v4055 = vpack.c.b16 %v3991, %v3987
        %4120 = vmatprep.subr.bf16.mxu0 %v3993
        %4121 = vmatpush1.bf16.msra.mxu0 %v3992
        %4122 = vmatprep.subr.bf16.mxu0 %v3997
        %4123 = vmatpush1.bf16.msra.mxu0 %v3996
        %4124 = vmatprep.subr.bf16.mxu0 %v4001
        %4125 = vmatpush1.bf16.msra.mxu0 %v4000
        %4126 = vmatprep.subr.bf16.mxu0 %v4005
        %4127 = vmatpush1.bf16.msra.mxu0 %v4004
        %4128 = vmatprep.subr.bf16.mxu0 %v4009
        %4129 = vmatpush1.bf16.msra.mxu0 %v4008
        %4130 = vmatprep.subr.bf16.mxu0 %v4013
        %4131 = vmatpush1.bf16.msra.mxu0 %v4012
        %4132 = vmatprep.subr.bf16.mxu0 %v4017
        %4133 = vmatpush1.bf16.msra.mxu0 %v4016
        %4134 = vmatprep.subr.bf16.mxu0 %v4021
        %4135 = vmatpush1.bf16.msra.mxu0 %v4020
        %4136 = vmatprep.subr.bf16.mxu0 %v4025
        %4137 = vmatpush1.bf16.msra.mxu0 %v4024
        %4138 = vmatprep.subr.bf16.mxu0 %v4029
        %4139 = vmatpush1.bf16.msra.mxu0 %v4028
        %4140 = vmatprep.subr.bf16.mxu0 %v4033
        %4141 = vmatpush1.bf16.msra.mxu0 %v4032
        %4142 = vmatprep.subr.bf16.mxu0 %v4037
        %4143 = vmatpush1.bf16.msra.mxu0 %v4036
        %4144 = vmatprep.subr.bf16.mxu0 %v4041
        %4145 = vmatpush1.bf16.msra.mxu0 %v4040
        %4146 = vmatprep.subr.bf16.mxu0 %v4045
        %4147 = vmatpush1.bf16.msra.mxu0 %v4044
        %4148 = vmatprep.subr.bf16.mxu0 %v4049
        %4149 = vmatpush1.bf16.msra.mxu0 %v4048
        %4150 = vmatprep.subr.bf16.mxu0 %v4053
        %4151 = vmatpush1.bf16.msra.mxu0 %v4052
        %4152 = vmatprep.mubr.bf16.mxu0 %v1410
        %4153 = vmatmul.mubr.bf16.gmra.mrb[0].mxu0 %v1409
        %v4154 = vpop.f32.mrb[0].mxu0
        %v4155 = vadd.f32 0.0, %v4154
        %v4156 = vpop.f32.mrb[0].mxu0
        %v4157 = vadd.f32 0.0, %v4156
        %v4158 = vpop.f32.mrb[0].mxu0
        %v4159 = vadd.f32 0.0, %v4158
        %v4160 = vpop.f32.mrb[0].mxu0
        %v4161 = vadd.f32 0.0, %v4160
        %4162 = vdwg.mxu0
        %4163 = vmatprep.subr.bf16.mxu0 %v3995
        %4164 = vmatpush1.bf16.msra.mxu0 %v3994
        %4165 = vmatprep.subr.bf16.mxu0 %v3999
        %4166 = vmatpush1.bf16.msra.mxu0 %v3998
        %4167 = vmatprep.subr.bf16.mxu0 %v4003
        %4168 = vmatpush1.bf16.msra.mxu0 %v4002
        %4169 = vmatprep.subr.bf16.mxu0 %v4007
        %4170 = vmatpush1.bf16.msra.mxu0 %v4006
        %4171 = vmatprep.subr.bf16.mxu0 %v4011
        %4172 = vmatpush1.bf16.msra.mxu0 %v4010
        %4173 = vmatprep.subr.bf16.mxu0 %v4015
        %4174 = vmatpush1.bf16.msra.mxu0 %v4014
        %4175 = vmatprep.subr.bf16.mxu0 %v4019
        %4176 = vmatpush1.bf16.msra.mxu0 %v4018
        %4177 = vmatprep.subr.bf16.mxu0 %v4023
        %4178 = vmatpush1.bf16.msra.mxu0 %v4022
        %4179 = vmatprep.subr.bf16.mxu0 %v4027
        %4180 = vmatpush1.bf16.msra.mxu0 %v4026
        %4181 = vmatprep.subr.bf16.mxu0 %v4031
        %4182 = vmatpush1.bf16.msra.mxu0 %v4030
        %4183 = vmatprep.subr.bf16.mxu0 %v4035
        %4184 = vmatpush1.bf16.msra.mxu0 %v4034
        %4185 = vmatprep.subr.bf16.mxu0 %v4039
        %4186 = vmatpush1.bf16.msra.mxu0 %v4038
        %4187 = vmatprep.subr.bf16.mxu0 %v4043
        %4188 = vmatpush1.bf16.msra.mxu0 %v4042
        %4189 = vmatprep.subr.bf16.mxu0 %v4047
        %4190 = vmatpush1.bf16.msra.mxu0 %v4046
        %4191 = vmatprep.subr.bf16.mxu0 %v4051
        %4192 = vmatpush1.bf16.msra.mxu0 %v4050
        %4193 = vmatprep.subr.bf16.mxu0 %v4055
        %4194 = vmatpush1.bf16.msra.mxu0 %v4054
        %4195 = vmatprep.mubr.bf16.mxu0 %v1410
        %4196 = vmatmul.mubr.bf16.gmra.mrb[0].mxu0 %v1409
        %v4197 = vpop.f32.mrb[0].mxu0
        %v4198 = vadd.f32 0.0, %v4197
        %v4199 = vpop.f32.mrb[0].mxu0
        %v4200 = vadd.f32 0.0, %v4199
        %v4201 = vpop.f32.mrb[0].mxu0
        %v4202 = vadd.f32 0.0, %v4201
        %v4203 = vpop.f32.mrb[0].mxu0
        %v4204 = vadd.f32 0.0, %v4203
        %4205 = vdwg.mxu0
        %v4206 = vmax.f32 %v3727, %v4155
        %v4207 = vmax.f32 %v3728, %v4157
        %v4208 = vmax.f32 %v3729, %v4198
        %v4209 = vmax.f32 %v3730, %v4200
        %v4210 = vmax.f32 %v3731, %v4159
        %v4211 = vmax.f32 %v3732, %v4161
        %v4212 = vmax.f32 %v3733, %v4202
        %v4213 = vmax.f32 %v3734, %v4204
        %s4214 = scalar_lea.vmem %s1315, 3072 [#allocation2]
        %v4215 = vld [vmem:[%s4214] sm:$0xff]
        %v4216 = vld [vmem:[%s4214 + $0x8] sm:$0xff]
        %v4217 = vld [vmem:[%s4214 + $0x10] sm:$0xff]
        %v4218 = vld [vmem:[%s4214 + $0x18] sm:$0xff]
        %v4219 = vld [vmem:[%s4214 + $0x20] sm:$0xff]
        %v4220 = vld [vmem:[%s4214 + $0x28] sm:$0xff]
        %v4221 = vld [vmem:[%s4214 + $0x30] sm:$0xff]
        %v4222 = vld [vmem:[%s4214 + $0x38] sm:$0xff]
        %v4223 = vld [vmem:[%s4214 + $0x40] sm:$0xff]
        %v4224 = vld [vmem:[%s4214 + $0x48] sm:$0xff]
        %v4225 = vld [vmem:[%s4214 + $0x50] sm:$0xff]
        %v4226 = vld [vmem:[%s4214 + $0x58] sm:$0xff]
        %v4227 = vld [vmem:[%s4214 + $0x60] sm:$0xff]
        %v4228 = vld [vmem:[%s4214 + $0x68] sm:$0xff]
        %v4229 = vld [vmem:[%s4214 + $0x70] sm:$0xff]
        %v4230 = vld [vmem:[%s4214 + $0x78] sm:$0xff]
        %v4231 = vld [vmem:[%s4214 + $0x80] sm:$0xff]
        %v4232 = vld [vmem:[%s4214 + $0x88] sm:$0xff]
        %v4233 = vld [vmem:[%s4214 + $0x90] sm:$0xff]
        %v4234 = vld [vmem:[%s4214 + $0x98] sm:$0xff]
        %v4235 = vld [vmem:[%s4214 + $0xa0] sm:$0xff]
        %v4236 = vld [vmem:[%s4214 + $0xa8] sm:$0xff]
        %v4237 = vld [vmem:[%s4214 + $0xb0] sm:$0xff]
        %v4238 = vld [vmem:[%s4214 + $0xb8] sm:$0xff]
        %v4239 = vld [vmem:[%s4214 + $0xc0] sm:$0xff]
        %v4240 = vld [vmem:[%s4214 + $0xc8] sm:$0xff]
        %v4241 = vld [vmem:[%s4214 + $0xd0] sm:$0xff]
        %v4242 = vld [vmem:[%s4214 + $0xd8] sm:$0xff]
        %v4243 = vld [vmem:[%s4214 + $0xe0] sm:$0xff]
        %v4244 = vld [vmem:[%s4214 + $0xe8] sm:$0xff]
        %v4245 = vld [vmem:[%s4214 + $0xf0] sm:$0xff]
        %v4246 = vld [vmem:[%s4214 + $0xf8] sm:$0xff]
        %v4247 = vld [vmem:[%s4214 + $0x100] sm:$0xff]
        %v4248 = vld [vmem:[%s4214 + $0x108] sm:$0xff]
        %v4249 = vld [vmem:[%s4214 + $0x110] sm:$0xff]
        %v4250 = vld [vmem:[%s4214 + $0x118] sm:$0xff]
        %v4251 = vld [vmem:[%s4214 + $0x120] sm:$0xff]
        %v4252 = vld [vmem:[%s4214 + $0x128] sm:$0xff]
        %v4253 = vld [vmem:[%s4214 + $0x130] sm:$0xff]
        %v4254 = vld [vmem:[%s4214 + $0x138] sm:$0xff]
        %v4255 = vld [vmem:[%s4214 + $0x140] sm:$0xff]
        %v4256 = vld [vmem:[%s4214 + $0x148] sm:$0xff]
        %v4257 = vld [vmem:[%s4214 + $0x150] sm:$0xff]
        %v4258 = vld [vmem:[%s4214 + $0x158] sm:$0xff]
        %v4259 = vld [vmem:[%s4214 + $0x160] sm:$0xff]
        %v4260 = vld [vmem:[%s4214 + $0x168] sm:$0xff]
        %v4261 = vld [vmem:[%s4214 + $0x170] sm:$0xff]
        %v4262 = vld [vmem:[%s4214 + $0x178] sm:$0xff]
        %v4263 = vld [vmem:[%s4214 + $0x180] sm:$0xff]
        %v4264 = vld [vmem:[%s4214 + $0x188] sm:$0xff]
        %v4265 = vld [vmem:[%s4214 + $0x190] sm:$0xff]
        %v4266 = vld [vmem:[%s4214 + $0x198] sm:$0xff]
        %v4267 = vld [vmem:[%s4214 + $0x1a0] sm:$0xff]
        %v4268 = vld [vmem:[%s4214 + $0x1a8] sm:$0xff]
        %v4269 = vld [vmem:[%s4214 + $0x1b0] sm:$0xff]
        %v4270 = vld [vmem:[%s4214 + $0x1b8] sm:$0xff]
        %v4271 = vld [vmem:[%s4214 + $0x1c0] sm:$0xff]
        %v4272 = vld [vmem:[%s4214 + $0x1c8] sm:$0xff]
        %v4273 = vld [vmem:[%s4214 + $0x1d0] sm:$0xff]
        %v4274 = vld [vmem:[%s4214 + $0x1d8] sm:$0xff]
        %v4275 = vld [vmem:[%s4214 + $0x1e0] sm:$0xff]
        %v4276 = vld [vmem:[%s4214 + $0x1e8] sm:$0xff]
        %v4277 = vld [vmem:[%s4214 + $0x1f0] sm:$0xff]
        %v4278 = vld [vmem:[%s4214 + $0x1f8] sm:$0xff]
        %v4343 = vunpack.c.l.b16 %v4215
        %v4344 = vunpack.c.h.b16 %v4215
        %v4345 = vunpack.c.l.b16 %v4216
        %v4346 = vunpack.c.h.b16 %v4216
        %v4347 = vunpack.c.l.b16 %v4217
        %v4348 = vunpack.c.h.b16 %v4217
        %v4349 = vunpack.c.l.b16 %v4218
        %v4350 = vunpack.c.h.b16 %v4218
        %v4351 = vunpack.c.l.b16 %v4219
        %v4352 = vunpack.c.h.b16 %v4219
        %v4353 = vunpack.c.l.b16 %v4220
        %v4354 = vunpack.c.h.b16 %v4220
        %v4355 = vunpack.c.l.b16 %v4221
        %v4356 = vunpack.c.h.b16 %v4221
        %v4357 = vunpack.c.l.b16 %v4222
        %v4358 = vunpack.c.h.b16 %v4222
        %v4359 = vunpack.c.l.b16 %v4223
        %v4360 = vunpack.c.h.b16 %v4223
        %v4361 = vunpack.c.l.b16 %v4224
        %v4362 = vunpack.c.h.b16 %v4224
        %v4363 = vunpack.c.l.b16 %v4225
        %v4364 = vunpack.c.h.b16 %v4225
        %v4365 = vunpack.c.l.b16 %v4226
        %v4366 = vunpack.c.h.b16 %v4226
        %v4367 = vunpack.c.l.b16 %v4227
        %v4368 = vunpack.c.h.b16 %v4227
        %v4369 = vunpack.c.l.b16 %v4228
        %v4370 = vunpack.c.h.b16 %v4228
        %v4371 = vunpack.c.l.b16 %v4229
        %v4372 = vunpack.c.h.b16 %v4229
        %v4373 = vunpack.c.l.b16 %v4230
        %v4374 = vunpack.c.h.b16 %v4230
        %v4375 = vunpack.c.l.b16 %v4231
        %v4376 = vunpack.c.h.b16 %v4231
        %v4377 = vunpack.c.l.b16 %v4232
        %v4378 = vunpack.c.h.b16 %v4232
        %v4379 = vunpack.c.l.b16 %v4233
        %v4380 = vunpack.c.h.b16 %v4233
        %v4381 = vunpack.c.l.b16 %v4234
        %v4382 = vunpack.c.h.b16 %v4234
        %v4383 = vunpack.c.l.b16 %v4235
        %v4384 = vunpack.c.h.b16 %v4235
        %v4385 = vunpack.c.l.b16 %v4236
        %v4386 = vunpack.c.h.b16 %v4236
        %v4387 = vunpack.c.l.b16 %v4237
        %v4388 = vunpack.c.h.b16 %v4237
        %v4389 = vunpack.c.l.b16 %v4238
        %v4390 = vunpack.c.h.b16 %v4238
        %v4391 = vunpack.c.l.b16 %v4239
        %v4392 = vunpack.c.h.b16 %v4239
        %v4393 = vunpack.c.l.b16 %v4240
        %v4394 = vunpack.c.h.b16 %v4240
        %v4395 = vunpack.c.l.b16 %v4241
        %v4396 = vunpack.c.h.b16 %v4241
        %v4397 = vunpack.c.l.b16 %v4242
        %v4398 = vunpack.c.h.b16 %v4242
        %v4399 = vunpack.c.l.b16 %v4243
        %v4400 = vunpack.c.h.b16 %v4243
        %v4401 = vunpack.c.l.b16 %v4244
        %v4402 = vunpack.c.h.b16 %v4244
        %v4403 = vunpack.c.l.b16 %v4245
        %v4404 = vunpack.c.h.b16 %v4245
        %v4405 = vunpack.c.l.b16 %v4246
        %v4406 = vunpack.c.h.b16 %v4246
        %v4407 = vunpack.c.l.b16 %v4247
        %v4408 = vunpack.c.h.b16 %v4247
        %v4409 = vunpack.c.l.b16 %v4248
        %v4410 = vunpack.c.h.b16 %v4248
        %v4411 = vunpack.c.l.b16 %v4249
        %v4412 = vunpack.c.h.b16 %v4249
        %v4413 = vunpack.c.l.b16 %v4250
        %v4414 = vunpack.c.h.b16 %v4250
        %v4415 = vunpack.c.l.b16 %v4251
        %v4416 = vunpack.c.h.b16 %v4251
        %v4417 = vunpack.c.l.b16 %v4252
        %v4418 = vunpack.c.h.b16 %v4252
        %v4419 = vunpack.c.l.b16 %v4253
        %v4420 = vunpack.c.h.b16 %v4253
        %v4421 = vunpack.c.l.b16 %v4254
        %v4422 = vunpack.c.h.b16 %v4254
        %v4423 = vunpack.c.l.b16 %v4255
        %v4424 = vunpack.c.h.b16 %v4255
        %v4425 = vunpack.c.l.b16 %v4256
        %v4426 = vunpack.c.h.b16 %v4256
        %v4427 = vunpack.c.l.b16 %v4257
        %v4428 = vunpack.c.h.b16 %v4257
        %v4429 = vunpack.c.l.b16 %v4258
        %v4430 = vunpack.c.h.b16 %v4258
        %v4431 = vunpack.c.l.b16 %v4259
        %v4432 = vunpack.c.h.b16 %v4259
        %v4433 = vunpack.c.l.b16 %v4260
        %v4434 = vunpack.c.h.b16 %v4260
        %v4435 = vunpack.c.l.b16 %v4261
        %v4436 = vunpack.c.h.b16 %v4261
        %v4437 = vunpack.c.l.b16 %v4262
        %v4438 = vunpack.c.h.b16 %v4262
        %v4439 = vunpack.c.l.b16 %v4263
        %v4440 = vunpack.c.h.b16 %v4263
        %v4441 = vunpack.c.l.b16 %v4264
        %v4442 = vunpack.c.h.b16 %v4264
        %v4443 = vunpack.c.l.b16 %v4265
        %v4444 = vunpack.c.h.b16 %v4265
        %v4445 = vunpack.c.l.b16 %v4266
        %v4446 = vunpack.c.h.b16 %v4266
        %v4447 = vunpack.c.l.b16 %v4267
        %v4448 = vunpack.c.h.b16 %v4267
        %v4449 = vunpack.c.l.b16 %v4268
        %v4450 = vunpack.c.h.b16 %v4268
        %v4451 = vunpack.c.l.b16 %v4269
        %v4452 = vunpack.c.h.b16 %v4269
        %v4453 = vunpack.c.l.b16 %v4270
        %v4454 = vunpack.c.h.b16 %v4270
        %v4455 = vunpack.c.l.b16 %v4271
        %v4456 = vunpack.c.h.b16 %v4271
        %v4457 = vunpack.c.l.b16 %v4272
        %v4458 = vunpack.c.h.b16 %v4272
        %v4459 = vunpack.c.l.b16 %v4273
        %v4460 = vunpack.c.h.b16 %v4273
        %v4461 = vunpack.c.l.b16 %v4274
        %v4462 = vunpack.c.h.b16 %v4274
        %v4463 = vunpack.c.l.b16 %v4275
        %v4464 = vunpack.c.h.b16 %v4275
        %v4465 = vunpack.c.l.b16 %v4276
        %v4466 = vunpack.c.h.b16 %v4276
        %v4467 = vunpack.c.l.b16 %v4277
        %v4468 = vunpack.c.h.b16 %v4277
        %v4469 = vunpack.c.l.b16 %v4278
        %v4470 = vunpack.c.h.b16 %v4278
        %v4471 = vpack.c.b16 %v4347, %v4343
        %v4472 = vpack.c.b16 %v4348, %v4344
        %v4473 = vpack.c.b16 %v4349, %v4345
        %v4474 = vpack.c.b16 %v4350, %v4346
        %v4475 = vpack.c.b16 %v4355, %v4351
        %v4476 = vpack.c.b16 %v4356, %v4352
        %v4477 = vpack.c.b16 %v4357, %v4353
        %v4478 = vpack.c.b16 %v4358, %v4354
        %v4479 = vpack.c.b16 %v4363, %v4359
        %v4480 = vpack.c.b16 %v4364, %v4360
        %v4481 = vpack.c.b16 %v4365, %v4361
        %v4482 = vpack.c.b16 %v4366, %v4362
        %v4483 = vpack.c.b16 %v4371, %v4367
        %v4484 = vpack.c.b16 %v4372, %v4368
        %v4485 = vpack.c.b16 %v4373, %v4369
        %v4486 = vpack.c.b16 %v4374, %v4370
        %v4487 = vpack.c.b16 %v4379, %v4375
        %v4488 = vpack.c.b16 %v4380, %v4376
        %v4489 = vpack.c.b16 %v4381, %v4377
        %v4490 = vpack.c.b16 %v4382, %v4378
        %v4491 = vpack.c.b16 %v4387, %v4383
        %v4492 = vpack.c.b16 %v4388, %v4384
        %v4493 = vpack.c.b16 %v4389, %v4385
        %v4494 = vpack.c.b16 %v4390, %v4386
        %v4495 = vpack.c.b16 %v4395, %v4391
        %v4496 = vpack.c.b16 %v4396, %v4392
        %v4497 = vpack.c.b16 %v4397, %v4393
        %v4498 = vpack.c.b16 %v4398, %v4394
        %v4499 = vpack.c.b16 %v4403, %v4399
        %v4500 = vpack.c.b16 %v4404, %v4400
        %v4501 = vpack.c.b16 %v4405, %v4401
        %v4502 = vpack.c.b16 %v4406, %v4402
        %v4503 = vpack.c.b16 %v4411, %v4407
        %v4504 = vpack.c.b16 %v4412, %v4408
        %v4505 = vpack.c.b16 %v4413, %v4409
        %v4506 = vpack.c.b16 %v4414, %v4410
        %v4507 = vpack.c.b16 %v4419, %v4415
        %v4508 = vpack.c.b16 %v4420, %v4416
        %v4509 = vpack.c.b16 %v4421, %v4417
        %v4510 = vpack.c.b16 %v4422, %v4418
        %v4511 = vpack.c.b16 %v4427, %v4423
        %v4512 = vpack.c.b16 %v4428, %v4424
        %v4513 = vpack.c.b16 %v4429, %v4425
        %v4514 = vpack.c.b16 %v4430, %v4426
        %v4515 = vpack.c.b16 %v4435, %v4431
        %v4516 = vpack.c.b16 %v4436, %v4432
        %v4517 = vpack.c.b16 %v4437, %v4433
        %v4518 = vpack.c.b16 %v4438, %v4434
        %v4519 = vpack.c.b16 %v4443, %v4439
        %v4520 = vpack.c.b16 %v4444, %v4440
        %v4521 = vpack.c.b16 %v4445, %v4441
        %v4522 = vpack.c.b16 %v4446, %v4442
        %v4523 = vpack.c.b16 %v4451, %v4447
        %v4524 = vpack.c.b16 %v4452, %v4448
        %v4525 = vpack.c.b16 %v4453, %v4449
        %v4526 = vpack.c.b16 %v4454, %v4450
        %v4527 = vpack.c.b16 %v4459, %v4455
        %v4528 = vpack.c.b16 %v4460, %v4456
        %v4529 = vpack.c.b16 %v4461, %v4457
        %v4530 = vpack.c.b16 %v4462, %v4458
        %v4531 = vpack.c.b16 %v4467, %v4463
        %v4532 = vpack.c.b16 %v4468, %v4464
        %v4533 = vpack.c.b16 %v4469, %v4465
        %v4534 = vpack.c.b16 %v4470, %v4466
        %4599 = vmatprep.subr.bf16.mxu0 %v4472
        %4600 = vmatpush1.bf16.msra.mxu0 %v4471
        %4601 = vmatprep.subr.bf16.mxu0 %v4476
        %4602 = vmatpush1.bf16.msra.mxu0 %v4475
        %4603 = vmatprep.subr.bf16.mxu0 %v4480
        %4604 = vmatpush1.bf16.msra.mxu0 %v4479
        %4605 = vmatprep.subr.bf16.mxu0 %v4484
        %4606 = vmatpush1.bf16.msra.mxu0 %v4483
        %4607 = vmatprep.subr.bf16.mxu0 %v4488
        %4608 = vmatpush1.bf16.msra.mxu0 %v4487
        %4609 = vmatprep.subr.bf16.mxu0 %v4492
        %4610 = vmatpush1.bf16.msra.mxu0 %v4491
        %4611 = vmatprep.subr.bf16.mxu0 %v4496
        %4612 = vmatpush1.bf16.msra.mxu0 %v4495
        %4613 = vmatprep.subr.bf16.mxu0 %v4500
        %4614 = vmatpush1.bf16.msra.mxu0 %v4499
        %4615 = vmatprep.subr.bf16.mxu0 %v4504
        %4616 = vmatpush1.bf16.msra.mxu0 %v4503
        %4617 = vmatprep.subr.bf16.mxu0 %v4508
        %4618 = vmatpush1.bf16.msra.mxu0 %v4507
        %4619 = vmatprep.subr.bf16.mxu0 %v4512
        %4620 = vmatpush1.bf16.msra.mxu0 %v4511
        %4621 = vmatprep.subr.bf16.mxu0 %v4516
        %4622 = vmatpush1.bf16.msra.mxu0 %v4515
        %4623 = vmatprep.subr.bf16.mxu0 %v4520
        %4624 = vmatpush1.bf16.msra.mxu0 %v4519
        %4625 = vmatprep.subr.bf16.mxu0 %v4524
        %4626 = vmatpush1.bf16.msra.mxu0 %v4523
        %4627 = vmatprep.subr.bf16.mxu0 %v4528
        %4628 = vmatpush1.bf16.msra.mxu0 %v4527
        %4629 = vmatprep.subr.bf16.mxu0 %v4532
        %4630 = vmatpush1.bf16.msra.mxu0 %v4531
        %4631 = vmatprep.mubr.bf16.mxu0 %v1410
        %4632 = vmatmul.mubr.bf16.gmra.mrb[0].mxu0 %v1409
        %v4633 = vpop.f32.mrb[0].mxu0
        %v4634 = vadd.f32 0.0, %v4633
        %v4635 = vpop.f32.mrb[0].mxu0
        %v4636 = vadd.f32 0.0, %v4635
        %v4637 = vpop.f32.mrb[0].mxu0
        %v4638 = vadd.f32 0.0, %v4637
        %v4639 = vpop.f32.mrb[0].mxu0
        %v4640 = vadd.f32 0.0, %v4639
        %4641 = vdwg.mxu0
        %4642 = vmatprep.subr.bf16.mxu0 %v4474
        %4643 = vmatpush1.bf16.msra.mxu0 %v4473
        %4644 = vmatprep.subr.bf16.mxu0 %v4478
        %4645 = vmatpush1.bf16.msra.mxu0 %v4477
        %4646 = vmatprep.subr.bf16.mxu0 %v4482
        %4647 = vmatpush1.bf16.msra.mxu0 %v4481
        %4648 = vmatprep.subr.bf16.mxu0 %v4486
        %4649 = vmatpush1.bf16.msra.mxu0 %v4485
        %4650 = vmatprep.subr.bf16.mxu0 %v4490
        %4651 = vmatpush1.bf16.msra.mxu0 %v4489
        %4652 = vmatprep.subr.bf16.mxu0 %v4494
        %4653 = vmatpush1.bf16.msra.mxu0 %v4493
        %4654 = vmatprep.subr.bf16.mxu0 %v4498
        %4655 = vmatpush1.bf16.msra.mxu0 %v4497
        %4656 = vmatprep.subr.bf16.mxu0 %v4502
        %4657 = vmatpush1.bf16.msra.mxu0 %v4501
        %4658 = vmatprep.subr.bf16.mxu0 %v4506
        %4659 = vmatpush1.bf16.msra.mxu0 %v4505
        %4660 = vmatprep.subr.bf16.mxu0 %v4510
        %4661 = vmatpush1.bf16.msra.mxu0 %v4509
        %4662 = vmatprep.subr.bf16.mxu0 %v4514
        %4663 = vmatpush1.bf16.msra.mxu0 %v4513
        %4664 = vmatprep.subr.bf16.mxu0 %v4518
        %4665 = vmatpush1.bf16.msra.mxu0 %v4517
        %4666 = vmatprep.subr.bf16.mxu0 %v4522
        %4667 = vmatpush1.bf16.msra.mxu0 %v4521
        %4668 = vmatprep.subr.bf16.mxu0 %v4526
        %4669 = vmatpush1.bf16.msra.mxu0 %v4525
        %4670 = vmatprep.subr.bf16.mxu0 %v4530
        %4671 = vmatpush1.bf16.msra.mxu0 %v4529
        %4672 = vmatprep.subr.bf16.mxu0 %v4534
        %4673 = vmatpush1.bf16.msra.mxu0 %v4533
        %4674 = vmatprep.mubr.bf16.mxu0 %v1410
        %4675 = vmatmul.mubr.bf16.gmra.mrb[0].mxu0 %v1409
        %v4676 = vpop.f32.mrb[0].mxu0
        %v4677 = vadd.f32 0.0, %v4676
        %v4678 = vpop.f32.mrb[0].mxu0
        %v4679 = vadd.f32 0.0, %v4678
        %v4680 = vpop.f32.mrb[0].mxu0
        %v4681 = vadd.f32 0.0, %v4680
        %v4682 = vpop.f32.mrb[0].mxu0
        %v4683 = vadd.f32 0.0, %v4682
        %4684 = vdwg.mxu0
        %v4685 = vmax.f32 %v4206, %v4634
        %v4686 = vmax.f32 %v4207, %v4636
        %v4687 = vmax.f32 %v4208, %v4677
        %v4688 = vmax.f32 %v4209, %v4679
        %v4689 = vmax.f32 %v4210, %v4638
        %v4690 = vmax.f32 %v4211, %v4640
        %v4691 = vmax.f32 %v4212, %v4681
        %v4692 = vmax.f32 %v4213, %v4683
        %s4693 = scalar_lea.vmem %s1315, 3584 [#allocation2]
        %v4694 = vld [vmem:[%s4693] sm:$0xff]
        %v4695 = vld [vmem:[%s4693 + $0x8] sm:$0xff]
        %v4696 = vld [vmem:[%s4693 + $0x10] sm:$0xff]
        %v4697 = vld [vmem:[%s4693 + $0x18] sm:$0xff]
        %v4698 = vld [vmem:[%s4693 + $0x20] sm:$0xff]
        %v4699 = vld [vmem:[%s4693 + $0x28] sm:$0xff]
        %v4700 = vld [vmem:[%s4693 + $0x30] sm:$0xff]
        %v4701 = vld [vmem:[%s4693 + $0x38] sm:$0xff]
        %v4702 = vld [vmem:[%s4693 + $0x40] sm:$0xff]
        %v4703 = vld [vmem:[%s4693 + $0x48] sm:$0xff]
        %v4704 = vld [vmem:[%s4693 + $0x50] sm:$0xff]
        %v4705 = vld [vmem:[%s4693 + $0x58] sm:$0xff]
        %v4706 = vld [vmem:[%s4693 + $0x60] sm:$0xff]
        %v4707 = vld [vmem:[%s4693 + $0x68] sm:$0xff]
        %v4708 = vld [vmem:[%s4693 + $0x70] sm:$0xff]
        %v4709 = vld [vmem:[%s4693 + $0x78] sm:$0xff]
        %v4710 = vld [vmem:[%s4693 + $0x80] sm:$0xff]
        %v4711 = vld [vmem:[%s4693 + $0x88] sm:$0xff]
        %v4712 = vld [vmem:[%s4693 + $0x90] sm:$0xff]
        %v4713 = vld [vmem:[%s4693 + $0x98] sm:$0xff]
        %v4714 = vld [vmem:[%s4693 + $0xa0] sm:$0xff]
        %v4715 = vld [vmem:[%s4693 + $0xa8] sm:$0xff]
        %v4716 = vld [vmem:[%s4693 + $0xb0] sm:$0xff]
        %v4717 = vld [vmem:[%s4693 + $0xb8] sm:$0xff]
        %v4718 = vld [vmem:[%s4693 + $0xc0] sm:$0xff]
        %v4719 = vld [vmem:[%s4693 + $0xc8] sm:$0xff]
        %v4720 = vld [vmem:[%s4693 + $0xd0] sm:$0xff]
        %v4721 = vld [vmem:[%s4693 + $0xd8] sm:$0xff]
        %v4722 = vld [vmem:[%s4693 + $0xe0] sm:$0xff]
        %v4723 = vld [vmem:[%s4693 + $0xe8] sm:$0xff]
        %v4724 = vld [vmem:[%s4693 + $0xf0] sm:$0xff]
        %v4725 = vld [vmem:[%s4693 + $0xf8] sm:$0xff]
        %v4726 = vld [vmem:[%s4693 + $0x100] sm:$0xff]
        %v4727 = vld [vmem:[%s4693 + $0x108] sm:$0xff]
        %v4728 = vld [vmem:[%s4693 + $0x110] sm:$0xff]
        %v4729 = vld [vmem:[%s4693 + $0x118] sm:$0xff]
        %v4730 = vld [vmem:[%s4693 + $0x120] sm:$0xff]
        %v4731 = vld [vmem:[%s4693 + $0x128] sm:$0xff]
        %v4732 = vld [vmem:[%s4693 + $0x130] sm:$0xff]
        %v4733 = vld [vmem:[%s4693 + $0x138] sm:$0xff]
        %v4734 = vld [vmem:[%s4693 + $0x140] sm:$0xff]
        %v4735 = vld [vmem:[%s4693 + $0x148] sm:$0xff]
        %v4736 = vld [vmem:[%s4693 + $0x150] sm:$0xff]
        %v4737 = vld [vmem:[%s4693 + $0x158] sm:$0xff]
        %v4738 = vld [vmem:[%s4693 + $0x160] sm:$0xff]
        %v4739 = vld [vmem:[%s4693 + $0x168] sm:$0xff]
        %v4740 = vld [vmem:[%s4693 + $0x170] sm:$0xff]
        %v4741 = vld [vmem:[%s4693 + $0x178] sm:$0xff]
        %v4742 = vld [vmem:[%s4693 + $0x180] sm:$0xff]
        %v4743 = vld [vmem:[%s4693 + $0x188] sm:$0xff]
        %v4744 = vld [vmem:[%s4693 + $0x190] sm:$0xff]
        %v4745 = vld [vmem:[%s4693 + $0x198] sm:$0xff]
        %v4746 = vld [vmem:[%s4693 + $0x1a0] sm:$0xff]
        %v4747 = vld [vmem:[%s4693 + $0x1a8] sm:$0xff]
        %v4748 = vld [vmem:[%s4693 + $0x1b0] sm:$0xff]
        %v4749 = vld [vmem:[%s4693 + $0x1b8] sm:$0xff]
        %v4750 = vld [vmem:[%s4693 + $0x1c0] sm:$0xff]
        %v4751 = vld [vmem:[%s4693 + $0x1c8] sm:$0xff]
        %v4752 = vld [vmem:[%s4693 + $0x1d0] sm:$0xff]
        %v4753 = vld [vmem:[%s4693 + $0x1d8] sm:$0xff]
        %v4754 = vld [vmem:[%s4693 + $0x1e0] sm:$0xff]
        %v4755 = vld [vmem:[%s4693 + $0x1e8] sm:$0xff]
        %v4756 = vld [vmem:[%s4693 + $0x1f0] sm:$0xff]
        %v4757 = vld [vmem:[%s4693 + $0x1f8] sm:$0xff]
        %v4822 = vunpack.c.l.b16 %v4694
        %v4823 = vunpack.c.h.b16 %v4694
        %v4824 = vunpack.c.l.b16 %v4695
        %v4825 = vunpack.c.h.b16 %v4695
        %v4826 = vunpack.c.l.b16 %v4696
        %v4827 = vunpack.c.h.b16 %v4696
        %v4828 = vunpack.c.l.b16 %v4697
        %v4829 = vunpack.c.h.b16 %v4697
        %v4830 = vunpack.c.l.b16 %v4698
        %v4831 = vunpack.c.h.b16 %v4698
        %v4832 = vunpack.c.l.b16 %v4699
        %v4833 = vunpack.c.h.b16 %v4699
        %v4834 = vunpack.c.l.b16 %v4700
        %v4835 = vunpack.c.h.b16 %v4700
        %v4836 = vunpack.c.l.b16 %v4701
        %v4837 = vunpack.c.h.b16 %v4701
        %v4838 = vunpack.c.l.b16 %v4702
        %v4839 = vunpack.c.h.b16 %v4702
        %v4840 = vunpack.c.l.b16 %v4703
        %v4841 = vunpack.c.h.b16 %v4703
        %v4842 = vunpack.c.l.b16 %v4704
        %v4843 = vunpack.c.h.b16 %v4704
        %v4844 = vunpack.c.l.b16 %v4705
        %v4845 = vunpack.c.h.b16 %v4705
        %v4846 = vunpack.c.l.b16 %v4706
        %v4847 = vunpack.c.h.b16 %v4706
        %v4848 = vunpack.c.l.b16 %v4707
        %v4849 = vunpack.c.h.b16 %v4707
        %v4850 = vunpack.c.l.b16 %v4708
        %v4851 = vunpack.c.h.b16 %v4708
        %v4852 = vunpack.c.l.b16 %v4709
        %v4853 = vunpack.c.h.b16 %v4709
        %v4854 = vunpack.c.l.b16 %v4710
        %v4855 = vunpack.c.h.b16 %v4710
        %v4856 = vunpack.c.l.b16 %v4711
        %v4857 = vunpack.c.h.b16 %v4711
        %v4858 = vunpack.c.l.b16 %v4712
        %v4859 = vunpack.c.h.b16 %v4712
        %v4860 = vunpack.c.l.b16 %v4713
        %v4861 = vunpack.c.h.b16 %v4713
        %v4862 = vunpack.c.l.b16 %v4714
        %v4863 = vunpack.c.h.b16 %v4714
        %v4864 = vunpack.c.l.b16 %v4715
        %v4865 = vunpack.c.h.b16 %v4715
        %v4866 = vunpack.c.l.b16 %v4716
        %v4867 = vunpack.c.h.b16 %v4716
        %v4868 = vunpack.c.l.b16 %v4717
        %v4869 = vunpack.c.h.b16 %v4717
        %v4870 = vunpack.c.l.b16 %v4718
        %v4871 = vunpack.c.h.b16 %v4718
        %v4872 = vunpack.c.l.b16 %v4719
        %v4873 = vunpack.c.h.b16 %v4719
        %v4874 = vunpack.c.l.b16 %v4720
        %v4875 = vunpack.c.h.b16 %v4720
        %v4876 = vunpack.c.l.b16 %v4721
        %v4877 = vunpack.c.h.b16 %v4721
        %v4878 = vunpack.c.l.b16 %v4722
        %v4879 = vunpack.c.h.b16 %v4722
        %v4880 = vunpack.c.l.b16 %v4723
        %v4881 = vunpack.c.h.b16 %v4723
        %v4882 = vunpack.c.l.b16 %v4724
        %v4883 = vunpack.c.h.b16 %v4724
        %v4884 = vunpack.c.l.b16 %v4725
        %v4885 = vunpack.c.h.b16 %v4725
        %v4886 = vunpack.c.l.b16 %v4726
        %v4887 = vunpack.c.h.b16 %v4726
        %v4888 = vunpack.c.l.b16 %v4727
        %v4889 = vunpack.c.h.b16 %v4727
        %v4890 = vunpack.c.l.b16 %v4728
        %v4891 = vunpack.c.h.b16 %v4728
        %v4892 = vunpack.c.l.b16 %v4729
        %v4893 = vunpack.c.h.b16 %v4729
        %v4894 = vunpack.c.l.b16 %v4730
        %v4895 = vunpack.c.h.b16 %v4730
        %v4896 = vunpack.c.l.b16 %v4731
        %v4897 = vunpack.c.h.b16 %v4731
        %v4898 = vunpack.c.l.b16 %v4732
        %v4899 = vunpack.c.h.b16 %v4732
        %v4900 = vunpack.c.l.b16 %v4733
        %v4901 = vunpack.c.h.b16 %v4733
        %v4902 = vunpack.c.l.b16 %v4734
        %v4903 = vunpack.c.h.b16 %v4734
        %v4904 = vunpack.c.l.b16 %v4735
        %v4905 = vunpack.c.h.b16 %v4735
        %v4906 = vunpack.c.l.b16 %v4736
        %v4907 = vunpack.c.h.b16 %v4736
        %v4908 = vunpack.c.l.b16 %v4737
        %v4909 = vunpack.c.h.b16 %v4737
        %v4910 = vunpack.c.l.b16 %v4738
        %v4911 = vunpack.c.h.b16 %v4738
        %v4912 = vunpack.c.l.b16 %v4739
        %v4913 = vunpack.c.h.b16 %v4739
        %v4914 = vunpack.c.l.b16 %v4740
        %v4915 = vunpack.c.h.b16 %v4740
        %v4916 = vunpack.c.l.b16 %v4741
        %v4917 = vunpack.c.h.b16 %v4741
        %v4918 = vunpack.c.l.b16 %v4742
        %v4919 = vunpack.c.h.b16 %v4742
        %v4920 = vunpack.c.l.b16 %v4743
        %v4921 = vunpack.c.h.b16 %v4743
        %v4922 = vunpack.c.l.b16 %v4744
        %v4923 = vunpack.c.h.b16 %v4744
        %v4924 = vunpack.c.l.b16 %v4745
        %v4925 = vunpack.c.h.b16 %v4745
        %v4926 = vunpack.c.l.b16 %v4746
        %v4927 = vunpack.c.h.b16 %v4746
        %v4928 = vunpack.c.l.b16 %v4747
        %v4929 = vunpack.c.h.b16 %v4747
        %v4930 = vunpack.c.l.b16 %v4748
        %v4931 = vunpack.c.h.b16 %v4748
        %v4932 = vunpack.c.l.b16 %v4749
        %v4933 = vunpack.c.h.b16 %v4749
        %v4934 = vunpack.c.l.b16 %v4750
        %v4935 = vunpack.c.h.b16 %v4750
        %v4936 = vunpack.c.l.b16 %v4751
        %v4937 = vunpack.c.h.b16 %v4751
        %v4938 = vunpack.c.l.b16 %v4752
        %v4939 = vunpack.c.h.b16 %v4752
        %v4940 = vunpack.c.l.b16 %v4753
        %v4941 = vunpack.c.h.b16 %v4753
        %v4942 = vunpack.c.l.b16 %v4754
        %v4943 = vunpack.c.h.b16 %v4754
        %v4944 = vunpack.c.l.b16 %v4755
        %v4945 = vunpack.c.h.b16 %v4755
        %v4946 = vunpack.c.l.b16 %v4756
        %v4947 = vunpack.c.h.b16 %v4756
        %v4948 = vunpack.c.l.b16 %v4757
        %v4949 = vunpack.c.h.b16 %v4757
        %v4950 = vpack.c.b16 %v4826, %v4822
        %v4951 = vpack.c.b16 %v4827, %v4823
        %v4952 = vpack.c.b16 %v4828, %v4824
        %v4953 = vpack.c.b16 %v4829, %v4825
        %v4954 = vpack.c.b16 %v4834, %v4830
        %v4955 = vpack.c.b16 %v4835, %v4831
        %v4956 = vpack.c.b16 %v4836, %v4832
        %v4957 = vpack.c.b16 %v4837, %v4833
        %v4958 = vpack.c.b16 %v4842, %v4838
        %v4959 = vpack.c.b16 %v4843, %v4839
        %v4960 = vpack.c.b16 %v4844, %v4840
        %v4961 = vpack.c.b16 %v4845, %v4841
        %v4962 = vpack.c.b16 %v4850, %v4846
        %v4963 = vpack.c.b16 %v4851, %v4847
        %v4964 = vpack.c.b16 %v4852, %v4848
        %v4965 = vpack.c.b16 %v4853, %v4849
        %v4966 = vpack.c.b16 %v4858, %v4854
        %v4967 = vpack.c.b16 %v4859, %v4855
        %v4968 = vpack.c.b16 %v4860, %v4856
        %v4969 = vpack.c.b16 %v4861, %v4857
        %v4970 = vpack.c.b16 %v4866, %v4862
        %v4971 = vpack.c.b16 %v4867, %v4863
        %v4972 = vpack.c.b16 %v4868, %v4864
        %v4973 = vpack.c.b16 %v4869, %v4865
        %v4974 = vpack.c.b16 %v4874, %v4870
        %v4975 = vpack.c.b16 %v4875, %v4871
        %v4976 = vpack.c.b16 %v4876, %v4872
        %v4977 = vpack.c.b16 %v4877, %v4873
        %v4978 = vpack.c.b16 %v4882, %v4878
        %v4979 = vpack.c.b16 %v4883, %v4879
        %v4980 = vpack.c.b16 %v4884, %v4880
        %v4981 = vpack.c.b16 %v4885, %v4881
        %v4982 = vpack.c.b16 %v4890, %v4886
        %v4983 = vpack.c.b16 %v4891, %v4887
        %v4984 = vpack.c.b16 %v4892, %v4888
        %v4985 = vpack.c.b16 %v4893, %v4889
        %v4986 = vpack.c.b16 %v4898, %v4894
        %v4987 = vpack.c.b16 %v4899, %v4895
        %v4988 = vpack.c.b16 %v4900, %v4896
        %v4989 = vpack.c.b16 %v4901, %v4897
        %v4990 = vpack.c.b16 %v4906, %v4902
        %v4991 = vpack.c.b16 %v4907, %v4903
        %v4992 = vpack.c.b16 %v4908, %v4904
        %v4993 = vpack.c.b16 %v4909, %v4905
        %v4994 = vpack.c.b16 %v4914, %v4910
        %v4995 = vpack.c.b16 %v4915, %v4911
        %v4996 = vpack.c.b16 %v4916, %v4912
        %v4997 = vpack.c.b16 %v4917, %v4913
        %v4998 = vpack.c.b16 %v4922, %v4918
        %v4999 = vpack.c.b16 %v4923, %v4919
        %v5000 = vpack.c.b16 %v4924, %v4920
        %v5001 = vpack.c.b16 %v4925, %v4921
        %v5002 = vpack.c.b16 %v4930, %v4926
        %v5003 = vpack.c.b16 %v4931, %v4927
        %v5004 = vpack.c.b16 %v4932, %v4928
        %v5005 = vpack.c.b16 %v4933, %v4929
        %v5006 = vpack.c.b16 %v4938, %v4934
        %v5007 = vpack.c.b16 %v4939, %v4935
        %v5008 = vpack.c.b16 %v4940, %v4936
        %v5009 = vpack.c.b16 %v4941, %v4937
        %v5010 = vpack.c.b16 %v4946, %v4942
        %v5011 = vpack.c.b16 %v4947, %v4943
        %v5012 = vpack.c.b16 %v4948, %v4944
        %v5013 = vpack.c.b16 %v4949, %v4945
        %5078 = vmatprep.subr.bf16.mxu0 %v4951
        %5079 = vmatpush1.bf16.msra.mxu0 %v4950
        %5080 = vmatprep.subr.bf16.mxu0 %v4955
        %5081 = vmatpush1.bf16.msra.mxu0 %v4954
        %5082 = vmatprep.subr.bf16.mxu0 %v4959
        %5083 = vmatpush1.bf16.msra.mxu0 %v4958
        %5084 = vmatprep.subr.bf16.mxu0 %v4963
        %5085 = vmatpush1.bf16.msra.mxu0 %v4962
        %5086 = vmatprep.subr.bf16.mxu0 %v4967
        %5087 = vmatpush1.bf16.msra.mxu0 %v4966
        %5088 = vmatprep.subr.bf16.mxu0 %v4971
        %5089 = vmatpush1.bf16.msra.mxu0 %v4970
        %5090 = vmatprep.subr.bf16.mxu0 %v4975
        %5091 = vmatpush1.bf16.msra.mxu0 %v4974
        %5092 = vmatprep.subr.bf16.mxu0 %v4979
        %5093 = vmatpush1.bf16.msra.mxu0 %v4978
        %5094 = vmatprep.subr.bf16.mxu0 %v4983
        %5095 = vmatpush1.bf16.msra.mxu0 %v4982
        %5096 = vmatprep.subr.bf16.mxu0 %v4987
        %5097 = vmatpush1.bf16.msra.mxu0 %v4986
        %5098 = vmatprep.subr.bf16.mxu0 %v4991
        %5099 = vmatpush1.bf16.msra.mxu0 %v4990
        %5100 = vmatprep.subr.bf16.mxu0 %v4995
        %5101 = vmatpush1.bf16.msra.mxu0 %v4994
        %5102 = vmatprep.subr.bf16.mxu0 %v4999
        %5103 = vmatpush1.bf16.msra.mxu0 %v4998
        %5104 = vmatprep.subr.bf16.mxu0 %v5003
        %5105 = vmatpush1.bf16.msra.mxu0 %v5002
        %5106 = vmatprep.subr.bf16.mxu0 %v5007
        %5107 = vmatpush1.bf16.msra.mxu0 %v5006
        %5108 = vmatprep.subr.bf16.mxu0 %v5011
        %5109 = vmatpush1.bf16.msra.mxu0 %v5010
        %5110 = vmatprep.mubr.bf16.mxu0 %v1410
        %5111 = vmatmul.mubr.bf16.gmra.mrb[0].mxu0 %v1409
        %v5112 = vpop.f32.mrb[0].mxu0
        %v5113 = vadd.f32 0.0, %v5112
        %v5114 = vpop.f32.mrb[0].mxu0
        %v5115 = vadd.f32 0.0, %v5114
        %v5116 = vpop.f32.mrb[0].mxu0
        %v5117 = vadd.f32 0.0, %v5116
        %v5118 = vpop.f32.mrb[0].mxu0
        %v5119 = vadd.f32 0.0, %v5118
        %5120 = vdwg.mxu0
        %5121 = vmatprep.subr.bf16.mxu0 %v4953
        %5122 = vmatpush1.bf16.msra.mxu0 %v4952
        %5123 = vmatprep.subr.bf16.mxu0 %v4957
        %5124 = vmatpush1.bf16.msra.mxu0 %v4956
        %5125 = vmatprep.subr.bf16.mxu0 %v4961
        %5126 = vmatpush1.bf16.msra.mxu0 %v4960
        %5127 = vmatprep.subr.bf16.mxu0 %v4965
        %5128 = vmatpush1.bf16.msra.mxu0 %v4964
        %5129 = vmatprep.subr.bf16.mxu0 %v4969
        %5130 = vmatpush1.bf16.msra.mxu0 %v4968
        %5131 = vmatprep.subr.bf16.mxu0 %v4973
        %5132 = vmatpush1.bf16.msra.mxu0 %v4972
        %5133 = vmatprep.subr.bf16.mxu0 %v4977
        %5134 = vmatpush1.bf16.msra.mxu0 %v4976
        %5135 = vmatprep.subr.bf16.mxu0 %v4981
        %5136 = vmatpush1.bf16.msra.mxu0 %v4980
        %5137 = vmatprep.subr.bf16.mxu0 %v4985
        %5138 = vmatpush1.bf16.msra.mxu0 %v4984
        %5139 = vmatprep.subr.bf16.mxu0 %v4989
        %5140 = vmatpush1.bf16.msra.mxu0 %v4988
        %5141 = vmatprep.subr.bf16.mxu0 %v4993
        %5142 = vmatpush1.bf16.msra.mxu0 %v4992
        %5143 = vmatprep.subr.bf16.mxu0 %v4997
        %5144 = vmatpush1.bf16.msra.mxu0 %v4996
        %5145 = vmatprep.subr.bf16.mxu0 %v5001
        %5146 = vmatpush1.bf16.msra.mxu0 %v5000
        %5147 = vmatprep.subr.bf16.mxu0 %v5005
        %5148 = vmatpush1.bf16.msra.mxu0 %v5004
        %5149 = vmatprep.subr.bf16.mxu0 %v5009
        %5150 = vmatpush1.bf16.msra.mxu0 %v5008
        %5151 = vmatprep.subr.bf16.mxu0 %v5013
        %5152 = vmatpush1.bf16.msra.mxu0 %v5012
        %5153 = vmatprep.mubr.bf16.mxu0 %v1410
        %5154 = vmatmul.mubr.bf16.gmra.mrb[0].mxu0 %v1409
        %v5155 = vpop.f32.mrb[0].mxu0
        %v5156 = vadd.f32 0.0, %v5155
        %v5157 = vpop.f32.mrb[0].mxu0
        %v5158 = vadd.f32 0.0, %v5157
        %v5159 = vpop.f32.mrb[0].mxu0
        %v5160 = vadd.f32 0.0, %v5159
        %v5161 = vpop.f32.mrb[0].mxu0
        %v5162 = vadd.f32 0.0, %v5161
        %5163 = vdwg.mxu0
        %v5164 = vmax.f32 %v4685, %v5113
        %v5165 = vmax.f32 %v4686, %v5115
        %v5166 = vmax.f32 %v4687, %v5156
        %v5167 = vmax.f32 %v4688, %v5158
        %v5168 = vmax.f32 %v4689, %v5117
        %v5169 = vmax.f32 %v4690, %v5119
        %v5170 = vmax.f32 %v4691, %v5160
        %v5171 = vmax.f32 %v4692, %v5162
        %s5172 = scalar_lea.vmem %s1315, 4096 [#allocation2]
        %v5173 = vld [vmem:[%s5172] sm:$0xff]
        %v5174 = vld [vmem:[%s5172 + $0x8] sm:$0xff]
        %v5175 = vld [vmem:[%s5172 + $0x10] sm:$0xff]
        %v5176 = vld [vmem:[%s5172 + $0x18] sm:$0xff]
        %v5177 = vld [vmem:[%s5172 + $0x20] sm:$0xff]
        %v5178 = vld [vmem:[%s5172 + $0x28] sm:$0xff]
        %v5179 = vld [vmem:[%s5172 + $0x30] sm:$0xff]
        %v5180 = vld [vmem:[%s5172 + $0x38] sm:$0xff]
        %v5181 = vld [vmem:[%s5172 + $0x40] sm:$0xff]
        %v5182 = vld [vmem:[%s5172 + $0x48] sm:$0xff]
        %v5183 = vld [vmem:[%s5172 + $0x50] sm:$0xff]
        %v5184 = vld [vmem:[%s5172 + $0x58] sm:$0xff]
        %v5185 = vld [vmem:[%s5172 + $0x60] sm:$0xff]
        %v5186 = vld [vmem:[%s5172 + $0x68] sm:$0xff]
        %v5187 = vld [vmem:[%s5172 + $0x70] sm:$0xff]
        %v5188 = vld [vmem:[%s5172 + $0x78] sm:$0xff]
        %v5189 = vld [vmem:[%s5172 + $0x80] sm:$0xff]
        %v5190 = vld [vmem:[%s5172 + $0x88] sm:$0xff]
        %v5191 = vld [vmem:[%s5172 + $0x90] sm:$0xff]
        %v5192 = vld [vmem:[%s5172 + $0x98] sm:$0xff]
        %v5193 = vld [vmem:[%s5172 + $0xa0] sm:$0xff]
        %v5194 = vld [vmem:[%s5172 + $0xa8] sm:$0xff]
        %v5195 = vld [vmem:[%s5172 + $0xb0] sm:$0xff]
        %v5196 = vld [vmem:[%s5172 + $0xb8] sm:$0xff]
        %v5197 = vld [vmem:[%s5172 + $0xc0] sm:$0xff]
        %v5198 = vld [vmem:[%s5172 + $0xc8] sm:$0xff]
        %v5199 = vld [vmem:[%s5172 + $0xd0] sm:$0xff]
        %v5200 = vld [vmem:[%s5172 + $0xd8] sm:$0xff]
        %v5201 = vld [vmem:[%s5172 + $0xe0] sm:$0xff]
        %v5202 = vld [vmem:[%s5172 + $0xe8] sm:$0xff]
        %v5203 = vld [vmem:[%s5172 + $0xf0] sm:$0xff]
        %v5204 = vld [vmem:[%s5172 + $0xf8] sm:$0xff]
        %v5205 = vld [vmem:[%s5172 + $0x100] sm:$0xff]
        %v5206 = vld [vmem:[%s5172 + $0x108] sm:$0xff]
        %v5207 = vld [vmem:[%s5172 + $0x110] sm:$0xff]
        %v5208 = vld [vmem:[%s5172 + $0x118] sm:$0xff]
        %v5209 = vld [vmem:[%s5172 + $0x120] sm:$0xff]
        %v5210 = vld [vmem:[%s5172 + $0x128] sm:$0xff]
        %v5211 = vld [vmem:[%s5172 + $0x130] sm:$0xff]
        %v5212 = vld [vmem:[%s5172 + $0x138] sm:$0xff]
        %v5213 = vld [vmem:[%s5172 + $0x140] sm:$0xff]
        %v5214 = vld [vmem:[%s5172 + $0x148] sm:$0xff]
        %v5215 = vld [vmem:[%s5172 + $0x150] sm:$0xff]
        %v5216 = vld [vmem:[%s5172 + $0x158] sm:$0xff]
        %v5217 = vld [vmem:[%s5172 + $0x160] sm:$0xff]
        %v5218 = vld [vmem:[%s5172 + $0x168] sm:$0xff]
        %v5219 = vld [vmem:[%s5172 + $0x170] sm:$0xff]
        %v5220 = vld [vmem:[%s5172 + $0x178] sm:$0xff]
        %v5221 = vld [vmem:[%s5172 + $0x180] sm:$0xff]
        %v5222 = vld [vmem:[%s5172 + $0x188] sm:$0xff]
        %v5223 = vld [vmem:[%s5172 + $0x190] sm:$0xff]
        %v5224 = vld [vmem:[%s5172 + $0x198] sm:$0xff]
        %v5225 = vld [vmem:[%s5172 + $0x1a0] sm:$0xff]
        %v5226 = vld [vmem:[%s5172 + $0x1a8] sm:$0xff]
        %v5227 = vld [vmem:[%s5172 + $0x1b0] sm:$0xff]
        %v5228 = vld [vmem:[%s5172 + $0x1b8] sm:$0xff]
        %v5229 = vld [vmem:[%s5172 + $0x1c0] sm:$0xff]
        %v5230 = vld [vmem:[%s5172 + $0x1c8] sm:$0xff]
        %v5231 = vld [vmem:[%s5172 + $0x1d0] sm:$0xff]
        %v5232 = vld [vmem:[%s5172 + $0x1d8] sm:$0xff]
        %v5233 = vld [vmem:[%s5172 + $0x1e0] sm:$0xff]
        %v5234 = vld [vmem:[%s5172 + $0x1e8] sm:$0xff]
        %v5235 = vld [vmem:[%s5172 + $0x1f0] sm:$0xff]
        %v5236 = vld [vmem:[%s5172 + $0x1f8] sm:$0xff]
        %v5301 = vunpack.c.l.b16 %v5173
        %v5302 = vunpack.c.h.b16 %v5173
        %v5303 = vunpack.c.l.b16 %v5174
        %v5304 = vunpack.c.h.b16 %v5174
        %v5305 = vunpack.c.l.b16 %v5175
        %v5306 = vunpack.c.h.b16 %v5175
        %v5307 = vunpack.c.l.b16 %v5176
        %v5308 = vunpack.c.h.b16 %v5176
        %v5309 = vunpack.c.l.b16 %v5177
        %v5310 = vunpack.c.h.b16 %v5177
        %v5311 = vunpack.c.l.b16 %v5178
        %v5312 = vunpack.c.h.b16 %v5178
        %v5313 = vunpack.c.l.b16 %v5179
        %v5314 = vunpack.c.h.b16 %v5179
        %v5315 = vunpack.c.l.b16 %v5180
        %v5316 = vunpack.c.h.b16 %v5180
        %v5317 = vunpack.c.l.b16 %v5181
        %v5318 = vunpack.c.h.b16 %v5181
        %v5319 = vunpack.c.l.b16 %v5182
        %v5320 = vunpack.c.h.b16 %v5182
        %v5321 = vunpack.c.l.b16 %v5183
        %v5322 = vunpack.c.h.b16 %v5183
        %v5323 = vunpack.c.l.b16 %v5184
        %v5324 = vunpack.c.h.b16 %v5184
        %v5325 = vunpack.c.l.b16 %v5185
        %v5326 = vunpack.c.h.b16 %v5185
        %v5327 = vunpack.c.l.b16 %v5186
        %v5328 = vunpack.c.h.b16 %v5186
        %v5329 = vunpack.c.l.b16 %v5187
        %v5330 = vunpack.c.h.b16 %v5187
        %v5331 = vunpack.c.l.b16 %v5188
        %v5332 = vunpack.c.h.b16 %v5188
        %v5333 = vunpack.c.l.b16 %v5189
        %v5334 = vunpack.c.h.b16 %v5189
        %v5335 = vunpack.c.l.b16 %v5190
        %v5336 = vunpack.c.h.b16 %v5190
        %v5337 = vunpack.c.l.b16 %v5191
        %v5338 = vunpack.c.h.b16 %v5191
        %v5339 = vunpack.c.l.b16 %v5192
        %v5340 = vunpack.c.h.b16 %v5192
        %v5341 = vunpack.c.l.b16 %v5193
        %v5342 = vunpack.c.h.b16 %v5193
        %v5343 = vunpack.c.l.b16 %v5194
        %v5344 = vunpack.c.h.b16 %v5194
        %v5345 = vunpack.c.l.b16 %v5195
        %v5346 = vunpack.c.h.b16 %v5195
        %v5347 = vunpack.c.l.b16 %v5196
        %v5348 = vunpack.c.h.b16 %v5196
        %v5349 = vunpack.c.l.b16 %v5197
        %v5350 = vunpack.c.h.b16 %v5197
        %v5351 = vunpack.c.l.b16 %v5198
        %v5352 = vunpack.c.h.b16 %v5198
        %v5353 = vunpack.c.l.b16 %v5199
        %v5354 = vunpack.c.h.b16 %v5199
        %v5355 = vunpack.c.l.b16 %v5200
        %v5356 = vunpack.c.h.b16 %v5200
        %v5357 = vunpack.c.l.b16 %v5201
        %v5358 = vunpack.c.h.b16 %v5201
        %v5359 = vunpack.c.l.b16 %v5202
        %v5360 = vunpack.c.h.b16 %v5202
        %v5361 = vunpack.c.l.b16 %v5203
        %v5362 = vunpack.c.h.b16 %v5203
        %v5363 = vunpack.c.l.b16 %v5204
        %v5364 = vunpack.c.h.b16 %v5204
        %v5365 = vunpack.c.l.b16 %v5205
        %v5366 = vunpack.c.h.b16 %v5205
        %v5367 = vunpack.c.l.b16 %v5206
        %v5368 = vunpack.c.h.b16 %v5206
        %v5369 = vunpack.c.l.b16 %v5207
        %v5370 = vunpack.c.h.b16 %v5207
        %v5371 = vunpack.c.l.b16 %v5208
        %v5372 = vunpack.c.h.b16 %v5208
        %v5373 = vunpack.c.l.b16 %v5209
        %v5374 = vunpack.c.h.b16 %v5209
        %v5375 = vunpack.c.l.b16 %v5210
        %v5376 = vunpack.c.h.b16 %v5210
        %v5377 = vunpack.c.l.b16 %v5211
        %v5378 = vunpack.c.h.b16 %v5211
        %v5379 = vunpack.c.l.b16 %v5212
        %v5380 = vunpack.c.h.b16 %v5212
        %v5381 = vunpack.c.l.b16 %v5213
        %v5382 = vunpack.c.h.b16 %v5213
        %v5383 = vunpack.c.l.b16 %v5214
        %v5384 = vunpack.c.h.b16 %v5214
        %v5385 = vunpack.c.l.b16 %v5215
        %v5386 = vunpack.c.h.b16 %v5215
        %v5387 = vunpack.c.l.b16 %v5216
        %v5388 = vunpack.c.h.b16 %v5216
        %v5389 = vunpack.c.l.b16 %v5217
        %v5390 = vunpack.c.h.b16 %v5217
        %v5391 = vunpack.c.l.b16 %v5218
        %v5392 = vunpack.c.h.b16 %v5218
        %v5393 = vunpack.c.l.b16 %v5219
        %v5394 = vunpack.c.h.b16 %v5219
        %v5395 = vunpack.c.l.b16 %v5220
        %v5396 = vunpack.c.h.b16 %v5220
        %v5397 = vunpack.c.l.b16 %v5221
        %v5398 = vunpack.c.h.b16 %v5221
        %v5399 = vunpack.c.l.b16 %v5222
        %v5400 = vunpack.c.h.b16 %v5222
        %v5401 = vunpack.c.l.b16 %v5223
        %v5402 = vunpack.c.h.b16 %v5223
        %v5403 = vunpack.c.l.b16 %v5224
        %v5404 = vunpack.c.h.b16 %v5224
        %v5405 = vunpack.c.l.b16 %v5225
        %v5406 = vunpack.c.h.b16 %v5225
        %v5407 = vunpack.c.l.b16 %v5226
        %v5408 = vunpack.c.h.b16 %v5226
        %v5409 = vunpack.c.l.b16 %v5227
        %v5410 = vunpack.c.h.b16 %v5227
        %v5411 = vunpack.c.l.b16 %v5228
        %v5412 = vunpack.c.h.b16 %v5228
        %v5413 = vunpack.c.l.b16 %v5229
        %v5414 = vunpack.c.h.b16 %v5229
        %v5415 = vunpack.c.l.b16 %v5230
        %v5416 = vunpack.c.h.b16 %v5230
        %v5417 = vunpack.c.l.b16 %v5231
        %v5418 = vunpack.c.h.b16 %v5231
        %v5419 = vunpack.c.l.b16 %v5232
        %v5420 = vunpack.c.h.b16 %v5232
        %v5421 = vunpack.c.l.b16 %v5233
        %v5422 = vunpack.c.h.b16 %v5233
        %v5423 = vunpack.c.l.b16 %v5234
        %v5424 = vunpack.c.h.b16 %v5234
        %v5425 = vunpack.c.l.b16 %v5235
        %v5426 = vunpack.c.h.b16 %v5235
        %v5427 = vunpack.c.l.b16 %v5236
        %v5428 = vunpack.c.h.b16 %v5236
        %v5429 = vpack.c.b16 %v5305, %v5301
        %v5430 = vpack.c.b16 %v5306, %v5302
        %v5431 = vpack.c.b16 %v5307, %v5303
        %v5432 = vpack.c.b16 %v5308, %v5304
        %v5433 = vpack.c.b16 %v5313, %v5309
        %v5434 = vpack.c.b16 %v5314, %v5310
        %v5435 = vpack.c.b16 %v5315, %v5311
        %v5436 = vpack.c.b16 %v5316, %v5312
        %v5437 = vpack.c.b16 %v5321, %v5317
        %v5438 = vpack.c.b16 %v5322, %v5318
        %v5439 = vpack.c.b16 %v5323, %v5319
        %v5440 = vpack.c.b16 %v5324, %v5320
        %v5441 = vpack.c.b16 %v5329, %v5325
        %v5442 = vpack.c.b16 %v5330, %v5326
        %v5443 = vpack.c.b16 %v5331, %v5327
        %v5444 = vpack.c.b16 %v5332, %v5328
        %v5445 = vpack.c.b16 %v5337, %v5333
        %v5446 = vpack.c.b16 %v5338, %v5334
        %v5447 = vpack.c.b16 %v5339, %v5335
        %v5448 = vpack.c.b16 %v5340, %v5336
        %v5449 = vpack.c.b16 %v5345, %v5341
        %v5450 = vpack.c.b16 %v5346, %v5342
        %v5451 = vpack.c.b16 %v5347, %v5343
        %v5452 = vpack.c.b16 %v5348, %v5344
        %v5453 = vpack.c.b16 %v5353, %v5349
        %v5454 = vpack.c.b16 %v5354, %v5350
        %v5455 = vpack.c.b16 %v5355, %v5351
        %v5456 = vpack.c.b16 %v5356, %v5352
        %v5457 = vpack.c.b16 %v5361, %v5357
        %v5458 = vpack.c.b16 %v5362, %v5358
        %v5459 = vpack.c.b16 %v5363, %v5359
        %v5460 = vpack.c.b16 %v5364, %v5360
        %v5461 = vpack.c.b16 %v5369, %v5365
        %v5462 = vpack.c.b16 %v5370, %v5366
        %v5463 = vpack.c.b16 %v5371, %v5367
        %v5464 = vpack.c.b16 %v5372, %v5368
        %v5465 = vpack.c.b16 %v5377, %v5373
        %v5466 = vpack.c.b16 %v5378, %v5374
        %v5467 = vpack.c.b16 %v5379, %v5375
        %v5468 = vpack.c.b16 %v5380, %v5376
        %v5469 = vpack.c.b16 %v5385, %v5381
        %v5470 = vpack.c.b16 %v5386, %v5382
        %v5471 = vpack.c.b16 %v5387, %v5383
        %v5472 = vpack.c.b16 %v5388, %v5384
        %v5473 = vpack.c.b16 %v5393, %v5389
        %v5474 = vpack.c.b16 %v5394, %v5390
        %v5475 = vpack.c.b16 %v5395, %v5391
        %v5476 = vpack.c.b16 %v5396, %v5392
        %v5477 = vpack.c.b16 %v5401, %v5397
        %v5478 = vpack.c.b16 %v5402, %v5398
        %v5479 = vpack.c.b16 %v5403, %v5399
        %v5480 = vpack.c.b16 %v5404, %v5400
        %v5481 = vpack.c.b16 %v5409, %v5405
        %v5482 = vpack.c.b16 %v5410, %v5406
        %v5483 = vpack.c.b16 %v5411, %v5407
        %v5484 = vpack.c.b16 %v5412, %v5408
        %v5485 = vpack.c.b16 %v5417, %v5413
        %v5486 = vpack.c.b16 %v5418, %v5414
        %v5487 = vpack.c.b16 %v5419, %v5415
        %v5488 = vpack.c.b16 %v5420, %v5416
        %v5489 = vpack.c.b16 %v5425, %v5421
        %v5490 = vpack.c.b16 %v5426, %v5422
        %v5491 = vpack.c.b16 %v5427, %v5423
        %v5492 = vpack.c.b16 %v5428, %v5424
        %5557 = vmatprep.subr.bf16.mxu0 %v5430
        %5558 = vmatpush1.bf16.msra.mxu0 %v5429
        %5559 = vmatprep.subr.bf16.mxu0 %v5434
        %5560 = vmatpush1.bf16.msra.mxu0 %v5433
        %5561 = vmatprep.subr.bf16.mxu0 %v5438
        %5562 = vmatpush1.bf16.msra.mxu0 %v5437
        %5563 = vmatprep.subr.bf16.mxu0 %v5442
        %5564 = vmatpush1.bf16.msra.mxu0 %v5441
        %5565 = vmatprep.subr.bf16.mxu0 %v5446
        %5566 = vmatpush1.bf16.msra.mxu0 %v5445
        %5567 = vmatprep.subr.bf16.mxu0 %v5450
        %5568 = vmatpush1.bf16.msra.mxu0 %v5449
        %5569 = vmatprep.subr.bf16.mxu0 %v5454
        %5570 = vmatpush1.bf16.msra.mxu0 %v5453
        %5571 = vmatprep.subr.bf16.mxu0 %v5458
        %5572 = vmatpush1.bf16.msra.mxu0 %v5457
        %5573 = vmatprep.subr.bf16.mxu0 %v5462
        %5574 = vmatpush1.bf16.msra.mxu0 %v5461
        %5575 = vmatprep.subr.bf16.mxu0 %v5466
        %5576 = vmatpush1.bf16.msra.mxu0 %v5465
        %5577 = vmatprep.subr.bf16.mxu0 %v5470
        %5578 = vmatpush1.bf16.msra.mxu0 %v5469
        %5579 = vmatprep.subr.bf16.mxu0 %v5474
        %5580 = vmatpush1.bf16.msra.mxu0 %v5473
        %5581 = vmatprep.subr.bf16.mxu0 %v5478
        %5582 = vmatpush1.bf16.msra.mxu0 %v5477
        %5583 = vmatprep.subr.bf16.mxu0 %v5482
        %5584 = vmatpush1.bf16.msra.mxu0 %v5481
        %5585 = vmatprep.subr.bf16.mxu0 %v5486
        %5586 = vmatpush1.bf16.msra.mxu0 %v5485
        %5587 = vmatprep.subr.bf16.mxu0 %v5490
        %5588 = vmatpush1.bf16.msra.mxu0 %v5489
        %5589 = vmatprep.mubr.bf16.mxu0 %v1410
        %5590 = vmatmul.mubr.bf16.gmra.mrb[0].mxu0 %v1409
        %v5591 = vpop.f32.mrb[0].mxu0
        %v5592 = vadd.f32 0.0, %v5591
        %v5593 = vpop.f32.mrb[0].mxu0
        %v5594 = vadd.f32 0.0, %v5593
        %v5595 = vpop.f32.mrb[0].mxu0
        %v5596 = vadd.f32 0.0, %v5595
        %v5597 = vpop.f32.mrb[0].mxu0
        %v5598 = vadd.f32 0.0, %v5597
        %5599 = vdwg.mxu0
        %5600 = vmatprep.subr.bf16.mxu0 %v5432
        %5601 = vmatpush1.bf16.msra.mxu0 %v5431
        %5602 = vmatprep.subr.bf16.mxu0 %v5436
        %5603 = vmatpush1.bf16.msra.mxu0 %v5435
        %5604 = vmatprep.subr.bf16.mxu0 %v5440
        %5605 = vmatpush1.bf16.msra.mxu0 %v5439
        %5606 = vmatprep.subr.bf16.mxu0 %v5444
        %5607 = vmatpush1.bf16.msra.mxu0 %v5443
        %5608 = vmatprep.subr.bf16.mxu0 %v5448
        %5609 = vmatpush1.bf16.msra.mxu0 %v5447
        %5610 = vmatprep.subr.bf16.mxu0 %v5452
        %5611 = vmatpush1.bf16.msra.mxu0 %v5451
        %5612 = vmatprep.subr.bf16.mxu0 %v5456
        %5613 = vmatpush1.bf16.msra.mxu0 %v5455
        %5614 = vmatprep.subr.bf16.mxu0 %v5460
        %5615 = vmatpush1.bf16.msra.mxu0 %v5459
        %5616 = vmatprep.subr.bf16.mxu0 %v5464
        %5617 = vmatpush1.bf16.msra.mxu0 %v5463
        %5618 = vmatprep.subr.bf16.mxu0 %v5468
        %5619 = vmatpush1.bf16.msra.mxu0 %v5467
        %5620 = vmatprep.subr.bf16.mxu0 %v5472
        %5621 = vmatpush1.bf16.msra.mxu0 %v5471
        %5622 = vmatprep.subr.bf16.mxu0 %v5476
        %5623 = vmatpush1.bf16.msra.mxu0 %v5475
        %5624 = vmatprep.subr.bf16.mxu0 %v5480
        %5625 = vmatpush1.bf16.msra.mxu0 %v5479
        %5626 = vmatprep.subr.bf16.mxu0 %v5484
        %5627 = vmatpush1.bf16.msra.mxu0 %v5483
        %5628 = vmatprep.subr.bf16.mxu0 %v5488
        %5629 = vmatpush1.bf16.msra.mxu0 %v5487
        %5630 = vmatprep.subr.bf16.mxu0 %v5492
        %5631 = vmatpush1.bf16.msra.mxu0 %v5491
        %5632 = vmatprep.mubr.bf16.mxu0 %v1410
        %5633 = vmatmul.mubr.bf16.gmra.mrb[0].mxu0 %v1409
        %v5634 = vpop.f32.mrb[0].mxu0
        %v5635 = vadd.f32 0.0, %v5634
        %v5636 = vpop.f32.mrb[0].mxu0
        %v5637 = vadd.f32 0.0, %v5636
        %v5638 = vpop.f32.mrb[0].mxu0
        %v5639 = vadd.f32 0.0, %v5638
        %v5640 = vpop.f32.mrb[0].mxu0
        %v5641 = vadd.f32 0.0, %v5640
        %5642 = vdwg.mxu0
        %v5643 = vmax.f32 %v5164, %v5592
        %v5644 = vmax.f32 %v5165, %v5594
        %v5645 = vmax.f32 %v5166, %v5635
        %v5646 = vmax.f32 %v5167, %v5637
        %v5647 = vmax.f32 %v5168, %v5596
        %v5648 = vmax.f32 %v5169, %v5598
        %v5649 = vmax.f32 %v5170, %v5639
        %v5650 = vmax.f32 %v5171, %v5641
        %v5651 = vld [vmem:[%s2] sm:$0xff]
        %v5652 = vld [vmem:[%s2 + $0x8] sm:$0xff]
        %5654 = vset.pattern.permute.xlu0 0
        %5655 = vperm.xlu0 %5654, %v5651
        %v5656 = vpop.permute.xlu0 %5655
        %5659 = vset.pattern.permute.xlu0 0
        %5660 = vperm.xlu0 %5659, %v5652
        %v5661 = vpop.permute.xlu0 %5660
        %v5663 = vadd.f32 %v5643, %v5656
        %v5664 = vadd.f32 %v5644, %v5656
        %v5665 = vadd.f32 %v5645, %v5656
        %v5666 = vadd.f32 %v5646, %v5656
        %v5667 = vadd.f32 %v5647, %v5661
        %v5668 = vadd.f32 %v5648, %v5661
        %v5669 = vadd.f32 %v5649, %v5661
        %v5670 = vadd.f32 %v5650, %v5661
        %v5671 = vmax.f32 %v5663, 0.0
        %v5672 = vmax.f32 %v5664, 0.0
        %v5673 = vmax.f32 %v5665, 0.0
        %v5674 = vmax.f32 %v5666, 0.0
        %v5675 = vmax.f32 %v5667, 0.0
        %v5676 = vmax.f32 %v5668, 0.0
        %v5677 = vmax.f32 %v5669, 0.0
        %v5678 = vmax.f32 %v5670, 0.0
        %v5679 = vpack.c.bf16 %v5675, %v5671
        %v5680 = vpack.c.bf16 %v5676, %v5672
        %v5681 = vpack.c.bf16 %v5677, %v5673
        %v5682 = vpack.c.bf16 %v5678, %v5674
        %v5687 = vunpack.c.l.b16 %v5679
        %v5688 = vunpack.c.l.b16 %v5680
        %v5689 = vunpack.c.l.b16 %v5681
        %v5690 = vunpack.c.l.b16 %v5682
        %v5691 = vunpack.c.h.b16 %v5679
        %v5692 = vunpack.c.h.b16 %v5680
        %v5693 = vunpack.c.h.b16 %v5681
        %v5694 = vunpack.c.h.b16 %v5682
        %v5695 = vpack.c.b16 %v5688, %v5687
        %v5696 = vpack.c.b16 %v5690, %v5689
        %v5697 = vpack.c.b16 %v5692, %v5691
        %v5698 = vpack.c.b16 %v5694, %v5693
        %5703 = vst [vmem:[%s1334] sm:$0xff] %v5695
        %5704 = vst [vmem:[%s1334 + $0x8] sm:$0xff] %v5696
        %5705 = vst [vmem:[%s1334 + $0x10] sm:$0xff] %v5697
        %5706 = vst [vmem:[%s1334 + $0x18] sm:$0xff] %v5698
        %s5707 = sand.u32 %s90, 1
        %s5708 = sand.u32 %s90, 1
        %s5709 = smul.addr %s5708, 32
        %s5710 = scalar_lea.vmem [#allocation3], %s5709
        // Predicated region
        $region56: #{critic_forward.5} parent=50 // pred_check
          %p5711 = pneg %p100
        $region57: #{critic_forward.5} parent=50 // pred_check_branch
          %5713 = sbr.rel (%p5711) target = $region59
        $region58: #{critic_forward.5} parent=50 // pred_region
          %s5714 = smul.u32 4, %s14
          %s5715 = smul.addr %s5714, 4
          %s5716 = scalar_lea.vmem %s3, %s5715
          // Predicated region
          $region60: #{critic_forward.5} parent=58 // pred_check
            _
          $region61: #{critic_forward.5} parent=58 // pred_check_branch
            %5718 = sbr.rel (0) target = $region63
          $region62: #{critic_forward.5} parent=58 // pred_region
            // Predicated region
            $region64: #{critic_forward.5} parent=62 // pred_check
              _
            $region65: #{critic_forward.5} parent=62 // pred_check_branch
              %5720 = sbr.rel (0) target = $region67
            $region66: #{critic_forward.5} parent=62 // pred_region
              loop: start=0, step=1, limit=1
              $region68: #{critic_forward.5} parent=66 // loop_pre_header
                _
              $region69: #{critic_forward.5} parent=66 // loop_header
                %s5722 = sphi 0, %s5726
                %p5723 = scmp.ge.s32.totalorder %s5722, 1
                %s5727 = sphi %s5710, %s5710
                %s5728 = sphi %s5716, %s5716
              $region70: #{critic_forward.5} parent=66 // loop_header_branch
                %5725 = sbr.rel (%p5723) target = $region74
              $region71: #{critic_forward.5} parent=66 // loop_body
                %v5729 = vld [vmem:[%s5727] sm:$0xff]
                %5730 = vst [vmem:[%s5728] sm:$0xff] %v5729
                %v5731 = vld [vmem:[%s5727 + $0x8] sm:$0xff]
                %5732 = vst [vmem:[%s5728 + $0x8] sm:$0xff] %v5731
                %v5733 = vld [vmem:[%s5727 + $0x10] sm:$0xff]
                %5734 = vst [vmem:[%s5728 + $0x20] sm:$0xff] %v5733
                %v5735 = vld [vmem:[%s5727 + $0x18] sm:$0xff]
                %5736 = vst [vmem:[%s5728 + $0x28] sm:$0xff] %v5735
              $region72: #{critic_forward.5} parent=66 // loop_footer
                %s5726 = sadd.s32 1, %s5722
              $region73: #{critic_forward.5} parent=66 // loop_footer_branch
                %5721 = sbr.rel target = $region69
              $region74: #{critic_forward.5} parent=66 // loop_exit
                _
            $region67: #{critic_forward.5} parent=62 // pred_fallthru
              _
            // Predicated region
            $region75: #{critic_forward.5} parent=62 // pred_check
              _
            $region76: #{critic_forward.5} parent=62 // pred_check_branch
              %5738 = sbr.rel target = $region78
            $region77: #{critic_forward.5} parent=62 // pred_region
              _
            $region78: #{critic_forward.5} parent=62 // pred_fallthru
              _
          $region63: #{critic_forward.5} parent=58 // pred_fallthru
            _
          %5739 = vnop
        $region59: #{critic_forward.5} parent=50 // pred_fallthru
          _
      $region51: #{critic_forward.5} parent=5 // pred_fallthru
        _
      %p5740 = scmp.le.s32.totalorder 2, %s9
      // Predicated region
      $region79: #{critic_forward.5} parent=5 // pred_check
        %p5741 = pneg %p5740
      $region80: #{critic_forward.5} parent=5 // pred_check_branch
        %5743 = sbr.rel (%p5741) target = $region82
      $region81: #{critic_forward.5} parent=5 // pred_region
        %s5744 = ssub.s32 %s9, 2
        // Predicated region
        $region83: #{critic_forward.5} parent=81 // pred_check
          %p5745 = pneg %p106
        $region84: #{critic_forward.5} parent=81 // pred_check_branch
          %5747 = sbr.rel (%p5745) target = $region86
        $region85: #{critic_forward.5} parent=81 // pred_region
          %s5748 = sand.u32 %s91, 1
          %s5749 = sand.u32 %s91, 1
          %s5750 = smul.addr %s5749, 32
          %s5751 = scalar_lea.vmem [#allocation3], %s5750
        $region86: #{critic_forward.5} parent=81 // pred_fallthru
          _
      $region82: #{critic_forward.5} parent=5 // pred_fallthru
        _
    $region6: #{critic_forward.5} parent=1 // loop_footer
      %s13 = sadd.s32 1, %s9
    $region7: #{critic_forward.5} parent=1 // loop_footer_branch
      %8 = sbr.rel target = $region3
    $region8: #{critic_forward.5} parent=1 // loop_exit
      _

// kernel: critic_forward.6
$region0: #{critic_forward.6}
  #allocation0 [shape = 'u32[]', space=smem, size = 0x4, offset = 0x4, fixed_abs, tag = 'smem constant byte address 0x4 - core index']
  #allocation1 [shape = 'u32[144,128]{1,0:T(1,128)}', space=vmem, size = 0x12000, scoped, tag = 'internal scratch']
  %s0 = inlined_call_operand.vmem [shape: bf16[16,256,128], index: 0, kind: input, shape index: {}]
  %s1 = inlined_call_operand.vmem [shape: bf16[32,256], index: 1, kind: input, shape index: {}]
  %s2 = inlined_call_operand.vmem [shape: f32[32,1], index: 2, kind: input, shape index: {}]
  %s3 = inlined_call_operand.vmem [shape: bf16[32,128], index: 3, kind: output, shape index: {}]
  %s4 = sld [smem:[#allocation0]]
  $region22: #{critic_forward.6} parent=0
    _
  %s6 = ssub.s32 1, %s4
  %s7 = scalar_select 0, %s6, %s4
  // Predicated region
  $region2: #{critic_forward.6} parent=0 // pred_check
    _
  $region3: #{critic_forward.6} parent=0 // pred_check_branch
    %9 = sbr.rel (0) target = $region5
  $region4: #{critic_forward.6} parent=0 // pred_region
    _
  $region5: #{critic_forward.6} parent=0 // pred_fallthru
    _
  // Predicated region
  $region6: #{critic_forward.6} parent=0 // pred_check
    _
  $region7: #{critic_forward.6} parent=0 // pred_check_branch
    %11 = sbr.rel (0) target = $region9
  $region8: #{critic_forward.6} parent=0 // pred_region
    _
  $region9: #{critic_forward.6} parent=0 // pred_fallthru
    _
  // Predicated region
  $region10: #{critic_forward.6} parent=0 // pred_check
    _
  $region11: #{critic_forward.6} parent=0 // pred_check_branch
    %13 = sbr.rel (0) target = $region13
  $region12: #{critic_forward.6} parent=0 // pred_region
    _
  $region13: #{critic_forward.6} parent=0 // pred_fallthru
    _
  %v15 = vld [vmem:[%s1] sm:$0xff]
  %v16 = vld [vmem:[%s1 + $0x8] sm:$0xff]
  %v17 = vld [vmem:[%s1 + $0x10] sm:$0xff]
  %v18 = vld [vmem:[%s1 + $0x18] sm:$0xff]
  %v19 = vld [vmem:[%s0] sm:$0xf]
  %v20 = vld [vmem:[%s0 + $0x4] sm:$0xf]
  %v21 = vld [vmem:[%s0 + $0x8] sm:$0xf]
  %v22 = vld [vmem:[%s0 + $0xc] sm:$0xf]
  %v23 = vld [vmem:[%s0 + $0x10] sm:$0xf]
  %v24 = vld [vmem:[%s0 + $0x14] sm:$0xf]
  %v25 = vld [vmem:[%s0 + $0x18] sm:$0xf]
  %v26 = vld [vmem:[%s0 + $0x1c] sm:$0xf]
  %v27 = vld [vmem:[%s0 + $0x20] sm:$0xf]
  %v28 = vld [vmem:[%s0 + $0x24] sm:$0xf]
  %v29 = vld [vmem:[%s0 + $0x28] sm:$0xf]
  %v30 = vld [vmem:[%s0 + $0x2c] sm:$0xf]
  %v31 = vld [vmem:[%s0 + $0x30] sm:$0xf]
  %v32 = vld [vmem:[%s0 + $0x34] sm:$0xf]
  %v33 = vld [vmem:[%s0 + $0x38] sm:$0xf]
  %v34 = vld [vmem:[%s0 + $0x3c] sm:$0xf]
  %v35 = vld [vmem:[%s0 + $0x40] sm:$0xf]
  %v36 = vld [vmem:[%s0 + $0x44] sm:$0xf]
  %v37 = vld [vmem:[%s0 + $0x48] sm:$0xf]
  %v38 = vld [vmem:[%s0 + $0x4c] sm:$0xf]
  %v39 = vld [vmem:[%s0 + $0x50] sm:$0xf]
  %v40 = vld [vmem:[%s0 + $0x54] sm:$0xf]
  %v41 = vld [vmem:[%s0 + $0x58] sm:$0xf]
  %v42 = vld [vmem:[%s0 + $0x5c] sm:$0xf]
  %v43 = vld [vmem:[%s0 + $0x60] sm:$0xf]
  %v44 = vld [vmem:[%s0 + $0x64] sm:$0xf]
  %v45 = vld [vmem:[%s0 + $0x68] sm:$0xf]
  %v46 = vld [vmem:[%s0 + $0x6c] sm:$0xf]
  %v47 = vld [vmem:[%s0 + $0x70] sm:$0xf]
  %v48 = vld [vmem:[%s0 + $0x74] sm:$0xf]
  %v49 = vld [vmem:[%s0 + $0x78] sm:$0xf]
  %v50 = vld [vmem:[%s0 + $0x7c] sm:$0xf]
  %v55 = vunpack.c.l.b16 %v15
  %v56 = vunpack.c.h.b16 %v15
  %v57 = vunpack.c.l.b16 %v16
  %v58 = vunpack.c.h.b16 %v16
  %v59 = vunpack.c.l.b16 %v17
  %v60 = vunpack.c.h.b16 %v17
  %v61 = vunpack.c.l.b16 %v18
  %v62 = vunpack.c.h.b16 %v18
  %v63 = vpack.c.b16 %v57, %v55
  %v64 = vpack.c.b16 %v58, %v56
  %v65 = vpack.c.b16 %v61, %v59
  %v66 = vpack.c.b16 %v62, %v60
  %v103 = vunpack.c.l.b16 %v19
  %v104 = vunpack.c.l.b16 %v20
  %v105 = vunpack.c.l.b16 %v21
  %v106 = vunpack.c.l.b16 %v22
  %v107 = vunpack.c.l.b16 %v23
  %v108 = vunpack.c.l.b16 %v24
  %v109 = vunpack.c.l.b16 %v25
  %v110 = vunpack.c.l.b16 %v26
  %v111 = vunpack.c.l.b16 %v27
  %v112 = vunpack.c.l.b16 %v28
  %v113 = vunpack.c.l.b16 %v29
  %v114 = vunpack.c.l.b16 %v30
  %v115 = vunpack.c.l.b16 %v31
  %v116 = vunpack.c.l.b16 %v32
  %v117 = vunpack.c.l.b16 %v33
  %v118 = vunpack.c.l.b16 %v34
  %v119 = vunpack.c.l.b16 %v35
  %v120 = vunpack.c.l.b16 %v36
  %v121 = vunpack.c.l.b16 %v37
  %v122 = vunpack.c.l.b16 %v38
  %v123 = vunpack.c.l.b16 %v39
  %v124 = vunpack.c.l.b16 %v40
  %v125 = vunpack.c.l.b16 %v41
  %v126 = vunpack.c.l.b16 %v42
  %v127 = vunpack.c.l.b16 %v43
  %v128 = vunpack.c.l.b16 %v44
  %v129 = vunpack.c.l.b16 %v45
  %v130 = vunpack.c.l.b16 %v46
  %v131 = vunpack.c.l.b16 %v47
  %v132 = vunpack.c.l.b16 %v48
  %v133 = vunpack.c.l.b16 %v49
  %v134 = vunpack.c.l.b16 %v50
  %v135 = vpack.c.b16 %v104, %v103
  %v136 = vpack.c.b16 %v106, %v105
  %v137 = vpack.c.b16 %v108, %v107
  %v138 = vpack.c.b16 %v110, %v109
  %v139 = vpack.c.b16 %v112, %v111
  %v140 = vpack.c.b16 %v114, %v113
  %v141 = vpack.c.b16 %v116, %v115
  %v142 = vpack.c.b16 %v118, %v117
  %v143 = vpack.c.b16 %v120, %v119
  %v144 = vpack.c.b16 %v122, %v121
  %v145 = vpack.c.b16 %v124, %v123
  %v146 = vpack.c.b16 %v126, %v125
  %v147 = vpack.c.b16 %v128, %v127
  %v148 = vpack.c.b16 %v130, %v129
  %v149 = vpack.c.b16 %v132, %v131
  %v150 = vpack.c.b16 %v134, %v133
  %167 = vmatprep.subr.bf16.mxu0 0
  %168 = vmatpush1.bf16.msra.mxu0 %v135
  %169 = vmatprep.subr.bf16.mxu0 0
  %170 = vmatpush1.bf16.msra.mxu0 %v136
  %171 = vmatprep.subr.bf16.mxu0 0
  %172 = vmatpush1.bf16.msra.mxu0 %v137
  %173 = vmatprep.subr.bf16.mxu0 0
  %174 = vmatpush1.bf16.msra.mxu0 %v138
  %175 = vmatprep.subr.bf16.mxu0 0
  %176 = vmatpush1.bf16.msra.mxu0 %v139
  %177 = vmatprep.subr.bf16.mxu0 0
  %178 = vmatpush1.bf16.msra.mxu0 %v140
  %179 = vmatprep.subr.bf16.mxu0 0
  %180 = vmatpush1.bf16.msra.mxu0 %v141
  %181 = vmatprep.subr.bf16.mxu0 0
  %182 = vmatpush1.bf16.msra.mxu0 %v142
  %183 = vmatprep.subr.bf16.mxu0 0
  %184 = vmatpush1.bf16.msra.mxu0 %v143
  %185 = vmatprep.subr.bf16.mxu0 0
  %186 = vmatpush1.bf16.msra.mxu0 %v144
  %187 = vmatprep.subr.bf16.mxu0 0
  %188 = vmatpush1.bf16.msra.mxu0 %v145
  %189 = vmatprep.subr.bf16.mxu0 0
  %190 = vmatpush1.bf16.msra.mxu0 %v146
  %191 = vmatprep.subr.bf16.mxu0 0
  %192 = vmatpush1.bf16.msra.mxu0 %v147
  %193 = vmatprep.subr.bf16.mxu0 0
  %194 = vmatpush1.bf16.msra.mxu0 %v148
  %195 = vmatprep.subr.bf16.mxu0 0
  %196 = vmatpush1.bf16.msra.mxu0 %v149
  %197 = vmatprep.subr.bf16.mxu0 0
  %198 = vmatpush1.bf16.msra.mxu0 %v150
  %199 = vmatprep.mubr.bf16.mxu0 %v64
  %200 = vmatmul.mubr.bf16.gmra.mrb[0].mxu0 %v63
  %v201 = vpop.f32.mrb[0].mxu0
  %v202 = vadd.f32 0.0, %v201
  %v203 = vpop.f32.mrb[0].mxu0
  %v204 = vpop.f32.mrb[0].mxu0
  %v205 = vadd.f32 0.0, %v204
  %v206 = vpop.f32.mrb[0].mxu0
  %207 = vmatprep.mubr.bf16.mxu0 %v66
  %208 = vmatmul.mubr.bf16.gmra.mrb[0].mxu0 %v65
  %v209 = vpop.f32.mrb[0].mxu0
  %v210 = vadd.f32 0.0, %v209
  %v211 = vpop.f32.mrb[0].mxu0
  %v212 = vpop.f32.mrb[0].mxu0
  %v213 = vadd.f32 0.0, %v212
  %v214 = vpop.f32.mrb[0].mxu0
  %215 = vdwg.mxu0
  %s216 = scalar_lea.vmem %s0, 128
  %v217 = vld [vmem:[%s216] sm:$0xf]
  %v218 = vld [vmem:[%s216 + $0x4] sm:$0xf]
  %v219 = vld [vmem:[%s216 + $0x8] sm:$0xf]
  %v220 = vld [vmem:[%s216 + $0xc] sm:$0xf]
  %v221 = vld [vmem:[%s216 + $0x10] sm:$0xf]
  %v222 = vld [vmem:[%s216 + $0x14] sm:$0xf]
  %v223 = vld [vmem:[%s216 + $0x18] sm:$0xf]
  %v224 = vld [vmem:[%s216 + $0x1c] sm:$0xf]
  %v225 = vld [vmem:[%s216 + $0x20] sm:$0xf]
  %v226 = vld [vmem:[%s216 + $0x24] sm:$0xf]
  %v227 = vld [vmem:[%s216 + $0x28] sm:$0xf]
  %v228 = vld [vmem:[%s216 + $0x2c] sm:$0xf]
  %v229 = vld [vmem:[%s216 + $0x30] sm:$0xf]
  %v230 = vld [vmem:[%s216 + $0x34] sm:$0xf]
  %v231 = vld [vmem:[%s216 + $0x38] sm:$0xf]
  %v232 = vld [vmem:[%s216 + $0x3c] sm:$0xf]
  %v233 = vld [vmem:[%s216 + $0x40] sm:$0xf]
  %v234 = vld [vmem:[%s216 + $0x44] sm:$0xf]
  %v235 = vld [vmem:[%s216 + $0x48] sm:$0xf]
  %v236 = vld [vmem:[%s216 + $0x4c] sm:$0xf]
  %v237 = vld [vmem:[%s216 + $0x50] sm:$0xf]
  %v238 = vld [vmem:[%s216 + $0x54] sm:$0xf]
  %v239 = vld [vmem:[%s216 + $0x58] sm:$0xf]
  %v240 = vld [vmem:[%s216 + $0x5c] sm:$0xf]
  %v241 = vld [vmem:[%s216 + $0x60] sm:$0xf]
  %v242 = vld [vmem:[%s216 + $0x64] sm:$0xf]
  %v243 = vld [vmem:[%s216 + $0x68] sm:$0xf]
  %v244 = vld [vmem:[%s216 + $0x6c] sm:$0xf]
  %v245 = vld [vmem:[%s216 + $0x70] sm:$0xf]
  %v246 = vld [vmem:[%s216 + $0x74] sm:$0xf]
  %v247 = vld [vmem:[%s216 + $0x78] sm:$0xf]
  %v248 = vld [vmem:[%s216 + $0x7c] sm:$0xf]
  %v281 = vunpack.c.l.b16 %v217
  %v282 = vunpack.c.l.b16 %v218
  %v283 = vunpack.c.l.b16 %v219
  %v284 = vunpack.c.l.b16 %v220
  %v285 = vunpack.c.l.b16 %v221
  %v286 = vunpack.c.l.b16 %v222
  %v287 = vunpack.c.l.b16 %v223
  %v288 = vunpack.c.l.b16 %v224
  %v289 = vunpack.c.l.b16 %v225
  %v290 = vunpack.c.l.b16 %v226
  %v291 = vunpack.c.l.b16 %v227
  %v292 = vunpack.c.l.b16 %v228
  %v293 = vunpack.c.l.b16 %v229
  %v294 = vunpack.c.l.b16 %v230
  %v295 = vunpack.c.l.b16 %v231
  %v296 = vunpack.c.l.b16 %v232
  %v297 = vunpack.c.l.b16 %v233
  %v298 = vunpack.c.l.b16 %v234
  %v299 = vunpack.c.l.b16 %v235
  %v300 = vunpack.c.l.b16 %v236
  %v301 = vunpack.c.l.b16 %v237
  %v302 = vunpack.c.l.b16 %v238
  %v303 = vunpack.c.l.b16 %v239
  %v304 = vunpack.c.l.b16 %v240
  %v305 = vunpack.c.l.b16 %v241
  %v306 = vunpack.c.l.b16 %v242
  %v307 = vunpack.c.l.b16 %v243
  %v308 = vunpack.c.l.b16 %v244
  %v309 = vunpack.c.l.b16 %v245
  %v310 = vunpack.c.l.b16 %v246
  %v311 = vunpack.c.l.b16 %v247
  %v312 = vunpack.c.l.b16 %v248
  %v313 = vpack.c.b16 %v282, %v281
  %v314 = vpack.c.b16 %v284, %v283
  %v315 = vpack.c.b16 %v286, %v285
  %v316 = vpack.c.b16 %v288, %v287
  %v317 = vpack.c.b16 %v290, %v289
  %v318 = vpack.c.b16 %v292, %v291
  %v319 = vpack.c.b16 %v294, %v293
  %v320 = vpack.c.b16 %v296, %v295
  %v321 = vpack.c.b16 %v298, %v297
  %v322 = vpack.c.b16 %v300, %v299
  %v323 = vpack.c.b16 %v302, %v301
  %v324 = vpack.c.b16 %v304, %v303
  %v325 = vpack.c.b16 %v306, %v305
  %v326 = vpack.c.b16 %v308, %v307
  %v327 = vpack.c.b16 %v310, %v309
  %v328 = vpack.c.b16 %v312, %v311
  %345 = vmatprep.subr.bf16.mxu0 0
  %346 = vmatpush1.bf16.msra.mxu0 %v313
  %347 = vmatprep.subr.bf16.mxu0 0
  %348 = vmatpush1.bf16.msra.mxu0 %v314
  %349 = vmatprep.subr.bf16.mxu0 0
  %350 = vmatpush1.bf16.msra.mxu0 %v315
  %351 = vmatprep.subr.bf16.mxu0 0
  %352 = vmatpush1.bf16.msra.mxu0 %v316
  %353 = vmatprep.subr.bf16.mxu0 0
  %354 = vmatpush1.bf16.msra.mxu0 %v317
  %355 = vmatprep.subr.bf16.mxu0 0
  %356 = vmatpush1.bf16.msra.mxu0 %v318
  %357 = vmatprep.subr.bf16.mxu0 0
  %358 = vmatpush1.bf16.msra.mxu0 %v319
  %359 = vmatprep.subr.bf16.mxu0 0
  %360 = vmatpush1.bf16.msra.mxu0 %v320
  %361 = vmatprep.subr.bf16.mxu0 0
  %362 = vmatpush1.bf16.msra.mxu0 %v321
  %363 = vmatprep.subr.bf16.mxu0 0
  %364 = vmatpush1.bf16.msra.mxu0 %v322
  %365 = vmatprep.subr.bf16.mxu0 0
  %366 = vmatpush1.bf16.msra.mxu0 %v323
  %367 = vmatprep.subr.bf16.mxu0 0
  %368 = vmatpush1.bf16.msra.mxu0 %v324
  %369 = vmatprep.subr.bf16.mxu0 0
  %370 = vmatpush1.bf16.msra.mxu0 %v325
  %371 = vmatprep.subr.bf16.mxu0 0
  %372 = vmatpush1.bf16.msra.mxu0 %v326
  %373 = vmatprep.subr.bf16.mxu0 0
  %374 = vmatpush1.bf16.msra.mxu0 %v327
  %375 = vmatprep.subr.bf16.mxu0 0
  %376 = vmatpush1.bf16.msra.mxu0 %v328
  %377 = vmatprep.mubr.bf16.mxu0 %v64
  %378 = vmatmul.mubr.bf16.gmra.mrb[0].mxu0 %v63
  %v379 = vpop.f32.mrb[0].mxu0
  %v380 = vadd.f32 0.0, %v379
  %v381 = vpop.f32.mrb[0].mxu0
  %v382 = vpop.f32.mrb[0].mxu0
  %v383 = vadd.f32 0.0, %v382
  %v384 = vpop.f32.mrb[0].mxu0
  %385 = vmatprep.mubr.bf16.mxu0 %v66
  %386 = vmatmul.mubr.bf16.gmra.mrb[0].mxu0 %v65
  %v387 = vpop.f32.mrb[0].mxu0
  %v388 = vadd.f32 0.0, %v387
  %v389 = vpop.f32.mrb[0].mxu0
  %v390 = vpop.f32.mrb[0].mxu0
  %v391 = vadd.f32 0.0, %v390
  %v392 = vpop.f32.mrb[0].mxu0
  %393 = vdwg.mxu0
  %v394 = vmax.f32 %v202, %v380
  %v395 = vmax.f32 %v205, %v383
  %v396 = vmax.f32 %v210, %v388
  %v397 = vmax.f32 %v213, %v391
  %s398 = scalar_lea.vmem %s0, 256
  %v399 = vld [vmem:[%s398] sm:$0xf]
  %v400 = vld [vmem:[%s398 + $0x4] sm:$0xf]
  %v401 = vld [vmem:[%s398 + $0x8] sm:$0xf]
  %v402 = vld [vmem:[%s398 + $0xc] sm:$0xf]
  %v403 = vld [vmem:[%s398 + $0x10] sm:$0xf]
  %v404 = vld [vmem:[%s398 + $0x14] sm:$0xf]
  %v405 = vld [vmem:[%s398 + $0x18] sm:$0xf]
  %v406 = vld [vmem:[%s398 + $0x1c] sm:$0xf]
  %v407 = vld [vmem:[%s398 + $0x20] sm:$0xf]
  %v408 = vld [vmem:[%s398 + $0x24] sm:$0xf]
  %v409 = vld [vmem:[%s398 + $0x28] sm:$0xf]
  %v410 = vld [vmem:[%s398 + $0x2c] sm:$0xf]
  %v411 = vld [vmem:[%s398 + $0x30] sm:$0xf]
  %v412 = vld [vmem:[%s398 + $0x34] sm:$0xf]
  %v413 = vld [vmem:[%s398 + $0x38] sm:$0xf]
  %v414 = vld [vmem:[%s398 + $0x3c] sm:$0xf]
  %v415 = vld [vmem:[%s398 + $0x40] sm:$0xf]
  %v416 = vld [vmem:[%s398 + $0x44] sm:$0xf]
  %v417 = vld [vmem:[%s398 + $0x48] sm:$0xf]
  %v418 = vld [vmem:[%s398 + $0x4c] sm:$0xf]
  %v419 = vld [vmem:[%s398 + $0x50] sm:$0xf]
  %v420 = vld [vmem:[%s398 + $0x54] sm:$0xf]
  %v421 = vld [vmem:[%s398 + $0x58] sm:$0xf]
  %v422 = vld [vmem:[%s398 + $0x5c] sm:$0xf]
  %v423 = vld [vmem:[%s398 + $0x60] sm:$0xf]
  %v424 = vld [vmem:[%s398 + $0x64] sm:$0xf]
  %v425 = vld [vmem:[%s398 + $0x68] sm:$0xf]
  %v426 = vld [vmem:[%s398 + $0x6c] sm:$0xf]
  %v427 = vld [vmem:[%s398 + $0x70] sm:$0xf]
  %v428 = vld [vmem:[%s398 + $0x74] sm:$0xf]
  %v429 = vld [vmem:[%s398 + $0x78] sm:$0xf]
  %v430 = vld [vmem:[%s398 + $0x7c] sm:$0xf]
  %v463 = vunpack.c.l.b16 %v399
  %v464 = vunpack.c.l.b16 %v400
  %v465 = vunpack.c.l.b16 %v401
  %v466 = vunpack.c.l.b16 %v402
  %v467 = vunpack.c.l.b16 %v403
  %v468 = vunpack.c.l.b16 %v404
  %v469 = vunpack.c.l.b16 %v405
  %v470 = vunpack.c.l.b16 %v406
  %v471 = vunpack.c.l.b16 %v407
  %v472 = vunpack.c.l.b16 %v408
  %v473 = vunpack.c.l.b16 %v409
  %v474 = vunpack.c.l.b16 %v410
  %v475 = vunpack.c.l.b16 %v411
  %v476 = vunpack.c.l.b16 %v412
  %v477 = vunpack.c.l.b16 %v413
  %v478 = vunpack.c.l.b16 %v414
  %v479 = vunpack.c.l.b16 %v415
  %v480 = vunpack.c.l.b16 %v416
  %v481 = vunpack.c.l.b16 %v417
  %v482 = vunpack.c.l.b16 %v418
  %v483 = vunpack.c.l.b16 %v419
  %v484 = vunpack.c.l.b16 %v420
  %v485 = vunpack.c.l.b16 %v421
  %v486 = vunpack.c.l.b16 %v422
  %v487 = vunpack.c.l.b16 %v423
  %v488 = vunpack.c.l.b16 %v424
  %v489 = vunpack.c.l.b16 %v425
  %v490 = vunpack.c.l.b16 %v426
  %v491 = vunpack.c.l.b16 %v427
  %v492 = vunpack.c.l.b16 %v428
  %v493 = vunpack.c.l.b16 %v429
  %v494 = vunpack.c.l.b16 %v430
  %v495 = vpack.c.b16 %v464, %v463
  %v496 = vpack.c.b16 %v466, %v465
  %v497 = vpack.c.b16 %v468, %v467
  %v498 = vpack.c.b16 %v470, %v469
  %v499 = vpack.c.b16 %v472, %v471
  %v500 = vpack.c.b16 %v474, %v473
  %v501 = vpack.c.b16 %v476, %v475
  %v502 = vpack.c.b16 %v478, %v477
  %v503 = vpack.c.b16 %v480, %v479
  %v504 = vpack.c.b16 %v482, %v481
  %v505 = vpack.c.b16 %v484, %v483
  %v506 = vpack.c.b16 %v486, %v485
  %v507 = vpack.c.b16 %v488, %v487
  %v508 = vpack.c.b16 %v490, %v489
  %v509 = vpack.c.b16 %v492, %v491
  %v510 = vpack.c.b16 %v494, %v493
  %527 = vmatprep.subr.bf16.mxu0 0
  %528 = vmatpush1.bf16.msra.mxu0 %v495
  %529 = vmatprep.subr.bf16.mxu0 0
  %530 = vmatpush1.bf16.msra.mxu0 %v496
  %531 = vmatprep.subr.bf16.mxu0 0
  %532 = vmatpush1.bf16.msra.mxu0 %v497
  %533 = vmatprep.subr.bf16.mxu0 0
  %534 = vmatpush1.bf16.msra.mxu0 %v498
  %535 = vmatprep.subr.bf16.mxu0 0
  %536 = vmatpush1.bf16.msra.mxu0 %v499
  %537 = vmatprep.subr.bf16.mxu0 0
  %538 = vmatpush1.bf16.msra.mxu0 %v500
  %539 = vmatprep.subr.bf16.mxu0 0
  %540 = vmatpush1.bf16.msra.mxu0 %v501
  %541 = vmatprep.subr.bf16.mxu0 0
  %542 = vmatpush1.bf16.msra.mxu0 %v502
  %543 = vmatprep.subr.bf16.mxu0 0
  %544 = vmatpush1.bf16.msra.mxu0 %v503
  %545 = vmatprep.subr.bf16.mxu0 0
  %546 = vmatpush1.bf16.msra.mxu0 %v504
  %547 = vmatprep.subr.bf16.mxu0 0
  %548 = vmatpush1.bf16.msra.mxu0 %v505
  %549 = vmatprep.subr.bf16.mxu0 0
  %550 = vmatpush1.bf16.msra.mxu0 %v506
  %551 = vmatprep.subr.bf16.mxu0 0
  %552 = vmatpush1.bf16.msra.mxu0 %v507
  %553 = vmatprep.subr.bf16.mxu0 0
  %554 = vmatpush1.bf16.msra.mxu0 %v508
  %555 = vmatprep.subr.bf16.mxu0 0
  %556 = vmatpush1.bf16.msra.mxu0 %v509
  %557 = vmatprep.subr.bf16.mxu0 0
  %558 = vmatpush1.bf16.msra.mxu0 %v510
  %559 = vmatprep.mubr.bf16.mxu0 %v64
  %560 = vmatmul.mubr.bf16.gmra.mrb[0].mxu0 %v63
  %v561 = vpop.f32.mrb[0].mxu0
  %v562 = vadd.f32 0.0, %v561
  %v563 = vpop.f32.mrb[0].mxu0
  %v564 = vpop.f32.mrb[0].mxu0
  %v565 = vadd.f32 0.0, %v564
  %v566 = vpop.f32.mrb[0].mxu0
  %567 = vmatprep.mubr.bf16.mxu0 %v66
  %568 = vmatmul.mubr.bf16.gmra.mrb[0].mxu0 %v65
  %v569 = vpop.f32.mrb[0].mxu0
  %v570 = vadd.f32 0.0, %v569
  %v571 = vpop.f32.mrb[0].mxu0
  %v572 = vpop.f32.mrb[0].mxu0
  %v573 = vadd.f32 0.0, %v572
  %v574 = vpop.f32.mrb[0].mxu0
  %575 = vdwg.mxu0
  %v576 = vmax.f32 %v394, %v562
  %v577 = vmax.f32 %v395, %v565
  %v578 = vmax.f32 %v396, %v570
  %v579 = vmax.f32 %v397, %v573
  %s580 = scalar_lea.vmem %s0, 384
  %v581 = vld [vmem:[%s580] sm:$0xf]
  %v582 = vld [vmem:[%s580 + $0x4] sm:$0xf]
  %v583 = vld [vmem:[%s580 + $0x8] sm:$0xf]
  %v584 = vld [vmem:[%s580 + $0xc] sm:$0xf]
  %v585 = vld [vmem:[%s580 + $0x10] sm:$0xf]
  %v586 = vld [vmem:[%s580 + $0x14] sm:$0xf]
  %v587 = vld [vmem:[%s580 + $0x18] sm:$0xf]
  %v588 = vld [vmem:[%s580 + $0x1c] sm:$0xf]
  %v589 = vld [vmem:[%s580 + $0x20] sm:$0xf]
  %v590 = vld [vmem:[%s580 + $0x24] sm:$0xf]
  %v591 = vld [vmem:[%s580 + $0x28] sm:$0xf]
  %v592 = vld [vmem:[%s580 + $0x2c] sm:$0xf]
  %v593 = vld [vmem:[%s580 + $0x30] sm:$0xf]
  %v594 = vld [vmem:[%s580 + $0x34] sm:$0xf]
  %v595 = vld [vmem:[%s580 + $0x38] sm:$0xf]
  %v596 = vld [vmem:[%s580 + $0x3c] sm:$0xf]
  %v597 = vld [vmem:[%s580 + $0x40] sm:$0xf]
  %v598 = vld [vmem:[%s580 + $0x44] sm:$0xf]
  %v599 = vld [vmem:[%s580 + $0x48] sm:$0xf]
  %v600 = vld [vmem:[%s580 + $0x4c] sm:$0xf]
  %v601 = vld [vmem:[%s580 + $0x50] sm:$0xf]
  %v602 = vld [vmem:[%s580 + $0x54] sm:$0xf]
  %v603 = vld [vmem:[%s580 + $0x58] sm:$0xf]
  %v604 = vld [vmem:[%s580 + $0x5c] sm:$0xf]
  %v605 = vld [vmem:[%s580 + $0x60] sm:$0xf]
  %v606 = vld [vmem:[%s580 + $0x64] sm:$0xf]
  %v607 = vld [vmem:[%s580 + $0x68] sm:$0xf]
  %v608 = vld [vmem:[%s580 + $0x6c] sm:$0xf]
  %v609 = vld [vmem:[%s580 + $0x70] sm:$0xf]
  %v610 = vld [vmem:[%s580 + $0x74] sm:$0xf]
  %v611 = vld [vmem:[%s580 + $0x78] sm:$0xf]
  %v612 = vld [vmem:[%s580 + $0x7c] sm:$0xf]
  %v645 = vunpack.c.l.b16 %v581
  %v646 = vunpack.c.l.b16 %v582
  %v647 = vunpack.c.l.b16 %v583
  %v648 = vunpack.c.l.b16 %v584
  %v649 = vunpack.c.l.b16 %v585
  %v650 = vunpack.c.l.b16 %v586
  %v651 = vunpack.c.l.b16 %v587
  %v652 = vunpack.c.l.b16 %v588
  %v653 = vunpack.c.l.b16 %v589
  %v654 = vunpack.c.l.b16 %v590
  %v655 = vunpack.c.l.b16 %v591
  %v656 = vunpack.c.l.b16 %v592
  %v657 = vunpack.c.l.b16 %v593
  %v658 = vunpack.c.l.b16 %v594
  %v659 = vunpack.c.l.b16 %v595
  %v660 = vunpack.c.l.b16 %v596
  %v661 = vunpack.c.l.b16 %v597
  %v662 = vunpack.c.l.b16 %v598
  %v663 = vunpack.c.l.b16 %v599
  %v664 = vunpack.c.l.b16 %v600
  %v665 = vunpack.c.l.b16 %v601
  %v666 = vunpack.c.l.b16 %v602
  %v667 = vunpack.c.l.b16 %v603
  %v668 = vunpack.c.l.b16 %v604
  %v669 = vunpack.c.l.b16 %v605
  %v670 = vunpack.c.l.b16 %v606
  %v671 = vunpack.c.l.b16 %v607
  %v672 = vunpack.c.l.b16 %v608
  %v673 = vunpack.c.l.b16 %v609
  %v674 = vunpack.c.l.b16 %v610
  %v675 = vunpack.c.l.b16 %v611
  %v676 = vunpack.c.l.b16 %v612
  %v677 = vpack.c.b16 %v646, %v645
  %v678 = vpack.c.b16 %v648, %v647
  %v679 = vpack.c.b16 %v650, %v649
  %v680 = vpack.c.b16 %v652, %v651
  %v681 = vpack.c.b16 %v654, %v653
  %v682 = vpack.c.b16 %v656, %v655
  %v683 = vpack.c.b16 %v658, %v657
  %v684 = vpack.c.b16 %v660, %v659
  %v685 = vpack.c.b16 %v662, %v661
  %v686 = vpack.c.b16 %v664, %v663
  %v687 = vpack.c.b16 %v666, %v665
  %v688 = vpack.c.b16 %v668, %v667
  %v689 = vpack.c.b16 %v670, %v669
  %v690 = vpack.c.b16 %v672, %v671
  %v691 = vpack.c.b16 %v674, %v673
  %v692 = vpack.c.b16 %v676, %v675
  %709 = vmatprep.subr.bf16.mxu0 0
  %710 = vmatpush1.bf16.msra.mxu0 %v677
  %711 = vmatprep.subr.bf16.mxu0 0
  %712 = vmatpush1.bf16.msra.mxu0 %v678
  %713 = vmatprep.subr.bf16.mxu0 0
  %714 = vmatpush1.bf16.msra.mxu0 %v679
  %715 = vmatprep.subr.bf16.mxu0 0
  %716 = vmatpush1.bf16.msra.mxu0 %v680
  %717 = vmatprep.subr.bf16.mxu0 0
  %718 = vmatpush1.bf16.msra.mxu0 %v681
  %719 = vmatprep.subr.bf16.mxu0 0
  %720 = vmatpush1.bf16.msra.mxu0 %v682
  %721 = vmatprep.subr.bf16.mxu0 0
  %722 = vmatpush1.bf16.msra.mxu0 %v683
  %723 = vmatprep.subr.bf16.mxu0 0
  %724 = vmatpush1.bf16.msra.mxu0 %v684
  %725 = vmatprep.subr.bf16.mxu0 0
  %726 = vmatpush1.bf16.msra.mxu0 %v685
  %727 = vmatprep.subr.bf16.mxu0 0
  %728 = vmatpush1.bf16.msra.mxu0 %v686
  %729 = vmatprep.subr.bf16.mxu0 0
  %730 = vmatpush1.bf16.msra.mxu0 %v687
  %731 = vmatprep.subr.bf16.mxu0 0
  %732 = vmatpush1.bf16.msra.mxu0 %v688
  %733 = vmatprep.subr.bf16.mxu0 0
  %734 = vmatpush1.bf16.msra.mxu0 %v689
  %735 = vmatprep.subr.bf16.mxu0 0
  %736 = vmatpush1.bf16.msra.mxu0 %v690
  %737 = vmatprep.subr.bf16.mxu0 0
  %738 = vmatpush1.bf16.msra.mxu0 %v691
  %739 = vmatprep.subr.bf16.mxu0 0
  %740 = vmatpush1.bf16.msra.mxu0 %v692
  %741 = vmatprep.mubr.bf16.mxu0 %v64
  %742 = vmatmul.mubr.bf16.gmra.mrb[0].mxu0 %v63
  %v743 = vpop.f32.mrb[0].mxu0
  %v744 = vadd.f32 0.0, %v743
  %v745 = vpop.f32.mrb[0].mxu0
  %v746 = vpop.f32.mrb[0].mxu0
  %v747 = vadd.f32 0.0, %v746
  %v748 = vpop.f32.mrb[0].mxu0
  %749 = vmatprep.mubr.bf16.mxu0 %v66
  %750 = vmatmul.mubr.bf16.gmra.mrb[0].mxu0 %v65
  %v751 = vpop.f32.mrb[0].mxu0
  %v752 = vadd.f32 0.0, %v751
  %v753 = vpop.f32.mrb[0].mxu0
  %v754 = vpop.f32.mrb[0].mxu0
  %v755 = vadd.f32 0.0, %v754
  %v756 = vpop.f32.mrb[0].mxu0
  %757 = vdwg.mxu0
  %v758 = vmax.f32 %v576, %v744
  %v759 = vmax.f32 %v577, %v747
  %v760 = vmax.f32 %v578, %v752
  %v761 = vmax.f32 %v579, %v755
  %s762 = scalar_lea.vmem %s0, 512
  %v763 = vld [vmem:[%s762] sm:$0xf]
  %v764 = vld [vmem:[%s762 + $0x4] sm:$0xf]
  %v765 = vld [vmem:[%s762 + $0x8] sm:$0xf]
  %v766 = vld [vmem:[%s762 + $0xc] sm:$0xf]
  %v767 = vld [vmem:[%s762 + $0x10] sm:$0xf]
  %v768 = vld [vmem:[%s762 + $0x14] sm:$0xf]
  %v769 = vld [vmem:[%s762 + $0x18] sm:$0xf]
  %v770 = vld [vmem:[%s762 + $0x1c] sm:$0xf]
  %v771 = vld [vmem:[%s762 + $0x20] sm:$0xf]
  %v772 = vld [vmem:[%s762 + $0x24] sm:$0xf]
  %v773 = vld [vmem:[%s762 + $0x28] sm:$0xf]
  %v774 = vld [vmem:[%s762 + $0x2c] sm:$0xf]
  %v775 = vld [vmem:[%s762 + $0x30] sm:$0xf]
  %v776 = vld [vmem:[%s762 + $0x34] sm:$0xf]
  %v777 = vld [vmem:[%s762 + $0x38] sm:$0xf]
  %v778 = vld [vmem:[%s762 + $0x3c] sm:$0xf]
  %v779 = vld [vmem:[%s762 + $0x40] sm:$0xf]
  %v780 = vld [vmem:[%s762 + $0x44] sm:$0xf]
  %v781 = vld [vmem:[%s762 + $0x48] sm:$0xf]
  %v782 = vld [vmem:[%s762 + $0x4c] sm:$0xf]
  %v783 = vld [vmem:[%s762 + $0x50] sm:$0xf]
  %v784 = vld [vmem:[%s762 + $0x54] sm:$0xf]
  %v785 = vld [vmem:[%s762 + $0x58] sm:$0xf]
  %v786 = vld [vmem:[%s762 + $0x5c] sm:$0xf]
  %v787 = vld [vmem:[%s762 + $0x60] sm:$0xf]
  %v788 = vld [vmem:[%s762 + $0x64] sm:$0xf]
  %v789 = vld [vmem:[%s762 + $0x68] sm:$0xf]
  %v790 = vld [vmem:[%s762 + $0x6c] sm:$0xf]
  %v791 = vld [vmem:[%s762 + $0x70] sm:$0xf]
  %v792 = vld [vmem:[%s762 + $0x74] sm:$0xf]
  %v793 = vld [vmem:[%s762 + $0x78] sm:$0xf]
  %v794 = vld [vmem:[%s762 + $0x7c] sm:$0xf]
  %v827 = vunpack.c.l.b16 %v763
  %v828 = vunpack.c.l.b16 %v764
  %v829 = vunpack.c.l.b16 %v765
  %v830 = vunpack.c.l.b16 %v766
  %v831 = vunpack.c.l.b16 %v767
  %v832 = vunpack.c.l.b16 %v768
  %v833 = vunpack.c.l.b16 %v769
  %v834 = vunpack.c.l.b16 %v770
  %v835 = vunpack.c.l.b16 %v771
  %v836 = vunpack.c.l.b16 %v772
  %v837 = vunpack.c.l.b16 %v773
  %v838 = vunpack.c.l.b16 %v774
  %v839 = vunpack.c.l.b16 %v775
  %v840 = vunpack.c.l.b16 %v776
  %v841 = vunpack.c.l.b16 %v777
  %v842 = vunpack.c.l.b16 %v778
  %v843 = vunpack.c.l.b16 %v779
  %v844 = vunpack.c.l.b16 %v780
  %v845 = vunpack.c.l.b16 %v781
  %v846 = vunpack.c.l.b16 %v782
  %v847 = vunpack.c.l.b16 %v783
  %v848 = vunpack.c.l.b16 %v784
  %v849 = vunpack.c.l.b16 %v785
  %v850 = vunpack.c.l.b16 %v786
  %v851 = vunpack.c.l.b16 %v787
  %v852 = vunpack.c.l.b16 %v788
  %v853 = vunpack.c.l.b16 %v789
  %v854 = vunpack.c.l.b16 %v790
  %v855 = vunpack.c.l.b16 %v791
  %v856 = vunpack.c.l.b16 %v792
  %v857 = vunpack.c.l.b16 %v793
  %v858 = vunpack.c.l.b16 %v794
  %v859 = vpack.c.b16 %v828, %v827
  %v860 = vpack.c.b16 %v830, %v829
  %v861 = vpack.c.b16 %v832, %v831
  %v862 = vpack.c.b16 %v834, %v833
  %v863 = vpack.c.b16 %v836, %v835
  %v864 = vpack.c.b16 %v838, %v837
  %v865 = vpack.c.b16 %v840, %v839
  %v866 = vpack.c.b16 %v842, %v841
  %v867 = vpack.c.b16 %v844, %v843
  %v868 = vpack.c.b16 %v846, %v845
  %v869 = vpack.c.b16 %v848, %v847
  %v870 = vpack.c.b16 %v850, %v849
  %v871 = vpack.c.b16 %v852, %v851
  %v872 = vpack.c.b16 %v854, %v853
  %v873 = vpack.c.b16 %v856, %v855
  %v874 = vpack.c.b16 %v858, %v857
  %891 = vmatprep.subr.bf16.mxu0 0
  %892 = vmatpush1.bf16.msra.mxu0 %v859
  %893 = vmatprep.subr.bf16.mxu0 0
  %894 = vmatpush1.bf16.msra.mxu0 %v860
  %895 = vmatprep.subr.bf16.mxu0 0
  %896 = vmatpush1.bf16.msra.mxu0 %v861
  %897 = vmatprep.subr.bf16.mxu0 0
  %898 = vmatpush1.bf16.msra.mxu0 %v862
  %899 = vmatprep.subr.bf16.mxu0 0
  %900 = vmatpush1.bf16.msra.mxu0 %v863
  %901 = vmatprep.subr.bf16.mxu0 0
  %902 = vmatpush1.bf16.msra.mxu0 %v864
  %903 = vmatprep.subr.bf16.mxu0 0
  %904 = vmatpush1.bf16.msra.mxu0 %v865
  %905 = vmatprep.subr.bf16.mxu0 0
  %906 = vmatpush1.bf16.msra.mxu0 %v866
  %907 = vmatprep.subr.bf16.mxu0 0
  %908 = vmatpush1.bf16.msra.mxu0 %v867
  %909 = vmatprep.subr.bf16.mxu0 0
  %910 = vmatpush1.bf16.msra.mxu0 %v868
  %911 = vmatprep.subr.bf16.mxu0 0
  %912 = vmatpush1.bf16.msra.mxu0 %v869
  %913 = vmatprep.subr.bf16.mxu0 0
  %914 = vmatpush1.bf16.msra.mxu0 %v870
  %915 = vmatprep.subr.bf16.mxu0 0
  %916 = vmatpush1.bf16.msra.mxu0 %v871
  %917 = vmatprep.subr.bf16.mxu0 0
  %918 = vmatpush1.bf16.msra.mxu0 %v872
  %919 = vmatprep.subr.bf16.mxu0 0
  %920 = vmatpush1.bf16.msra.mxu0 %v873
  %921 = vmatprep.subr.bf16.mxu0 0
  %922 = vmatpush1.bf16.msra.mxu0 %v874
  %923 = vmatprep.mubr.bf16.mxu0 %v64
  %924 = vmatmul.mubr.bf16.gmra.mrb[0].mxu0 %v63
  %v925 = vpop.f32.mrb[0].mxu0
  %v926 = vadd.f32 0.0, %v925
  %v927 = vpop.f32.mrb[0].mxu0
  %v928 = vpop.f32.mrb[0].mxu0
  %v929 = vadd.f32 0.0, %v928
  %v930 = vpop.f32.mrb[0].mxu0
  %931 = vmatprep.mubr.bf16.mxu0 %v66
  %932 = vmatmul.mubr.bf16.gmra.mrb[0].mxu0 %v65
  %v933 = vpop.f32.mrb[0].mxu0
  %v934 = vadd.f32 0.0, %v933
  %v935 = vpop.f32.mrb[0].mxu0
  %v936 = vpop.f32.mrb[0].mxu0
  %v937 = vadd.f32 0.0, %v936
  %v938 = vpop.f32.mrb[0].mxu0
  %939 = vdwg.mxu0
  %v940 = vmax.f32 %v758, %v926
  %v941 = vmax.f32 %v759, %v929
  %v942 = vmax.f32 %v760, %v934
  %v943 = vmax.f32 %v761, %v937
  %s944 = scalar_lea.vmem %s0, 640
  %v945 = vld [vmem:[%s944] sm:$0xf]
  %v946 = vld [vmem:[%s944 + $0x4] sm:$0xf]
  %v947 = vld [vmem:[%s944 + $0x8] sm:$0xf]
  %v948 = vld [vmem:[%s944 + $0xc] sm:$0xf]
  %v949 = vld [vmem:[%s944 + $0x10] sm:$0xf]
  %v950 = vld [vmem:[%s944 + $0x14] sm:$0xf]
  %v951 = vld [vmem:[%s944 + $0x18] sm:$0xf]
  %v952 = vld [vmem:[%s944 + $0x1c] sm:$0xf]
  %v953 = vld [vmem:[%s944 + $0x20] sm:$0xf]
  %v954 = vld [vmem:[%s944 + $0x24] sm:$0xf]
  %v955 = vld [vmem:[%s944 + $0x28] sm:$0xf]
  %v956 = vld [vmem:[%s944 + $0x2c] sm:$0xf]
  %v957 = vld [vmem:[%s944 + $0x30] sm:$0xf]
  %v958 = vld [vmem:[%s944 + $0x34] sm:$0xf]
  %v959 = vld [vmem:[%s944 + $0x38] sm:$0xf]
  %v960 = vld [vmem:[%s944 + $0x3c] sm:$0xf]
  %v961 = vld [vmem:[%s944 + $0x40] sm:$0xf]
  %v962 = vld [vmem:[%s944 + $0x44] sm:$0xf]
  %v963 = vld [vmem:[%s944 + $0x48] sm:$0xf]
  %v964 = vld [vmem:[%s944 + $0x4c] sm:$0xf]
  %v965 = vld [vmem:[%s944 + $0x50] sm:$0xf]
  %v966 = vld [vmem:[%s944 + $0x54] sm:$0xf]
  %v967 = vld [vmem:[%s944 + $0x58] sm:$0xf]
  %v968 = vld [vmem:[%s944 + $0x5c] sm:$0xf]
  %v969 = vld [vmem:[%s944 + $0x60] sm:$0xf]
  %v970 = vld [vmem:[%s944 + $0x64] sm:$0xf]
  %v971 = vld [vmem:[%s944 + $0x68] sm:$0xf]
  %v972 = vld [vmem:[%s944 + $0x6c] sm:$0xf]
  %v973 = vld [vmem:[%s944 + $0x70] sm:$0xf]
  %v974 = vld [vmem:[%s944 + $0x74] sm:$0xf]
  %v975 = vld [vmem:[%s944 + $0x78] sm:$0xf]
  %v976 = vld [vmem:[%s944 + $0x7c] sm:$0xf]
  %v1009 = vunpack.c.l.b16 %v945
  %v1010 = vunpack.c.l.b16 %v946
  %v1011 = vunpack.c.l.b16 %v947
  %v1012 = vunpack.c.l.b16 %v948
  %v1013 = vunpack.c.l.b16 %v949
  %v1014 = vunpack.c.l.b16 %v950
  %v1015 = vunpack.c.l.b16 %v951
  %v1016 = vunpack.c.l.b16 %v952
  %v1017 = vunpack.c.l.b16 %v953
  %v1018 = vunpack.c.l.b16 %v954
  %v1019 = vunpack.c.l.b16 %v955
  %v1020 = vunpack.c.l.b16 %v956
  %v1021 = vunpack.c.l.b16 %v957
  %v1022 = vunpack.c.l.b16 %v958
  %v1023 = vunpack.c.l.b16 %v959
  %v1024 = vunpack.c.l.b16 %v960
  %v1025 = vunpack.c.l.b16 %v961
  %v1026 = vunpack.c.l.b16 %v962
  %v1027 = vunpack.c.l.b16 %v963
  %v1028 = vunpack.c.l.b16 %v964
  %v1029 = vunpack.c.l.b16 %v965
  %v1030 = vunpack.c.l.b16 %v966
  %v1031 = vunpack.c.l.b16 %v967
  %v1032 = vunpack.c.l.b16 %v968
  %v1033 = vunpack.c.l.b16 %v969
  %v1034 = vunpack.c.l.b16 %v970
  %v1035 = vunpack.c.l.b16 %v971
  %v1036 = vunpack.c.l.b16 %v972
  %v1037 = vunpack.c.l.b16 %v973
  %v1038 = vunpack.c.l.b16 %v974
  %v1039 = vunpack.c.l.b16 %v975
  %v1040 = vunpack.c.l.b16 %v976
  %v1041 = vpack.c.b16 %v1010, %v1009
  %v1042 = vpack.c.b16 %v1012, %v1011
  %v1043 = vpack.c.b16 %v1014, %v1013
  %v1044 = vpack.c.b16 %v1016, %v1015
  %v1045 = vpack.c.b16 %v1018, %v1017
  %v1046 = vpack.c.b16 %v1020, %v1019
  %v1047 = vpack.c.b16 %v1022, %v1021
  %v1048 = vpack.c.b16 %v1024, %v1023
  %v1049 = vpack.c.b16 %v1026, %v1025
  %v1050 = vpack.c.b16 %v1028, %v1027
  %v1051 = vpack.c.b16 %v1030, %v1029
  %v1052 = vpack.c.b16 %v1032, %v1031
  %v1053 = vpack.c.b16 %v1034, %v1033
  %v1054 = vpack.c.b16 %v1036, %v1035
  %v1055 = vpack.c.b16 %v1038, %v1037
  %v1056 = vpack.c.b16 %v1040, %v1039
  %1073 = vmatprep.subr.bf16.mxu0 0
  %1074 = vmatpush1.bf16.msra.mxu0 %v1041
  %1075 = vmatprep.subr.bf16.mxu0 0
  %1076 = vmatpush1.bf16.msra.mxu0 %v1042
  %1077 = vmatprep.subr.bf16.mxu0 0
  %1078 = vmatpush1.bf16.msra.mxu0 %v1043
  %1079 = vmatprep.subr.bf16.mxu0 0
  %1080 = vmatpush1.bf16.msra.mxu0 %v1044
  %1081 = vmatprep.subr.bf16.mxu0 0
  %1082 = vmatpush1.bf16.msra.mxu0 %v1045
  %1083 = vmatprep.subr.bf16.mxu0 0
  %1084 = vmatpush1.bf16.msra.mxu0 %v1046
  %1085 = vmatprep.subr.bf16.mxu0 0
  %1086 = vmatpush1.bf16.msra.mxu0 %v1047
  %1087 = vmatprep.subr.bf16.mxu0 0
  %1088 = vmatpush1.bf16.msra.mxu0 %v1048
  %1089 = vmatprep.subr.bf16.mxu0 0
  %1090 = vmatpush1.bf16.msra.mxu0 %v1049
  %1091 = vmatprep.subr.bf16.mxu0 0
  %1092 = vmatpush1.bf16.msra.mxu0 %v1050
  %1093 = vmatprep.subr.bf16.mxu0 0
  %1094 = vmatpush1.bf16.msra.mxu0 %v1051
  %1095 = vmatprep.subr.bf16.mxu0 0
  %1096 = vmatpush1.bf16.msra.mxu0 %v1052
  %1097 = vmatprep.subr.bf16.mxu0 0
  %1098 = vmatpush1.bf16.msra.mxu0 %v1053
  %1099 = vmatprep.subr.bf16.mxu0 0
  %1100 = vmatpush1.bf16.msra.mxu0 %v1054
  %1101 = vmatprep.subr.bf16.mxu0 0
  %1102 = vmatpush1.bf16.msra.mxu0 %v1055
  %1103 = vmatprep.subr.bf16.mxu0 0
  %1104 = vmatpush1.bf16.msra.mxu0 %v1056
  %1105 = vmatprep.mubr.bf16.mxu0 %v64
  %1106 = vmatmul.mubr.bf16.gmra.mrb[0].mxu0 %v63
  %v1107 = vpop.f32.mrb[0].mxu0
  %v1108 = vadd.f32 0.0, %v1107
  %v1109 = vpop.f32.mrb[0].mxu0
  %v1110 = vpop.f32.mrb[0].mxu0
  %v1111 = vadd.f32 0.0, %v1110
  %v1112 = vpop.f32.mrb[0].mxu0
  %1113 = vmatprep.mubr.bf16.mxu0 %v66
  %1114 = vmatmul.mubr.bf16.gmra.mrb[0].mxu0 %v65
  %v1115 = vpop.f32.mrb[0].mxu0
  %v1116 = vadd.f32 0.0, %v1115
  %v1117 = vpop.f32.mrb[0].mxu0
  %v1118 = vpop.f32.mrb[0].mxu0
  %v1119 = vadd.f32 0.0, %v1118
  %v1120 = vpop.f32.mrb[0].mxu0
  %1121 = vdwg.mxu0
  %v1122 = vmax.f32 %v940, %v1108
  %v1123 = vmax.f32 %v941, %v1111
  %v1124 = vmax.f32 %v942, %v1116
  %v1125 = vmax.f32 %v943, %v1119
  %s1126 = scalar_lea.vmem %s0, 768
  %v1127 = vld [vmem:[%s1126] sm:$0xf]
  %v1128 = vld [vmem:[%s1126 + $0x4] sm:$0xf]
  %v1129 = vld [vmem:[%s1126 + $0x8] sm:$0xf]
  %v1130 = vld [vmem:[%s1126 + $0xc] sm:$0xf]
  %v1131 = vld [vmem:[%s1126 + $0x10] sm:$0xf]
  %v1132 = vld [vmem:[%s1126 + $0x14] sm:$0xf]
  %v1133 = vld [vmem:[%s1126 + $0x18] sm:$0xf]
  %v1134 = vld [vmem:[%s1126 + $0x1c] sm:$0xf]
  %v1135 = vld [vmem:[%s1126 + $0x20] sm:$0xf]
  %v1136 = vld [vmem:[%s1126 + $0x24] sm:$0xf]
  %v1137 = vld [vmem:[%s1126 + $0x28] sm:$0xf]
  %v1138 = vld [vmem:[%s1126 + $0x2c] sm:$0xf]
  %v1139 = vld [vmem:[%s1126 + $0x30] sm:$0xf]
  %v1140 = vld [vmem:[%s1126 + $0x34] sm:$0xf]
  %v1141 = vld [vmem:[%s1126 + $0x38] sm:$0xf]
  %v1142 = vld [vmem:[%s1126 + $0x3c] sm:$0xf]
  %v1143 = vld [vmem:[%s1126 + $0x40] sm:$0xf]
  %v1144 = vld [vmem:[%s1126 + $0x44] sm:$0xf]
  %v1145 = vld [vmem:[%s1126 + $0x48] sm:$0xf]
  %v1146 = vld [vmem:[%s1126 + $0x4c] sm:$0xf]
  %v1147 = vld [vmem:[%s1126 + $0x50] sm:$0xf]
  %v1148 = vld [vmem:[%s1126 + $0x54] sm:$0xf]
  %v1149 = vld [vmem:[%s1126 + $0x58] sm:$0xf]
  %v1150 = vld [vmem:[%s1126 + $0x5c] sm:$0xf]
  %v1151 = vld [vmem:[%s1126 + $0x60] sm:$0xf]
  %v1152 = vld [vmem:[%s1126 + $0x64] sm:$0xf]
  %v1153 = vld [vmem:[%s1126 + $0x68] sm:$0xf]
  %v1154 = vld [vmem:[%s1126 + $0x6c] sm:$0xf]
  %v1155 = vld [vmem:[%s1126 + $0x70] sm:$0xf]
  %v1156 = vld [vmem:[%s1126 + $0x74] sm:$0xf]
  %v1157 = vld [vmem:[%s1126 + $0x78] sm:$0xf]
  %v1158 = vld [vmem:[%s1126 + $0x7c] sm:$0xf]
  %v1191 = vunpack.c.l.b16 %v1127
  %v1192 = vunpack.c.l.b16 %v1128
  %v1193 = vunpack.c.l.b16 %v1129
  %v1194 = vunpack.c.l.b16 %v1130
  %v1195 = vunpack.c.l.b16 %v1131
  %v1196 = vunpack.c.l.b16 %v1132
  %v1197 = vunpack.c.l.b16 %v1133
  %v1198 = vunpack.c.l.b16 %v1134
  %v1199 = vunpack.c.l.b16 %v1135
  %v1200 = vunpack.c.l.b16 %v1136
  %v1201 = vunpack.c.l.b16 %v1137
  %v1202 = vunpack.c.l.b16 %v1138
  %v1203 = vunpack.c.l.b16 %v1139
  %v1204 = vunpack.c.l.b16 %v1140
  %v1205 = vunpack.c.l.b16 %v1141
  %v1206 = vunpack.c.l.b16 %v1142
  %v1207 = vunpack.c.l.b16 %v1143
  %v1208 = vunpack.c.l.b16 %v1144
  %v1209 = vunpack.c.l.b16 %v1145
  %v1210 = vunpack.c.l.b16 %v1146
  %v1211 = vunpack.c.l.b16 %v1147
  %v1212 = vunpack.c.l.b16 %v1148
  %v1213 = vunpack.c.l.b16 %v1149
  %v1214 = vunpack.c.l.b16 %v1150
  %v1215 = vunpack.c.l.b16 %v1151
  %v1216 = vunpack.c.l.b16 %v1152
  %v1217 = vunpack.c.l.b16 %v1153
  %v1218 = vunpack.c.l.b16 %v1154
  %v1219 = vunpack.c.l.b16 %v1155
  %v1220 = vunpack.c.l.b16 %v1156
  %v1221 = vunpack.c.l.b16 %v1157
  %v1222 = vunpack.c.l.b16 %v1158
  %v1223 = vpack.c.b16 %v1192, %v1191
  %v1224 = vpack.c.b16 %v1194, %v1193
  %v1225 = vpack.c.b16 %v1196, %v1195
  %v1226 = vpack.c.b16 %v1198, %v1197
  %v1227 = vpack.c.b16 %v1200, %v1199
  %v1228 = vpack.c.b16 %v1202, %v1201
  %v1229 = vpack.c.b16 %v1204, %v1203
  %v1230 = vpack.c.b16 %v1206, %v1205
  %v1231 = vpack.c.b16 %v1208, %v1207
  %v1232 = vpack.c.b16 %v1210, %v1209
  %v1233 = vpack.c.b16 %v1212, %v1211
  %v1234 = vpack.c.b16 %v1214, %v1213
  %v1235 = vpack.c.b16 %v1216, %v1215
  %v1236 = vpack.c.b16 %v1218, %v1217
  %v1237 = vpack.c.b16 %v1220, %v1219
  %v1238 = vpack.c.b16 %v1222, %v1221
  %1255 = vmatprep.subr.bf16.mxu0 0
  %1256 = vmatpush1.bf16.msra.mxu0 %v1223
  %1257 = vmatprep.subr.bf16.mxu0 0
  %1258 = vmatpush1.bf16.msra.mxu0 %v1224
  %1259 = vmatprep.subr.bf16.mxu0 0
  %1260 = vmatpush1.bf16.msra.mxu0 %v1225
  %1261 = vmatprep.subr.bf16.mxu0 0
  %1262 = vmatpush1.bf16.msra.mxu0 %v1226
  %1263 = vmatprep.subr.bf16.mxu0 0
  %1264 = vmatpush1.bf16.msra.mxu0 %v1227
  %1265 = vmatprep.subr.bf16.mxu0 0
  %1266 = vmatpush1.bf16.msra.mxu0 %v1228
  %1267 = vmatprep.subr.bf16.mxu0 0
  %1268 = vmatpush1.bf16.msra.mxu0 %v1229
  %1269 = vmatprep.subr.bf16.mxu0 0
  %1270 = vmatpush1.bf16.msra.mxu0 %v1230
  %1271 = vmatprep.subr.bf16.mxu0 0
  %1272 = vmatpush1.bf16.msra.mxu0 %v1231
  %1273 = vmatprep.subr.bf16.mxu0 0
  %1274 = vmatpush1.bf16.msra.mxu0 %v1232
  %1275 = vmatprep.subr.bf16.mxu0 0
  %1276 = vmatpush1.bf16.msra.mxu0 %v1233
  %1277 = vmatprep.subr.bf16.mxu0 0
  %1278 = vmatpush1.bf16.msra.mxu0 %v1234
  %1279 = vmatprep.subr.bf16.mxu0 0
  %1280 = vmatpush1.bf16.msra.mxu0 %v1235
  %1281 = vmatprep.subr.bf16.mxu0 0
  %1282 = vmatpush1.bf16.msra.mxu0 %v1236
  %1283 = vmatprep.subr.bf16.mxu0 0
  %1284 = vmatpush1.bf16.msra.mxu0 %v1237
  %1285 = vmatprep.subr.bf16.mxu0 0
  %1286 = vmatpush1.bf16.msra.mxu0 %v1238
  %1287 = vmatprep.mubr.bf16.mxu0 %v64
  %1288 = vmatmul.mubr.bf16.gmra.mrb[0].mxu0 %v63
  %v1289 = vpop.f32.mrb[0].mxu0
  %v1290 = vadd.f32 0.0, %v1289
  %v1291 = vpop.f32.mrb[0].mxu0
  %v1292 = vpop.f32.mrb[0].mxu0
  %v1293 = vadd.f32 0.0, %v1292
  %v1294 = vpop.f32.mrb[0].mxu0
  %1295 = vmatprep.mubr.bf16.mxu0 %v66
  %1296 = vmatmul.mubr.bf16.gmra.mrb[0].mxu0 %v65
  %v1297 = vpop.f32.mrb[0].mxu0
  %v1298 = vadd.f32 0.0, %v1297
  %v1299 = vpop.f32.mrb[0].mxu0
  %v1300 = vpop.f32.mrb[0].mxu0
  %v1301 = vadd.f32 0.0, %v1300
  %v1302 = vpop.f32.mrb[0].mxu0
  %1303 = vdwg.mxu0
  %v1304 = vmax.f32 %v1122, %v1290
  %v1305 = vmax.f32 %v1123, %v1293
  %v1306 = vmax.f32 %v1124, %v1298
  %v1307 = vmax.f32 %v1125, %v1301
  %s1308 = scalar_lea.vmem %s0, 896
  %v1309 = vld [vmem:[%s1308] sm:$0xf]
  %v1310 = vld [vmem:[%s1308 + $0x4] sm:$0xf]
  %v1311 = vld [vmem:[%s1308 + $0x8] sm:$0xf]
  %v1312 = vld [vmem:[%s1308 + $0xc] sm:$0xf]
  %v1313 = vld [vmem:[%s1308 + $0x10] sm:$0xf]
  %v1314 = vld [vmem:[%s1308 + $0x14] sm:$0xf]
  %v1315 = vld [vmem:[%s1308 + $0x18] sm:$0xf]
  %v1316 = vld [vmem:[%s1308 + $0x1c] sm:$0xf]
  %v1317 = vld [vmem:[%s1308 + $0x20] sm:$0xf]
  %v1318 = vld [vmem:[%s1308 + $0x24] sm:$0xf]
  %v1319 = vld [vmem:[%s1308 + $0x28] sm:$0xf]
  %v1320 = vld [vmem:[%s1308 + $0x2c] sm:$0xf]
  %v1321 = vld [vmem:[%s1308 + $0x30] sm:$0xf]
  %v1322 = vld [vmem:[%s1308 + $0x34] sm:$0xf]
  %v1323 = vld [vmem:[%s1308 + $0x38] sm:$0xf]
  %v1324 = vld [vmem:[%s1308 + $0x3c] sm:$0xf]
  %v1325 = vld [vmem:[%s1308 + $0x40] sm:$0xf]
  %v1326 = vld [vmem:[%s1308 + $0x44] sm:$0xf]
  %v1327 = vld [vmem:[%s1308 + $0x48] sm:$0xf]
  %v1328 = vld [vmem:[%s1308 + $0x4c] sm:$0xf]
  %v1329 = vld [vmem:[%s1308 + $0x50] sm:$0xf]
  %v1330 = vld [vmem:[%s1308 + $0x54] sm:$0xf]
  %v1331 = vld [vmem:[%s1308 + $0x58] sm:$0xf]
  %v1332 = vld [vmem:[%s1308 + $0x5c] sm:$0xf]
  %v1333 = vld [vmem:[%s1308 + $0x60] sm:$0xf]
  %v1334 = vld [vmem:[%s1308 + $0x64] sm:$0xf]
  %v1335 = vld [vmem:[%s1308 + $0x68] sm:$0xf]
  %v1336 = vld [vmem:[%s1308 + $0x6c] sm:$0xf]
  %v1337 = vld [vmem:[%s1308 + $0x70] sm:$0xf]
  %v1338 = vld [vmem:[%s1308 + $0x74] sm:$0xf]
  %v1339 = vld [vmem:[%s1308 + $0x78] sm:$0xf]
  %v1340 = vld [vmem:[%s1308 + $0x7c] sm:$0xf]
  %v1373 = vunpack.c.l.b16 %v1309
  %v1374 = vunpack.c.l.b16 %v1310
  %v1375 = vunpack.c.l.b16 %v1311
  %v1376 = vunpack.c.l.b16 %v1312
  %v1377 = vunpack.c.l.b16 %v1313
  %v1378 = vunpack.c.l.b16 %v1314
  %v1379 = vunpack.c.l.b16 %v1315
  %v1380 = vunpack.c.l.b16 %v1316
  %v1381 = vunpack.c.l.b16 %v1317
  %v1382 = vunpack.c.l.b16 %v1318
  %v1383 = vunpack.c.l.b16 %v1319
  %v1384 = vunpack.c.l.b16 %v1320
  %v1385 = vunpack.c.l.b16 %v1321
  %v1386 = vunpack.c.l.b16 %v1322
  %v1387 = vunpack.c.l.b16 %v1323
  %v1388 = vunpack.c.l.b16 %v1324
  %v1389 = vunpack.c.l.b16 %v1325
  %v1390 = vunpack.c.l.b16 %v1326
  %v1391 = vunpack.c.l.b16 %v1327
  %v1392 = vunpack.c.l.b16 %v1328
  %v1393 = vunpack.c.l.b16 %v1329
  %v1394 = vunpack.c.l.b16 %v1330
  %v1395 = vunpack.c.l.b16 %v1331
  %v1396 = vunpack.c.l.b16 %v1332
  %v1397 = vunpack.c.l.b16 %v1333
  %v1398 = vunpack.c.l.b16 %v1334
  %v1399 = vunpack.c.l.b16 %v1335
  %v1400 = vunpack.c.l.b16 %v1336
  %v1401 = vunpack.c.l.b16 %v1337
  %v1402 = vunpack.c.l.b16 %v1338
  %v1403 = vunpack.c.l.b16 %v1339
  %v1404 = vunpack.c.l.b16 %v1340
  %v1405 = vpack.c.b16 %v1374, %v1373
  %v1406 = vpack.c.b16 %v1376, %v1375
  %v1407 = vpack.c.b16 %v1378, %v1377
  %v1408 = vpack.c.b16 %v1380, %v1379
  %v1409 = vpack.c.b16 %v1382, %v1381
  %v1410 = vpack.c.b16 %v1384, %v1383
  %v1411 = vpack.c.b16 %v1386, %v1385
  %v1412 = vpack.c.b16 %v1388, %v1387
  %v1413 = vpack.c.b16 %v1390, %v1389
  %v1414 = vpack.c.b16 %v1392, %v1391
  %v1415 = vpack.c.b16 %v1394, %v1393
  %v1416 = vpack.c.b16 %v1396, %v1395
  %v1417 = vpack.c.b16 %v1398, %v1397
  %v1418 = vpack.c.b16 %v1400, %v1399
  %v1419 = vpack.c.b16 %v1402, %v1401
  %v1420 = vpack.c.b16 %v1404, %v1403
  %1437 = vmatprep.subr.bf16.mxu0 0
  %1438 = vmatpush1.bf16.msra.mxu0 %v1405
  %1439 = vmatprep.subr.bf16.mxu0 0
  %1440 = vmatpush1.bf16.msra.mxu0 %v1406
  %1441 = vmatprep.subr.bf16.mxu0 0
  %1442 = vmatpush1.bf16.msra.mxu0 %v1407
  %1443 = vmatprep.subr.bf16.mxu0 0
  %1444 = vmatpush1.bf16.msra.mxu0 %v1408
  %1445 = vmatprep.subr.bf16.mxu0 0
  %1446 = vmatpush1.bf16.msra.mxu0 %v1409
  %1447 = vmatprep.subr.bf16.mxu0 0
  %1448 = vmatpush1.bf16.msra.mxu0 %v1410
  %1449 = vmatprep.subr.bf16.mxu0 0
  %1450 = vmatpush1.bf16.msra.mxu0 %v1411
  %1451 = vmatprep.subr.bf16.mxu0 0
  %1452 = vmatpush1.bf16.msra.mxu0 %v1412
  %1453 = vmatprep.subr.bf16.mxu0 0
  %1454 = vmatpush1.bf16.msra.mxu0 %v1413
  %1455 = vmatprep.subr.bf16.mxu0 0
  %1456 = vmatpush1.bf16.msra.mxu0 %v1414
  %1457 = vmatprep.subr.bf16.mxu0 0
  %1458 = vmatpush1.bf16.msra.mxu0 %v1415
  %1459 = vmatprep.subr.bf16.mxu0 0
  %1460 = vmatpush1.bf16.msra.mxu0 %v1416
  %1461 = vmatprep.subr.bf16.mxu0 0
  %1462 = vmatpush1.bf16.msra.mxu0 %v1417
  %1463 = vmatprep.subr.bf16.mxu0 0
  %1464 = vmatpush1.bf16.msra.mxu0 %v1418
  %1465 = vmatprep.subr.bf16.mxu0 0
  %1466 = vmatpush1.bf16.msra.mxu0 %v1419
  %1467 = vmatprep.subr.bf16.mxu0 0
  %1468 = vmatpush1.bf16.msra.mxu0 %v1420
  %1469 = vmatprep.mubr.bf16.mxu0 %v64
  %1470 = vmatmul.mubr.bf16.gmra.mrb[0].mxu0 %v63
  %v1471 = vpop.f32.mrb[0].mxu0
  %v1472 = vadd.f32 0.0, %v1471
  %v1473 = vpop.f32.mrb[0].mxu0
  %v1474 = vpop.f32.mrb[0].mxu0
  %v1475 = vadd.f32 0.0, %v1474
  %v1476 = vpop.f32.mrb[0].mxu0
  %1477 = vmatprep.mubr.bf16.mxu0 %v66
  %1478 = vmatmul.mubr.bf16.gmra.mrb[0].mxu0 %v65
  %v1479 = vpop.f32.mrb[0].mxu0
  %v1480 = vadd.f32 0.0, %v1479
  %v1481 = vpop.f32.mrb[0].mxu0
  %v1482 = vpop.f32.mrb[0].mxu0
  %v1483 = vadd.f32 0.0, %v1482
  %v1484 = vpop.f32.mrb[0].mxu0
  %1485 = vdwg.mxu0
  %v1486 = vmax.f32 %v1304, %v1472
  %v1487 = vmax.f32 %v1305, %v1475
  %v1488 = vmax.f32 %v1306, %v1480
  %v1489 = vmax.f32 %v1307, %v1483
  %s1490 = scalar_lea.vmem %s0, 1024
  %v1491 = vld [vmem:[%s1490] sm:$0xf]
  %v1492 = vld [vmem:[%s1490 + $0x4] sm:$0xf]
  %v1493 = vld [vmem:[%s1490 + $0x8] sm:$0xf]
  %v1494 = vld [vmem:[%s1490 + $0xc] sm:$0xf]
  %v1495 = vld [vmem:[%s1490 + $0x10] sm:$0xf]
  %v1496 = vld [vmem:[%s1490 + $0x14] sm:$0xf]
  %v1497 = vld [vmem:[%s1490 + $0x18] sm:$0xf]
  %v1498 = vld [vmem:[%s1490 + $0x1c] sm:$0xf]
  %v1499 = vld [vmem:[%s1490 + $0x20] sm:$0xf]
  %v1500 = vld [vmem:[%s1490 + $0x24] sm:$0xf]
  %v1501 = vld [vmem:[%s1490 + $0x28] sm:$0xf]
  %v1502 = vld [vmem:[%s1490 + $0x2c] sm:$0xf]
  %v1503 = vld [vmem:[%s1490 + $0x30] sm:$0xf]
  %v1504 = vld [vmem:[%s1490 + $0x34] sm:$0xf]
  %v1505 = vld [vmem:[%s1490 + $0x38] sm:$0xf]
  %v1506 = vld [vmem:[%s1490 + $0x3c] sm:$0xf]
  %v1507 = vld [vmem:[%s1490 + $0x40] sm:$0xf]
  %v1508 = vld [vmem:[%s1490 + $0x44] sm:$0xf]
  %v1509 = vld [vmem:[%s1490 + $0x48] sm:$0xf]
  %v1510 = vld [vmem:[%s1490 + $0x4c] sm:$0xf]
  %v1511 = vld [vmem:[%s1490 + $0x50] sm:$0xf]
  %v1512 = vld [vmem:[%s1490 + $0x54] sm:$0xf]
  %v1513 = vld [vmem:[%s1490 + $0x58] sm:$0xf]
  %v1514 = vld [vmem:[%s1490 + $0x5c] sm:$0xf]
  %v1515 = vld [vmem:[%s1490 + $0x60] sm:$0xf]
  %v1516 = vld [vmem:[%s1490 + $0x64] sm:$0xf]
  %v1517 = vld [vmem:[%s1490 + $0x68] sm:$0xf]
  %v1518 = vld [vmem:[%s1490 + $0x6c] sm:$0xf]
  %v1519 = vld [vmem:[%s1490 + $0x70] sm:$0xf]
  %v1520 = vld [vmem:[%s1490 + $0x74] sm:$0xf]
  %v1521 = vld [vmem:[%s1490 + $0x78] sm:$0xf]
  %v1522 = vld [vmem:[%s1490 + $0x7c] sm:$0xf]
  %v1555 = vunpack.c.l.b16 %v1491
  %v1556 = vunpack.c.l.b16 %v1492
  %v1557 = vunpack.c.l.b16 %v1493
  %v1558 = vunpack.c.l.b16 %v1494
  %v1559 = vunpack.c.l.b16 %v1495
  %v1560 = vunpack.c.l.b16 %v1496
  %v1561 = vunpack.c.l.b16 %v1497
  %v1562 = vunpack.c.l.b16 %v1498
  %v1563 = vunpack.c.l.b16 %v1499
  %v1564 = vunpack.c.l.b16 %v1500
  %v1565 = vunpack.c.l.b16 %v1501
  %v1566 = vunpack.c.l.b16 %v1502
  %v1567 = vunpack.c.l.b16 %v1503
  %v1568 = vunpack.c.l.b16 %v1504
  %v1569 = vunpack.c.l.b16 %v1505
  %v1570 = vunpack.c.l.b16 %v1506
  %v1571 = vunpack.c.l.b16 %v1507
  %v1572 = vunpack.c.l.b16 %v1508
  %v1573 = vunpack.c.l.b16 %v1509
  %v1574 = vunpack.c.l.b16 %v1510
  %v1575 = vunpack.c.l.b16 %v1511
  %v1576 = vunpack.c.l.b16 %v1512
  %v1577 = vunpack.c.l.b16 %v1513
  %v1578 = vunpack.c.l.b16 %v1514
  %v1579 = vunpack.c.l.b16 %v1515
  %v1580 = vunpack.c.l.b16 %v1516
  %v1581 = vunpack.c.l.b16 %v1517
  %v1582 = vunpack.c.l.b16 %v1518
  %v1583 = vunpack.c.l.b16 %v1519
  %v1584 = vunpack.c.l.b16 %v1520
  %v1585 = vunpack.c.l.b16 %v1521
  %v1586 = vunpack.c.l.b16 %v1522
  %v1587 = vpack.c.b16 %v1556, %v1555
  %v1588 = vpack.c.b16 %v1558, %v1557
  %v1589 = vpack.c.b16 %v1560, %v1559
  %v1590 = vpack.c.b16 %v1562, %v1561
  %v1591 = vpack.c.b16 %v1564, %v1563
  %v1592 = vpack.c.b16 %v1566, %v1565
  %v1593 = vpack.c.b16 %v1568, %v1567
  %v1594 = vpack.c.b16 %v1570, %v1569
  %v1595 = vpack.c.b16 %v1572, %v1571
  %v1596 = vpack.c.b16 %v1574, %v1573
  %v1597 = vpack.c.b16 %v1576, %v1575
  %v1598 = vpack.c.b16 %v1578, %v1577
  %v1599 = vpack.c.b16 %v1580, %v1579
  %v1600 = vpack.c.b16 %v1582, %v1581
  %v1601 = vpack.c.b16 %v1584, %v1583
  %v1602 = vpack.c.b16 %v1586, %v1585
  %1619 = vmatprep.subr.bf16.mxu0 0
  %1620 = vmatpush1.bf16.msra.mxu0 %v1587
  %1621 = vmatprep.subr.bf16.mxu0 0
  %1622 = vmatpush1.bf16.msra.mxu0 %v1588
  %1623 = vmatprep.subr.bf16.mxu0 0
  %1624 = vmatpush1.bf16.msra.mxu0 %v1589
  %1625 = vmatprep.subr.bf16.mxu0 0
  %1626 = vmatpush1.bf16.msra.mxu0 %v1590
  %1627 = vmatprep.subr.bf16.mxu0 0
  %1628 = vmatpush1.bf16.msra.mxu0 %v1591
  %1629 = vmatprep.subr.bf16.mxu0 0
  %1630 = vmatpush1.bf16.msra.mxu0 %v1592
  %1631 = vmatprep.subr.bf16.mxu0 0
  %1632 = vmatpush1.bf16.msra.mxu0 %v1593
  %1633 = vmatprep.subr.bf16.mxu0 0
  %1634 = vmatpush1.bf16.msra.mxu0 %v1594
  %1635 = vmatprep.subr.bf16.mxu0 0
  %1636 = vmatpush1.bf16.msra.mxu0 %v1595
  %1637 = vmatprep.subr.bf16.mxu0 0
  %1638 = vmatpush1.bf16.msra.mxu0 %v1596
  %1639 = vmatprep.subr.bf16.mxu0 0
  %1640 = vmatpush1.bf16.msra.mxu0 %v1597
  %1641 = vmatprep.subr.bf16.mxu0 0
  %1642 = vmatpush1.bf16.msra.mxu0 %v1598
  %1643 = vmatprep.subr.bf16.mxu0 0
  %1644 = vmatpush1.bf16.msra.mxu0 %v1599
  %1645 = vmatprep.subr.bf16.mxu0 0
  %1646 = vmatpush1.bf16.msra.mxu0 %v1600
  %1647 = vmatprep.subr.bf16.mxu0 0
  %1648 = vmatpush1.bf16.msra.mxu0 %v1601
  %1649 = vmatprep.subr.bf16.mxu0 0
  %1650 = vmatpush1.bf16.msra.mxu0 %v1602
  %1651 = vmatprep.mubr.bf16.mxu0 %v64
  %1652 = vmatmul.mubr.bf16.gmra.mrb[0].mxu0 %v63
  %v1653 = vpop.f32.mrb[0].mxu0
  %v1654 = vadd.f32 0.0, %v1653
  %v1655 = vpop.f32.mrb[0].mxu0
  %v1656 = vpop.f32.mrb[0].mxu0
  %v1657 = vadd.f32 0.0, %v1656
  %v1658 = vpop.f32.mrb[0].mxu0
  %1659 = vmatprep.mubr.bf16.mxu0 %v66
  %1660 = vmatmul.mubr.bf16.gmra.mrb[0].mxu0 %v65
  %v1661 = vpop.f32.mrb[0].mxu0
  %v1662 = vadd.f32 0.0, %v1661
  %v1663 = vpop.f32.mrb[0].mxu0
  %v1664 = vpop.f32.mrb[0].mxu0
  %v1665 = vadd.f32 0.0, %v1664
  %v1666 = vpop.f32.mrb[0].mxu0
  %1667 = vdwg.mxu0
  %v1668 = vmax.f32 %v1486, %v1654
  %v1669 = vmax.f32 %v1487, %v1657
  %v1670 = vmax.f32 %v1488, %v1662
  %v1671 = vmax.f32 %v1489, %v1665
  %s1672 = scalar_lea.vmem %s0, 1152
  %v1673 = vld [vmem:[%s1672] sm:$0xf]
  %v1674 = vld [vmem:[%s1672 + $0x4] sm:$0xf]
  %v1675 = vld [vmem:[%s1672 + $0x8] sm:$0xf]
  %v1676 = vld [vmem:[%s1672 + $0xc] sm:$0xf]
  %v1677 = vld [vmem:[%s1672 + $0x10] sm:$0xf]
  %v1678 = vld [vmem:[%s1672 + $0x14] sm:$0xf]
  %v1679 = vld [vmem:[%s1672 + $0x18] sm:$0xf]
  %v1680 = vld [vmem:[%s1672 + $0x1c] sm:$0xf]
  %v1681 = vld [vmem:[%s1672 + $0x20] sm:$0xf]
  %v1682 = vld [vmem:[%s1672 + $0x24] sm:$0xf]
  %v1683 = vld [vmem:[%s1672 + $0x28] sm:$0xf]
  %v1684 = vld [vmem:[%s1672 + $0x2c] sm:$0xf]
  %v1685 = vld [vmem:[%s1672 + $0x30] sm:$0xf]
  %v1686 = vld [vmem:[%s1672 + $0x34] sm:$0xf]
  %v1687 = vld [vmem:[%s1672 + $0x38] sm:$0xf]
  %v1688 = vld [vmem:[%s1672 + $0x3c] sm:$0xf]
  %v1689 = vld [vmem:[%s1672 + $0x40] sm:$0xf]
  %v1690 = vld [vmem:[%s1672 + $0x44] sm:$0xf]
  %v1691 = vld [vmem:[%s1672 + $0x48] sm:$0xf]
  %v1692 = vld [vmem:[%s1672 + $0x4c] sm:$0xf]
  %v1693 = vld [vmem:[%s1672 + $0x50] sm:$0xf]
  %v1694 = vld [vmem:[%s1672 + $0x54] sm:$0xf]
  %v1695 = vld [vmem:[%s1672 + $0x58] sm:$0xf]
  %v1696 = vld [vmem:[%s1672 + $0x5c] sm:$0xf]
  %v1697 = vld [vmem:[%s1672 + $0x60] sm:$0xf]
  %v1698 = vld [vmem:[%s1672 + $0x64] sm:$0xf]
  %v1699 = vld [vmem:[%s1672 + $0x68] sm:$0xf]
  %v1700 = vld [vmem:[%s1672 + $0x6c] sm:$0xf]
  %v1701 = vld [vmem:[%s1672 + $0x70] sm:$0xf]
  %v1702 = vld [vmem:[%s1672 + $0x74] sm:$0xf]
  %v1703 = vld [vmem:[%s1672 + $0x78] sm:$0xf]
  %v1704 = vld [vmem:[%s1672 + $0x7c] sm:$0xf]
  %v1737 = vunpack.c.l.b16 %v1673
  %v1738 = vunpack.c.l.b16 %v1674
  %v1739 = vunpack.c.l.b16 %v1675
  %v1740 = vunpack.c.l.b16 %v1676
  %v1741 = vunpack.c.l.b16 %v1677
  %v1742 = vunpack.c.l.b16 %v1678
  %v1743 = vunpack.c.l.b16 %v1679
  %v1744 = vunpack.c.l.b16 %v1680
  %v1745 = vunpack.c.l.b16 %v1681
  %v1746 = vunpack.c.l.b16 %v1682
  %v1747 = vunpack.c.l.b16 %v1683
  %v1748 = vunpack.c.l.b16 %v1684
  %v1749 = vunpack.c.l.b16 %v1685
  %v1750 = vunpack.c.l.b16 %v1686
  %v1751 = vunpack.c.l.b16 %v1687
  %v1752 = vunpack.c.l.b16 %v1688
  %v1753 = vunpack.c.l.b16 %v1689
  %v1754 = vunpack.c.l.b16 %v1690
  %v1755 = vunpack.c.l.b16 %v1691
  %v1756 = vunpack.c.l.b16 %v1692
  %v1757 = vunpack.c.l.b16 %v1693
  %v1758 = vunpack.c.l.b16 %v1694
  %v1759 = vunpack.c.l.b16 %v1695
  %v1760 = vunpack.c.l.b16 %v1696
  %v1761 = vunpack.c.l.b16 %v1697
  %v1762 = vunpack.c.l.b16 %v1698
  %v1763 = vunpack.c.l.b16 %v1699
  %v1764 = vunpack.c.l.b16 %v1700
  %v1765 = vunpack.c.l.b16 %v1701
  %v1766 = vunpack.c.l.b16 %v1702
  %v1767 = vunpack.c.l.b16 %v1703
  %v1768 = vunpack.c.l.b16 %v1704
  %v1769 = vpack.c.b16 %v1738, %v1737
  %v1770 = vpack.c.b16 %v1740, %v1739
  %v1771 = vpack.c.b16 %v1742, %v1741
  %v1772 = vpack.c.b16 %v1744, %v1743
  %v1773 = vpack.c.b16 %v1746, %v1745
  %v1774 = vpack.c.b16 %v1748, %v1747
  %v1775 = vpack.c.b16 %v1750, %v1749
  %v1776 = vpack.c.b16 %v1752, %v1751
  %v1777 = vpack.c.b16 %v1754, %v1753
  %v1778 = vpack.c.b16 %v1756, %v1755
  %v1779 = vpack.c.b16 %v1758, %v1757
  %v1780 = vpack.c.b16 %v1760, %v1759
  %v1781 = vpack.c.b16 %v1762, %v1761
  %v1782 = vpack.c.b16 %v1764, %v1763
  %v1783 = vpack.c.b16 %v1766, %v1765
  %v1784 = vpack.c.b16 %v1768, %v1767
  %1801 = vmatprep.subr.bf16.mxu0 0
  %1802 = vmatpush1.bf16.msra.mxu0 %v1769
  %1803 = vmatprep.subr.bf16.mxu0 0
  %1804 = vmatpush1.bf16.msra.mxu0 %v1770
  %1805 = vmatprep.subr.bf16.mxu0 0
  %1806 = vmatpush1.bf16.msra.mxu0 %v1771
  %1807 = vmatprep.subr.bf16.mxu0 0
  %1808 = vmatpush1.bf16.msra.mxu0 %v1772
  %1809 = vmatprep.subr.bf16.mxu0 0
  %1810 = vmatpush1.bf16.msra.mxu0 %v1773
  %1811 = vmatprep.subr.bf16.mxu0 0
  %1812 = vmatpush1.bf16.msra.mxu0 %v1774
  %1813 = vmatprep.subr.bf16.mxu0 0
  %1814 = vmatpush1.bf16.msra.mxu0 %v1775
  %1815 = vmatprep.subr.bf16.mxu0 0
  %1816 = vmatpush1.bf16.msra.mxu0 %v1776
  %1817 = vmatprep.subr.bf16.mxu0 0
  %1818 = vmatpush1.bf16.msra.mxu0 %v1777
  %1819 = vmatprep.subr.bf16.mxu0 0
  %1820 = vmatpush1.bf16.msra.mxu0 %v1778
  %1821 = vmatprep.subr.bf16.mxu0 0
  %1822 = vmatpush1.bf16.msra.mxu0 %v1779
  %1823 = vmatprep.subr.bf16.mxu0 0
  %1824 = vmatpush1.bf16.msra.mxu0 %v1780
  %1825 = vmatprep.subr.bf16.mxu0 0
  %1826 = vmatpush1.bf16.msra.mxu0 %v1781
  %1827 = vmatprep.subr.bf16.mxu0 0
  %1828 = vmatpush1.bf16.msra.mxu0 %v1782
  %1829 = vmatprep.subr.bf16.mxu0 0
  %1830 = vmatpush1.bf16.msra.mxu0 %v1783
  %1831 = vmatprep.subr.bf16.mxu0 0
  %1832 = vmatpush1.bf16.msra.mxu0 %v1784
  %1833 = vmatprep.mubr.bf16.mxu0 %v64
  %1834 = vmatmul.mubr.bf16.gmra.mrb[0].mxu0 %v63
  %v1835 = vpop.f32.mrb[0].mxu0
  %v1836 = vadd.f32 0.0, %v1835
  %v1837 = vpop.f32.mrb[0].mxu0
  %v1838 = vpop.f32.mrb[0].mxu0
  %v1839 = vadd.f32 0.0, %v1838
  %v1840 = vpop.f32.mrb[0].mxu0
  %1841 = vmatprep.mubr.bf16.mxu0 %v66
  %1842 = vmatmul.mubr.bf16.gmra.mrb[0].mxu0 %v65
  %v1843 = vpop.f32.mrb[0].mxu0
  %v1844 = vadd.f32 0.0, %v1843
  %v1845 = vpop.f32.mrb[0].mxu0
  %v1846 = vpop.f32.mrb[0].mxu0
  %v1847 = vadd.f32 0.0, %v1846
  %v1848 = vpop.f32.mrb[0].mxu0
  %1849 = vdwg.mxu0
  %v1850 = vmax.f32 %v1668, %v1836
  %v1851 = vmax.f32 %v1669, %v1839
  %v1852 = vmax.f32 %v1670, %v1844
  %v1853 = vmax.f32 %v1671, %v1847
  %s1854 = scalar_lea.vmem %s0, 1280
  %v1855 = vld [vmem:[%s1854] sm:$0xf]
  %v1856 = vld [vmem:[%s1854 + $0x4] sm:$0xf]
  %v1857 = vld [vmem:[%s1854 + $0x8] sm:$0xf]
  %v1858 = vld [vmem:[%s1854 + $0xc] sm:$0xf]
  %v1859 = vld [vmem:[%s1854 + $0x10] sm:$0xf]
  %v1860 = vld [vmem:[%s1854 + $0x14] sm:$0xf]
  %v1861 = vld [vmem:[%s1854 + $0x18] sm:$0xf]
  %v1862 = vld [vmem:[%s1854 + $0x1c] sm:$0xf]
  %v1863 = vld [vmem:[%s1854 + $0x20] sm:$0xf]
  %v1864 = vld [vmem:[%s1854 + $0x24] sm:$0xf]
  %v1865 = vld [vmem:[%s1854 + $0x28] sm:$0xf]
  %v1866 = vld [vmem:[%s1854 + $0x2c] sm:$0xf]
  %v1867 = vld [vmem:[%s1854 + $0x30] sm:$0xf]
  %v1868 = vld [vmem:[%s1854 + $0x34] sm:$0xf]
  %v1869 = vld [vmem:[%s1854 + $0x38] sm:$0xf]
  %v1870 = vld [vmem:[%s1854 + $0x3c] sm:$0xf]
  %v1871 = vld [vmem:[%s1854 + $0x40] sm:$0xf]
  %v1872 = vld [vmem:[%s1854 + $0x44] sm:$0xf]
  %v1873 = vld [vmem:[%s1854 + $0x48] sm:$0xf]
  %v1874 = vld [vmem:[%s1854 + $0x4c] sm:$0xf]
  %v1875 = vld [vmem:[%s1854 + $0x50] sm:$0xf]
  %v1876 = vld [vmem:[%s1854 + $0x54] sm:$0xf]
  %v1877 = vld [vmem:[%s1854 + $0x58] sm:$0xf]
  %v1878 = vld [vmem:[%s1854 + $0x5c] sm:$0xf]
  %v1879 = vld [vmem:[%s1854 + $0x60] sm:$0xf]
  %v1880 = vld [vmem:[%s1854 + $0x64] sm:$0xf]
  %v1881 = vld [vmem:[%s1854 + $0x68] sm:$0xf]
  %v1882 = vld [vmem:[%s1854 + $0x6c] sm:$0xf]
  %v1883 = vld [vmem:[%s1854 + $0x70] sm:$0xf]
  %v1884 = vld [vmem:[%s1854 + $0x74] sm:$0xf]
  %v1885 = vld [vmem:[%s1854 + $0x78] sm:$0xf]
  %v1886 = vld [vmem:[%s1854 + $0x7c] sm:$0xf]
  %v1919 = vunpack.c.l.b16 %v1855
  %v1920 = vunpack.c.l.b16 %v1856
  %v1921 = vunpack.c.l.b16 %v1857
  %v1922 = vunpack.c.l.b16 %v1858
  %v1923 = vunpack.c.l.b16 %v1859
  %v1924 = vunpack.c.l.b16 %v1860
  %v1925 = vunpack.c.l.b16 %v1861
  %v1926 = vunpack.c.l.b16 %v1862
  %v1927 = vunpack.c.l.b16 %v1863
  %v1928 = vunpack.c.l.b16 %v1864
  %v1929 = vunpack.c.l.b16 %v1865
  %v1930 = vunpack.c.l.b16 %v1866
  %v1931 = vunpack.c.l.b16 %v1867
  %v1932 = vunpack.c.l.b16 %v1868
  %v1933 = vunpack.c.l.b16 %v1869
  %v1934 = vunpack.c.l.b16 %v1870
  %v1935 = vunpack.c.l.b16 %v1871
  %v1936 = vunpack.c.l.b16 %v1872
  %v1937 = vunpack.c.l.b16 %v1873
  %v1938 = vunpack.c.l.b16 %v1874
  %v1939 = vunpack.c.l.b16 %v1875
  %v1940 = vunpack.c.l.b16 %v1876
  %v1941 = vunpack.c.l.b16 %v1877
  %v1942 = vunpack.c.l.b16 %v1878
  %v1943 = vunpack.c.l.b16 %v1879
  %v1944 = vunpack.c.l.b16 %v1880
  %v1945 = vunpack.c.l.b16 %v1881
  %v1946 = vunpack.c.l.b16 %v1882
  %v1947 = vunpack.c.l.b16 %v1883
  %v1948 = vunpack.c.l.b16 %v1884
  %v1949 = vunpack.c.l.b16 %v1885
  %v1950 = vunpack.c.l.b16 %v1886
  %v1951 = vpack.c.b16 %v1920, %v1919
  %v1952 = vpack.c.b16 %v1922, %v1921
  %v1953 = vpack.c.b16 %v1924, %v1923
  %v1954 = vpack.c.b16 %v1926, %v1925
  %v1955 = vpack.c.b16 %v1928, %v1927
  %v1956 = vpack.c.b16 %v1930, %v1929
  %v1957 = vpack.c.b16 %v1932, %v1931
  %v1958 = vpack.c.b16 %v1934, %v1933
  %v1959 = vpack.c.b16 %v1936, %v1935
  %v1960 = vpack.c.b16 %v1938, %v1937
  %v1961 = vpack.c.b16 %v1940, %v1939
  %v1962 = vpack.c.b16 %v1942, %v1941
  %v1963 = vpack.c.b16 %v1944, %v1943
  %v1964 = vpack.c.b16 %v1946, %v1945
  %v1965 = vpack.c.b16 %v1948, %v1947
  %v1966 = vpack.c.b16 %v1950, %v1949
  %1983 = vmatprep.subr.bf16.mxu0 0
  %1984 = vmatpush1.bf16.msra.mxu0 %v1951
  %1985 = vmatprep.subr.bf16.mxu0 0
  %1986 = vmatpush1.bf16.msra.mxu0 %v1952
  %1987 = vmatprep.subr.bf16.mxu0 0
  %1988 = vmatpush1.bf16.msra.mxu0 %v1953
  %1989 = vmatprep.subr.bf16.mxu0 0
  %1990 = vmatpush1.bf16.msra.mxu0 %v1954
  %1991 = vmatprep.subr.bf16.mxu0 0
  %1992 = vmatpush1.bf16.msra.mxu0 %v1955
  %1993 = vmatprep.subr.bf16.mxu0 0
  %1994 = vmatpush1.bf16.msra.mxu0 %v1956
  %1995 = vmatprep.subr.bf16.mxu0 0
  %1996 = vmatpush1.bf16.msra.mxu0 %v1957
  %1997 = vmatprep.subr.bf16.mxu0 0
  %1998 = vmatpush1.bf16.msra.mxu0 %v1958
  %1999 = vmatprep.subr.bf16.mxu0 0
  %2000 = vmatpush1.bf16.msra.mxu0 %v1959
  %2001 = vmatprep.subr.bf16.mxu0 0
  %2002 = vmatpush1.bf16.msra.mxu0 %v1960
  %2003 = vmatprep.subr.bf16.mxu0 0
  %2004 = vmatpush1.bf16.msra.mxu0 %v1961
  %2005 = vmatprep.subr.bf16.mxu0 0
  %2006 = vmatpush1.bf16.msra.mxu0 %v1962
  %2007 = vmatprep.subr.bf16.mxu0 0
  %2008 = vmatpush1.bf16.msra.mxu0 %v1963
  %2009 = vmatprep.subr.bf16.mxu0 0
  %2010 = vmatpush1.bf16.msra.mxu0 %v1964
  %2011 = vmatprep.subr.bf16.mxu0 0
  %2012 = vmatpush1.bf16.msra.mxu0 %v1965
  %2013 = vmatprep.subr.bf16.mxu0 0
  %2014 = vmatpush1.bf16.msra.mxu0 %v1966
  %2015 = vmatprep.mubr.bf16.mxu0 %v64
  %2016 = vmatmul.mubr.bf16.gmra.mrb[0].mxu0 %v63
  %v2017 = vpop.f32.mrb[0].mxu0
  %v2018 = vadd.f32 0.0, %v2017
  %v2019 = vpop.f32.mrb[0].mxu0
  %v2020 = vpop.f32.mrb[0].mxu0
  %v2021 = vadd.f32 0.0, %v2020
  %v2022 = vpop.f32.mrb[0].mxu0
  %2023 = vmatprep.mubr.bf16.mxu0 %v66
  %2024 = vmatmul.mubr.bf16.gmra.mrb[0].mxu0 %v65
  %v2025 = vpop.f32.mrb[0].mxu0
  %v2026 = vadd.f32 0.0, %v2025
  %v2027 = vpop.f32.mrb[0].mxu0
  %v2028 = vpop.f32.mrb[0].mxu0
  %v2029 = vadd.f32 0.0, %v2028
  %v2030 = vpop.f32.mrb[0].mxu0
  %2031 = vdwg.mxu0
  %v2032 = vmax.f32 %v1850, %v2018
  %v2033 = vmax.f32 %v1851, %v2021
  %v2034 = vmax.f32 %v1852, %v2026
  %v2035 = vmax.f32 %v1853, %v2029
  %s2036 = scalar_lea.vmem %s0, 1408
  %v2037 = vld [vmem:[%s2036] sm:$0xf]
  %v2038 = vld [vmem:[%s2036 + $0x4] sm:$0xf]
  %v2039 = vld [vmem:[%s2036 + $0x8] sm:$0xf]
  %v2040 = vld [vmem:[%s2036 + $0xc] sm:$0xf]
  %v2041 = vld [vmem:[%s2036 + $0x10] sm:$0xf]
  %v2042 = vld [vmem:[%s2036 + $0x14] sm:$0xf]
  %v2043 = vld [vmem:[%s2036 + $0x18] sm:$0xf]
  %v2044 = vld [vmem:[%s2036 + $0x1c] sm:$0xf]
  %v2045 = vld [vmem:[%s2036 + $0x20] sm:$0xf]
  %v2046 = vld [vmem:[%s2036 + $0x24] sm:$0xf]
  %v2047 = vld [vmem:[%s2036 + $0x28] sm:$0xf]
  %v2048 = vld [vmem:[%s2036 + $0x2c] sm:$0xf]
  %v2049 = vld [vmem:[%s2036 + $0x30] sm:$0xf]
  %v2050 = vld [vmem:[%s2036 + $0x34] sm:$0xf]
  %v2051 = vld [vmem:[%s2036 + $0x38] sm:$0xf]
  %v2052 = vld [vmem:[%s2036 + $0x3c] sm:$0xf]
  %v2053 = vld [vmem:[%s2036 + $0x40] sm:$0xf]
  %v2054 = vld [vmem:[%s2036 + $0x44] sm:$0xf]
  %v2055 = vld [vmem:[%s2036 + $0x48] sm:$0xf]
  %v2056 = vld [vmem:[%s2036 + $0x4c] sm:$0xf]
  %v2057 = vld [vmem:[%s2036 + $0x50] sm:$0xf]
  %v2058 = vld [vmem:[%s2036 + $0x54] sm:$0xf]
  %v2059 = vld [vmem:[%s2036 + $0x58] sm:$0xf]
  %v2060 = vld [vmem:[%s2036 + $0x5c] sm:$0xf]
  %v2061 = vld [vmem:[%s2036 + $0x60] sm:$0xf]
  %v2062 = vld [vmem:[%s2036 + $0x64] sm:$0xf]
  %v2063 = vld [vmem:[%s2036 + $0x68] sm:$0xf]
  %v2064 = vld [vmem:[%s2036 + $0x6c] sm:$0xf]
  %v2065 = vld [vmem:[%s2036 + $0x70] sm:$0xf]
  %v2066 = vld [vmem:[%s2036 + $0x74] sm:$0xf]
  %v2067 = vld [vmem:[%s2036 + $0x78] sm:$0xf]
  %v2068 = vld [vmem:[%s2036 + $0x7c] sm:$0xf]
  %v2101 = vunpack.c.l.b16 %v2037
  %v2102 = vunpack.c.l.b16 %v2038
  %v2103 = vunpack.c.l.b16 %v2039
  %v2104 = vunpack.c.l.b16 %v2040
  %v2105 = vunpack.c.l.b16 %v2041
  %v2106 = vunpack.c.l.b16 %v2042
  %v2107 = vunpack.c.l.b16 %v2043
  %v2108 = vunpack.c.l.b16 %v2044
  %v2109 = vunpack.c.l.b16 %v2045
  %v2110 = vunpack.c.l.b16 %v2046
  %v2111 = vunpack.c.l.b16 %v2047
  %v2112 = vunpack.c.l.b16 %v2048
  %v2113 = vunpack.c.l.b16 %v2049
  %v2114 = vunpack.c.l.b16 %v2050
  %v2115 = vunpack.c.l.b16 %v2051
  %v2116 = vunpack.c.l.b16 %v2052
  %v2117 = vunpack.c.l.b16 %v2053
  %v2118 = vunpack.c.l.b16 %v2054
  %v2119 = vunpack.c.l.b16 %v2055
  %v2120 = vunpack.c.l.b16 %v2056
  %v2121 = vunpack.c.l.b16 %v2057
  %v2122 = vunpack.c.l.b16 %v2058
  %v2123 = vunpack.c.l.b16 %v2059
  %v2124 = vunpack.c.l.b16 %v2060
  %v2125 = vunpack.c.l.b16 %v2061
  %v2126 = vunpack.c.l.b16 %v2062
  %v2127 = vunpack.c.l.b16 %v2063
  %v2128 = vunpack.c.l.b16 %v2064
  %v2129 = vunpack.c.l.b16 %v2065
  %v2130 = vunpack.c.l.b16 %v2066
  %v2131 = vunpack.c.l.b16 %v2067
  %v2132 = vunpack.c.l.b16 %v2068
  %v2133 = vpack.c.b16 %v2102, %v2101
  %v2134 = vpack.c.b16 %v2104, %v2103
  %v2135 = vpack.c.b16 %v2106, %v2105
  %v2136 = vpack.c.b16 %v2108, %v2107
  %v2137 = vpack.c.b16 %v2110, %v2109
  %v2138 = vpack.c.b16 %v2112, %v2111
  %v2139 = vpack.c.b16 %v2114, %v2113
  %v2140 = vpack.c.b16 %v2116, %v2115
  %v2141 = vpack.c.b16 %v2118, %v2117
  %v2142 = vpack.c.b16 %v2120, %v2119
  %v2143 = vpack.c.b16 %v2122, %v2121
  %v2144 = vpack.c.b16 %v2124, %v2123
  %v2145 = vpack.c.b16 %v2126, %v2125
  %v2146 = vpack.c.b16 %v2128, %v2127
  %v2147 = vpack.c.b16 %v2130, %v2129
  %v2148 = vpack.c.b16 %v2132, %v2131
  %2165 = vmatprep.subr.bf16.mxu0 0
  %2166 = vmatpush1.bf16.msra.mxu0 %v2133
  %2167 = vmatprep.subr.bf16.mxu0 0
  %2168 = vmatpush1.bf16.msra.mxu0 %v2134
  %2169 = vmatprep.subr.bf16.mxu0 0
  %2170 = vmatpush1.bf16.msra.mxu0 %v2135
  %2171 = vmatprep.subr.bf16.mxu0 0
  %2172 = vmatpush1.bf16.msra.mxu0 %v2136
  %2173 = vmatprep.subr.bf16.mxu0 0
  %2174 = vmatpush1.bf16.msra.mxu0 %v2137
  %2175 = vmatprep.subr.bf16.mxu0 0
  %2176 = vmatpush1.bf16.msra.mxu0 %v2138
  %2177 = vmatprep.subr.bf16.mxu0 0
  %2178 = vmatpush1.bf16.msra.mxu0 %v2139
  %2179 = vmatprep.subr.bf16.mxu0 0
  %2180 = vmatpush1.bf16.msra.mxu0 %v2140
  %2181 = vmatprep.subr.bf16.mxu0 0
  %2182 = vmatpush1.bf16.msra.mxu0 %v2141
  %2183 = vmatprep.subr.bf16.mxu0 0
  %2184 = vmatpush1.bf16.msra.mxu0 %v2142
  %2185 = vmatprep.subr.bf16.mxu0 0
  %2186 = vmatpush1.bf16.msra.mxu0 %v2143
  %2187 = vmatprep.subr.bf16.mxu0 0
  %2188 = vmatpush1.bf16.msra.mxu0 %v2144
  %2189 = vmatprep.subr.bf16.mxu0 0
  %2190 = vmatpush1.bf16.msra.mxu0 %v2145
  %2191 = vmatprep.subr.bf16.mxu0 0
  %2192 = vmatpush1.bf16.msra.mxu0 %v2146
  %2193 = vmatprep.subr.bf16.mxu0 0
  %2194 = vmatpush1.bf16.msra.mxu0 %v2147
  %2195 = vmatprep.subr.bf16.mxu0 0
  %2196 = vmatpush1.bf16.msra.mxu0 %v2148
  %2197 = vmatprep.mubr.bf16.mxu0 %v64
  %2198 = vmatmul.mubr.bf16.gmra.mrb[0].mxu0 %v63
  %v2199 = vpop.f32.mrb[0].mxu0
  %v2200 = vadd.f32 0.0, %v2199
  %v2201 = vpop.f32.mrb[0].mxu0
  %v2202 = vpop.f32.mrb[0].mxu0
  %v2203 = vadd.f32 0.0, %v2202
  %v2204 = vpop.f32.mrb[0].mxu0
  %2205 = vmatprep.mubr.bf16.mxu0 %v66
  %2206 = vmatmul.mubr.bf16.gmra.mrb[0].mxu0 %v65
  %v2207 = vpop.f32.mrb[0].mxu0
  %v2208 = vadd.f32 0.0, %v2207
  %v2209 = vpop.f32.mrb[0].mxu0
  %v2210 = vpop.f32.mrb[0].mxu0
  %v2211 = vadd.f32 0.0, %v2210
  %v2212 = vpop.f32.mrb[0].mxu0
  %2213 = vdwg.mxu0
  %v2214 = vmax.f32 %v2032, %v2200
  %v2215 = vmax.f32 %v2033, %v2203
  %v2216 = vmax.f32 %v2034, %v2208
  %v2217 = vmax.f32 %v2035, %v2211
  %s2218 = scalar_lea.vmem %s0, 1536
  %v2219 = vld [vmem:[%s2218] sm:$0xf]
  %v2220 = vld [vmem:[%s2218 + $0x4] sm:$0xf]
  %v2221 = vld [vmem:[%s2218 + $0x8] sm:$0xf]
  %v2222 = vld [vmem:[%s2218 + $0xc] sm:$0xf]
  %v2223 = vld [vmem:[%s2218 + $0x10] sm:$0xf]
  %v2224 = vld [vmem:[%s2218 + $0x14] sm:$0xf]
  %v2225 = vld [vmem:[%s2218 + $0x18] sm:$0xf]
  %v2226 = vld [vmem:[%s2218 + $0x1c] sm:$0xf]
  %v2227 = vld [vmem:[%s2218 + $0x20] sm:$0xf]
  %v2228 = vld [vmem:[%s2218 + $0x24] sm:$0xf]
  %v2229 = vld [vmem:[%s2218 + $0x28] sm:$0xf]
  %v2230 = vld [vmem:[%s2218 + $0x2c] sm:$0xf]
  %v2231 = vld [vmem:[%s2218 + $0x30] sm:$0xf]
  %v2232 = vld [vmem:[%s2218 + $0x34] sm:$0xf]
  %v2233 = vld [vmem:[%s2218 + $0x38] sm:$0xf]
  %v2234 = vld [vmem:[%s2218 + $0x3c] sm:$0xf]
  %v2235 = vld [vmem:[%s2218 + $0x40] sm:$0xf]
  %v2236 = vld [vmem:[%s2218 + $0x44] sm:$0xf]
  %v2237 = vld [vmem:[%s2218 + $0x48] sm:$0xf]
  %v2238 = vld [vmem:[%s2218 + $0x4c] sm:$0xf]
  %v2239 = vld [vmem:[%s2218 + $0x50] sm:$0xf]
  %v2240 = vld [vmem:[%s2218 + $0x54] sm:$0xf]
  %v2241 = vld [vmem:[%s2218 + $0x58] sm:$0xf]
  %v2242 = vld [vmem:[%s2218 + $0x5c] sm:$0xf]
  %v2243 = vld [vmem:[%s2218 + $0x60] sm:$0xf]
  %v2244 = vld [vmem:[%s2218 + $0x64] sm:$0xf]
  %v2245 = vld [vmem:[%s2218 + $0x68] sm:$0xf]
  %v2246 = vld [vmem:[%s2218 + $0x6c] sm:$0xf]
  %v2247 = vld [vmem:[%s2218 + $0x70] sm:$0xf]
  %v2248 = vld [vmem:[%s2218 + $0x74] sm:$0xf]
  %v2249 = vld [vmem:[%s2218 + $0x78] sm:$0xf]
  %v2250 = vld [vmem:[%s2218 + $0x7c] sm:$0xf]
  %v2283 = vunpack.c.l.b16 %v2219
  %v2284 = vunpack.c.l.b16 %v2220
  %v2285 = vunpack.c.l.b16 %v2221
  %v2286 = vunpack.c.l.b16 %v2222
  %v2287 = vunpack.c.l.b16 %v2223
  %v2288 = vunpack.c.l.b16 %v2224
  %v2289 = vunpack.c.l.b16 %v2225
  %v2290 = vunpack.c.l.b16 %v2226
  %v2291 = vunpack.c.l.b16 %v2227
  %v2292 = vunpack.c.l.b16 %v2228
  %v2293 = vunpack.c.l.b16 %v2229
  %v2294 = vunpack.c.l.b16 %v2230
  %v2295 = vunpack.c.l.b16 %v2231
  %v2296 = vunpack.c.l.b16 %v2232
  %v2297 = vunpack.c.l.b16 %v2233
  %v2298 = vunpack.c.l.b16 %v2234
  %v2299 = vunpack.c.l.b16 %v2235
  %v2300 = vunpack.c.l.b16 %v2236
  %v2301 = vunpack.c.l.b16 %v2237
  %v2302 = vunpack.c.l.b16 %v2238
  %v2303 = vunpack.c.l.b16 %v2239
  %v2304 = vunpack.c.l.b16 %v2240
  %v2305 = vunpack.c.l.b16 %v2241
  %v2306 = vunpack.c.l.b16 %v2242
  %v2307 = vunpack.c.l.b16 %v2243
  %v2308 = vunpack.c.l.b16 %v2244
  %v2309 = vunpack.c.l.b16 %v2245
  %v2310 = vunpack.c.l.b16 %v2246
  %v2311 = vunpack.c.l.b16 %v2247
  %v2312 = vunpack.c.l.b16 %v2248
  %v2313 = vunpack.c.l.b16 %v2249
  %v2314 = vunpack.c.l.b16 %v2250
  %v2315 = vpack.c.b16 %v2284, %v2283
  %v2316 = vpack.c.b16 %v2286, %v2285
  %v2317 = vpack.c.b16 %v2288, %v2287
  %v2318 = vpack.c.b16 %v2290, %v2289
  %v2319 = vpack.c.b16 %v2292, %v2291
  %v2320 = vpack.c.b16 %v2294, %v2293
  %v2321 = vpack.c.b16 %v2296, %v2295
  %v2322 = vpack.c.b16 %v2298, %v2297
  %v2323 = vpack.c.b16 %v2300, %v2299
  %v2324 = vpack.c.b16 %v2302, %v2301
  %v2325 = vpack.c.b16 %v2304, %v2303
  %v2326 = vpack.c.b16 %v2306, %v2305
  %v2327 = vpack.c.b16 %v2308, %v2307
  %v2328 = vpack.c.b16 %v2310, %v2309
  %v2329 = vpack.c.b16 %v2312, %v2311
  %v2330 = vpack.c.b16 %v2314, %v2313
  %2347 = vmatprep.subr.bf16.mxu0 0
  %2348 = vmatpush1.bf16.msra.mxu0 %v2315
  %2349 = vmatprep.subr.bf16.mxu0 0
  %2350 = vmatpush1.bf16.msra.mxu0 %v2316
  %2351 = vmatprep.subr.bf16.mxu0 0
  %2352 = vmatpush1.bf16.msra.mxu0 %v2317
  %2353 = vmatprep.subr.bf16.mxu0 0
  %2354 = vmatpush1.bf16.msra.mxu0 %v2318
  %2355 = vmatprep.subr.bf16.mxu0 0
  %2356 = vmatpush1.bf16.msra.mxu0 %v2319
  %2357 = vmatprep.subr.bf16.mxu0 0
  %2358 = vmatpush1.bf16.msra.mxu0 %v2320
  %2359 = vmatprep.subr.bf16.mxu0 0
  %2360 = vmatpush1.bf16.msra.mxu0 %v2321
  %2361 = vmatprep.subr.bf16.mxu0 0
  %2362 = vmatpush1.bf16.msra.mxu0 %v2322
  %2363 = vmatprep.subr.bf16.mxu0 0
  %2364 = vmatpush1.bf16.msra.mxu0 %v2323
  %2365 = vmatprep.subr.bf16.mxu0 0
  %2366 = vmatpush1.bf16.msra.mxu0 %v2324
  %2367 = vmatprep.subr.bf16.mxu0 0
  %2368 = vmatpush1.bf16.msra.mxu0 %v2325
  %2369 = vmatprep.subr.bf16.mxu0 0
  %2370 = vmatpush1.bf16.msra.mxu0 %v2326
  %2371 = vmatprep.subr.bf16.mxu0 0
  %2372 = vmatpush1.bf16.msra.mxu0 %v2327
  %2373 = vmatprep.subr.bf16.mxu0 0
  %2374 = vmatpush1.bf16.msra.mxu0 %v2328
  %2375 = vmatprep.subr.bf16.mxu0 0
  %2376 = vmatpush1.bf16.msra.mxu0 %v2329
  %2377 = vmatprep.subr.bf16.mxu0 0
  %2378 = vmatpush1.bf16.msra.mxu0 %v2330
  %2379 = vmatprep.mubr.bf16.mxu0 %v64
  %2380 = vmatmul.mubr.bf16.gmra.mrb[0].mxu0 %v63
  %v2381 = vpop.f32.mrb[0].mxu0
  %v2382 = vadd.f32 0.0, %v2381
  %v2383 = vpop.f32.mrb[0].mxu0
  %v2384 = vpop.f32.mrb[0].mxu0
  %v2385 = vadd.f32 0.0, %v2384
  %v2386 = vpop.f32.mrb[0].mxu0
  %2387 = vmatprep.mubr.bf16.mxu0 %v66
  %2388 = vmatmul.mubr.bf16.gmra.mrb[0].mxu0 %v65
  %v2389 = vpop.f32.mrb[0].mxu0
  %v2390 = vadd.f32 0.0, %v2389
  %v2391 = vpop.f32.mrb[0].mxu0
  %v2392 = vpop.f32.mrb[0].mxu0
  %v2393 = vadd.f32 0.0, %v2392
  %v2394 = vpop.f32.mrb[0].mxu0
  %2395 = vdwg.mxu0
  %v2396 = vmax.f32 %v2214, %v2382
  %v2397 = vmax.f32 %v2215, %v2385
  %v2398 = vmax.f32 %v2216, %v2390
  %v2399 = vmax.f32 %v2217, %v2393
  %s2400 = scalar_lea.vmem %s0, 1664
  %v2401 = vld [vmem:[%s2400] sm:$0xf]
  %v2402 = vld [vmem:[%s2400 + $0x4] sm:$0xf]
  %v2403 = vld [vmem:[%s2400 + $0x8] sm:$0xf]
  %v2404 = vld [vmem:[%s2400 + $0xc] sm:$0xf]
  %v2405 = vld [vmem:[%s2400 + $0x10] sm:$0xf]
  %v2406 = vld [vmem:[%s2400 + $0x14] sm:$0xf]
  %v2407 = vld [vmem:[%s2400 + $0x18] sm:$0xf]
  %v2408 = vld [vmem:[%s2400 + $0x1c] sm:$0xf]
  %v2409 = vld [vmem:[%s2400 + $0x20] sm:$0xf]
  %v2410 = vld [vmem:[%s2400 + $0x24] sm:$0xf]
  %v2411 = vld [vmem:[%s2400 + $0x28] sm:$0xf]
  %v2412 = vld [vmem:[%s2400 + $0x2c] sm:$0xf]
  %v2413 = vld [vmem:[%s2400 + $0x30] sm:$0xf]
  %v2414 = vld [vmem:[%s2400 + $0x34] sm:$0xf]
  %v2415 = vld [vmem:[%s2400 + $0x38] sm:$0xf]
  %v2416 = vld [vmem:[%s2400 + $0x3c] sm:$0xf]
  %v2417 = vld [vmem:[%s2400 + $0x40] sm:$0xf]
  %v2418 = vld [vmem:[%s2400 + $0x44] sm:$0xf]
  %v2419 = vld [vmem:[%s2400 + $0x48] sm:$0xf]
  %v2420 = vld [vmem:[%s2400 + $0x4c] sm:$0xf]
  %v2421 = vld [vmem:[%s2400 + $0x50] sm:$0xf]
  %v2422 = vld [vmem:[%s2400 + $0x54] sm:$0xf]
  %v2423 = vld [vmem:[%s2400 + $0x58] sm:$0xf]
  %v2424 = vld [vmem:[%s2400 + $0x5c] sm:$0xf]
  %v2425 = vld [vmem:[%s2400 + $0x60] sm:$0xf]
  %v2426 = vld [vmem:[%s2400 + $0x64] sm:$0xf]
  %v2427 = vld [vmem:[%s2400 + $0x68] sm:$0xf]
  %v2428 = vld [vmem:[%s2400 + $0x6c] sm:$0xf]
  %v2429 = vld [vmem:[%s2400 + $0x70] sm:$0xf]
  %v2430 = vld [vmem:[%s2400 + $0x74] sm:$0xf]
  %v2431 = vld [vmem:[%s2400 + $0x78] sm:$0xf]
  %v2432 = vld [vmem:[%s2400 + $0x7c] sm:$0xf]
  %v2465 = vunpack.c.l.b16 %v2401
  %v2466 = vunpack.c.l.b16 %v2402
  %v2467 = vunpack.c.l.b16 %v2403
  %v2468 = vunpack.c.l.b16 %v2404
  %v2469 = vunpack.c.l.b16 %v2405
  %v2470 = vunpack.c.l.b16 %v2406
  %v2471 = vunpack.c.l.b16 %v2407
  %v2472 = vunpack.c.l.b16 %v2408
  %v2473 = vunpack.c.l.b16 %v2409
  %v2474 = vunpack.c.l.b16 %v2410
  %v2475 = vunpack.c.l.b16 %v2411
  %v2476 = vunpack.c.l.b16 %v2412
  %v2477 = vunpack.c.l.b16 %v2413
  %v2478 = vunpack.c.l.b16 %v2414
  %v2479 = vunpack.c.l.b16 %v2415
  %v2480 = vunpack.c.l.b16 %v2416
  %v2481 = vunpack.c.l.b16 %v2417
  %v2482 = vunpack.c.l.b16 %v2418
  %v2483 = vunpack.c.l.b16 %v2419
  %v2484 = vunpack.c.l.b16 %v2420
  %v2485 = vunpack.c.l.b16 %v2421
  %v2486 = vunpack.c.l.b16 %v2422
  %v2487 = vunpack.c.l.b16 %v2423
  %v2488 = vunpack.c.l.b16 %v2424
  %v2489 = vunpack.c.l.b16 %v2425
  %v2490 = vunpack.c.l.b16 %v2426
  %v2491 = vunpack.c.l.b16 %v2427
  %v2492 = vunpack.c.l.b16 %v2428
  %v2493 = vunpack.c.l.b16 %v2429
  %v2494 = vunpack.c.l.b16 %v2430
  %v2495 = vunpack.c.l.b16 %v2431
  %v2496 = vunpack.c.l.b16 %v2432
  %v2497 = vpack.c.b16 %v2466, %v2465
  %v2498 = vpack.c.b16 %v2468, %v2467
  %v2499 = vpack.c.b16 %v2470, %v2469
  %v2500 = vpack.c.b16 %v2472, %v2471
  %v2501 = vpack.c.b16 %v2474, %v2473
  %v2502 = vpack.c.b16 %v2476, %v2475
  %v2503 = vpack.c.b16 %v2478, %v2477
  %v2504 = vpack.c.b16 %v2480, %v2479
  %v2505 = vpack.c.b16 %v2482, %v2481
  %v2506 = vpack.c.b16 %v2484, %v2483
  %v2507 = vpack.c.b16 %v2486, %v2485
  %v2508 = vpack.c.b16 %v2488, %v2487
  %v2509 = vpack.c.b16 %v2490, %v2489
  %v2510 = vpack.c.b16 %v2492, %v2491
  %v2511 = vpack.c.b16 %v2494, %v2493
  %v2512 = vpack.c.b16 %v2496, %v2495
  %2529 = vmatprep.subr.bf16.mxu0 0
  %2530 = vmatpush1.bf16.msra.mxu0 %v2497
  %2531 = vmatprep.subr.bf16.mxu0 0
  %2532 = vmatpush1.bf16.msra.mxu0 %v2498
  %2533 = vmatprep.subr.bf16.mxu0 0
  %2534 = vmatpush1.bf16.msra.mxu0 %v2499
  %2535 = vmatprep.subr.bf16.mxu0 0
  %2536 = vmatpush1.bf16.msra.mxu0 %v2500
  %2537 = vmatprep.subr.bf16.mxu0 0
  %2538 = vmatpush1.bf16.msra.mxu0 %v2501
  %2539 = vmatprep.subr.bf16.mxu0 0
  %2540 = vmatpush1.bf16.msra.mxu0 %v2502
  %2541 = vmatprep.subr.bf16.mxu0 0
  %2542 = vmatpush1.bf16.msra.mxu0 %v2503
  %2543 = vmatprep.subr.bf16.mxu0 0
  %2544 = vmatpush1.bf16.msra.mxu0 %v2504
  %2545 = vmatprep.subr.bf16.mxu0 0
  %2546 = vmatpush1.bf16.msra.mxu0 %v2505
  %2547 = vmatprep.subr.bf16.mxu0 0
  %2548 = vmatpush1.bf16.msra.mxu0 %v2506
  %2549 = vmatprep.subr.bf16.mxu0 0
  %2550 = vmatpush1.bf16.msra.mxu0 %v2507
  %2551 = vmatprep.subr.bf16.mxu0 0
  %2552 = vmatpush1.bf16.msra.mxu0 %v2508
  %2553 = vmatprep.subr.bf16.mxu0 0
  %2554 = vmatpush1.bf16.msra.mxu0 %v2509
  %2555 = vmatprep.subr.bf16.mxu0 0
  %2556 = vmatpush1.bf16.msra.mxu0 %v2510
  %2557 = vmatprep.subr.bf16.mxu0 0
  %2558 = vmatpush1.bf16.msra.mxu0 %v2511
  %2559 = vmatprep.subr.bf16.mxu0 0
  %2560 = vmatpush1.bf16.msra.mxu0 %v2512
  %2561 = vmatprep.mubr.bf16.mxu0 %v64
  %2562 = vmatmul.mubr.bf16.gmra.mrb[0].mxu0 %v63
  %v2563 = vpop.f32.mrb[0].mxu0
  %v2564 = vadd.f32 0.0, %v2563
  %v2565 = vpop.f32.mrb[0].mxu0
  %v2566 = vpop.f32.mrb[0].mxu0
  %v2567 = vadd.f32 0.0, %v2566
  %v2568 = vpop.f32.mrb[0].mxu0
  %2569 = vmatprep.mubr.bf16.mxu0 %v66
  %2570 = vmatmul.mubr.bf16.gmra.mrb[0].mxu0 %v65
  %v2571 = vpop.f32.mrb[0].mxu0
  %v2572 = vadd.f32 0.0, %v2571
  %v2573 = vpop.f32.mrb[0].mxu0
  %v2574 = vpop.f32.mrb[0].mxu0
  %v2575 = vadd.f32 0.0, %v2574
  %v2576 = vpop.f32.mrb[0].mxu0
  %2577 = vdwg.mxu0
  %v2578 = vmax.f32 %v2396, %v2564
  %v2579 = vmax.f32 %v2397, %v2567
  %v2580 = vmax.f32 %v2398, %v2572
  %v2581 = vmax.f32 %v2399, %v2575
  %s2582 = scalar_lea.vmem %s0, 1792
  %v2583 = vld [vmem:[%s2582] sm:$0xf]
  %v2584 = vld [vmem:[%s2582 + $0x4] sm:$0xf]
  %v2585 = vld [vmem:[%s2582 + $0x8] sm:$0xf]
  %v2586 = vld [vmem:[%s2582 + $0xc] sm:$0xf]
  %v2587 = vld [vmem:[%s2582 + $0x10] sm:$0xf]
  %v2588 = vld [vmem:[%s2582 + $0x14] sm:$0xf]
  %v2589 = vld [vmem:[%s2582 + $0x18] sm:$0xf]
  %v2590 = vld [vmem:[%s2582 + $0x1c] sm:$0xf]
  %v2591 = vld [vmem:[%s2582 + $0x20] sm:$0xf]
  %v2592 = vld [vmem:[%s2582 + $0x24] sm:$0xf]
  %v2593 = vld [vmem:[%s2582 + $0x28] sm:$0xf]
  %v2594 = vld [vmem:[%s2582 + $0x2c] sm:$0xf]
  %v2595 = vld [vmem:[%s2582 + $0x30] sm:$0xf]
  %v2596 = vld [vmem:[%s2582 + $0x34] sm:$0xf]
  %v2597 = vld [vmem:[%s2582 + $0x38] sm:$0xf]
  %v2598 = vld [vmem:[%s2582 + $0x3c] sm:$0xf]
  %v2599 = vld [vmem:[%s2582 + $0x40] sm:$0xf]
  %v2600 = vld [vmem:[%s2582 + $0x44] sm:$0xf]
  %v2601 = vld [vmem:[%s2582 + $0x48] sm:$0xf]
  %v2602 = vld [vmem:[%s2582 + $0x4c] sm:$0xf]
  %v2603 = vld [vmem:[%s2582 + $0x50] sm:$0xf]
  %v2604 = vld [vmem:[%s2582 + $0x54] sm:$0xf]
  %v2605 = vld [vmem:[%s2582 + $0x58] sm:$0xf]
  %v2606 = vld [vmem:[%s2582 + $0x5c] sm:$0xf]
  %v2607 = vld [vmem:[%s2582 + $0x60] sm:$0xf]
  %v2608 = vld [vmem:[%s2582 + $0x64] sm:$0xf]
  %v2609 = vld [vmem:[%s2582 + $0x68] sm:$0xf]
  %v2610 = vld [vmem:[%s2582 + $0x6c] sm:$0xf]
  %v2611 = vld [vmem:[%s2582 + $0x70] sm:$0xf]
  %v2612 = vld [vmem:[%s2582 + $0x74] sm:$0xf]
  %v2613 = vld [vmem:[%s2582 + $0x78] sm:$0xf]
  %v2614 = vld [vmem:[%s2582 + $0x7c] sm:$0xf]
  %v2647 = vunpack.c.l.b16 %v2583
  %v2648 = vunpack.c.l.b16 %v2584
  %v2649 = vunpack.c.l.b16 %v2585
  %v2650 = vunpack.c.l.b16 %v2586
  %v2651 = vunpack.c.l.b16 %v2587
  %v2652 = vunpack.c.l.b16 %v2588
  %v2653 = vunpack.c.l.b16 %v2589
  %v2654 = vunpack.c.l.b16 %v2590
  %v2655 = vunpack.c.l.b16 %v2591
  %v2656 = vunpack.c.l.b16 %v2592
  %v2657 = vunpack.c.l.b16 %v2593
  %v2658 = vunpack.c.l.b16 %v2594
  %v2659 = vunpack.c.l.b16 %v2595
  %v2660 = vunpack.c.l.b16 %v2596
  %v2661 = vunpack.c.l.b16 %v2597
  %v2662 = vunpack.c.l.b16 %v2598
  %v2663 = vunpack.c.l.b16 %v2599
  %v2664 = vunpack.c.l.b16 %v2600
  %v2665 = vunpack.c.l.b16 %v2601
  %v2666 = vunpack.c.l.b16 %v2602
  %v2667 = vunpack.c.l.b16 %v2603
  %v2668 = vunpack.c.l.b16 %v2604
  %v2669 = vunpack.c.l.b16 %v2605
  %v2670 = vunpack.c.l.b16 %v2606
  %v2671 = vunpack.c.l.b16 %v2607
  %v2672 = vunpack.c.l.b16 %v2608
  %v2673 = vunpack.c.l.b16 %v2609
  %v2674 = vunpack.c.l.b16 %v2610
  %v2675 = vunpack.c.l.b16 %v2611
  %v2676 = vunpack.c.l.b16 %v2612
  %v2677 = vunpack.c.l.b16 %v2613
  %v2678 = vunpack.c.l.b16 %v2614
  %v2679 = vpack.c.b16 %v2648, %v2647
  %v2680 = vpack.c.b16 %v2650, %v2649
  %v2681 = vpack.c.b16 %v2652, %v2651
  %v2682 = vpack.c.b16 %v2654, %v2653
  %v2683 = vpack.c.b16 %v2656, %v2655
  %v2684 = vpack.c.b16 %v2658, %v2657
  %v2685 = vpack.c.b16 %v2660, %v2659
  %v2686 = vpack.c.b16 %v2662, %v2661
  %v2687 = vpack.c.b16 %v2664, %v2663
  %v2688 = vpack.c.b16 %v2666, %v2665
  %v2689 = vpack.c.b16 %v2668, %v2667
  %v2690 = vpack.c.b16 %v2670, %v2669
  %v2691 = vpack.c.b16 %v2672, %v2671
  %v2692 = vpack.c.b16 %v2674, %v2673
  %v2693 = vpack.c.b16 %v2676, %v2675
  %v2694 = vpack.c.b16 %v2678, %v2677
  %2711 = vmatprep.subr.bf16.mxu0 0
  %2712 = vmatpush1.bf16.msra.mxu0 %v2679
  %2713 = vmatprep.subr.bf16.mxu0 0
  %2714 = vmatpush1.bf16.msra.mxu0 %v2680
  %2715 = vmatprep.subr.bf16.mxu0 0
  %2716 = vmatpush1.bf16.msra.mxu0 %v2681
  %2717 = vmatprep.subr.bf16.mxu0 0
  %2718 = vmatpush1.bf16.msra.mxu0 %v2682
  %2719 = vmatprep.subr.bf16.mxu0 0
  %2720 = vmatpush1.bf16.msra.mxu0 %v2683
  %2721 = vmatprep.subr.bf16.mxu0 0
  %2722 = vmatpush1.bf16.msra.mxu0 %v2684
  %2723 = vmatprep.subr.bf16.mxu0 0
  %2724 = vmatpush1.bf16.msra.mxu0 %v2685
  %2725 = vmatprep.subr.bf16.mxu0 0
  %2726 = vmatpush1.bf16.msra.mxu0 %v2686
  %2727 = vmatprep.subr.bf16.mxu0 0
  %2728 = vmatpush1.bf16.msra.mxu0 %v2687
  %2729 = vmatprep.subr.bf16.mxu0 0
  %2730 = vmatpush1.bf16.msra.mxu0 %v2688
  %2731 = vmatprep.subr.bf16.mxu0 0
  %2732 = vmatpush1.bf16.msra.mxu0 %v2689
  %2733 = vmatprep.subr.bf16.mxu0 0
  %2734 = vmatpush1.bf16.msra.mxu0 %v2690
  %2735 = vmatprep.subr.bf16.mxu0 0
  %2736 = vmatpush1.bf16.msra.mxu0 %v2691
  %2737 = vmatprep.subr.bf16.mxu0 0
  %2738 = vmatpush1.bf16.msra.mxu0 %v2692
  %2739 = vmatprep.subr.bf16.mxu0 0
  %2740 = vmatpush1.bf16.msra.mxu0 %v2693
  %2741 = vmatprep.subr.bf16.mxu0 0
  %2742 = vmatpush1.bf16.msra.mxu0 %v2694
  %2743 = vmatprep.mubr.bf16.mxu0 %v64
  %2744 = vmatmul.mubr.bf16.gmra.mrb[0].mxu0 %v63
  %v2745 = vpop.f32.mrb[0].mxu0
  %v2746 = vadd.f32 0.0, %v2745
  %v2747 = vpop.f32.mrb[0].mxu0
  %v2748 = vpop.f32.mrb[0].mxu0
  %v2749 = vadd.f32 0.0, %v2748
  %v2750 = vpop.f32.mrb[0].mxu0
  %2751 = vmatprep.mubr.bf16.mxu0 %v66
  %2752 = vmatmul.mubr.bf16.gmra.mrb[0].mxu0 %v65
  %v2753 = vpop.f32.mrb[0].mxu0
  %v2754 = vadd.f32 0.0, %v2753
  %v2755 = vpop.f32.mrb[0].mxu0
  %v2756 = vpop.f32.mrb[0].mxu0
  %v2757 = vadd.f32 0.0, %v2756
  %v2758 = vpop.f32.mrb[0].mxu0
  %2759 = vdwg.mxu0
  %v2760 = vmax.f32 %v2578, %v2746
  %v2761 = vmax.f32 %v2579, %v2749
  %v2762 = vmax.f32 %v2580, %v2754
  %v2763 = vmax.f32 %v2581, %v2757
  %s2764 = scalar_lea.vmem %s0, 1920
  %v2765 = vld [vmem:[%s2764] sm:$0xf]
  %v2766 = vld [vmem:[%s2764 + $0x4] sm:$0xf]
  %v2767 = vld [vmem:[%s2764 + $0x8] sm:$0xf]
  %v2768 = vld [vmem:[%s2764 + $0xc] sm:$0xf]
  %v2769 = vld [vmem:[%s2764 + $0x10] sm:$0xf]
  %v2770 = vld [vmem:[%s2764 + $0x14] sm:$0xf]
  %v2771 = vld [vmem:[%s2764 + $0x18] sm:$0xf]
  %v2772 = vld [vmem:[%s2764 + $0x1c] sm:$0xf]
  %v2773 = vld [vmem:[%s2764 + $0x20] sm:$0xf]
  %v2774 = vld [vmem:[%s2764 + $0x24] sm:$0xf]
  %v2775 = vld [vmem:[%s2764 + $0x28] sm:$0xf]
  %v2776 = vld [vmem:[%s2764 + $0x2c] sm:$0xf]
  %v2777 = vld [vmem:[%s2764 + $0x30] sm:$0xf]
  %v2778 = vld [vmem:[%s2764 + $0x34] sm:$0xf]
  %v2779 = vld [vmem:[%s2764 + $0x38] sm:$0xf]
  %v2780 = vld [vmem:[%s2764 + $0x3c] sm:$0xf]
  %v2781 = vld [vmem:[%s2764 + $0x40] sm:$0xf]
  %v2782 = vld [vmem:[%s2764 + $0x44] sm:$0xf]
  %v2783 = vld [vmem:[%s2764 + $0x48] sm:$0xf]
  %v2784 = vld [vmem:[%s2764 + $0x4c] sm:$0xf]
  %v2785 = vld [vmem:[%s2764 + $0x50] sm:$0xf]
  %v2786 = vld [vmem:[%s2764 + $0x54] sm:$0xf]
  %v2787 = vld [vmem:[%s2764 + $0x58] sm:$0xf]
  %v2788 = vld [vmem:[%s2764 + $0x5c] sm:$0xf]
  %v2789 = vld [vmem:[%s2764 + $0x60] sm:$0xf]
  %v2790 = vld [vmem:[%s2764 + $0x64] sm:$0xf]
  %v2791 = vld [vmem:[%s2764 + $0x68] sm:$0xf]
  %v2792 = vld [vmem:[%s2764 + $0x6c] sm:$0xf]
  %v2793 = vld [vmem:[%s2764 + $0x70] sm:$0xf]
  %v2794 = vld [vmem:[%s2764 + $0x74] sm:$0xf]
  %v2795 = vld [vmem:[%s2764 + $0x78] sm:$0xf]
  %v2796 = vld [vmem:[%s2764 + $0x7c] sm:$0xf]
  %v2829 = vunpack.c.l.b16 %v2765
  %v2830 = vunpack.c.l.b16 %v2766
  %v2831 = vunpack.c.l.b16 %v2767
  %v2832 = vunpack.c.l.b16 %v2768
  %v2833 = vunpack.c.l.b16 %v2769
  %v2834 = vunpack.c.l.b16 %v2770
  %v2835 = vunpack.c.l.b16 %v2771
  %v2836 = vunpack.c.l.b16 %v2772
  %v2837 = vunpack.c.l.b16 %v2773
  %v2838 = vunpack.c.l.b16 %v2774
  %v2839 = vunpack.c.l.b16 %v2775
  %v2840 = vunpack.c.l.b16 %v2776
  %v2841 = vunpack.c.l.b16 %v2777
  %v2842 = vunpack.c.l.b16 %v2778
  %v2843 = vunpack.c.l.b16 %v2779
  %v2844 = vunpack.c.l.b16 %v2780
  %v2845 = vunpack.c.l.b16 %v2781
  %v2846 = vunpack.c.l.b16 %v2782
  %v2847 = vunpack.c.l.b16 %v2783
  %v2848 = vunpack.c.l.b16 %v2784
  %v2849 = vunpack.c.l.b16 %v2785
  %v2850 = vunpack.c.l.b16 %v2786
  %v2851 = vunpack.c.l.b16 %v2787
  %v2852 = vunpack.c.l.b16 %v2788
  %v2853 = vunpack.c.l.b16 %v2789
  %v2854 = vunpack.c.l.b16 %v2790
  %v2855 = vunpack.c.l.b16 %v2791
  %v2856 = vunpack.c.l.b16 %v2792
  %v2857 = vunpack.c.l.b16 %v2793
  %v2858 = vunpack.c.l.b16 %v2794
  %v2859 = vunpack.c.l.b16 %v2795
  %v2860 = vunpack.c.l.b16 %v2796
  %v2861 = vpack.c.b16 %v2830, %v2829
  %v2862 = vpack.c.b16 %v2832, %v2831
  %v2863 = vpack.c.b16 %v2834, %v2833
  %v2864 = vpack.c.b16 %v2836, %v2835
  %v2865 = vpack.c.b16 %v2838, %v2837
  %v2866 = vpack.c.b16 %v2840, %v2839
  %v2867 = vpack.c.b16 %v2842, %v2841
  %v2868 = vpack.c.b16 %v2844, %v2843
  %v2869 = vpack.c.b16 %v2846, %v2845
  %v2870 = vpack.c.b16 %v2848, %v2847
  %v2871 = vpack.c.b16 %v2850, %v2849
  %v2872 = vpack.c.b16 %v2852, %v2851
  %v2873 = vpack.c.b16 %v2854, %v2853
  %v2874 = vpack.c.b16 %v2856, %v2855
  %v2875 = vpack.c.b16 %v2858, %v2857
  %v2876 = vpack.c.b16 %v2860, %v2859
  %2893 = vmatprep.subr.bf16.mxu0 0
  %2894 = vmatpush1.bf16.msra.mxu0 %v2861
  %2895 = vmatprep.subr.bf16.mxu0 0
  %2896 = vmatpush1.bf16.msra.mxu0 %v2862
  %2897 = vmatprep.subr.bf16.mxu0 0
  %2898 = vmatpush1.bf16.msra.mxu0 %v2863
  %2899 = vmatprep.subr.bf16.mxu0 0
  %2900 = vmatpush1.bf16.msra.mxu0 %v2864
  %2901 = vmatprep.subr.bf16.mxu0 0
  %2902 = vmatpush1.bf16.msra.mxu0 %v2865
  %2903 = vmatprep.subr.bf16.mxu0 0
  %2904 = vmatpush1.bf16.msra.mxu0 %v2866
  %2905 = vmatprep.subr.bf16.mxu0 0
  %2906 = vmatpush1.bf16.msra.mxu0 %v2867
  %2907 = vmatprep.subr.bf16.mxu0 0
  %2908 = vmatpush1.bf16.msra.mxu0 %v2868
  %2909 = vmatprep.subr.bf16.mxu0 0
  %2910 = vmatpush1.bf16.msra.mxu0 %v2869
  %2911 = vmatprep.subr.bf16.mxu0 0
  %2912 = vmatpush1.bf16.msra.mxu0 %v2870
  %2913 = vmatprep.subr.bf16.mxu0 0
  %2914 = vmatpush1.bf16.msra.mxu0 %v2871
  %2915 = vmatprep.subr.bf16.mxu0 0
  %2916 = vmatpush1.bf16.msra.mxu0 %v2872
  %2917 = vmatprep.subr.bf16.mxu0 0
  %2918 = vmatpush1.bf16.msra.mxu0 %v2873
  %2919 = vmatprep.subr.bf16.mxu0 0
  %2920 = vmatpush1.bf16.msra.mxu0 %v2874
  %2921 = vmatprep.subr.bf16.mxu0 0
  %2922 = vmatpush1.bf16.msra.mxu0 %v2875
  %2923 = vmatprep.subr.bf16.mxu0 0
  %2924 = vmatpush1.bf16.msra.mxu0 %v2876
  %2925 = vmatprep.mubr.bf16.mxu0 %v64
  %2926 = vmatmul.mubr.bf16.gmra.mrb[0].mxu0 %v63
  %v2927 = vpop.f32.mrb[0].mxu0
  %v2928 = vadd.f32 0.0, %v2927
  %v2929 = vpop.f32.mrb[0].mxu0
  %v2930 = vpop.f32.mrb[0].mxu0
  %v2931 = vadd.f32 0.0, %v2930
  %v2932 = vpop.f32.mrb[0].mxu0
  %2933 = vmatprep.mubr.bf16.mxu0 %v66
  %2934 = vmatmul.mubr.bf16.gmra.mrb[0].mxu0 %v65
  %v2935 = vpop.f32.mrb[0].mxu0
  %v2936 = vadd.f32 0.0, %v2935
  %v2937 = vpop.f32.mrb[0].mxu0
  %v2938 = vpop.f32.mrb[0].mxu0
  %v2939 = vadd.f32 0.0, %v2938
  %v2940 = vpop.f32.mrb[0].mxu0
  %2941 = vdwg.mxu0
  %v2942 = vmax.f32 %v2760, %v2928
  %v2943 = vmax.f32 %v2761, %v2931
  %v2944 = vmax.f32 %v2762, %v2936
  %v2945 = vmax.f32 %v2763, %v2939
  %v2946 = vld [vmem:[%s2] sm:$0xff]
  %v2947 = vld [vmem:[%s2 + $0x8] sm:$0xff]
  %v2948 = vld [vmem:[%s2 + $0x10] sm:$0xff]
  %v2949 = vld [vmem:[%s2 + $0x18] sm:$0xff]
  %2951 = vset.pattern.permute.xlu0 0
  %2952 = vperm.xlu0 %2951, %v2946
  %v2953 = vpop.permute.xlu0 %2952
  %2956 = vset.pattern.permute.xlu0 0
  %2957 = vperm.xlu0 %2956, %v2947
  %v2958 = vpop.permute.xlu0 %2957
  %2961 = vset.pattern.permute.xlu0 0
  %2962 = vperm.xlu0 %2961, %v2948
  %v2963 = vpop.permute.xlu0 %2962
  %2966 = vset.pattern.permute.xlu0 0
  %2967 = vperm.xlu0 %2966, %v2949
  %v2968 = vpop.permute.xlu0 %2967
  %v2970 = vadd.f32 %v2942, %v2953
  %v2971 = vadd.f32 %v2943, %v2958
  %v2972 = vadd.f32 %v2944, %v2963
  %v2973 = vadd.f32 %v2945, %v2968
  %v2974 = vmax.f32 %v2970, 0.0
  %v2975 = vmax.f32 %v2971, 0.0
  %v2976 = vmax.f32 %v2972, 0.0
  %v2977 = vmax.f32 %v2973, 0.0
  %v2978 = vpack.c.bf16 %v2975, %v2974
  %v2979 = vpack.c.bf16 %v2977, %v2976
  %v2982 = vunpack.c.l.b16 %v2978
  %v2983 = vunpack.c.h.b16 %v2978
  %v2984 = vunpack.c.l.b16 %v2979
  %v2985 = vunpack.c.h.b16 %v2979
  %v2986 = vpack.c.b16 %v2982, %v2982
  %v2987 = vpack.c.b16 %v2983, %v2983
  %v2988 = vpack.c.b16 %v2984, %v2984
  %v2989 = vpack.c.b16 %v2985, %v2985
  %2994 = vst [vmem:[%s3] sm:$0xf] %v2986
  %2995 = vst [vmem:[%s3 + $0x4] sm:$0xf] %v2987
  %2996 = vst [vmem:[%s3 + $0x8] sm:$0xf] %v2988
  %2997 = vst [vmem:[%s3 + $0xc] sm:$0xf] %v2989
  // Predicated region
  $region14: #{critic_forward.6} parent=0 // pred_check
    _
  $region15: #{critic_forward.6} parent=0 // pred_check_branch
    %2999 = sbr.rel (0) target = $region17
  $region16: #{critic_forward.6} parent=0 // pred_region
    _
  $region17: #{critic_forward.6} parent=0 // pred_fallthru
    _
  // Predicated region
  $region18: #{critic_forward.6} parent=0 // pred_check
    _
  $region19: #{critic_forward.6} parent=0 // pred_check_branch
    %3001 = sbr.rel (0) target = $region21
  $region20: #{critic_forward.6} parent=0 // pred_region
    _
  $region21: #{critic_forward.6} parent=0 // pred_fallthru
    _

// kernel: critic_forward.7
$region0: #{critic_forward.7}
  #allocation0 [shape = 'u32[]', space=smem, size = 0x4, offset = 0x4, fixed_abs, tag = 'smem constant byte address 0x4 - core index']
  #allocation1 [shape = 'u32[144,128]{1,0:T(1,128)}', space=vmem, size = 0x12000, scoped, tag = 'internal scratch']
  %s0 = inlined_call_operand.vmem [shape: bf16[4,256,128], index: 0, kind: input, shape index: {}]
  %s1 = inlined_call_operand.vmem [shape: bf16[16,256], index: 1, kind: input, shape index: {}]
  %s2 = inlined_call_operand.vmem [shape: f32[16,1], index: 2, kind: input, shape index: {}]
  %s3 = inlined_call_operand.vmem [shape: bf16[16,128], index: 3, kind: output, shape index: {}]
  %s4 = sld [smem:[#allocation0]]
  $region22: #{critic_forward.7} parent=0
    _
  %s6 = ssub.s32 1, %s4
  %s7 = scalar_select 0, %s6, %s4
  // Predicated region
  $region2: #{critic_forward.7} parent=0 // pred_check
    _
  $region3: #{critic_forward.7} parent=0 // pred_check_branch
    %9 = sbr.rel (0) target = $region5
  $region4: #{critic_forward.7} parent=0 // pred_region
    _
  $region5: #{critic_forward.7} parent=0 // pred_fallthru
    _
  // Predicated region
  $region6: #{critic_forward.7} parent=0 // pred_check
    _
  $region7: #{critic_forward.7} parent=0 // pred_check_branch
    %11 = sbr.rel (0) target = $region9
  $region8: #{critic_forward.7} parent=0 // pred_region
    _
  $region9: #{critic_forward.7} parent=0 // pred_fallthru
    _
  // Predicated region
  $region10: #{critic_forward.7} parent=0 // pred_check
    _
  $region11: #{critic_forward.7} parent=0 // pred_check_branch
    %13 = sbr.rel (0) target = $region13
  $region12: #{critic_forward.7} parent=0 // pred_region
    _
  $region13: #{critic_forward.7} parent=0 // pred_fallthru
    _
  %v15 = vld [vmem:[%s1] sm:$0xff]
  %v16 = vld [vmem:[%s1 + $0x8] sm:$0xff]
  %v17 = vld [vmem:[%s0] sm:$0xf]
  %v18 = vld [vmem:[%s0 + $0x4] sm:$0xf]
  %v19 = vld [vmem:[%s0 + $0x8] sm:$0xf]
  %v20 = vld [vmem:[%s0 + $0xc] sm:$0xf]
  %v21 = vld [vmem:[%s0 + $0x10] sm:$0xf]
  %v22 = vld [vmem:[%s0 + $0x14] sm:$0xf]
  %v23 = vld [vmem:[%s0 + $0x18] sm:$0xf]
  %v24 = vld [vmem:[%s0 + $0x1c] sm:$0xf]
  %v25 = vld [vmem:[%s0 + $0x20] sm:$0xf]
  %v26 = vld [vmem:[%s0 + $0x24] sm:$0xf]
  %v27 = vld [vmem:[%s0 + $0x28] sm:$0xf]
  %v28 = vld [vmem:[%s0 + $0x2c] sm:$0xf]
  %v29 = vld [vmem:[%s0 + $0x30] sm:$0xf]
  %v30 = vld [vmem:[%s0 + $0x34] sm:$0xf]
  %v31 = vld [vmem:[%s0 + $0x38] sm:$0xf]
  %v32 = vld [vmem:[%s0 + $0x3c] sm:$0xf]
  %v33 = vld [vmem:[%s0 + $0x40] sm:$0xf]
  %v34 = vld [vmem:[%s0 + $0x44] sm:$0xf]
  %v35 = vld [vmem:[%s0 + $0x48] sm:$0xf]
  %v36 = vld [vmem:[%s0 + $0x4c] sm:$0xf]
  %v37 = vld [vmem:[%s0 + $0x50] sm:$0xf]
  %v38 = vld [vmem:[%s0 + $0x54] sm:$0xf]
  %v39 = vld [vmem:[%s0 + $0x58] sm:$0xf]
  %v40 = vld [vmem:[%s0 + $0x5c] sm:$0xf]
  %v41 = vld [vmem:[%s0 + $0x60] sm:$0xf]
  %v42 = vld [vmem:[%s0 + $0x64] sm:$0xf]
  %v43 = vld [vmem:[%s0 + $0x68] sm:$0xf]
  %v44 = vld [vmem:[%s0 + $0x6c] sm:$0xf]
  %v45 = vld [vmem:[%s0 + $0x70] sm:$0xf]
  %v46 = vld [vmem:[%s0 + $0x74] sm:$0xf]
  %v47 = vld [vmem:[%s0 + $0x78] sm:$0xf]
  %v48 = vld [vmem:[%s0 + $0x7c] sm:$0xf]
  %v51 = vunpack.c.l.b16 %v15
  %v52 = vunpack.c.h.b16 %v15
  %v53 = vunpack.c.l.b16 %v16
  %v54 = vunpack.c.h.b16 %v16
  %v55 = vpack.c.b16 %v53, %v51
  %v56 = vpack.c.b16 %v54, %v52
  %v91 = vunpack.c.l.b16 %v17
  %v92 = vunpack.c.l.b16 %v18
  %v93 = vunpack.c.l.b16 %v19
  %v94 = vunpack.c.l.b16 %v20
  %v95 = vunpack.c.l.b16 %v21
  %v96 = vunpack.c.l.b16 %v22
  %v97 = vunpack.c.l.b16 %v23
  %v98 = vunpack.c.l.b16 %v24
  %v99 = vunpack.c.l.b16 %v25
  %v100 = vunpack.c.l.b16 %v26
  %v101 = vunpack.c.l.b16 %v27
  %v102 = vunpack.c.l.b16 %v28
  %v103 = vunpack.c.l.b16 %v29
  %v104 = vunpack.c.l.b16 %v30
  %v105 = vunpack.c.l.b16 %v31
  %v106 = vunpack.c.l.b16 %v32
  %v107 = vunpack.c.l.b16 %v33
  %v108 = vunpack.c.l.b16 %v34
  %v109 = vunpack.c.l.b16 %v35
  %v110 = vunpack.c.l.b16 %v36
  %v111 = vunpack.c.l.b16 %v37
  %v112 = vunpack.c.l.b16 %v38
  %v113 = vunpack.c.l.b16 %v39
  %v114 = vunpack.c.l.b16 %v40
  %v115 = vunpack.c.l.b16 %v41
  %v116 = vunpack.c.l.b16 %v42
  %v117 = vunpack.c.l.b16 %v43
  %v118 = vunpack.c.l.b16 %v44
  %v119 = vunpack.c.l.b16 %v45
  %v120 = vunpack.c.l.b16 %v46
  %v121 = vunpack.c.l.b16 %v47
  %v122 = vunpack.c.l.b16 %v48
  %v123 = vpack.c.b16 %v92, %v91
  %v124 = vpack.c.b16 %v94, %v93
  %v125 = vpack.c.b16 %v96, %v95
  %v126 = vpack.c.b16 %v98, %v97
  %v127 = vpack.c.b16 %v100, %v99
  %v128 = vpack.c.b16 %v102, %v101
  %v129 = vpack.c.b16 %v104, %v103
  %v130 = vpack.c.b16 %v106, %v105
  %v131 = vpack.c.b16 %v108, %v107
  %v132 = vpack.c.b16 %v110, %v109
  %v133 = vpack.c.b16 %v112, %v111
  %v134 = vpack.c.b16 %v114, %v113
  %v135 = vpack.c.b16 %v116, %v115
  %v136 = vpack.c.b16 %v118, %v117
  %v137 = vpack.c.b16 %v120, %v119
  %v138 = vpack.c.b16 %v122, %v121
  %155 = vmatprep.subr.bf16.mxu0 0
  %156 = vmatpush1.bf16.msra.mxu0 %v123
  %157 = vmatprep.subr.bf16.mxu0 0
  %158 = vmatpush1.bf16.msra.mxu0 %v124
  %159 = vmatprep.subr.bf16.mxu0 0
  %160 = vmatpush1.bf16.msra.mxu0 %v125
  %161 = vmatprep.subr.bf16.mxu0 0
  %162 = vmatpush1.bf16.msra.mxu0 %v126
  %163 = vmatprep.subr.bf16.mxu0 0
  %164 = vmatpush1.bf16.msra.mxu0 %v127
  %165 = vmatprep.subr.bf16.mxu0 0
  %166 = vmatpush1.bf16.msra.mxu0 %v128
  %167 = vmatprep.subr.bf16.mxu0 0
  %168 = vmatpush1.bf16.msra.mxu0 %v129
  %169 = vmatprep.subr.bf16.mxu0 0
  %170 = vmatpush1.bf16.msra.mxu0 %v130
  %171 = vmatprep.subr.bf16.mxu0 0
  %172 = vmatpush1.bf16.msra.mxu0 %v131
  %173 = vmatprep.subr.bf16.mxu0 0
  %174 = vmatpush1.bf16.msra.mxu0 %v132
  %175 = vmatprep.subr.bf16.mxu0 0
  %176 = vmatpush1.bf16.msra.mxu0 %v133
  %177 = vmatprep.subr.bf16.mxu0 0
  %178 = vmatpush1.bf16.msra.mxu0 %v134
  %179 = vmatprep.subr.bf16.mxu0 0
  %180 = vmatpush1.bf16.msra.mxu0 %v135
  %181 = vmatprep.subr.bf16.mxu0 0
  %182 = vmatpush1.bf16.msra.mxu0 %v136
  %183 = vmatprep.subr.bf16.mxu0 0
  %184 = vmatpush1.bf16.msra.mxu0 %v137
  %185 = vmatprep.subr.bf16.mxu0 0
  %186 = vmatpush1.bf16.msra.mxu0 %v138
  %187 = vmatprep.mubr.bf16.mxu0 %v56
  %188 = vmatmul.mubr.bf16.gmra.mrb[0].mxu0 %v55
  %v189 = vpop.f32.mrb[0].mxu0
  %v190 = vadd.f32 0.0, %v189
  %v191 = vpop.f32.mrb[0].mxu0
  %v192 = vpop.f32.mrb[0].mxu0
  %v193 = vadd.f32 0.0, %v192
  %v194 = vpop.f32.mrb[0].mxu0
  %195 = vdwg.mxu0
  %s196 = scalar_lea.vmem %s0, 128
  %v197 = vld [vmem:[%s196] sm:$0xf]
  %v198 = vld [vmem:[%s196 + $0x4] sm:$0xf]
  %v199 = vld [vmem:[%s196 + $0x8] sm:$0xf]
  %v200 = vld [vmem:[%s196 + $0xc] sm:$0xf]
  %v201 = vld [vmem:[%s196 + $0x10] sm:$0xf]
  %v202 = vld [vmem:[%s196 + $0x14] sm:$0xf]
  %v203 = vld [vmem:[%s196 + $0x18] sm:$0xf]
  %v204 = vld [vmem:[%s196 + $0x1c] sm:$0xf]
  %v205 = vld [vmem:[%s196 + $0x20] sm:$0xf]
  %v206 = vld [vmem:[%s196 + $0x24] sm:$0xf]
  %v207 = vld [vmem:[%s196 + $0x28] sm:$0xf]
  %v208 = vld [vmem:[%s196 + $0x2c] sm:$0xf]
  %v209 = vld [vmem:[%s196 + $0x30] sm:$0xf]
  %v210 = vld [vmem:[%s196 + $0x34] sm:$0xf]
  %v211 = vld [vmem:[%s196 + $0x38] sm:$0xf]
  %v212 = vld [vmem:[%s196 + $0x3c] sm:$0xf]
  %v213 = vld [vmem:[%s196 + $0x40] sm:$0xf]
  %v214 = vld [vmem:[%s196 + $0x44] sm:$0xf]
  %v215 = vld [vmem:[%s196 + $0x48] sm:$0xf]
  %v216 = vld [vmem:[%s196 + $0x4c] sm:$0xf]
  %v217 = vld [vmem:[%s196 + $0x50] sm:$0xf]
  %v218 = vld [vmem:[%s196 + $0x54] sm:$0xf]
  %v219 = vld [vmem:[%s196 + $0x58] sm:$0xf]
  %v220 = vld [vmem:[%s196 + $0x5c] sm:$0xf]
  %v221 = vld [vmem:[%s196 + $0x60] sm:$0xf]
  %v222 = vld [vmem:[%s196 + $0x64] sm:$0xf]
  %v223 = vld [vmem:[%s196 + $0x68] sm:$0xf]
  %v224 = vld [vmem:[%s196 + $0x6c] sm:$0xf]
  %v225 = vld [vmem:[%s196 + $0x70] sm:$0xf]
  %v226 = vld [vmem:[%s196 + $0x74] sm:$0xf]
  %v227 = vld [vmem:[%s196 + $0x78] sm:$0xf]
  %v228 = vld [vmem:[%s196 + $0x7c] sm:$0xf]
  %v261 = vunpack.c.l.b16 %v197
  %v262 = vunpack.c.l.b16 %v198
  %v263 = vunpack.c.l.b16 %v199
  %v264 = vunpack.c.l.b16 %v200
  %v265 = vunpack.c.l.b16 %v201
  %v266 = vunpack.c.l.b16 %v202
  %v267 = vunpack.c.l.b16 %v203
  %v268 = vunpack.c.l.b16 %v204
  %v269 = vunpack.c.l.b16 %v205
  %v270 = vunpack.c.l.b16 %v206
  %v271 = vunpack.c.l.b16 %v207
  %v272 = vunpack.c.l.b16 %v208
  %v273 = vunpack.c.l.b16 %v209
  %v274 = vunpack.c.l.b16 %v210
  %v275 = vunpack.c.l.b16 %v211
  %v276 = vunpack.c.l.b16 %v212
  %v277 = vunpack.c.l.b16 %v213
  %v278 = vunpack.c.l.b16 %v214
  %v279 = vunpack.c.l.b16 %v215
  %v280 = vunpack.c.l.b16 %v216
  %v281 = vunpack.c.l.b16 %v217
  %v282 = vunpack.c.l.b16 %v218
  %v283 = vunpack.c.l.b16 %v219
  %v284 = vunpack.c.l.b16 %v220
  %v285 = vunpack.c.l.b16 %v221
  %v286 = vunpack.c.l.b16 %v222
  %v287 = vunpack.c.l.b16 %v223
  %v288 = vunpack.c.l.b16 %v224
  %v289 = vunpack.c.l.b16 %v225
  %v290 = vunpack.c.l.b16 %v226
  %v291 = vunpack.c.l.b16 %v227
  %v292 = vunpack.c.l.b16 %v228
  %v293 = vpack.c.b16 %v262, %v261
  %v294 = vpack.c.b16 %v264, %v263
  %v295 = vpack.c.b16 %v266, %v265
  %v296 = vpack.c.b16 %v268, %v267
  %v297 = vpack.c.b16 %v270, %v269
  %v298 = vpack.c.b16 %v272, %v271
  %v299 = vpack.c.b16 %v274, %v273
  %v300 = vpack.c.b16 %v276, %v275
  %v301 = vpack.c.b16 %v278, %v277
  %v302 = vpack.c.b16 %v280, %v279
  %v303 = vpack.c.b16 %v282, %v281
  %v304 = vpack.c.b16 %v284, %v283
  %v305 = vpack.c.b16 %v286, %v285
  %v306 = vpack.c.b16 %v288, %v287
  %v307 = vpack.c.b16 %v290, %v289
  %v308 = vpack.c.b16 %v292, %v291
  %325 = vmatprep.subr.bf16.mxu0 0
  %326 = vmatpush1.bf16.msra.mxu0 %v293
  %327 = vmatprep.subr.bf16.mxu0 0
  %328 = vmatpush1.bf16.msra.mxu0 %v294
  %329 = vmatprep.subr.bf16.mxu0 0
  %330 = vmatpush1.bf16.msra.mxu0 %v295
  %331 = vmatprep.subr.bf16.mxu0 0
  %332 = vmatpush1.bf16.msra.mxu0 %v296
  %333 = vmatprep.subr.bf16.mxu0 0
  %334 = vmatpush1.bf16.msra.mxu0 %v297
  %335 = vmatprep.subr.bf16.mxu0 0
  %336 = vmatpush1.bf16.msra.mxu0 %v298
  %337 = vmatprep.subr.bf16.mxu0 0
  %338 = vmatpush1.bf16.msra.mxu0 %v299
  %339 = vmatprep.subr.bf16.mxu0 0
  %340 = vmatpush1.bf16.msra.mxu0 %v300
  %341 = vmatprep.subr.bf16.mxu0 0
  %342 = vmatpush1.bf16.msra.mxu0 %v301
  %343 = vmatprep.subr.bf16.mxu0 0
  %344 = vmatpush1.bf16.msra.mxu0 %v302
  %345 = vmatprep.subr.bf16.mxu0 0
  %346 = vmatpush1.bf16.msra.mxu0 %v303
  %347 = vmatprep.subr.bf16.mxu0 0
  %348 = vmatpush1.bf16.msra.mxu0 %v304
  %349 = vmatprep.subr.bf16.mxu0 0
  %350 = vmatpush1.bf16.msra.mxu0 %v305
  %351 = vmatprep.subr.bf16.mxu0 0
  %352 = vmatpush1.bf16.msra.mxu0 %v306
  %353 = vmatprep.subr.bf16.mxu0 0
  %354 = vmatpush1.bf16.msra.mxu0 %v307
  %355 = vmatprep.subr.bf16.mxu0 0
  %356 = vmatpush1.bf16.msra.mxu0 %v308
  %357 = vmatprep.mubr.bf16.mxu0 %v56
  %358 = vmatmul.mubr.bf16.gmra.mrb[0].mxu0 %v55
  %v359 = vpop.f32.mrb[0].mxu0
  %v360 = vadd.f32 0.0, %v359
  %v361 = vpop.f32.mrb[0].mxu0
  %v362 = vpop.f32.mrb[0].mxu0
  %v363 = vadd.f32 0.0, %v362
  %v364 = vpop.f32.mrb[0].mxu0
  %365 = vdwg.mxu0
  %v366 = vmax.f32 %v190, %v360
  %v367 = vmax.f32 %v193, %v363
  %s368 = scalar_lea.vmem %s0, 256
  %v369 = vld [vmem:[%s368] sm:$0xf]
  %v370 = vld [vmem:[%s368 + $0x4] sm:$0xf]
  %v371 = vld [vmem:[%s368 + $0x8] sm:$0xf]
  %v372 = vld [vmem:[%s368 + $0xc] sm:$0xf]
  %v373 = vld [vmem:[%s368 + $0x10] sm:$0xf]
  %v374 = vld [vmem:[%s368 + $0x14] sm:$0xf]
  %v375 = vld [vmem:[%s368 + $0x18] sm:$0xf]
  %v376 = vld [vmem:[%s368 + $0x1c] sm:$0xf]
  %v377 = vld [vmem:[%s368 + $0x20] sm:$0xf]
  %v378 = vld [vmem:[%s368 + $0x24] sm:$0xf]
  %v379 = vld [vmem:[%s368 + $0x28] sm:$0xf]
  %v380 = vld [vmem:[%s368 + $0x2c] sm:$0xf]
  %v381 = vld [vmem:[%s368 + $0x30] sm:$0xf]
  %v382 = vld [vmem:[%s368 + $0x34] sm:$0xf]
  %v383 = vld [vmem:[%s368 + $0x38] sm:$0xf]
  %v384 = vld [vmem:[%s368 + $0x3c] sm:$0xf]
  %v385 = vld [vmem:[%s368 + $0x40] sm:$0xf]
  %v386 = vld [vmem:[%s368 + $0x44] sm:$0xf]
  %v387 = vld [vmem:[%s368 + $0x48] sm:$0xf]
  %v388 = vld [vmem:[%s368 + $0x4c] sm:$0xf]
  %v389 = vld [vmem:[%s368 + $0x50] sm:$0xf]
  %v390 = vld [vmem:[%s368 + $0x54] sm:$0xf]
  %v391 = vld [vmem:[%s368 + $0x58] sm:$0xf]
  %v392 = vld [vmem:[%s368 + $0x5c] sm:$0xf]
  %v393 = vld [vmem:[%s368 + $0x60] sm:$0xf]
  %v394 = vld [vmem:[%s368 + $0x64] sm:$0xf]
  %v395 = vld [vmem:[%s368 + $0x68] sm:$0xf]
  %v396 = vld [vmem:[%s368 + $0x6c] sm:$0xf]
  %v397 = vld [vmem:[%s368 + $0x70] sm:$0xf]
  %v398 = vld [vmem:[%s368 + $0x74] sm:$0xf]
  %v399 = vld [vmem:[%s368 + $0x78] sm:$0xf]
  %v400 = vld [vmem:[%s368 + $0x7c] sm:$0xf]
  %v433 = vunpack.c.l.b16 %v369
  %v434 = vunpack.c.l.b16 %v370
  %v435 = vunpack.c.l.b16 %v371
  %v436 = vunpack.c.l.b16 %v372
  %v437 = vunpack.c.l.b16 %v373
  %v438 = vunpack.c.l.b16 %v374
  %v439 = vunpack.c.l.b16 %v375
  %v440 = vunpack.c.l.b16 %v376
  %v441 = vunpack.c.l.b16 %v377
  %v442 = vunpack.c.l.b16 %v378
  %v443 = vunpack.c.l.b16 %v379
  %v444 = vunpack.c.l.b16 %v380
  %v445 = vunpack.c.l.b16 %v381
  %v446 = vunpack.c.l.b16 %v382
  %v447 = vunpack.c.l.b16 %v383
  %v448 = vunpack.c.l.b16 %v384
  %v449 = vunpack.c.l.b16 %v385
  %v450 = vunpack.c.l.b16 %v386
  %v451 = vunpack.c.l.b16 %v387
  %v452 = vunpack.c.l.b16 %v388
  %v453 = vunpack.c.l.b16 %v389
  %v454 = vunpack.c.l.b16 %v390
  %v455 = vunpack.c.l.b16 %v391
  %v456 = vunpack.c.l.b16 %v392
  %v457 = vunpack.c.l.b16 %v393
  %v458 = vunpack.c.l.b16 %v394
  %v459 = vunpack.c.l.b16 %v395
  %v460 = vunpack.c.l.b16 %v396
  %v461 = vunpack.c.l.b16 %v397
  %v462 = vunpack.c.l.b16 %v398
  %v463 = vunpack.c.l.b16 %v399
  %v464 = vunpack.c.l.b16 %v400
  %v465 = vpack.c.b16 %v434, %v433
  %v466 = vpack.c.b16 %v436, %v435
  %v467 = vpack.c.b16 %v438, %v437
  %v468 = vpack.c.b16 %v440, %v439
  %v469 = vpack.c.b16 %v442, %v441
  %v470 = vpack.c.b16 %v444, %v443
  %v471 = vpack.c.b16 %v446, %v445
  %v472 = vpack.c.b16 %v448, %v447
  %v473 = vpack.c.b16 %v450, %v449
  %v474 = vpack.c.b16 %v452, %v451
  %v475 = vpack.c.b16 %v454, %v453
  %v476 = vpack.c.b16 %v456, %v455
  %v477 = vpack.c.b16 %v458, %v457
  %v478 = vpack.c.b16 %v460, %v459
  %v479 = vpack.c.b16 %v462, %v461
  %v480 = vpack.c.b16 %v464, %v463
  %497 = vmatprep.subr.bf16.mxu0 0
  %498 = vmatpush1.bf16.msra.mxu0 %v465
  %499 = vmatprep.subr.bf16.mxu0 0
  %500 = vmatpush1.bf16.msra.mxu0 %v466
  %501 = vmatprep.subr.bf16.mxu0 0
  %502 = vmatpush1.bf16.msra.mxu0 %v467
  %503 = vmatprep.subr.bf16.mxu0 0
  %504 = vmatpush1.bf16.msra.mxu0 %v468
  %505 = vmatprep.subr.bf16.mxu0 0
  %506 = vmatpush1.bf16.msra.mxu0 %v469
  %507 = vmatprep.subr.bf16.mxu0 0
  %508 = vmatpush1.bf16.msra.mxu0 %v470
  %509 = vmatprep.subr.bf16.mxu0 0
  %510 = vmatpush1.bf16.msra.mxu0 %v471
  %511 = vmatprep.subr.bf16.mxu0 0
  %512 = vmatpush1.bf16.msra.mxu0 %v472
  %513 = vmatprep.subr.bf16.mxu0 0
  %514 = vmatpush1.bf16.msra.mxu0 %v473
  %515 = vmatprep.subr.bf16.mxu0 0
  %516 = vmatpush1.bf16.msra.mxu0 %v474
  %517 = vmatprep.subr.bf16.mxu0 0
  %518 = vmatpush1.bf16.msra.mxu0 %v475
  %519 = vmatprep.subr.bf16.mxu0 0
  %520 = vmatpush1.bf16.msra.mxu0 %v476
  %521 = vmatprep.subr.bf16.mxu0 0
  %522 = vmatpush1.bf16.msra.mxu0 %v477
  %523 = vmatprep.subr.bf16.mxu0 0
  %524 = vmatpush1.bf16.msra.mxu0 %v478
  %525 = vmatprep.subr.bf16.mxu0 0
  %526 = vmatpush1.bf16.msra.mxu0 %v479
  %527 = vmatprep.subr.bf16.mxu0 0
  %528 = vmatpush1.bf16.msra.mxu0 %v480
  %529 = vmatprep.mubr.bf16.mxu0 %v56
  %530 = vmatmul.mubr.bf16.gmra.mrb[0].mxu0 %v55
  %v531 = vpop.f32.mrb[0].mxu0
  %v532 = vadd.f32 0.0, %v531
  %v533 = vpop.f32.mrb[0].mxu0
  %v534 = vpop.f32.mrb[0].mxu0
  %v535 = vadd.f32 0.0, %v534
  %v536 = vpop.f32.mrb[0].mxu0
  %537 = vdwg.mxu0
  %v538 = vmax.f32 %v366, %v532
  %v539 = vmax.f32 %v367, %v535
  %s540 = scalar_lea.vmem %s0, 384
  %v541 = vld [vmem:[%s540] sm:$0xf]
  %v542 = vld [vmem:[%s540 + $0x4] sm:$0xf]
  %v543 = vld [vmem:[%s540 + $0x8] sm:$0xf]
  %v544 = vld [vmem:[%s540 + $0xc] sm:$0xf]
  %v545 = vld [vmem:[%s540 + $0x10] sm:$0xf]
  %v546 = vld [vmem:[%s540 + $0x14] sm:$0xf]
  %v547 = vld [vmem:[%s540 + $0x18] sm:$0xf]
  %v548 = vld [vmem:[%s540 + $0x1c] sm:$0xf]
  %v549 = vld [vmem:[%s540 + $0x20] sm:$0xf]
  %v550 = vld [vmem:[%s540 + $0x24] sm:$0xf]
  %v551 = vld [vmem:[%s540 + $0x28] sm:$0xf]
  %v552 = vld [vmem:[%s540 + $0x2c] sm:$0xf]
  %v553 = vld [vmem:[%s540 + $0x30] sm:$0xf]
  %v554 = vld [vmem:[%s540 + $0x34] sm:$0xf]
  %v555 = vld [vmem:[%s540 + $0x38] sm:$0xf]
  %v556 = vld [vmem:[%s540 + $0x3c] sm:$0xf]
  %v557 = vld [vmem:[%s540 + $0x40] sm:$0xf]
  %v558 = vld [vmem:[%s540 + $0x44] sm:$0xf]
  %v559 = vld [vmem:[%s540 + $0x48] sm:$0xf]
  %v560 = vld [vmem:[%s540 + $0x4c] sm:$0xf]
  %v561 = vld [vmem:[%s540 + $0x50] sm:$0xf]
  %v562 = vld [vmem:[%s540 + $0x54] sm:$0xf]
  %v563 = vld [vmem:[%s540 + $0x58] sm:$0xf]
  %v564 = vld [vmem:[%s540 + $0x5c] sm:$0xf]
  %v565 = vld [vmem:[%s540 + $0x60] sm:$0xf]
  %v566 = vld [vmem:[%s540 + $0x64] sm:$0xf]
  %v567 = vld [vmem:[%s540 + $0x68] sm:$0xf]
  %v568 = vld [vmem:[%s540 + $0x6c] sm:$0xf]
  %v569 = vld [vmem:[%s540 + $0x70] sm:$0xf]
  %v570 = vld [vmem:[%s540 + $0x74] sm:$0xf]
  %v571 = vld [vmem:[%s540 + $0x78] sm:$0xf]
  %v572 = vld [vmem:[%s540 + $0x7c] sm:$0xf]
  %v605 = vunpack.c.l.b16 %v541
  %v606 = vunpack.c.l.b16 %v542
  %v607 = vunpack.c.l.b16 %v543
  %v608 = vunpack.c.l.b16 %v544
  %v609 = vunpack.c.l.b16 %v545
  %v610 = vunpack.c.l.b16 %v546
  %v611 = vunpack.c.l.b16 %v547
  %v612 = vunpack.c.l.b16 %v548
  %v613 = vunpack.c.l.b16 %v549
  %v614 = vunpack.c.l.b16 %v550
  %v615 = vunpack.c.l.b16 %v551
  %v616 = vunpack.c.l.b16 %v552
  %v617 = vunpack.c.l.b16 %v553
  %v618 = vunpack.c.l.b16 %v554
  %v619 = vunpack.c.l.b16 %v555
  %v620 = vunpack.c.l.b16 %v556
  %v621 = vunpack.c.l.b16 %v557
  %v622 = vunpack.c.l.b16 %v558
  %v623 = vunpack.c.l.b16 %v559
  %v624 = vunpack.c.l.b16 %v560
  %v625 = vunpack.c.l.b16 %v561
  %v626 = vunpack.c.l.b16 %v562
  %v627 = vunpack.c.l.b16 %v563
  %v628 = vunpack.c.l.b16 %v564
  %v629 = vunpack.c.l.b16 %v565
  %v630 = vunpack.c.l.b16 %v566
  %v631 = vunpack.c.l.b16 %v567
  %v632 = vunpack.c.l.b16 %v568
  %v633 = vunpack.c.l.b16 %v569
  %v634 = vunpack.c.l.b16 %v570
  %v635 = vunpack.c.l.b16 %v571
  %v636 = vunpack.c.l.b16 %v572
  %v637 = vpack.c.b16 %v606, %v605
  %v638 = vpack.c.b16 %v608, %v607
  %v639 = vpack.c.b16 %v610, %v609
  %v640 = vpack.c.b16 %v612, %v611
  %v641 = vpack.c.b16 %v614, %v613
  %v642 = vpack.c.b16 %v616, %v615
  %v643 = vpack.c.b16 %v618, %v617
  %v644 = vpack.c.b16 %v620, %v619
  %v645 = vpack.c.b16 %v622, %v621
  %v646 = vpack.c.b16 %v624, %v623
  %v647 = vpack.c.b16 %v626, %v625
  %v648 = vpack.c.b16 %v628, %v627
  %v649 = vpack.c.b16 %v630, %v629
  %v650 = vpack.c.b16 %v632, %v631
  %v651 = vpack.c.b16 %v634, %v633
  %v652 = vpack.c.b16 %v636, %v635
  %669 = vmatprep.subr.bf16.mxu0 0
  %670 = vmatpush1.bf16.msra.mxu0 %v637
  %671 = vmatprep.subr.bf16.mxu0 0
  %672 = vmatpush1.bf16.msra.mxu0 %v638
  %673 = vmatprep.subr.bf16.mxu0 0
  %674 = vmatpush1.bf16.msra.mxu0 %v639
  %675 = vmatprep.subr.bf16.mxu0 0
  %676 = vmatpush1.bf16.msra.mxu0 %v640
  %677 = vmatprep.subr.bf16.mxu0 0
  %678 = vmatpush1.bf16.msra.mxu0 %v641
  %679 = vmatprep.subr.bf16.mxu0 0
  %680 = vmatpush1.bf16.msra.mxu0 %v642
  %681 = vmatprep.subr.bf16.mxu0 0
  %682 = vmatpush1.bf16.msra.mxu0 %v643
  %683 = vmatprep.subr.bf16.mxu0 0
  %684 = vmatpush1.bf16.msra.mxu0 %v644
  %685 = vmatprep.subr.bf16.mxu0 0
  %686 = vmatpush1.bf16.msra.mxu0 %v645
  %687 = vmatprep.subr.bf16.mxu0 0
  %688 = vmatpush1.bf16.msra.mxu0 %v646
  %689 = vmatprep.subr.bf16.mxu0 0
  %690 = vmatpush1.bf16.msra.mxu0 %v647
  %691 = vmatprep.subr.bf16.mxu0 0
  %692 = vmatpush1.bf16.msra.mxu0 %v648
  %693 = vmatprep.subr.bf16.mxu0 0
  %694 = vmatpush1.bf16.msra.mxu0 %v649
  %695 = vmatprep.subr.bf16.mxu0 0
  %696 = vmatpush1.bf16.msra.mxu0 %v650
  %697 = vmatprep.subr.bf16.mxu0 0
  %698 = vmatpush1.bf16.msra.mxu0 %v651
  %699 = vmatprep.subr.bf16.mxu0 0
  %700 = vmatpush1.bf16.msra.mxu0 %v652
  %701 = vmatprep.mubr.bf16.mxu0 %v56
  %702 = vmatmul.mubr.bf16.gmra.mrb[0].mxu0 %v55
  %v703 = vpop.f32.mrb[0].mxu0
  %v704 = vadd.f32 0.0, %v703
  %v705 = vpop.f32.mrb[0].mxu0
  %v706 = vpop.f32.mrb[0].mxu0
  %v707 = vadd.f32 0.0, %v706
  %v708 = vpop.f32.mrb[0].mxu0
  %709 = vdwg.mxu0
  %v710 = vmax.f32 %v538, %v704
  %v711 = vmax.f32 %v539, %v707
  %v712 = vld [vmem:[%s2] sm:$0xff]
  %v713 = vld [vmem:[%s2 + $0x8] sm:$0xff]
  %715 = vset.pattern.permute.xlu0 0
  %716 = vperm.xlu0 %715, %v712
  %v717 = vpop.permute.xlu0 %716
  %720 = vset.pattern.permute.xlu0 0
  %721 = vperm.xlu0 %720, %v713
  %v722 = vpop.permute.xlu0 %721
  %v724 = vadd.f32 %v710, %v717
  %v725 = vadd.f32 %v711, %v722
  %v726 = vmax.f32 %v724, 0.0
  %v727 = vmax.f32 %v725, 0.0
  %v728 = vpack.c.bf16 %v727, %v726
  %v730 = vunpack.c.l.b16 %v728
  %v731 = vunpack.c.h.b16 %v728
  %v732 = vpack.c.b16 %v730, %v730
  %v733 = vpack.c.b16 %v731, %v731
  %736 = vst [vmem:[%s3] sm:$0xf] %v732
  %737 = vst [vmem:[%s3 + $0x4] sm:$0xf] %v733
  // Predicated region
  $region14: #{critic_forward.7} parent=0 // pred_check
    _
  $region15: #{critic_forward.7} parent=0 // pred_check_branch
    %739 = sbr.rel (0) target = $region17
  $region16: #{critic_forward.7} parent=0 // pred_region
    _
  $region17: #{critic_forward.7} parent=0 // pred_fallthru
    _
  // Predicated region
  $region18: #{critic_forward.7} parent=0 // pred_check
    _
  $region19: #{critic_forward.7} parent=0 // pred_check_branch
    %741 = sbr.rel (0) target = $region21
  $region20: #{critic_forward.7} parent=0 // pred_region
    _
  $region21: #{critic_forward.7} parent=0 // pred_fallthru
    _

// kernel: critic_forward.8
$region0: #{critic_forward.8}
  #allocation0 [shape = 'u32[]', space=smem, size = 0x4, offset = 0x4, fixed_abs, tag = 'smem constant byte address 0x4 - core index']
  #allocation1 [shape = 'u32[144,128]{1,0:T(1,128)}', space=vmem, size = 0x12000, scoped, tag = 'internal scratch']
  %s0 = inlined_call_operand.vmem [shape: bf16[4,256,128], index: 0, kind: input, shape index: {}]
  %s1 = inlined_call_operand.vmem [shape: bf16[32,256], index: 1, kind: input, shape index: {}]
  %s2 = inlined_call_operand.vmem [shape: f32[32,1], index: 2, kind: input, shape index: {}]
  %s3 = inlined_call_operand.vmem [shape: bf16[32,128], index: 3, kind: output, shape index: {}]
  %s4 = sld [smem:[#allocation0]]
  $region22: #{critic_forward.8} parent=0
    _
  %s6 = ssub.s32 1, %s4
  %s7 = scalar_select 0, %s6, %s4
  // Predicated region
  $region2: #{critic_forward.8} parent=0 // pred_check
    _
  $region3: #{critic_forward.8} parent=0 // pred_check_branch
    %9 = sbr.rel (0) target = $region5
  $region4: #{critic_forward.8} parent=0 // pred_region
    _
  $region5: #{critic_forward.8} parent=0 // pred_fallthru
    _
  // Predicated region
  $region6: #{critic_forward.8} parent=0 // pred_check
    _
  $region7: #{critic_forward.8} parent=0 // pred_check_branch
    %11 = sbr.rel (0) target = $region9
  $region8: #{critic_forward.8} parent=0 // pred_region
    _
  $region9: #{critic_forward.8} parent=0 // pred_fallthru
    _
  // Predicated region
  $region10: #{critic_forward.8} parent=0 // pred_check
    _
  $region11: #{critic_forward.8} parent=0 // pred_check_branch
    %13 = sbr.rel (0) target = $region13
  $region12: #{critic_forward.8} parent=0 // pred_region
    _
  $region13: #{critic_forward.8} parent=0 // pred_fallthru
    _
  %v15 = vld [vmem:[%s1] sm:$0xff]
  %v16 = vld [vmem:[%s1 + $0x8] sm:$0xff]
  %v17 = vld [vmem:[%s1 + $0x10] sm:$0xff]
  %v18 = vld [vmem:[%s1 + $0x18] sm:$0xff]
  %v19 = vld [vmem:[%s0] sm:$0xf]
  %v20 = vld [vmem:[%s0 + $0x4] sm:$0xf]
  %v21 = vld [vmem:[%s0 + $0x8] sm:$0xf]
  %v22 = vld [vmem:[%s0 + $0xc] sm:$0xf]
  %v23 = vld [vmem:[%s0 + $0x10] sm:$0xf]
  %v24 = vld [vmem:[%s0 + $0x14] sm:$0xf]
  %v25 = vld [vmem:[%s0 + $0x18] sm:$0xf]
  %v26 = vld [vmem:[%s0 + $0x1c] sm:$0xf]
  %v27 = vld [vmem:[%s0 + $0x20] sm:$0xf]
  %v28 = vld [vmem:[%s0 + $0x24] sm:$0xf]
  %v29 = vld [vmem:[%s0 + $0x28] sm:$0xf]
  %v30 = vld [vmem:[%s0 + $0x2c] sm:$0xf]
  %v31 = vld [vmem:[%s0 + $0x30] sm:$0xf]
  %v32 = vld [vmem:[%s0 + $0x34] sm:$0xf]
  %v33 = vld [vmem:[%s0 + $0x38] sm:$0xf]
  %v34 = vld [vmem:[%s0 + $0x3c] sm:$0xf]
  %v35 = vld [vmem:[%s0 + $0x40] sm:$0xf]
  %v36 = vld [vmem:[%s0 + $0x44] sm:$0xf]
  %v37 = vld [vmem:[%s0 + $0x48] sm:$0xf]
  %v38 = vld [vmem:[%s0 + $0x4c] sm:$0xf]
  %v39 = vld [vmem:[%s0 + $0x50] sm:$0xf]
  %v40 = vld [vmem:[%s0 + $0x54] sm:$0xf]
  %v41 = vld [vmem:[%s0 + $0x58] sm:$0xf]
  %v42 = vld [vmem:[%s0 + $0x5c] sm:$0xf]
  %v43 = vld [vmem:[%s0 + $0x60] sm:$0xf]
  %v44 = vld [vmem:[%s0 + $0x64] sm:$0xf]
  %v45 = vld [vmem:[%s0 + $0x68] sm:$0xf]
  %v46 = vld [vmem:[%s0 + $0x6c] sm:$0xf]
  %v47 = vld [vmem:[%s0 + $0x70] sm:$0xf]
  %v48 = vld [vmem:[%s0 + $0x74] sm:$0xf]
  %v49 = vld [vmem:[%s0 + $0x78] sm:$0xf]
  %v50 = vld [vmem:[%s0 + $0x7c] sm:$0xf]
  %v55 = vunpack.c.l.b16 %v15
  %v56 = vunpack.c.h.b16 %v15
  %v57 = vunpack.c.l.b16 %v16
  %v58 = vunpack.c.h.b16 %v16
  %v59 = vunpack.c.l.b16 %v17
  %v60 = vunpack.c.h.b16 %v17
  %v61 = vunpack.c.l.b16 %v18
  %v62 = vunpack.c.h.b16 %v18
  %v63 = vpack.c.b16 %v57, %v55
  %v64 = vpack.c.b16 %v58, %v56
  %v65 = vpack.c.b16 %v61, %v59
  %v66 = vpack.c.b16 %v62, %v60
  %v103 = vunpack.c.l.b16 %v19
  %v104 = vunpack.c.l.b16 %v20
  %v105 = vunpack.c.l.b16 %v21
  %v106 = vunpack.c.l.b16 %v22
  %v107 = vunpack.c.l.b16 %v23
  %v108 = vunpack.c.l.b16 %v24
  %v109 = vunpack.c.l.b16 %v25
  %v110 = vunpack.c.l.b16 %v26
  %v111 = vunpack.c.l.b16 %v27
  %v112 = vunpack.c.l.b16 %v28
  %v113 = vunpack.c.l.b16 %v29
  %v114 = vunpack.c.l.b16 %v30
  %v115 = vunpack.c.l.b16 %v31
  %v116 = vunpack.c.l.b16 %v32
  %v117 = vunpack.c.l.b16 %v33
  %v118 = vunpack.c.l.b16 %v34
  %v119 = vunpack.c.l.b16 %v35
  %v120 = vunpack.c.l.b16 %v36
  %v121 = vunpack.c.l.b16 %v37
  %v122 = vunpack.c.l.b16 %v38
  %v123 = vunpack.c.l.b16 %v39
  %v124 = vunpack.c.l.b16 %v40
  %v125 = vunpack.c.l.b16 %v41
  %v126 = vunpack.c.l.b16 %v42
  %v127 = vunpack.c.l.b16 %v43
  %v128 = vunpack.c.l.b16 %v44
  %v129 = vunpack.c.l.b16 %v45
  %v130 = vunpack.c.l.b16 %v46
  %v131 = vunpack.c.l.b16 %v47
  %v132 = vunpack.c.l.b16 %v48
  %v133 = vunpack.c.l.b16 %v49
  %v134 = vunpack.c.l.b16 %v50
  %v135 = vpack.c.b16 %v104, %v103
  %v136 = vpack.c.b16 %v106, %v105
  %v137 = vpack.c.b16 %v108, %v107
  %v138 = vpack.c.b16 %v110, %v109
  %v139 = vpack.c.b16 %v112, %v111
  %v140 = vpack.c.b16 %v114, %v113
  %v141 = vpack.c.b16 %v116, %v115
  %v142 = vpack.c.b16 %v118, %v117
  %v143 = vpack.c.b16 %v120, %v119
  %v144 = vpack.c.b16 %v122, %v121
  %v145 = vpack.c.b16 %v124, %v123
  %v146 = vpack.c.b16 %v126, %v125
  %v147 = vpack.c.b16 %v128, %v127
  %v148 = vpack.c.b16 %v130, %v129
  %v149 = vpack.c.b16 %v132, %v131
  %v150 = vpack.c.b16 %v134, %v133
  %167 = vmatprep.subr.bf16.mxu0 0
  %168 = vmatpush1.bf16.msra.mxu0 %v135
  %169 = vmatprep.subr.bf16.mxu0 0
  %170 = vmatpush1.bf16.msra.mxu0 %v136
  %171 = vmatprep.subr.bf16.mxu0 0
  %172 = vmatpush1.bf16.msra.mxu0 %v137
  %173 = vmatprep.subr.bf16.mxu0 0
  %174 = vmatpush1.bf16.msra.mxu0 %v138
  %175 = vmatprep.subr.bf16.mxu0 0
  %176 = vmatpush1.bf16.msra.mxu0 %v139
  %177 = vmatprep.subr.bf16.mxu0 0
  %178 = vmatpush1.bf16.msra.mxu0 %v140
  %179 = vmatprep.subr.bf16.mxu0 0
  %180 = vmatpush1.bf16.msra.mxu0 %v141
  %181 = vmatprep.subr.bf16.mxu0 0
  %182 = vmatpush1.bf16.msra.mxu0 %v142
  %183 = vmatprep.subr.bf16.mxu0 0
  %184 = vmatpush1.bf16.msra.mxu0 %v143
  %185 = vmatprep.subr.bf16.mxu0 0
  %186 = vmatpush1.bf16.msra.mxu0 %v144
  %187 = vmatprep.subr.bf16.mxu0 0
  %188 = vmatpush1.bf16.msra.mxu0 %v145
  %189 = vmatprep.subr.bf16.mxu0 0
  %190 = vmatpush1.bf16.msra.mxu0 %v146
  %191 = vmatprep.subr.bf16.mxu0 0
  %192 = vmatpush1.bf16.msra.mxu0 %v147
  %193 = vmatprep.subr.bf16.mxu0 0
  %194 = vmatpush1.bf16.msra.mxu0 %v148
  %195 = vmatprep.subr.bf16.mxu0 0
  %196 = vmatpush1.bf16.msra.mxu0 %v149
  %197 = vmatprep.subr.bf16.mxu0 0
  %198 = vmatpush1.bf16.msra.mxu0 %v150
  %199 = vmatprep.mubr.bf16.mxu0 %v64
  %200 = vmatmul.mubr.bf16.gmra.mrb[0].mxu0 %v63
  %v201 = vpop.f32.mrb[0].mxu0
  %v202 = vadd.f32 0.0, %v201
  %v203 = vpop.f32.mrb[0].mxu0
  %v204 = vpop.f32.mrb[0].mxu0
  %v205 = vadd.f32 0.0, %v204
  %v206 = vpop.f32.mrb[0].mxu0
  %207 = vmatprep.mubr.bf16.mxu0 %v66
  %208 = vmatmul.mubr.bf16.gmra.mrb[0].mxu0 %v65
  %v209 = vpop.f32.mrb[0].mxu0
  %v210 = vadd.f32 0.0, %v209
  %v211 = vpop.f32.mrb[0].mxu0
  %v212 = vpop.f32.mrb[0].mxu0
  %v213 = vadd.f32 0.0, %v212
  %v214 = vpop.f32.mrb[0].mxu0
  %215 = vdwg.mxu0
  %s216 = scalar_lea.vmem %s0, 128
  %v217 = vld [vmem:[%s216] sm:$0xf]
  %v218 = vld [vmem:[%s216 + $0x4] sm:$0xf]
  %v219 = vld [vmem:[%s216 + $0x8] sm:$0xf]
  %v220 = vld [vmem:[%s216 + $0xc] sm:$0xf]
  %v221 = vld [vmem:[%s216 + $0x10] sm:$0xf]
  %v222 = vld [vmem:[%s216 + $0x14] sm:$0xf]
  %v223 = vld [vmem:[%s216 + $0x18] sm:$0xf]
  %v224 = vld [vmem:[%s216 + $0x1c] sm:$0xf]
  %v225 = vld [vmem:[%s216 + $0x20] sm:$0xf]
  %v226 = vld [vmem:[%s216 + $0x24] sm:$0xf]
  %v227 = vld [vmem:[%s216 + $0x28] sm:$0xf]
  %v228 = vld [vmem:[%s216 + $0x2c] sm:$0xf]
  %v229 = vld [vmem:[%s216 + $0x30] sm:$0xf]
  %v230 = vld [vmem:[%s216 + $0x34] sm:$0xf]
  %v231 = vld [vmem:[%s216 + $0x38] sm:$0xf]
  %v232 = vld [vmem:[%s216 + $0x3c] sm:$0xf]
  %v233 = vld [vmem:[%s216 + $0x40] sm:$0xf]
  %v234 = vld [vmem:[%s216 + $0x44] sm:$0xf]
  %v235 = vld [vmem:[%s216 + $0x48] sm:$0xf]
  %v236 = vld [vmem:[%s216 + $0x4c] sm:$0xf]
  %v237 = vld [vmem:[%s216 + $0x50] sm:$0xf]
  %v238 = vld [vmem:[%s216 + $0x54] sm:$0xf]
  %v239 = vld [vmem:[%s216 + $0x58] sm:$0xf]
  %v240 = vld [vmem:[%s216 + $0x5c] sm:$0xf]
  %v241 = vld [vmem:[%s216 + $0x60] sm:$0xf]
  %v242 = vld [vmem:[%s216 + $0x64] sm:$0xf]
  %v243 = vld [vmem:[%s216 + $0x68] sm:$0xf]
  %v244 = vld [vmem:[%s216 + $0x6c] sm:$0xf]
  %v245 = vld [vmem:[%s216 + $0x70] sm:$0xf]
  %v246 = vld [vmem:[%s216 + $0x74] sm:$0xf]
  %v247 = vld [vmem:[%s216 + $0x78] sm:$0xf]
  %v248 = vld [vmem:[%s216 + $0x7c] sm:$0xf]
  %v281 = vunpack.c.l.b16 %v217
  %v282 = vunpack.c.l.b16 %v218
  %v283 = vunpack.c.l.b16 %v219
  %v284 = vunpack.c.l.b16 %v220
  %v285 = vunpack.c.l.b16 %v221
  %v286 = vunpack.c.l.b16 %v222
  %v287 = vunpack.c.l.b16 %v223
  %v288 = vunpack.c.l.b16 %v224
  %v289 = vunpack.c.l.b16 %v225
  %v290 = vunpack.c.l.b16 %v226
  %v291 = vunpack.c.l.b16 %v227
  %v292 = vunpack.c.l.b16 %v228
  %v293 = vunpack.c.l.b16 %v229
  %v294 = vunpack.c.l.b16 %v230
  %v295 = vunpack.c.l.b16 %v231
  %v296 = vunpack.c.l.b16 %v232
  %v297 = vunpack.c.l.b16 %v233
  %v298 = vunpack.c.l.b16 %v234
  %v299 = vunpack.c.l.b16 %v235
  %v300 = vunpack.c.l.b16 %v236
  %v301 = vunpack.c.l.b16 %v237
  %v302 = vunpack.c.l.b16 %v238
  %v303 = vunpack.c.l.b16 %v239
  %v304 = vunpack.c.l.b16 %v240
  %v305 = vunpack.c.l.b16 %v241
  %v306 = vunpack.c.l.b16 %v242
  %v307 = vunpack.c.l.b16 %v243
  %v308 = vunpack.c.l.b16 %v244
  %v309 = vunpack.c.l.b16 %v245
  %v310 = vunpack.c.l.b16 %v246
  %v311 = vunpack.c.l.b16 %v247
  %v312 = vunpack.c.l.b16 %v248
  %v313 = vpack.c.b16 %v282, %v281
  %v314 = vpack.c.b16 %v284, %v283
  %v315 = vpack.c.b16 %v286, %v285
  %v316 = vpack.c.b16 %v288, %v287
  %v317 = vpack.c.b16 %v290, %v289
  %v318 = vpack.c.b16 %v292, %v291
  %v319 = vpack.c.b16 %v294, %v293
  %v320 = vpack.c.b16 %v296, %v295
  %v321 = vpack.c.b16 %v298, %v297
  %v322 = vpack.c.b16 %v300, %v299
  %v323 = vpack.c.b16 %v302, %v301
  %v324 = vpack.c.b16 %v304, %v303
  %v325 = vpack.c.b16 %v306, %v305
  %v326 = vpack.c.b16 %v308, %v307
  %v327 = vpack.c.b16 %v310, %v309
  %v328 = vpack.c.b16 %v312, %v311
  %345 = vmatprep.subr.bf16.mxu0 0
  %346 = vmatpush1.bf16.msra.mxu0 %v313
  %347 = vmatprep.subr.bf16.mxu0 0
  %348 = vmatpush1.bf16.msra.mxu0 %v314
  %349 = vmatprep.subr.bf16.mxu0 0
  %350 = vmatpush1.bf16.msra.mxu0 %v315
  %351 = vmatprep.subr.bf16.mxu0 0
  %352 = vmatpush1.bf16.msra.mxu0 %v316
  %353 = vmatprep.subr.bf16.mxu0 0
  %354 = vmatpush1.bf16.msra.mxu0 %v317
  %355 = vmatprep.subr.bf16.mxu0 0
  %356 = vmatpush1.bf16.msra.mxu0 %v318
  %357 = vmatprep.subr.bf16.mxu0 0
  %358 = vmatpush1.bf16.msra.mxu0 %v319
  %359 = vmatprep.subr.bf16.mxu0 0
  %360 = vmatpush1.bf16.msra.mxu0 %v320
  %361 = vmatprep.subr.bf16.mxu0 0
  %362 = vmatpush1.bf16.msra.mxu0 %v321
  %363 = vmatprep.subr.bf16.mxu0 0
  %364 = vmatpush1.bf16.msra.mxu0 %v322
  %365 = vmatprep.subr.bf16.mxu0 0
  %366 = vmatpush1.bf16.msra.mxu0 %v323
  %367 = vmatprep.subr.bf16.mxu0 0
  %368 = vmatpush1.bf16.msra.mxu0 %v324
  %369 = vmatprep.subr.bf16.mxu0 0
  %370 = vmatpush1.bf16.msra.mxu0 %v325
  %371 = vmatprep.subr.bf16.mxu0 0
  %372 = vmatpush1.bf16.msra.mxu0 %v326
  %373 = vmatprep.subr.bf16.mxu0 0
  %374 = vmatpush1.bf16.msra.mxu0 %v327
  %375 = vmatprep.subr.bf16.mxu0 0
  %376 = vmatpush1.bf16.msra.mxu0 %v328
  %377 = vmatprep.mubr.bf16.mxu0 %v64
  %378 = vmatmul.mubr.bf16.gmra.mrb[0].mxu0 %v63
  %v379 = vpop.f32.mrb[0].mxu0
  %v380 = vadd.f32 0.0, %v379
  %v381 = vpop.f32.mrb[0].mxu0
  %v382 = vpop.f32.mrb[0].mxu0
  %v383 = vadd.f32 0.0, %v382
  %v384 = vpop.f32.mrb[0].mxu0
  %385 = vmatprep.mubr.bf16.mxu0 %v66
  %386 = vmatmul.mubr.bf16.gmra.mrb[0].mxu0 %v65
  %v387 = vpop.f32.mrb[0].mxu0
  %v388 = vadd.f32 0.0, %v387
  %v389 = vpop.f32.mrb[0].mxu0
  %v390 = vpop.f32.mrb[0].mxu0
  %v391 = vadd.f32 0.0, %v390
  %v392 = vpop.f32.mrb[0].mxu0
  %393 = vdwg.mxu0
  %v394 = vmax.f32 %v202, %v380
  %v395 = vmax.f32 %v205, %v383
  %v396 = vmax.f32 %v210, %v388
  %v397 = vmax.f32 %v213, %v391
  %s398 = scalar_lea.vmem %s0, 256
  %v399 = vld [vmem:[%s398] sm:$0xf]
  %v400 = vld [vmem:[%s398 + $0x4] sm:$0xf]
  %v401 = vld [vmem:[%s398 + $0x8] sm:$0xf]
  %v402 = vld [vmem:[%s398 + $0xc] sm:$0xf]
  %v403 = vld [vmem:[%s398 + $0x10] sm:$0xf]
  %v404 = vld [vmem:[%s398 + $0x14] sm:$0xf]
  %v405 = vld [vmem:[%s398 + $0x18] sm:$0xf]
  %v406 = vld [vmem:[%s398 + $0x1c] sm:$0xf]
  %v407 = vld [vmem:[%s398 + $0x20] sm:$0xf]
  %v408 = vld [vmem:[%s398 + $0x24] sm:$0xf]
  %v409 = vld [vmem:[%s398 + $0x28] sm:$0xf]
  %v410 = vld [vmem:[%s398 + $0x2c] sm:$0xf]
  %v411 = vld [vmem:[%s398 + $0x30] sm:$0xf]
  %v412 = vld [vmem:[%s398 + $0x34] sm:$0xf]
  %v413 = vld [vmem:[%s398 + $0x38] sm:$0xf]
  %v414 = vld [vmem:[%s398 + $0x3c] sm:$0xf]
  %v415 = vld [vmem:[%s398 + $0x40] sm:$0xf]
  %v416 = vld [vmem:[%s398 + $0x44] sm:$0xf]
  %v417 = vld [vmem:[%s398 + $0x48] sm:$0xf]
  %v418 = vld [vmem:[%s398 + $0x4c] sm:$0xf]
  %v419 = vld [vmem:[%s398 + $0x50] sm:$0xf]
  %v420 = vld [vmem:[%s398 + $0x54] sm:$0xf]
  %v421 = vld [vmem:[%s398 + $0x58] sm:$0xf]
  %v422 = vld [vmem:[%s398 + $0x5c] sm:$0xf]
  %v423 = vld [vmem:[%s398 + $0x60] sm:$0xf]
  %v424 = vld [vmem:[%s398 + $0x64] sm:$0xf]
  %v425 = vld [vmem:[%s398 + $0x68] sm:$0xf]
  %v426 = vld [vmem:[%s398 + $0x6c] sm:$0xf]
  %v427 = vld [vmem:[%s398 + $0x70] sm:$0xf]
  %v428 = vld [vmem:[%s398 + $0x74] sm:$0xf]
  %v429 = vld [vmem:[%s398 + $0x78] sm:$0xf]
  %v430 = vld [vmem:[%s398 + $0x7c] sm:$0xf]
  %v463 = vunpack.c.l.b16 %v399
  %v464 = vunpack.c.l.b16 %v400
  %v465 = vunpack.c.l.b16 %v401
  %v466 = vunpack.c.l.b16 %v402
  %v467 = vunpack.c.l.b16 %v403
  %v468 = vunpack.c.l.b16 %v404
  %v469 = vunpack.c.l.b16 %v405
  %v470 = vunpack.c.l.b16 %v406
  %v471 = vunpack.c.l.b16 %v407
  %v472 = vunpack.c.l.b16 %v408
  %v473 = vunpack.c.l.b16 %v409
  %v474 = vunpack.c.l.b16 %v410
  %v475 = vunpack.c.l.b16 %v411
  %v476 = vunpack.c.l.b16 %v412
  %v477 = vunpack.c.l.b16 %v413
  %v478 = vunpack.c.l.b16 %v414
  %v479 = vunpack.c.l.b16 %v415
  %v480 = vunpack.c.l.b16 %v416
  %v481 = vunpack.c.l.b16 %v417
  %v482 = vunpack.c.l.b16 %v418
  %v483 = vunpack.c.l.b16 %v419
  %v484 = vunpack.c.l.b16 %v420
  %v485 = vunpack.c.l.b16 %v421
  %v486 = vunpack.c.l.b16 %v422
  %v487 = vunpack.c.l.b16 %v423
  %v488 = vunpack.c.l.b16 %v424
  %v489 = vunpack.c.l.b16 %v425
  %v490 = vunpack.c.l.b16 %v426
  %v491 = vunpack.c.l.b16 %v427
  %v492 = vunpack.c.l.b16 %v428
  %v493 = vunpack.c.l.b16 %v429
  %v494 = vunpack.c.l.b16 %v430
  %v495 = vpack.c.b16 %v464, %v463
  %v496 = vpack.c.b16 %v466, %v465
  %v497 = vpack.c.b16 %v468, %v467
  %v498 = vpack.c.b16 %v470, %v469
  %v499 = vpack.c.b16 %v472, %v471
  %v500 = vpack.c.b16 %v474, %v473
  %v501 = vpack.c.b16 %v476, %v475
  %v502 = vpack.c.b16 %v478, %v477
  %v503 = vpack.c.b16 %v480, %v479
  %v504 = vpack.c.b16 %v482, %v481
  %v505 = vpack.c.b16 %v484, %v483
  %v506 = vpack.c.b16 %v486, %v485
  %v507 = vpack.c.b16 %v488, %v487
  %v508 = vpack.c.b16 %v490, %v489
  %v509 = vpack.c.b16 %v492, %v491
  %v510 = vpack.c.b16 %v494, %v493
  %527 = vmatprep.subr.bf16.mxu0 0
  %528 = vmatpush1.bf16.msra.mxu0 %v495
  %529 = vmatprep.subr.bf16.mxu0 0
  %530 = vmatpush1.bf16.msra.mxu0 %v496
  %531 = vmatprep.subr.bf16.mxu0 0
  %532 = vmatpush1.bf16.msra.mxu0 %v497
  %533 = vmatprep.subr.bf16.mxu0 0
  %534 = vmatpush1.bf16.msra.mxu0 %v498
  %535 = vmatprep.subr.bf16.mxu0 0
  %536 = vmatpush1.bf16.msra.mxu0 %v499
  %537 = vmatprep.subr.bf16.mxu0 0
  %538 = vmatpush1.bf16.msra.mxu0 %v500
  %539 = vmatprep.subr.bf16.mxu0 0
  %540 = vmatpush1.bf16.msra.mxu0 %v501
  %541 = vmatprep.subr.bf16.mxu0 0
  %542 = vmatpush1.bf16.msra.mxu0 %v502
  %543 = vmatprep.subr.bf16.mxu0 0
  %544 = vmatpush1.bf16.msra.mxu0 %v503
  %545 = vmatprep.subr.bf16.mxu0 0
  %546 = vmatpush1.bf16.msra.mxu0 %v504
  %547 = vmatprep.subr.bf16.mxu0 0
  %548 = vmatpush1.bf16.msra.mxu0 %v505
  %549 = vmatprep.subr.bf16.mxu0 0
  %550 = vmatpush1.bf16.msra.mxu0 %v506
  %551 = vmatprep.subr.bf16.mxu0 0
  %552 = vmatpush1.bf16.msra.mxu0 %v507
  %553 = vmatprep.subr.bf16.mxu0 0
  %554 = vmatpush1.bf16.msra.mxu0 %v508
  %555 = vmatprep.subr.bf16.mxu0 0
  %556 = vmatpush1.bf16.msra.mxu0 %v509
  %557 = vmatprep.subr.bf16.mxu0 0
  %558 = vmatpush1.bf16.msra.mxu0 %v510
  %559 = vmatprep.mubr.bf16.mxu0 %v64
  %560 = vmatmul.mubr.bf16.gmra.mrb[0].mxu0 %v63
  %v561 = vpop.f32.mrb[0].mxu0
  %v562 = vadd.f32 0.0, %v561
  %v563 = vpop.f32.mrb[0].mxu0
  %v564 = vpop.f32.mrb[0].mxu0
  %v565 = vadd.f32 0.0, %v564
  %v566 = vpop.f32.mrb[0].mxu0
  %567 = vmatprep.mubr.bf16.mxu0 %v66
  %568 = vmatmul.mubr.bf16.gmra.mrb[0].mxu0 %v65
  %v569 = vpop.f32.mrb[0].mxu0
  %v570 = vadd.f32 0.0, %v569
  %v571 = vpop.f32.mrb[0].mxu0
  %v572 = vpop.f32.mrb[0].mxu0
  %v573 = vadd.f32 0.0, %v572
  %v574 = vpop.f32.mrb[0].mxu0
  %575 = vdwg.mxu0
  %v576 = vmax.f32 %v394, %v562
  %v577 = vmax.f32 %v395, %v565
  %v578 = vmax.f32 %v396, %v570
  %v579 = vmax.f32 %v397, %v573
  %s580 = scalar_lea.vmem %s0, 384
  %v581 = vld [vmem:[%s580] sm:$0xf]
  %v582 = vld [vmem:[%s580 + $0x4] sm:$0xf]
  %v583 = vld [vmem:[%s580 + $0x8] sm:$0xf]
  %v584 = vld [vmem:[%s580 + $0xc] sm:$0xf]
  %v585 = vld [vmem:[%s580 + $0x10] sm:$0xf]
  %v586 = vld [vmem:[%s580 + $0x14] sm:$0xf]
  %v587 = vld [vmem:[%s580 + $0x18] sm:$0xf]
  %v588 = vld [vmem:[%s580 + $0x1c] sm:$0xf]
  %v589 = vld [vmem:[%s580 + $0x20] sm:$0xf]
  %v590 = vld [vmem:[%s580 + $0x24] sm:$0xf]
  %v591 = vld [vmem:[%s580 + $0x28] sm:$0xf]
  %v592 = vld [vmem:[%s580 + $0x2c] sm:$0xf]
  %v593 = vld [vmem:[%s580 + $0x30] sm:$0xf]
  %v594 = vld [vmem:[%s580 + $0x34] sm:$0xf]
  %v595 = vld [vmem:[%s580 + $0x38] sm:$0xf]
  %v596 = vld [vmem:[%s580 + $0x3c] sm:$0xf]
  %v597 = vld [vmem:[%s580 + $0x40] sm:$0xf]
  %v598 = vld [vmem:[%s580 + $0x44] sm:$0xf]
  %v599 = vld [vmem:[%s580 + $0x48] sm:$0xf]
  %v600 = vld [vmem:[%s580 + $0x4c] sm:$0xf]
  %v601 = vld [vmem:[%s580 + $0x50] sm:$0xf]
  %v602 = vld [vmem:[%s580 + $0x54] sm:$0xf]
  %v603 = vld [vmem:[%s580 + $0x58] sm:$0xf]
  %v604 = vld [vmem:[%s580 + $0x5c] sm:$0xf]
  %v605 = vld [vmem:[%s580 + $0x60] sm:$0xf]
  %v606 = vld [vmem:[%s580 + $0x64] sm:$0xf]
  %v607 = vld [vmem:[%s580 + $0x68] sm:$0xf]
  %v608 = vld [vmem:[%s580 + $0x6c] sm:$0xf]
  %v609 = vld [vmem:[%s580 + $0x70] sm:$0xf]
  %v610 = vld [vmem:[%s580 + $0x74] sm:$0xf]
  %v611 = vld [vmem:[%s580 + $0x78] sm:$0xf]
  %v612 = vld [vmem:[%s580 + $0x7c] sm:$0xf]
  %v645 = vunpack.c.l.b16 %v581
  %v646 = vunpack.c.l.b16 %v582
  %v647 = vunpack.c.l.b16 %v583
  %v648 = vunpack.c.l.b16 %v584
  %v649 = vunpack.c.l.b16 %v585
  %v650 = vunpack.c.l.b16 %v586
  %v651 = vunpack.c.l.b16 %v587
  %v652 = vunpack.c.l.b16 %v588
  %v653 = vunpack.c.l.b16 %v589
  %v654 = vunpack.c.l.b16 %v590
  %v655 = vunpack.c.l.b16 %v591
  %v656 = vunpack.c.l.b16 %v592
  %v657 = vunpack.c.l.b16 %v593
  %v658 = vunpack.c.l.b16 %v594
  %v659 = vunpack.c.l.b16 %v595
  %v660 = vunpack.c.l.b16 %v596
  %v661 = vunpack.c.l.b16 %v597
  %v662 = vunpack.c.l.b16 %v598
  %v663 = vunpack.c.l.b16 %v599
  %v664 = vunpack.c.l.b16 %v600
  %v665 = vunpack.c.l.b16 %v601
  %v666 = vunpack.c.l.b16 %v602
  %v667 = vunpack.c.l.b16 %v603
  %v668 = vunpack.c.l.b16 %v604
  %v669 = vunpack.c.l.b16 %v605
  %v670 = vunpack.c.l.b16 %v606
  %v671 = vunpack.c.l.b16 %v607
  %v672 = vunpack.c.l.b16 %v608
  %v673 = vunpack.c.l.b16 %v609
  %v674 = vunpack.c.l.b16 %v610
  %v675 = vunpack.c.l.b16 %v611
  %v676 = vunpack.c.l.b16 %v612
  %v677 = vpack.c.b16 %v646, %v645
  %v678 = vpack.c.b16 %v648, %v647
  %v679 = vpack.c.b16 %v650, %v649
  %v680 = vpack.c.b16 %v652, %v651
  %v681 = vpack.c.b16 %v654, %v653
  %v682 = vpack.c.b16 %v656, %v655
  %v683 = vpack.c.b16 %v658, %v657
  %v684 = vpack.c.b16 %v660, %v659
  %v685 = vpack.c.b16 %v662, %v661
  %v686 = vpack.c.b16 %v664, %v663
  %v687 = vpack.c.b16 %v666, %v665
  %v688 = vpack.c.b16 %v668, %v667
  %v689 = vpack.c.b16 %v670, %v669
  %v690 = vpack.c.b16 %v672, %v671
  %v691 = vpack.c.b16 %v674, %v673
  %v692 = vpack.c.b16 %v676, %v675
  %709 = vmatprep.subr.bf16.mxu0 0
  %710 = vmatpush1.bf16.msra.mxu0 %v677
  %711 = vmatprep.subr.bf16.mxu0 0
  %712 = vmatpush1.bf16.msra.mxu0 %v678
  %713 = vmatprep.subr.bf16.mxu0 0
  %714 = vmatpush1.bf16.msra.mxu0 %v679
  %715 = vmatprep.subr.bf16.mxu0 0
  %716 = vmatpush1.bf16.msra.mxu0 %v680
  %717 = vmatprep.subr.bf16.mxu0 0
  %718 = vmatpush1.bf16.msra.mxu0 %v681
  %719 = vmatprep.subr.bf16.mxu0 0
  %720 = vmatpush1.bf16.msra.mxu0 %v682
  %721 = vmatprep.subr.bf16.mxu0 0
  %722 = vmatpush1.bf16.msra.mxu0 %v683
  %723 = vmatprep.subr.bf16.mxu0 0
  %724 = vmatpush1.bf16.msra.mxu0 %v684
  %725 = vmatprep.subr.bf16.mxu0 0
  %726 = vmatpush1.bf16.msra.mxu0 %v685
  %727 = vmatprep.subr.bf16.mxu0 0
  %728 = vmatpush1.bf16.msra.mxu0 %v686
  %729 = vmatprep.subr.bf16.mxu0 0
  %730 = vmatpush1.bf16.msra.mxu0 %v687
  %731 = vmatprep.subr.bf16.mxu0 0
  %732 = vmatpush1.bf16.msra.mxu0 %v688
  %733 = vmatprep.subr.bf16.mxu0 0
  %734 = vmatpush1.bf16.msra.mxu0 %v689
  %735 = vmatprep.subr.bf16.mxu0 0
  %736 = vmatpush1.bf16.msra.mxu0 %v690
  %737 = vmatprep.subr.bf16.mxu0 0
  %738 = vmatpush1.bf16.msra.mxu0 %v691
  %739 = vmatprep.subr.bf16.mxu0 0
  %740 = vmatpush1.bf16.msra.mxu0 %v692
  %741 = vmatprep.mubr.bf16.mxu0 %v64
  %742 = vmatmul.mubr.bf16.gmra.mrb[0].mxu0 %v63
  %v743 = vpop.f32.mrb[0].mxu0
  %v744 = vadd.f32 0.0, %v743
  %v745 = vpop.f32.mrb[0].mxu0
  %v746 = vpop.f32.mrb[0].mxu0
  %v747 = vadd.f32 0.0, %v746
  %v748 = vpop.f32.mrb[0].mxu0
  %749 = vmatprep.mubr.bf16.mxu0 %v66
  %750 = vmatmul.mubr.bf16.gmra.mrb[0].mxu0 %v65
  %v751 = vpop.f32.mrb[0].mxu0
  %v752 = vadd.f32 0.0, %v751
  %v753 = vpop.f32.mrb[0].mxu0
  %v754 = vpop.f32.mrb[0].mxu0
  %v755 = vadd.f32 0.0, %v754
  %v756 = vpop.f32.mrb[0].mxu0
  %757 = vdwg.mxu0
  %v758 = vmax.f32 %v576, %v744
  %v759 = vmax.f32 %v577, %v747
  %v760 = vmax.f32 %v578, %v752
  %v761 = vmax.f32 %v579, %v755
  %v762 = vld [vmem:[%s2] sm:$0xff]
  %v763 = vld [vmem:[%s2 + $0x8] sm:$0xff]
  %v764 = vld [vmem:[%s2 + $0x10] sm:$0xff]
  %v765 = vld [vmem:[%s2 + $0x18] sm:$0xff]
  %767 = vset.pattern.permute.xlu0 0
  %768 = vperm.xlu0 %767, %v762
  %v769 = vpop.permute.xlu0 %768
  %772 = vset.pattern.permute.xlu0 0
  %773 = vperm.xlu0 %772, %v763
  %v774 = vpop.permute.xlu0 %773
  %777 = vset.pattern.permute.xlu0 0
  %778 = vperm.xlu0 %777, %v764
  %v779 = vpop.permute.xlu0 %778
  %782 = vset.pattern.permute.xlu0 0
  %783 = vperm.xlu0 %782, %v765
  %v784 = vpop.permute.xlu0 %783
  %v786 = vadd.f32 %v758, %v769
  %v787 = vadd.f32 %v759, %v774
  %v788 = vadd.f32 %v760, %v779
  %v789 = vadd.f32 %v761, %v784
  %v790 = vmax.f32 %v786, 0.0
  %v791 = vmax.f32 %v787, 0.0
  %v792 = vmax.f32 %v788, 0.0
  %v793 = vmax.f32 %v789, 0.0
  %v794 = vpack.c.bf16 %v791, %v790
  %v795 = vpack.c.bf16 %v793, %v792
  %v798 = vunpack.c.l.b16 %v794
  %v799 = vunpack.c.h.b16 %v794
  %v800 = vunpack.c.l.b16 %v795
  %v801 = vunpack.c.h.b16 %v795
  %v802 = vpack.c.b16 %v798, %v798
  %v803 = vpack.c.b16 %v799, %v799
  %v804 = vpack.c.b16 %v800, %v800
  %v805 = vpack.c.b16 %v801, %v801
  %810 = vst [vmem:[%s3] sm:$0xf] %v802
  %811 = vst [vmem:[%s3 + $0x4] sm:$0xf] %v803
  %812 = vst [vmem:[%s3 + $0x8] sm:$0xf] %v804
  %813 = vst [vmem:[%s3 + $0xc] sm:$0xf] %v805
  // Predicated region
  $region14: #{critic_forward.8} parent=0 // pred_check
    _
  $region15: #{critic_forward.8} parent=0 // pred_check_branch
    %815 = sbr.rel (0) target = $region17
  $region16: #{critic_forward.8} parent=0 // pred_region
    _
  $region17: #{critic_forward.8} parent=0 // pred_fallthru
    _
  // Predicated region
  $region18: #{critic_forward.8} parent=0 // pred_check
    _
  $region19: #{critic_forward.8} parent=0 // pred_check_branch
    %817 = sbr.rel (0) target = $region21
  $region20: #{critic_forward.8} parent=0 // pred_region
    _
  $region21: #{critic_forward.8} parent=0 // pred_fallthru
    _

// kernel: critic_forward.9
$region0: #{critic_forward.9}
  #allocation0 [shape = 'u32[]', space=smem, size = 0x4, offset = 0x4, fixed_abs, tag = 'smem constant byte address 0x4 - core index']
  #allocation1 [shape = 'u32[144,128]{1,0:T(1,128)}', space=vmem, size = 0x12000, scoped, tag = 'internal scratch']
  #allocation2 [shape = 'f32[1,1]{1,0:T(1,128)S(1)}', space=vmem, size = 0x200, scoped, tag = 'scoped memory for critic_forward.9']
  %s0 = inlined_call_operand.vmem [shape: bf16[2,1408], index: 0, kind: input, shape index: {}]
  %s1 = inlined_call_operand.vmem [shape: bf16[1408,512], index: 1, kind: input, shape index: {}]
  %s2 = inlined_call_operand.vmem [shape: f32[1,512], index: 2, kind: input, shape index: {}]
  %s3 = inlined_call_operand.vmem [shape: bf16[1,512], index: 3, kind: input, shape index: {}]
  %s4 = inlined_call_operand.<no memory space> [shape: f32[1,1], index: 4, kind: input, shape index: {}]
  %s5 = inlined_call_operand.vmem [shape: f32[2,1], index: 5, kind: output, shape index: {}]
  %s6 = sld [smem:[#allocation0]]
  $region30: #{critic_forward.9} parent=0
    _
  %s8 = ssub.s32 1, %s6
  %s9 = scalar_select 0, %s8, %s6
  %v10 = vstv %s4
  %11 = vst [vmem:[#allocation2] sm:$0x1] %v10
  // Predicated region
  $region2: #{critic_forward.9} parent=0 // pred_check
    _
  $region3: #{critic_forward.9} parent=0 // pred_check_branch
    %13 = sbr.rel (0) target = $region5
  $region4: #{critic_forward.9} parent=0 // pred_region
    _
  $region5: #{critic_forward.9} parent=0 // pred_fallthru
    _
  // Predicated region
  $region6: #{critic_forward.9} parent=0 // pred_check
    _
  $region7: #{critic_forward.9} parent=0 // pred_check_branch
    %15 = sbr.rel (0) target = $region9
  $region8: #{critic_forward.9} parent=0 // pred_region
    _
  $region9: #{critic_forward.9} parent=0 // pred_fallthru
    _
  // Predicated region
  $region10: #{critic_forward.9} parent=0 // pred_check
    _
  $region11: #{critic_forward.9} parent=0 // pred_check_branch
    %17 = sbr.rel (0) target = $region13
  $region12: #{critic_forward.9} parent=0 // pred_region
    _
  $region13: #{critic_forward.9} parent=0 // pred_fallthru
    _
  // Predicated region
  $region14: #{critic_forward.9} parent=0 // pred_check
    _
  $region15: #{critic_forward.9} parent=0 // pred_check_branch
    %19 = sbr.rel (0) target = $region17
  $region16: #{critic_forward.9} parent=0 // pred_region
    _
  $region17: #{critic_forward.9} parent=0 // pred_fallthru
    _
  // Predicated region
  $region18: #{critic_forward.9} parent=0 // pred_check
    _
  $region19: #{critic_forward.9} parent=0 // pred_check_branch
    %21 = sbr.rel (0) target = $region21
  $region20: #{critic_forward.9} parent=0 // pred_region
    _
  $region21: #{critic_forward.9} parent=0 // pred_fallthru
    _
  %v23 = vld [vmem:[%s0] sm:$0xff]
  %v24 = vld [vmem:[%s0 + $0x8] sm:$0x7]
  %v25 = vld [vmem:[%s1] sm:$0xff]
  %v26 = vld [vmem:[%s1 + $0x8] sm:$0xff]
  %v27 = vld [vmem:[%s1 + $0x10] sm:$0xff]
  %v28 = vld [vmem:[%s1 + $0x18] sm:$0xff]
  %v29 = vld [vmem:[%s1 + $0x20] sm:$0xff]
  %v30 = vld [vmem:[%s1 + $0x28] sm:$0xff]
  %v31 = vld [vmem:[%s1 + $0x30] sm:$0xff]
  %v32 = vld [vmem:[%s1 + $0x38] sm:$0xff]
  %v33 = vld [vmem:[%s1 + $0x40] sm:$0xff]
  %v34 = vld [vmem:[%s1 + $0x48] sm:$0xff]
  %v35 = vld [vmem:[%s1 + $0x50] sm:$0xff]
  %v36 = vld [vmem:[%s1 + $0x58] sm:$0xff]
  %v37 = vld [vmem:[%s1 + $0x60] sm:$0xff]
  %v38 = vld [vmem:[%s1 + $0x68] sm:$0xff]
  %v39 = vld [vmem:[%s1 + $0x70] sm:$0xff]
  %v40 = vld [vmem:[%s1 + $0x78] sm:$0xff]
  %v41 = vld [vmem:[%s1 + $0x80] sm:$0xff]
  %v42 = vld [vmem:[%s1 + $0x88] sm:$0xff]
  %v43 = vld [vmem:[%s1 + $0x90] sm:$0xff]
  %v44 = vld [vmem:[%s1 + $0x98] sm:$0xff]
  %v45 = vld [vmem:[%s1 + $0xa0] sm:$0xff]
  %v46 = vld [vmem:[%s1 + $0xa8] sm:$0xff]
  %v47 = vld [vmem:[%s1 + $0xb0] sm:$0xff]
  %v48 = vld [vmem:[%s1 + $0xb8] sm:$0xff]
  %v49 = vld [vmem:[%s1 + $0xc0] sm:$0xff]
  %v50 = vld [vmem:[%s1 + $0xc8] sm:$0xff]
  %v51 = vld [vmem:[%s1 + $0xd0] sm:$0xff]
  %v52 = vld [vmem:[%s1 + $0xd8] sm:$0xff]
  %v53 = vld [vmem:[%s1 + $0xe0] sm:$0xff]
  %v54 = vld [vmem:[%s1 + $0xe8] sm:$0xff]
  %v55 = vld [vmem:[%s1 + $0xf0] sm:$0xff]
  %v56 = vld [vmem:[%s1 + $0xf8] sm:$0xff]
  %v57 = vld [vmem:[%s1 + $0x100] sm:$0xff]
  %v58 = vld [vmem:[%s1 + $0x108] sm:$0xff]
  %v59 = vld [vmem:[%s1 + $0x110] sm:$0xff]
  %v60 = vld [vmem:[%s1 + $0x118] sm:$0xff]
  %v61 = vld [vmem:[%s1 + $0x120] sm:$0xff]
  %v62 = vld [vmem:[%s1 + $0x128] sm:$0xff]
  %v63 = vld [vmem:[%s1 + $0x130] sm:$0xff]
  %v64 = vld [vmem:[%s1 + $0x138] sm:$0xff]
  %v65 = vld [vmem:[%s1 + $0x140] sm:$0xff]
  %v66 = vld [vmem:[%s1 + $0x148] sm:$0xff]
  %v67 = vld [vmem:[%s1 + $0x150] sm:$0xff]
  %v68 = vld [vmem:[%s1 + $0x158] sm:$0xff]
  %v69 = vld [vmem:[%s1 + $0x160] sm:$0xff]
  %v70 = vld [vmem:[%s1 + $0x168] sm:$0xff]
  %v71 = vld [vmem:[%s1 + $0x170] sm:$0xff]
  %v72 = vld [vmem:[%s1 + $0x178] sm:$0xff]
  %v73 = vld [vmem:[%s1 + $0x180] sm:$0xff]
  %v74 = vld [vmem:[%s1 + $0x188] sm:$0xff]
  %v75 = vld [vmem:[%s1 + $0x190] sm:$0xff]
  %v76 = vld [vmem:[%s1 + $0x198] sm:$0xff]
  %v77 = vld [vmem:[%s1 + $0x1a0] sm:$0xff]
  %v78 = vld [vmem:[%s1 + $0x1a8] sm:$0xff]
  %v79 = vld [vmem:[%s1 + $0x1b0] sm:$0xff]
  %v80 = vld [vmem:[%s1 + $0x1b8] sm:$0xff]
  %v81 = vld [vmem:[%s1 + $0x1c0] sm:$0xff]
  %v82 = vld [vmem:[%s1 + $0x1c8] sm:$0xff]
  %v83 = vld [vmem:[%s1 + $0x1d0] sm:$0xff]
  %v84 = vld [vmem:[%s1 + $0x1d8] sm:$0xff]
  %v85 = vld [vmem:[%s1 + $0x1e0] sm:$0xff]
  %v86 = vld [vmem:[%s1 + $0x1e8] sm:$0xff]
  %v87 = vld [vmem:[%s1 + $0x1f0] sm:$0xff]
  %v88 = vld [vmem:[%s1 + $0x1f8] sm:$0xff]
  %v89 = vld [vmem:[%s1 + $0x200] sm:$0xff]
  %v90 = vld [vmem:[%s1 + $0x208] sm:$0xff]
  %v91 = vld [vmem:[%s1 + $0x210] sm:$0xff]
  %v92 = vld [vmem:[%s1 + $0x218] sm:$0xff]
  %v93 = vld [vmem:[%s1 + $0x220] sm:$0xff]
  %v94 = vld [vmem:[%s1 + $0x228] sm:$0xff]
  %v95 = vld [vmem:[%s1 + $0x230] sm:$0xff]
  %v96 = vld [vmem:[%s1 + $0x238] sm:$0xff]
  %v97 = vld [vmem:[%s1 + $0x240] sm:$0xff]
  %v98 = vld [vmem:[%s1 + $0x248] sm:$0xff]
  %v99 = vld [vmem:[%s1 + $0x250] sm:$0xff]
  %v100 = vld [vmem:[%s1 + $0x258] sm:$0xff]
  %v101 = vld [vmem:[%s1 + $0x260] sm:$0xff]
  %v102 = vld [vmem:[%s1 + $0x268] sm:$0xff]
  %v103 = vld [vmem:[%s1 + $0x270] sm:$0xff]
  %v104 = vld [vmem:[%s1 + $0x278] sm:$0xff]
  %v105 = vld [vmem:[%s1 + $0x280] sm:$0xff]
  %v106 = vld [vmem:[%s1 + $0x288] sm:$0xff]
  %v107 = vld [vmem:[%s1 + $0x290] sm:$0xff]
  %v108 = vld [vmem:[%s1 + $0x298] sm:$0xff]
  %v109 = vld [vmem:[%s1 + $0x2a0] sm:$0xff]
  %v110 = vld [vmem:[%s1 + $0x2a8] sm:$0xff]
  %v111 = vld [vmem:[%s1 + $0x2b0] sm:$0xff]
  %v112 = vld [vmem:[%s1 + $0x2b8] sm:$0xff]
  %v113 = vld [vmem:[%s1 + $0x2c0] sm:$0xff]
  %v114 = vld [vmem:[%s1 + $0x2c8] sm:$0xff]
  %v115 = vld [vmem:[%s1 + $0x2d0] sm:$0xff]
  %v116 = vld [vmem:[%s1 + $0x2d8] sm:$0xff]
  %v117 = vld [vmem:[%s1 + $0x2e0] sm:$0xff]
  %v118 = vld [vmem:[%s1 + $0x2e8] sm:$0xff]
  %v119 = vld [vmem:[%s1 + $0x2f0] sm:$0xff]
  %v120 = vld [vmem:[%s1 + $0x2f8] sm:$0xff]
  %v121 = vld [vmem:[%s1 + $0x300] sm:$0xff]
  %v122 = vld [vmem:[%s1 + $0x308] sm:$0xff]
  %v123 = vld [vmem:[%s1 + $0x310] sm:$0xff]
  %v124 = vld [vmem:[%s1 + $0x318] sm:$0xff]
  %v125 = vld [vmem:[%s1 + $0x320] sm:$0xff]
  %v126 = vld [vmem:[%s1 + $0x328] sm:$0xff]
  %v127 = vld [vmem:[%s1 + $0x330] sm:$0xff]
  %v128 = vld [vmem:[%s1 + $0x338] sm:$0xff]
  %v129 = vld [vmem:[%s1 + $0x340] sm:$0xff]
  %v130 = vld [vmem:[%s1 + $0x348] sm:$0xff]
  %v131 = vld [vmem:[%s1 + $0x350] sm:$0xff]
  %v132 = vld [vmem:[%s1 + $0x358] sm:$0xff]
  %v133 = vld [vmem:[%s1 + $0x360] sm:$0xff]
  %v134 = vld [vmem:[%s1 + $0x368] sm:$0xff]
  %v135 = vld [vmem:[%s1 + $0x370] sm:$0xff]
  %v136 = vld [vmem:[%s1 + $0x378] sm:$0xff]
  %v137 = vld [vmem:[%s1 + $0x380] sm:$0xff]
  %v138 = vld [vmem:[%s1 + $0x388] sm:$0xff]
  %v139 = vld [vmem:[%s1 + $0x390] sm:$0xff]
  %v140 = vld [vmem:[%s1 + $0x398] sm:$0xff]
  %v141 = vld [vmem:[%s1 + $0x3a0] sm:$0xff]
  %v142 = vld [vmem:[%s1 + $0x3a8] sm:$0xff]
  %v143 = vld [vmem:[%s1 + $0x3b0] sm:$0xff]
  %v144 = vld [vmem:[%s1 + $0x3b8] sm:$0xff]
  %v145 = vld [vmem:[%s1 + $0x3c0] sm:$0xff]
  %v146 = vld [vmem:[%s1 + $0x3c8] sm:$0xff]
  %v147 = vld [vmem:[%s1 + $0x3d0] sm:$0xff]
  %v148 = vld [vmem:[%s1 + $0x3d8] sm:$0xff]
  %v149 = vld [vmem:[%s1 + $0x3e0] sm:$0xff]
  %v150 = vld [vmem:[%s1 + $0x3e8] sm:$0xff]
  %v151 = vld [vmem:[%s1 + $0x3f0] sm:$0xff]
  %v152 = vld [vmem:[%s1 + $0x3f8] sm:$0xff]
  %v153 = vld [vmem:[%s1 + $0x400] sm:$0xff]
  %v154 = vld [vmem:[%s1 + $0x408] sm:$0xff]
  %v155 = vld [vmem:[%s1 + $0x410] sm:$0xff]
  %v156 = vld [vmem:[%s1 + $0x418] sm:$0xff]
  %v157 = vld [vmem:[%s1 + $0x420] sm:$0xff]
  %v158 = vld [vmem:[%s1 + $0x428] sm:$0xff]
  %v159 = vld [vmem:[%s1 + $0x430] sm:$0xff]
  %v160 = vld [vmem:[%s1 + $0x438] sm:$0xff]
  %v161 = vld [vmem:[%s1 + $0x440] sm:$0xff]
  %v162 = vld [vmem:[%s1 + $0x448] sm:$0xff]
  %v163 = vld [vmem:[%s1 + $0x450] sm:$0xff]
  %v164 = vld [vmem:[%s1 + $0x458] sm:$0xff]
  %v165 = vld [vmem:[%s1 + $0x460] sm:$0xff]
  %v166 = vld [vmem:[%s1 + $0x468] sm:$0xff]
  %v167 = vld [vmem:[%s1 + $0x470] sm:$0xff]
  %v168 = vld [vmem:[%s1 + $0x478] sm:$0xff]
  %v169 = vld [vmem:[%s1 + $0x480] sm:$0xff]
  %v170 = vld [vmem:[%s1 + $0x488] sm:$0xff]
  %v171 = vld [vmem:[%s1 + $0x490] sm:$0xff]
  %v172 = vld [vmem:[%s1 + $0x498] sm:$0xff]
  %v173 = vld [vmem:[%s1 + $0x4a0] sm:$0xff]
  %v174 = vld [vmem:[%s1 + $0x4a8] sm:$0xff]
  %v175 = vld [vmem:[%s1 + $0x4b0] sm:$0xff]
  %v176 = vld [vmem:[%s1 + $0x4b8] sm:$0xff]
  %v177 = vld [vmem:[%s1 + $0x4c0] sm:$0xff]
  %v178 = vld [vmem:[%s1 + $0x4c8] sm:$0xff]
  %v179 = vld [vmem:[%s1 + $0x4d0] sm:$0xff]
  %v180 = vld [vmem:[%s1 + $0x4d8] sm:$0xff]
  %v181 = vld [vmem:[%s1 + $0x4e0] sm:$0xff]
  %v182 = vld [vmem:[%s1 + $0x4e8] sm:$0xff]
  %v183 = vld [vmem:[%s1 + $0x4f0] sm:$0xff]
  %v184 = vld [vmem:[%s1 + $0x4f8] sm:$0xff]
  %v185 = vld [vmem:[%s1 + $0x500] sm:$0xff]
  %v186 = vld [vmem:[%s1 + $0x508] sm:$0xff]
  %v187 = vld [vmem:[%s1 + $0x510] sm:$0xff]
  %v188 = vld [vmem:[%s1 + $0x518] sm:$0xff]
  %v189 = vld [vmem:[%s1 + $0x520] sm:$0xff]
  %v190 = vld [vmem:[%s1 + $0x528] sm:$0xff]
  %v191 = vld [vmem:[%s1 + $0x530] sm:$0xff]
  %v192 = vld [vmem:[%s1 + $0x538] sm:$0xff]
  %v193 = vld [vmem:[%s1 + $0x540] sm:$0xff]
  %v194 = vld [vmem:[%s1 + $0x548] sm:$0xff]
  %v195 = vld [vmem:[%s1 + $0x550] sm:$0xff]
  %v196 = vld [vmem:[%s1 + $0x558] sm:$0xff]
  %v197 = vld [vmem:[%s1 + $0x560] sm:$0xff]
  %v198 = vld [vmem:[%s1 + $0x568] sm:$0xff]
  %v199 = vld [vmem:[%s1 + $0x570] sm:$0xff]
  %v200 = vld [vmem:[%s1 + $0x578] sm:$0xff]
  %v201 = vld [vmem:[%s1 + $0x580] sm:$0xff]
  %v202 = vld [vmem:[%s1 + $0x588] sm:$0xff]
  %v203 = vld [vmem:[%s1 + $0x590] sm:$0xff]
  %v204 = vld [vmem:[%s1 + $0x598] sm:$0xff]
  %v205 = vld [vmem:[%s1 + $0x5a0] sm:$0xff]
  %v206 = vld [vmem:[%s1 + $0x5a8] sm:$0xff]
  %v207 = vld [vmem:[%s1 + $0x5b0] sm:$0xff]
  %v208 = vld [vmem:[%s1 + $0x5b8] sm:$0xff]
  %v209 = vld [vmem:[%s1 + $0x5c0] sm:$0xff]
  %v210 = vld [vmem:[%s1 + $0x5c8] sm:$0xff]
  %v211 = vld [vmem:[%s1 + $0x5d0] sm:$0xff]
  %v212 = vld [vmem:[%s1 + $0x5d8] sm:$0xff]
  %v213 = vld [vmem:[%s1 + $0x5e0] sm:$0xff]
  %v214 = vld [vmem:[%s1 + $0x5e8] sm:$0xff]
  %v215 = vld [vmem:[%s1 + $0x5f0] sm:$0xff]
  %v216 = vld [vmem:[%s1 + $0x5f8] sm:$0xff]
  %v217 = vld [vmem:[%s1 + $0x600] sm:$0xff]
  %v218 = vld [vmem:[%s1 + $0x608] sm:$0xff]
  %v219 = vld [vmem:[%s1 + $0x610] sm:$0xff]
  %v220 = vld [vmem:[%s1 + $0x618] sm:$0xff]
  %v221 = vld [vmem:[%s1 + $0x620] sm:$0xff]
  %v222 = vld [vmem:[%s1 + $0x628] sm:$0xff]
  %v223 = vld [vmem:[%s1 + $0x630] sm:$0xff]
  %v224 = vld [vmem:[%s1 + $0x638] sm:$0xff]
  %v225 = vld [vmem:[%s1 + $0x640] sm:$0xff]
  %v226 = vld [vmem:[%s1 + $0x648] sm:$0xff]
  %v227 = vld [vmem:[%s1 + $0x650] sm:$0xff]
  %v228 = vld [vmem:[%s1 + $0x658] sm:$0xff]
  %v229 = vld [vmem:[%s1 + $0x660] sm:$0xff]
  %v230 = vld [vmem:[%s1 + $0x668] sm:$0xff]
  %v231 = vld [vmem:[%s1 + $0x670] sm:$0xff]
  %v232 = vld [vmem:[%s1 + $0x678] sm:$0xff]
  %v233 = vld [vmem:[%s1 + $0x680] sm:$0xff]
  %v234 = vld [vmem:[%s1 + $0x688] sm:$0xff]
  %v235 = vld [vmem:[%s1 + $0x690] sm:$0xff]
  %v236 = vld [vmem:[%s1 + $0x698] sm:$0xff]
  %v237 = vld [vmem:[%s1 + $0x6a0] sm:$0xff]
  %v238 = vld [vmem:[%s1 + $0x6a8] sm:$0xff]
  %v239 = vld [vmem:[%s1 + $0x6b0] sm:$0xff]
  %v240 = vld [vmem:[%s1 + $0x6b8] sm:$0xff]
  %v241 = vld [vmem:[%s1 + $0x6c0] sm:$0xff]
  %v242 = vld [vmem:[%s1 + $0x6c8] sm:$0xff]
  %v243 = vld [vmem:[%s1 + $0x6d0] sm:$0xff]
  %v244 = vld [vmem:[%s1 + $0x6d8] sm:$0xff]
  %v245 = vld [vmem:[%s1 + $0x6e0] sm:$0xff]
  %v246 = vld [vmem:[%s1 + $0x6e8] sm:$0xff]
  %v247 = vld [vmem:[%s1 + $0x6f0] sm:$0xff]
  %v248 = vld [vmem:[%s1 + $0x6f8] sm:$0xff]
  %v249 = vld [vmem:[%s1 + $0x700] sm:$0xff]
  %v250 = vld [vmem:[%s1 + $0x708] sm:$0xff]
  %v251 = vld [vmem:[%s1 + $0x710] sm:$0xff]
  %v252 = vld [vmem:[%s1 + $0x718] sm:$0xff]
  %v253 = vld [vmem:[%s1 + $0x720] sm:$0xff]
  %v254 = vld [vmem:[%s1 + $0x728] sm:$0xff]
  %v255 = vld [vmem:[%s1 + $0x730] sm:$0xff]
  %v256 = vld [vmem:[%s1 + $0x738] sm:$0xff]
  %v257 = vld [vmem:[%s1 + $0x740] sm:$0xff]
  %v258 = vld [vmem:[%s1 + $0x748] sm:$0xff]
  %v259 = vld [vmem:[%s1 + $0x750] sm:$0xff]
  %v260 = vld [vmem:[%s1 + $0x758] sm:$0xff]
  %v261 = vld [vmem:[%s1 + $0x760] sm:$0xff]
  %v262 = vld [vmem:[%s1 + $0x768] sm:$0xff]
  %v263 = vld [vmem:[%s1 + $0x770] sm:$0xff]
  %v264 = vld [vmem:[%s1 + $0x778] sm:$0xff]
  %v265 = vld [vmem:[%s1 + $0x780] sm:$0xff]
  %v266 = vld [vmem:[%s1 + $0x788] sm:$0xff]
  %v267 = vld [vmem:[%s1 + $0x790] sm:$0xff]
  %v268 = vld [vmem:[%s1 + $0x798] sm:$0xff]
  %v269 = vld [vmem:[%s1 + $0x7a0] sm:$0xff]
  %v270 = vld [vmem:[%s1 + $0x7a8] sm:$0xff]
  %v271 = vld [vmem:[%s1 + $0x7b0] sm:$0xff]
  %v272 = vld [vmem:[%s1 + $0x7b8] sm:$0xff]
  %v273 = vld [vmem:[%s1 + $0x7c0] sm:$0xff]
  %v274 = vld [vmem:[%s1 + $0x7c8] sm:$0xff]
  %v275 = vld [vmem:[%s1 + $0x7d0] sm:$0xff]
  %v276 = vld [vmem:[%s1 + $0x7d8] sm:$0xff]
  %v277 = vld [vmem:[%s1 + $0x7e0] sm:$0xff]
  %v278 = vld [vmem:[%s1 + $0x7e8] sm:$0xff]
  %v279 = vld [vmem:[%s1 + $0x7f0] sm:$0xff]
  %v280 = vld [vmem:[%s1 + $0x7f8] sm:$0xff]
  %v281 = vld [vmem:[%s1 + $0x800] sm:$0xff]
  %v282 = vld [vmem:[%s1 + $0x808] sm:$0xff]
  %v283 = vld [vmem:[%s1 + $0x810] sm:$0xff]
  %v284 = vld [vmem:[%s1 + $0x818] sm:$0xff]
  %v285 = vld [vmem:[%s1 + $0x820] sm:$0xff]
  %v286 = vld [vmem:[%s1 + $0x828] sm:$0xff]
  %v287 = vld [vmem:[%s1 + $0x830] sm:$0xff]
  %v288 = vld [vmem:[%s1 + $0x838] sm:$0xff]
  %v289 = vld [vmem:[%s1 + $0x840] sm:$0xff]
  %v290 = vld [vmem:[%s1 + $0x848] sm:$0xff]
  %v291 = vld [vmem:[%s1 + $0x850] sm:$0xff]
  %v292 = vld [vmem:[%s1 + $0x858] sm:$0xff]
  %v293 = vld [vmem:[%s1 + $0x860] sm:$0xff]
  %v294 = vld [vmem:[%s1 + $0x868] sm:$0xff]
  %v295 = vld [vmem:[%s1 + $0x870] sm:$0xff]
  %v296 = vld [vmem:[%s1 + $0x878] sm:$0xff]
  %v297 = vld [vmem:[%s1 + $0x880] sm:$0xff]
  %v298 = vld [vmem:[%s1 + $0x888] sm:$0xff]
  %v299 = vld [vmem:[%s1 + $0x890] sm:$0xff]
  %v300 = vld [vmem:[%s1 + $0x898] sm:$0xff]
  %v301 = vld [vmem:[%s1 + $0x8a0] sm:$0xff]
  %v302 = vld [vmem:[%s1 + $0x8a8] sm:$0xff]
  %v303 = vld [vmem:[%s1 + $0x8b0] sm:$0xff]
  %v304 = vld [vmem:[%s1 + $0x8b8] sm:$0xff]
  %v305 = vld [vmem:[%s1 + $0x8c0] sm:$0xff]
  %v306 = vld [vmem:[%s1 + $0x8c8] sm:$0xff]
  %v307 = vld [vmem:[%s1 + $0x8d0] sm:$0xff]
  %v308 = vld [vmem:[%s1 + $0x8d8] sm:$0xff]
  %v309 = vld [vmem:[%s1 + $0x8e0] sm:$0xff]
  %v310 = vld [vmem:[%s1 + $0x8e8] sm:$0xff]
  %v311 = vld [vmem:[%s1 + $0x8f0] sm:$0xff]
  %v312 = vld [vmem:[%s1 + $0x8f8] sm:$0xff]
  %v313 = vld [vmem:[%s1 + $0x900] sm:$0xff]
  %v314 = vld [vmem:[%s1 + $0x908] sm:$0xff]
  %v315 = vld [vmem:[%s1 + $0x910] sm:$0xff]
  %v316 = vld [vmem:[%s1 + $0x918] sm:$0xff]
  %v317 = vld [vmem:[%s1 + $0x920] sm:$0xff]
  %v318 = vld [vmem:[%s1 + $0x928] sm:$0xff]
  %v319 = vld [vmem:[%s1 + $0x930] sm:$0xff]
  %v320 = vld [vmem:[%s1 + $0x938] sm:$0xff]
  %v321 = vld [vmem:[%s1 + $0x940] sm:$0xff]
  %v322 = vld [vmem:[%s1 + $0x948] sm:$0xff]
  %v323 = vld [vmem:[%s1 + $0x950] sm:$0xff]
  %v324 = vld [vmem:[%s1 + $0x958] sm:$0xff]
  %v325 = vld [vmem:[%s1 + $0x960] sm:$0xff]
  %v326 = vld [vmem:[%s1 + $0x968] sm:$0xff]
  %v327 = vld [vmem:[%s1 + $0x970] sm:$0xff]
  %v328 = vld [vmem:[%s1 + $0x978] sm:$0xff]
  %v329 = vld [vmem:[%s1 + $0x980] sm:$0xff]
  %v330 = vld [vmem:[%s1 + $0x988] sm:$0xff]
  %v331 = vld [vmem:[%s1 + $0x990] sm:$0xff]
  %v332 = vld [vmem:[%s1 + $0x998] sm:$0xff]
  %v333 = vld [vmem:[%s1 + $0x9a0] sm:$0xff]
  %v334 = vld [vmem:[%s1 + $0x9a8] sm:$0xff]
  %v335 = vld [vmem:[%s1 + $0x9b0] sm:$0xff]
  %v336 = vld [vmem:[%s1 + $0x9b8] sm:$0xff]
  %v337 = vld [vmem:[%s1 + $0x9c0] sm:$0xff]
  %v338 = vld [vmem:[%s1 + $0x9c8] sm:$0xff]
  %v339 = vld [vmem:[%s1 + $0x9d0] sm:$0xff]
  %v340 = vld [vmem:[%s1 + $0x9d8] sm:$0xff]
  %v341 = vld [vmem:[%s1 + $0x9e0] sm:$0xff]
  %v342 = vld [vmem:[%s1 + $0x9e8] sm:$0xff]
  %v343 = vld [vmem:[%s1 + $0x9f0] sm:$0xff]
  %v344 = vld [vmem:[%s1 + $0x9f8] sm:$0xff]
  %v345 = vld [vmem:[%s1 + $0xa00] sm:$0xff]
  %v346 = vld [vmem:[%s1 + $0xa08] sm:$0xff]
  %v347 = vld [vmem:[%s1 + $0xa10] sm:$0xff]
  %v348 = vld [vmem:[%s1 + $0xa18] sm:$0xff]
  %v349 = vld [vmem:[%s1 + $0xa20] sm:$0xff]
  %v350 = vld [vmem:[%s1 + $0xa28] sm:$0xff]
  %v351 = vld [vmem:[%s1 + $0xa30] sm:$0xff]
  %v352 = vld [vmem:[%s1 + $0xa38] sm:$0xff]
  %v353 = vld [vmem:[%s1 + $0xa40] sm:$0xff]
  %v354 = vld [vmem:[%s1 + $0xa48] sm:$0xff]
  %v355 = vld [vmem:[%s1 + $0xa50] sm:$0xff]
  %v356 = vld [vmem:[%s1 + $0xa58] sm:$0xff]
  %v357 = vld [vmem:[%s1 + $0xa60] sm:$0xff]
  %v358 = vld [vmem:[%s1 + $0xa68] sm:$0xff]
  %v359 = vld [vmem:[%s1 + $0xa70] sm:$0xff]
  %v360 = vld [vmem:[%s1 + $0xa78] sm:$0xff]
  %v361 = vld [vmem:[%s1 + $0xa80] sm:$0xff]
  %v362 = vld [vmem:[%s1 + $0xa88] sm:$0xff]
  %v363 = vld [vmem:[%s1 + $0xa90] sm:$0xff]
  %v364 = vld [vmem:[%s1 + $0xa98] sm:$0xff]
  %v365 = vld [vmem:[%s1 + $0xaa0] sm:$0xff]
  %v366 = vld [vmem:[%s1 + $0xaa8] sm:$0xff]
  %v367 = vld [vmem:[%s1 + $0xab0] sm:$0xff]
  %v368 = vld [vmem:[%s1 + $0xab8] sm:$0xff]
  %v369 = vld [vmem:[%s1 + $0xac0] sm:$0xff]
  %v370 = vld [vmem:[%s1 + $0xac8] sm:$0xff]
  %v371 = vld [vmem:[%s1 + $0xad0] sm:$0xff]
  %v372 = vld [vmem:[%s1 + $0xad8] sm:$0xff]
  %v373 = vld [vmem:[%s1 + $0xae0] sm:$0xff]
  %v374 = vld [vmem:[%s1 + $0xae8] sm:$0xff]
  %v375 = vld [vmem:[%s1 + $0xaf0] sm:$0xff]
  %v376 = vld [vmem:[%s1 + $0xaf8] sm:$0xff]
  %v377 = vld [vmem:[%s2] sm:$0xf]
  %v379 = vlaneseq
  %v380 = vshrl.u32 %v379, 7
  %v381 = vsub.s32 0, %v380
  %v382 = vrot.slane %v377, %v381
  %v383 = vlaneseq
  %v384 = vshrl.u32 %v383, 7
  %v385 = vsub.s32 1, %v384
  %v386 = vrot.slane %v377, %v385
  %v387 = vlaneseq
  %v388 = vshrl.u32 %v387, 7
  %v389 = vsub.s32 2, %v388
  %v390 = vrot.slane %v377, %v389
  %v391 = vlaneseq
  %v392 = vshrl.u32 %v391, 7
  %v393 = vsub.s32 3, %v392
  %v394 = vrot.slane %v377, %v393
  %v401 = vcombine.high %v23, %v23
  %v403 = vunpack.c.l.s4 1966171168
  %v404 = vunpack.c.0.s8 %v403
  %v405 = vlaneseq
  %v406 = vshrl.u32 %v405, 7
  %v407 = vsub.s32 %v404, %v406
  %v408 = vrot.slane %v23, %v407
  %v410 = vunpack.c.l.s4 1966171168
  %v411 = vunpack.c.0.s8 %v410
  %v412 = vlaneseq
  %v413 = vshrl.u32 %v412, 7
  %v414 = vsub.s32 %v411, %v413
  %v415 = vrot.slane %v401, %v414
  %v416 = vcombine.high %v408, %v408
  %v417 = vcombine.high %v415, %v415
  %v419 = vunpack.c.l.s4 1966171168
  %v420 = vunpack.c.0.s8 %v419
  %v421 = vlaneseq
  %v422 = vshrl.u32 %v421, 7
  %v423 = vsub.s32 %v420, %v422
  %v424 = vrot.slane %v408, %v423
  %v426 = vunpack.c.l.s4 1966171168
  %v427 = vunpack.c.0.s8 %v426
  %v428 = vlaneseq
  %v429 = vshrl.u32 %v428, 7
  %v430 = vsub.s32 %v427, %v429
  %v431 = vrot.slane %v415, %v430
  %v433 = vunpack.c.l.s4 1966171168
  %v434 = vunpack.c.0.s8 %v433
  %v435 = vlaneseq
  %v436 = vshrl.u32 %v435, 7
  %v437 = vsub.s32 %v434, %v436
  %v438 = vrot.slane %v416, %v437
  %v440 = vunpack.c.l.s4 1966171168
  %v441 = vunpack.c.0.s8 %v440
  %v442 = vlaneseq
  %v443 = vshrl.u32 %v442, 7
  %v444 = vsub.s32 %v441, %v443
  %v445 = vrot.slane %v417, %v444
  %v446 = vcombine.high %v424, %v424
  %v447 = vcombine.high %v431, %v431
  %v448 = vcombine.high %v438, %v438
  %v449 = vcombine.high %v445, %v445
  %v451 = vunpack.c.l.s4 1966171168
  %v452 = vunpack.c.0.s8 %v451
  %v453 = vlaneseq
  %v454 = vshrl.u32 %v453, 7
  %v455 = vsub.s32 %v452, %v454
  %v456 = vrot.slane %v24, %v455
  %v457 = vcombine.high %v456, %v456
  %v459 = vunpack.c.l.s4 1966171168
  %v460 = vunpack.c.0.s8 %v459
  %v461 = vlaneseq
  %v462 = vshrl.u32 %v461, 7
  %v463 = vsub.s32 %v460, %v462
  %v464 = vrot.slane %v456, %v463
  %v466 = vunpack.c.l.s4 1966171168
  %v467 = vunpack.c.0.s8 %v466
  %v468 = vlaneseq
  %v469 = vshrl.u32 %v468, 7
  %v470 = vsub.s32 %v467, %v469
  %v471 = vrot.slane %v457, %v470
  %v472 = vcombine.high %v464, %v464
  %v836 = vunpack.c.l.b16 %v25
  %v837 = vunpack.c.h.b16 %v25
  %v838 = vunpack.c.l.b16 %v26
  %v839 = vunpack.c.h.b16 %v26
  %v840 = vunpack.c.l.b16 %v27
  %v841 = vunpack.c.h.b16 %v27
  %v842 = vunpack.c.l.b16 %v28
  %v843 = vunpack.c.h.b16 %v28
  %v844 = vunpack.c.l.b16 %v29
  %v845 = vunpack.c.h.b16 %v29
  %v846 = vunpack.c.l.b16 %v30
  %v847 = vunpack.c.h.b16 %v30
  %v848 = vunpack.c.l.b16 %v31
  %v849 = vunpack.c.h.b16 %v31
  %v850 = vunpack.c.l.b16 %v32
  %v851 = vunpack.c.h.b16 %v32
  %v852 = vunpack.c.l.b16 %v33
  %v853 = vunpack.c.h.b16 %v33
  %v854 = vunpack.c.l.b16 %v34
  %v855 = vunpack.c.h.b16 %v34
  %v856 = vunpack.c.l.b16 %v35
  %v857 = vunpack.c.h.b16 %v35
  %v858 = vunpack.c.l.b16 %v36
  %v859 = vunpack.c.h.b16 %v36
  %v860 = vunpack.c.l.b16 %v37
  %v861 = vunpack.c.h.b16 %v37
  %v862 = vunpack.c.l.b16 %v38
  %v863 = vunpack.c.h.b16 %v38
  %v864 = vunpack.c.l.b16 %v39
  %v865 = vunpack.c.h.b16 %v39
  %v866 = vunpack.c.l.b16 %v40
  %v867 = vunpack.c.h.b16 %v40
  %v868 = vunpack.c.l.b16 %v41
  %v869 = vunpack.c.h.b16 %v41
  %v870 = vunpack.c.l.b16 %v42
  %v871 = vunpack.c.h.b16 %v42
  %v872 = vunpack.c.l.b16 %v43
  %v873 = vunpack.c.h.b16 %v43
  %v874 = vunpack.c.l.b16 %v44
  %v875 = vunpack.c.h.b16 %v44
  %v876 = vunpack.c.l.b16 %v45
  %v877 = vunpack.c.h.b16 %v45
  %v878 = vunpack.c.l.b16 %v46
  %v879 = vunpack.c.h.b16 %v46
  %v880 = vunpack.c.l.b16 %v47
  %v881 = vunpack.c.h.b16 %v47
  %v882 = vunpack.c.l.b16 %v48
  %v883 = vunpack.c.h.b16 %v48
  %v884 = vunpack.c.l.b16 %v49
  %v885 = vunpack.c.h.b16 %v49
  %v886 = vunpack.c.l.b16 %v50
  %v887 = vunpack.c.h.b16 %v50
  %v888 = vunpack.c.l.b16 %v51
  %v889 = vunpack.c.h.b16 %v51
  %v890 = vunpack.c.l.b16 %v52
  %v891 = vunpack.c.h.b16 %v52
  %v892 = vunpack.c.l.b16 %v53
  %v893 = vunpack.c.h.b16 %v53
  %v894 = vunpack.c.l.b16 %v54
  %v895 = vunpack.c.h.b16 %v54
  %v896 = vunpack.c.l.b16 %v55
  %v897 = vunpack.c.h.b16 %v55
  %v898 = vunpack.c.l.b16 %v56
  %v899 = vunpack.c.h.b16 %v56
  %v900 = vunpack.c.l.b16 %v57
  %v901 = vunpack.c.h.b16 %v57
  %v902 = vunpack.c.l.b16 %v58
  %v903 = vunpack.c.h.b16 %v58
  %v904 = vunpack.c.l.b16 %v59
  %v905 = vunpack.c.h.b16 %v59
  %v906 = vunpack.c.l.b16 %v60
  %v907 = vunpack.c.h.b16 %v60
  %v908 = vunpack.c.l.b16 %v61
  %v909 = vunpack.c.h.b16 %v61
  %v910 = vunpack.c.l.b16 %v62
  %v911 = vunpack.c.h.b16 %v62
  %v912 = vunpack.c.l.b16 %v63
  %v913 = vunpack.c.h.b16 %v63
  %v914 = vunpack.c.l.b16 %v64
  %v915 = vunpack.c.h.b16 %v64
  %v916 = vunpack.c.l.b16 %v65
  %v917 = vunpack.c.h.b16 %v65
  %v918 = vunpack.c.l.b16 %v66
  %v919 = vunpack.c.h.b16 %v66
  %v920 = vunpack.c.l.b16 %v67
  %v921 = vunpack.c.h.b16 %v67
  %v922 = vunpack.c.l.b16 %v68
  %v923 = vunpack.c.h.b16 %v68
  %v924 = vunpack.c.l.b16 %v69
  %v925 = vunpack.c.h.b16 %v69
  %v926 = vunpack.c.l.b16 %v70
  %v927 = vunpack.c.h.b16 %v70
  %v928 = vunpack.c.l.b16 %v71
  %v929 = vunpack.c.h.b16 %v71
  %v930 = vunpack.c.l.b16 %v72
  %v931 = vunpack.c.h.b16 %v72
  %v932 = vunpack.c.l.b16 %v73
  %v933 = vunpack.c.h.b16 %v73
  %v934 = vunpack.c.l.b16 %v74
  %v935 = vunpack.c.h.b16 %v74
  %v936 = vunpack.c.l.b16 %v75
  %v937 = vunpack.c.h.b16 %v75
  %v938 = vunpack.c.l.b16 %v76
  %v939 = vunpack.c.h.b16 %v76
  %v940 = vunpack.c.l.b16 %v77
  %v941 = vunpack.c.h.b16 %v77
  %v942 = vunpack.c.l.b16 %v78
  %v943 = vunpack.c.h.b16 %v78
  %v944 = vunpack.c.l.b16 %v79
  %v945 = vunpack.c.h.b16 %v79
  %v946 = vunpack.c.l.b16 %v80
  %v947 = vunpack.c.h.b16 %v80
  %v948 = vunpack.c.l.b16 %v81
  %v949 = vunpack.c.h.b16 %v81
  %v950 = vunpack.c.l.b16 %v82
  %v951 = vunpack.c.h.b16 %v82
  %v952 = vunpack.c.l.b16 %v83
  %v953 = vunpack.c.h.b16 %v83
  %v954 = vunpack.c.l.b16 %v84
  %v955 = vunpack.c.h.b16 %v84
  %v956 = vunpack.c.l.b16 %v85
  %v957 = vunpack.c.h.b16 %v85
  %v958 = vunpack.c.l.b16 %v86
  %v959 = vunpack.c.h.b16 %v86
  %v960 = vunpack.c.l.b16 %v87
  %v961 = vunpack.c.h.b16 %v87
  %v962 = vunpack.c.l.b16 %v88
  %v963 = vunpack.c.h.b16 %v88
  %v964 = vunpack.c.l.b16 %v89
  %v965 = vunpack.c.h.b16 %v89
  %v966 = vunpack.c.l.b16 %v90
  %v967 = vunpack.c.h.b16 %v90
  %v968 = vunpack.c.l.b16 %v91
  %v969 = vunpack.c.h.b16 %v91
  %v970 = vunpack.c.l.b16 %v92
  %v971 = vunpack.c.h.b16 %v92
  %v972 = vunpack.c.l.b16 %v93
  %v973 = vunpack.c.h.b16 %v93
  %v974 = vunpack.c.l.b16 %v94
  %v975 = vunpack.c.h.b16 %v94
  %v976 = vunpack.c.l.b16 %v95
  %v977 = vunpack.c.h.b16 %v95
  %v978 = vunpack.c.l.b16 %v96
  %v979 = vunpack.c.h.b16 %v96
  %v980 = vunpack.c.l.b16 %v97
  %v981 = vunpack.c.h.b16 %v97
  %v982 = vunpack.c.l.b16 %v98
  %v983 = vunpack.c.h.b16 %v98
  %v984 = vunpack.c.l.b16 %v99
  %v985 = vunpack.c.h.b16 %v99
  %v986 = vunpack.c.l.b16 %v100
  %v987 = vunpack.c.h.b16 %v100
  %v988 = vunpack.c.l.b16 %v101
  %v989 = vunpack.c.h.b16 %v101
  %v990 = vunpack.c.l.b16 %v102
  %v991 = vunpack.c.h.b16 %v102
  %v992 = vunpack.c.l.b16 %v103
  %v993 = vunpack.c.h.b16 %v103
  %v994 = vunpack.c.l.b16 %v104
  %v995 = vunpack.c.h.b16 %v104
  %v996 = vunpack.c.l.b16 %v105
  %v997 = vunpack.c.h.b16 %v105
  %v998 = vunpack.c.l.b16 %v106
  %v999 = vunpack.c.h.b16 %v106
  %v1000 = vunpack.c.l.b16 %v107
  %v1001 = vunpack.c.h.b16 %v107
  %v1002 = vunpack.c.l.b16 %v108
  %v1003 = vunpack.c.h.b16 %v108
  %v1004 = vunpack.c.l.b16 %v109
  %v1005 = vunpack.c.h.b16 %v109
  %v1006 = vunpack.c.l.b16 %v110
  %v1007 = vunpack.c.h.b16 %v110
  %v1008 = vunpack.c.l.b16 %v111
  %v1009 = vunpack.c.h.b16 %v111
  %v1010 = vunpack.c.l.b16 %v112
  %v1011 = vunpack.c.h.b16 %v112
  %v1012 = vunpack.c.l.b16 %v113
  %v1013 = vunpack.c.h.b16 %v113
  %v1014 = vunpack.c.l.b16 %v114
  %v1015 = vunpack.c.h.b16 %v114
  %v1016 = vunpack.c.l.b16 %v115
  %v1017 = vunpack.c.h.b16 %v115
  %v1018 = vunpack.c.l.b16 %v116
  %v1019 = vunpack.c.h.b16 %v116
  %v1020 = vunpack.c.l.b16 %v117
  %v1021 = vunpack.c.h.b16 %v117
  %v1022 = vunpack.c.l.b16 %v118
  %v1023 = vunpack.c.h.b16 %v118
  %v1024 = vunpack.c.l.b16 %v119
  %v1025 = vunpack.c.h.b16 %v119
  %v1026 = vunpack.c.l.b16 %v120
  %v1027 = vunpack.c.h.b16 %v120
  %v1028 = vunpack.c.l.b16 %v121
  %v1029 = vunpack.c.h.b16 %v121
  %v1030 = vunpack.c.l.b16 %v122
  %v1031 = vunpack.c.h.b16 %v122
  %v1032 = vunpack.c.l.b16 %v123
  %v1033 = vunpack.c.h.b16 %v123
  %v1034 = vunpack.c.l.b16 %v124
  %v1035 = vunpack.c.h.b16 %v124
  %v1036 = vunpack.c.l.b16 %v125
  %v1037 = vunpack.c.h.b16 %v125
  %v1038 = vunpack.c.l.b16 %v126
  %v1039 = vunpack.c.h.b16 %v126
  %v1040 = vunpack.c.l.b16 %v127
  %v1041 = vunpack.c.h.b16 %v127
  %v1042 = vunpack.c.l.b16 %v128
  %v1043 = vunpack.c.h.b16 %v128
  %v1044 = vunpack.c.l.b16 %v129
  %v1045 = vunpack.c.h.b16 %v129
  %v1046 = vunpack.c.l.b16 %v130
  %v1047 = vunpack.c.h.b16 %v130
  %v1048 = vunpack.c.l.b16 %v131
  %v1049 = vunpack.c.h.b16 %v131
  %v1050 = vunpack.c.l.b16 %v132
  %v1051 = vunpack.c.h.b16 %v132
  %v1052 = vunpack.c.l.b16 %v133
  %v1053 = vunpack.c.h.b16 %v133
  %v1054 = vunpack.c.l.b16 %v134
  %v1055 = vunpack.c.h.b16 %v134
  %v1056 = vunpack.c.l.b16 %v135
  %v1057 = vunpack.c.h.b16 %v135
  %v1058 = vunpack.c.l.b16 %v136
  %v1059 = vunpack.c.h.b16 %v136
  %v1060 = vunpack.c.l.b16 %v137
  %v1061 = vunpack.c.h.b16 %v137
  %v1062 = vunpack.c.l.b16 %v138
  %v1063 = vunpack.c.h.b16 %v138
  %v1064 = vunpack.c.l.b16 %v139
  %v1065 = vunpack.c.h.b16 %v139
  %v1066 = vunpack.c.l.b16 %v140
  %v1067 = vunpack.c.h.b16 %v140
  %v1068 = vunpack.c.l.b16 %v141
  %v1069 = vunpack.c.h.b16 %v141
  %v1070 = vunpack.c.l.b16 %v142
  %v1071 = vunpack.c.h.b16 %v142
  %v1072 = vunpack.c.l.b16 %v143
  %v1073 = vunpack.c.h.b16 %v143
  %v1074 = vunpack.c.l.b16 %v144
  %v1075 = vunpack.c.h.b16 %v144
  %v1076 = vunpack.c.l.b16 %v145
  %v1077 = vunpack.c.h.b16 %v145
  %v1078 = vunpack.c.l.b16 %v146
  %v1079 = vunpack.c.h.b16 %v146
  %v1080 = vunpack.c.l.b16 %v147
  %v1081 = vunpack.c.h.b16 %v147
  %v1082 = vunpack.c.l.b16 %v148
  %v1083 = vunpack.c.h.b16 %v148
  %v1084 = vunpack.c.l.b16 %v149
  %v1085 = vunpack.c.h.b16 %v149
  %v1086 = vunpack.c.l.b16 %v150
  %v1087 = vunpack.c.h.b16 %v150
  %v1088 = vunpack.c.l.b16 %v151
  %v1089 = vunpack.c.h.b16 %v151
  %v1090 = vunpack.c.l.b16 %v152
  %v1091 = vunpack.c.h.b16 %v152
  %v1092 = vunpack.c.l.b16 %v153
  %v1093 = vunpack.c.h.b16 %v153
  %v1094 = vunpack.c.l.b16 %v154
  %v1095 = vunpack.c.h.b16 %v154
  %v1096 = vunpack.c.l.b16 %v155
  %v1097 = vunpack.c.h.b16 %v155
  %v1098 = vunpack.c.l.b16 %v156
  %v1099 = vunpack.c.h.b16 %v156
  %v1100 = vunpack.c.l.b16 %v157
  %v1101 = vunpack.c.h.b16 %v157
  %v1102 = vunpack.c.l.b16 %v158
  %v1103 = vunpack.c.h.b16 %v158
  %v1104 = vunpack.c.l.b16 %v159
  %v1105 = vunpack.c.h.b16 %v159
  %v1106 = vunpack.c.l.b16 %v160
  %v1107 = vunpack.c.h.b16 %v160
  %v1108 = vunpack.c.l.b16 %v161
  %v1109 = vunpack.c.h.b16 %v161
  %v1110 = vunpack.c.l.b16 %v162
  %v1111 = vunpack.c.h.b16 %v162
  %v1112 = vunpack.c.l.b16 %v163
  %v1113 = vunpack.c.h.b16 %v163
  %v1114 = vunpack.c.l.b16 %v164
  %v1115 = vunpack.c.h.b16 %v164
  %v1116 = vunpack.c.l.b16 %v165
  %v1117 = vunpack.c.h.b16 %v165
  %v1118 = vunpack.c.l.b16 %v166
  %v1119 = vunpack.c.h.b16 %v166
  %v1120 = vunpack.c.l.b16 %v167
  %v1121 = vunpack.c.h.b16 %v167
  %v1122 = vunpack.c.l.b16 %v168
  %v1123 = vunpack.c.h.b16 %v168
  %v1124 = vunpack.c.l.b16 %v169
  %v1125 = vunpack.c.h.b16 %v169
  %v1126 = vunpack.c.l.b16 %v170
  %v1127 = vunpack.c.h.b16 %v170
  %v1128 = vunpack.c.l.b16 %v171
  %v1129 = vunpack.c.h.b16 %v171
  %v1130 = vunpack.c.l.b16 %v172
  %v1131 = vunpack.c.h.b16 %v172
  %v1132 = vunpack.c.l.b16 %v173
  %v1133 = vunpack.c.h.b16 %v173
  %v1134 = vunpack.c.l.b16 %v174
  %v1135 = vunpack.c.h.b16 %v174
  %v1136 = vunpack.c.l.b16 %v175
  %v1137 = vunpack.c.h.b16 %v175
  %v1138 = vunpack.c.l.b16 %v176
  %v1139 = vunpack.c.h.b16 %v176
  %v1140 = vunpack.c.l.b16 %v177
  %v1141 = vunpack.c.h.b16 %v177
  %v1142 = vunpack.c.l.b16 %v178
  %v1143 = vunpack.c.h.b16 %v178
  %v1144 = vunpack.c.l.b16 %v179
  %v1145 = vunpack.c.h.b16 %v179
  %v1146 = vunpack.c.l.b16 %v180
  %v1147 = vunpack.c.h.b16 %v180
  %v1148 = vunpack.c.l.b16 %v181
  %v1149 = vunpack.c.h.b16 %v181
  %v1150 = vunpack.c.l.b16 %v182
  %v1151 = vunpack.c.h.b16 %v182
  %v1152 = vunpack.c.l.b16 %v183
  %v1153 = vunpack.c.h.b16 %v183
  %v1154 = vunpack.c.l.b16 %v184
  %v1155 = vunpack.c.h.b16 %v184
  %v1156 = vunpack.c.l.b16 %v185
  %v1157 = vunpack.c.h.b16 %v185
  %v1158 = vunpack.c.l.b16 %v186
  %v1159 = vunpack.c.h.b16 %v186
  %v1160 = vunpack.c.l.b16 %v187
  %v1161 = vunpack.c.h.b16 %v187
  %v1162 = vunpack.c.l.b16 %v188
  %v1163 = vunpack.c.h.b16 %v188
  %v1164 = vunpack.c.l.b16 %v189
  %v1165 = vunpack.c.h.b16 %v189
  %v1166 = vunpack.c.l.b16 %v190
  %v1167 = vunpack.c.h.b16 %v190
  %v1168 = vunpack.c.l.b16 %v191
  %v1169 = vunpack.c.h.b16 %v191
  %v1170 = vunpack.c.l.b16 %v192
  %v1171 = vunpack.c.h.b16 %v192
  %v1172 = vunpack.c.l.b16 %v193
  %v1173 = vunpack.c.h.b16 %v193
  %v1174 = vunpack.c.l.b16 %v194
  %v1175 = vunpack.c.h.b16 %v194
  %v1176 = vunpack.c.l.b16 %v195
  %v1177 = vunpack.c.h.b16 %v195
  %v1178 = vunpack.c.l.b16 %v196
  %v1179 = vunpack.c.h.b16 %v196
  %v1180 = vunpack.c.l.b16 %v197
  %v1181 = vunpack.c.h.b16 %v197
  %v1182 = vunpack.c.l.b16 %v198
  %v1183 = vunpack.c.h.b16 %v198
  %v1184 = vunpack.c.l.b16 %v199
  %v1185 = vunpack.c.h.b16 %v199
  %v1186 = vunpack.c.l.b16 %v200
  %v1187 = vunpack.c.h.b16 %v200
  %v1188 = vunpack.c.l.b16 %v201
  %v1189 = vunpack.c.h.b16 %v201
  %v1190 = vunpack.c.l.b16 %v202
  %v1191 = vunpack.c.h.b16 %v202
  %v1192 = vunpack.c.l.b16 %v203
  %v1193 = vunpack.c.h.b16 %v203
  %v1194 = vunpack.c.l.b16 %v204
  %v1195 = vunpack.c.h.b16 %v204
  %v1196 = vunpack.c.l.b16 %v205
  %v1197 = vunpack.c.h.b16 %v205
  %v1198 = vunpack.c.l.b16 %v206
  %v1199 = vunpack.c.h.b16 %v206
  %v1200 = vunpack.c.l.b16 %v207
  %v1201 = vunpack.c.h.b16 %v207
  %v1202 = vunpack.c.l.b16 %v208
  %v1203 = vunpack.c.h.b16 %v208
  %v1204 = vunpack.c.l.b16 %v209
  %v1205 = vunpack.c.h.b16 %v209
  %v1206 = vunpack.c.l.b16 %v210
  %v1207 = vunpack.c.h.b16 %v210
  %v1208 = vunpack.c.l.b16 %v211
  %v1209 = vunpack.c.h.b16 %v211
  %v1210 = vunpack.c.l.b16 %v212
  %v1211 = vunpack.c.h.b16 %v212
  %v1212 = vunpack.c.l.b16 %v213
  %v1213 = vunpack.c.h.b16 %v213
  %v1214 = vunpack.c.l.b16 %v214
  %v1215 = vunpack.c.h.b16 %v214
  %v1216 = vunpack.c.l.b16 %v215
  %v1217 = vunpack.c.h.b16 %v215
  %v1218 = vunpack.c.l.b16 %v216
  %v1219 = vunpack.c.h.b16 %v216
  %v1220 = vunpack.c.l.b16 %v217
  %v1221 = vunpack.c.h.b16 %v217
  %v1222 = vunpack.c.l.b16 %v218
  %v1223 = vunpack.c.h.b16 %v218
  %v1224 = vunpack.c.l.b16 %v219
  %v1225 = vunpack.c.h.b16 %v219
  %v1226 = vunpack.c.l.b16 %v220
  %v1227 = vunpack.c.h.b16 %v220
  %v1228 = vunpack.c.l.b16 %v221
  %v1229 = vunpack.c.h.b16 %v221
  %v1230 = vunpack.c.l.b16 %v222
  %v1231 = vunpack.c.h.b16 %v222
  %v1232 = vunpack.c.l.b16 %v223
  %v1233 = vunpack.c.h.b16 %v223
  %v1234 = vunpack.c.l.b16 %v224
  %v1235 = vunpack.c.h.b16 %v224
  %v1236 = vunpack.c.l.b16 %v225
  %v1237 = vunpack.c.h.b16 %v225
  %v1238 = vunpack.c.l.b16 %v226
  %v1239 = vunpack.c.h.b16 %v226
  %v1240 = vunpack.c.l.b16 %v227
  %v1241 = vunpack.c.h.b16 %v227
  %v1242 = vunpack.c.l.b16 %v228
  %v1243 = vunpack.c.h.b16 %v228
  %v1244 = vunpack.c.l.b16 %v229
  %v1245 = vunpack.c.h.b16 %v229
  %v1246 = vunpack.c.l.b16 %v230
  %v1247 = vunpack.c.h.b16 %v230
  %v1248 = vunpack.c.l.b16 %v231
  %v1249 = vunpack.c.h.b16 %v231
  %v1250 = vunpack.c.l.b16 %v232
  %v1251 = vunpack.c.h.b16 %v232
  %v1252 = vunpack.c.l.b16 %v233
  %v1253 = vunpack.c.h.b16 %v233
  %v1254 = vunpack.c.l.b16 %v234
  %v1255 = vunpack.c.h.b16 %v234
  %v1256 = vunpack.c.l.b16 %v235
  %v1257 = vunpack.c.h.b16 %v235
  %v1258 = vunpack.c.l.b16 %v236
  %v1259 = vunpack.c.h.b16 %v236
  %v1260 = vunpack.c.l.b16 %v237
  %v1261 = vunpack.c.h.b16 %v237
  %v1262 = vunpack.c.l.b16 %v238
  %v1263 = vunpack.c.h.b16 %v238
  %v1264 = vunpack.c.l.b16 %v239
  %v1265 = vunpack.c.h.b16 %v239
  %v1266 = vunpack.c.l.b16 %v240
  %v1267 = vunpack.c.h.b16 %v240
  %v1268 = vunpack.c.l.b16 %v241
  %v1269 = vunpack.c.h.b16 %v241
  %v1270 = vunpack.c.l.b16 %v242
  %v1271 = vunpack.c.h.b16 %v242
  %v1272 = vunpack.c.l.b16 %v243
  %v1273 = vunpack.c.h.b16 %v243
  %v1274 = vunpack.c.l.b16 %v244
  %v1275 = vunpack.c.h.b16 %v244
  %v1276 = vunpack.c.l.b16 %v245
  %v1277 = vunpack.c.h.b16 %v245
  %v1278 = vunpack.c.l.b16 %v246
  %v1279 = vunpack.c.h.b16 %v246
  %v1280 = vunpack.c.l.b16 %v247
  %v1281 = vunpack.c.h.b16 %v247
  %v1282 = vunpack.c.l.b16 %v248
  %v1283 = vunpack.c.h.b16 %v248
  %v1284 = vunpack.c.l.b16 %v249
  %v1285 = vunpack.c.h.b16 %v249
  %v1286 = vunpack.c.l.b16 %v250
  %v1287 = vunpack.c.h.b16 %v250
  %v1288 = vunpack.c.l.b16 %v251
  %v1289 = vunpack.c.h.b16 %v251
  %v1290 = vunpack.c.l.b16 %v252
  %v1291 = vunpack.c.h.b16 %v252
  %v1292 = vunpack.c.l.b16 %v253
  %v1293 = vunpack.c.h.b16 %v253
  %v1294 = vunpack.c.l.b16 %v254
  %v1295 = vunpack.c.h.b16 %v254
  %v1296 = vunpack.c.l.b16 %v255
  %v1297 = vunpack.c.h.b16 %v255
  %v1298 = vunpack.c.l.b16 %v256
  %v1299 = vunpack.c.h.b16 %v256
  %v1300 = vunpack.c.l.b16 %v257
  %v1301 = vunpack.c.h.b16 %v257
  %v1302 = vunpack.c.l.b16 %v258
  %v1303 = vunpack.c.h.b16 %v258
  %v1304 = vunpack.c.l.b16 %v259
  %v1305 = vunpack.c.h.b16 %v259
  %v1306 = vunpack.c.l.b16 %v260
  %v1307 = vunpack.c.h.b16 %v260
  %v1308 = vunpack.c.l.b16 %v261
  %v1309 = vunpack.c.h.b16 %v261
  %v1310 = vunpack.c.l.b16 %v262
  %v1311 = vunpack.c.h.b16 %v262
  %v1312 = vunpack.c.l.b16 %v263
  %v1313 = vunpack.c.h.b16 %v263
  %v1314 = vunpack.c.l.b16 %v264
  %v1315 = vunpack.c.h.b16 %v264
  %v1316 = vunpack.c.l.b16 %v265
  %v1317 = vunpack.c.h.b16 %v265
  %v1318 = vunpack.c.l.b16 %v266
  %v1319 = vunpack.c.h.b16 %v266
  %v1320 = vunpack.c.l.b16 %v267
  %v1321 = vunpack.c.h.b16 %v267
  %v1322 = vunpack.c.l.b16 %v268
  %v1323 = vunpack.c.h.b16 %v268
  %v1324 = vunpack.c.l.b16 %v269
  %v1325 = vunpack.c.h.b16 %v269
  %v1326 = vunpack.c.l.b16 %v270
  %v1327 = vunpack.c.h.b16 %v270
  %v1328 = vunpack.c.l.b16 %v271
  %v1329 = vunpack.c.h.b16 %v271
  %v1330 = vunpack.c.l.b16 %v272
  %v1331 = vunpack.c.h.b16 %v272
  %v1332 = vunpack.c.l.b16 %v273
  %v1333 = vunpack.c.h.b16 %v273
  %v1334 = vunpack.c.l.b16 %v274
  %v1335 = vunpack.c.h.b16 %v274
  %v1336 = vunpack.c.l.b16 %v275
  %v1337 = vunpack.c.h.b16 %v275
  %v1338 = vunpack.c.l.b16 %v276
  %v1339 = vunpack.c.h.b16 %v276
  %v1340 = vunpack.c.l.b16 %v277
  %v1341 = vunpack.c.h.b16 %v277
  %v1342 = vunpack.c.l.b16 %v278
  %v1343 = vunpack.c.h.b16 %v278
  %v1344 = vunpack.c.l.b16 %v279
  %v1345 = vunpack.c.h.b16 %v279
  %v1346 = vunpack.c.l.b16 %v280
  %v1347 = vunpack.c.h.b16 %v280
  %v1348 = vunpack.c.l.b16 %v281
  %v1349 = vunpack.c.h.b16 %v281
  %v1350 = vunpack.c.l.b16 %v282
  %v1351 = vunpack.c.h.b16 %v282
  %v1352 = vunpack.c.l.b16 %v283
  %v1353 = vunpack.c.h.b16 %v283
  %v1354 = vunpack.c.l.b16 %v284
  %v1355 = vunpack.c.h.b16 %v284
  %v1356 = vunpack.c.l.b16 %v285
  %v1357 = vunpack.c.h.b16 %v285
  %v1358 = vunpack.c.l.b16 %v286
  %v1359 = vunpack.c.h.b16 %v286
  %v1360 = vunpack.c.l.b16 %v287
  %v1361 = vunpack.c.h.b16 %v287
  %v1362 = vunpack.c.l.b16 %v288
  %v1363 = vunpack.c.h.b16 %v288
  %v1364 = vunpack.c.l.b16 %v289
  %v1365 = vunpack.c.h.b16 %v289
  %v1366 = vunpack.c.l.b16 %v290
  %v1367 = vunpack.c.h.b16 %v290
  %v1368 = vunpack.c.l.b16 %v291
  %v1369 = vunpack.c.h.b16 %v291
  %v1370 = vunpack.c.l.b16 %v292
  %v1371 = vunpack.c.h.b16 %v292
  %v1372 = vunpack.c.l.b16 %v293
  %v1373 = vunpack.c.h.b16 %v293
  %v1374 = vunpack.c.l.b16 %v294
  %v1375 = vunpack.c.h.b16 %v294
  %v1376 = vunpack.c.l.b16 %v295
  %v1377 = vunpack.c.h.b16 %v295
  %v1378 = vunpack.c.l.b16 %v296
  %v1379 = vunpack.c.h.b16 %v296
  %v1380 = vunpack.c.l.b16 %v297
  %v1381 = vunpack.c.h.b16 %v297
  %v1382 = vunpack.c.l.b16 %v298
  %v1383 = vunpack.c.h.b16 %v298
  %v1384 = vunpack.c.l.b16 %v299
  %v1385 = vunpack.c.h.b16 %v299
  %v1386 = vunpack.c.l.b16 %v300
  %v1387 = vunpack.c.h.b16 %v300
  %v1388 = vunpack.c.l.b16 %v301
  %v1389 = vunpack.c.h.b16 %v301
  %v1390 = vunpack.c.l.b16 %v302
  %v1391 = vunpack.c.h.b16 %v302
  %v1392 = vunpack.c.l.b16 %v303
  %v1393 = vunpack.c.h.b16 %v303
  %v1394 = vunpack.c.l.b16 %v304
  %v1395 = vunpack.c.h.b16 %v304
  %v1396 = vunpack.c.l.b16 %v305
  %v1397 = vunpack.c.h.b16 %v305
  %v1398 = vunpack.c.l.b16 %v306
  %v1399 = vunpack.c.h.b16 %v306
  %v1400 = vunpack.c.l.b16 %v307
  %v1401 = vunpack.c.h.b16 %v307
  %v1402 = vunpack.c.l.b16 %v308
  %v1403 = vunpack.c.h.b16 %v308
  %v1404 = vunpack.c.l.b16 %v309
  %v1405 = vunpack.c.h.b16 %v309
  %v1406 = vunpack.c.l.b16 %v310
  %v1407 = vunpack.c.h.b16 %v310
  %v1408 = vunpack.c.l.b16 %v311
  %v1409 = vunpack.c.h.b16 %v311
  %v1410 = vunpack.c.l.b16 %v312
  %v1411 = vunpack.c.h.b16 %v312
  %v1412 = vunpack.c.l.b16 %v313
  %v1413 = vunpack.c.h.b16 %v313
  %v1414 = vunpack.c.l.b16 %v314
  %v1415 = vunpack.c.h.b16 %v314
  %v1416 = vunpack.c.l.b16 %v315
  %v1417 = vunpack.c.h.b16 %v315
  %v1418 = vunpack.c.l.b16 %v316
  %v1419 = vunpack.c.h.b16 %v316
  %v1420 = vunpack.c.l.b16 %v317
  %v1421 = vunpack.c.h.b16 %v317
  %v1422 = vunpack.c.l.b16 %v318
  %v1423 = vunpack.c.h.b16 %v318
  %v1424 = vunpack.c.l.b16 %v319
  %v1425 = vunpack.c.h.b16 %v319
  %v1426 = vunpack.c.l.b16 %v320
  %v1427 = vunpack.c.h.b16 %v320
  %v1428 = vunpack.c.l.b16 %v321
  %v1429 = vunpack.c.h.b16 %v321
  %v1430 = vunpack.c.l.b16 %v322
  %v1431 = vunpack.c.h.b16 %v322
  %v1432 = vunpack.c.l.b16 %v323
  %v1433 = vunpack.c.h.b16 %v323
  %v1434 = vunpack.c.l.b16 %v324
  %v1435 = vunpack.c.h.b16 %v324
  %v1436 = vunpack.c.l.b16 %v325
  %v1437 = vunpack.c.h.b16 %v325
  %v1438 = vunpack.c.l.b16 %v326
  %v1439 = vunpack.c.h.b16 %v326
  %v1440 = vunpack.c.l.b16 %v327
  %v1441 = vunpack.c.h.b16 %v327
  %v1442 = vunpack.c.l.b16 %v328
  %v1443 = vunpack.c.h.b16 %v328
  %v1444 = vunpack.c.l.b16 %v329
  %v1445 = vunpack.c.h.b16 %v329
  %v1446 = vunpack.c.l.b16 %v330
  %v1447 = vunpack.c.h.b16 %v330
  %v1448 = vunpack.c.l.b16 %v331
  %v1449 = vunpack.c.h.b16 %v331
  %v1450 = vunpack.c.l.b16 %v332
  %v1451 = vunpack.c.h.b16 %v332
  %v1452 = vunpack.c.l.b16 %v333
  %v1453 = vunpack.c.h.b16 %v333
  %v1454 = vunpack.c.l.b16 %v334
  %v1455 = vunpack.c.h.b16 %v334
  %v1456 = vunpack.c.l.b16 %v335
  %v1457 = vunpack.c.h.b16 %v335
  %v1458 = vunpack.c.l.b16 %v336
  %v1459 = vunpack.c.h.b16 %v336
  %v1460 = vunpack.c.l.b16 %v337
  %v1461 = vunpack.c.h.b16 %v337
  %v1462 = vunpack.c.l.b16 %v338
  %v1463 = vunpack.c.h.b16 %v338
  %v1464 = vunpack.c.l.b16 %v339
  %v1465 = vunpack.c.h.b16 %v339
  %v1466 = vunpack.c.l.b16 %v340
  %v1467 = vunpack.c.h.b16 %v340
  %v1468 = vunpack.c.l.b16 %v341
  %v1469 = vunpack.c.h.b16 %v341
  %v1470 = vunpack.c.l.b16 %v342
  %v1471 = vunpack.c.h.b16 %v342
  %v1472 = vunpack.c.l.b16 %v343
  %v1473 = vunpack.c.h.b16 %v343
  %v1474 = vunpack.c.l.b16 %v344
  %v1475 = vunpack.c.h.b16 %v344
  %v1476 = vunpack.c.l.b16 %v345
  %v1477 = vunpack.c.h.b16 %v345
  %v1478 = vunpack.c.l.b16 %v346
  %v1479 = vunpack.c.h.b16 %v346
  %v1480 = vunpack.c.l.b16 %v347
  %v1481 = vunpack.c.h.b16 %v347
  %v1482 = vunpack.c.l.b16 %v348
  %v1483 = vunpack.c.h.b16 %v348
  %v1484 = vunpack.c.l.b16 %v349
  %v1485 = vunpack.c.h.b16 %v349
  %v1486 = vunpack.c.l.b16 %v350
  %v1487 = vunpack.c.h.b16 %v350
  %v1488 = vunpack.c.l.b16 %v351
  %v1489 = vunpack.c.h.b16 %v351
  %v1490 = vunpack.c.l.b16 %v352
  %v1491 = vunpack.c.h.b16 %v352
  %v1492 = vunpack.c.l.b16 %v353
  %v1493 = vunpack.c.h.b16 %v353
  %v1494 = vunpack.c.l.b16 %v354
  %v1495 = vunpack.c.h.b16 %v354
  %v1496 = vunpack.c.l.b16 %v355
  %v1497 = vunpack.c.h.b16 %v355
  %v1498 = vunpack.c.l.b16 %v356
  %v1499 = vunpack.c.h.b16 %v356
  %v1500 = vunpack.c.l.b16 %v357
  %v1501 = vunpack.c.h.b16 %v357
  %v1502 = vunpack.c.l.b16 %v358
  %v1503 = vunpack.c.h.b16 %v358
  %v1504 = vunpack.c.l.b16 %v359
  %v1505 = vunpack.c.h.b16 %v359
  %v1506 = vunpack.c.l.b16 %v360
  %v1507 = vunpack.c.h.b16 %v360
  %v1508 = vunpack.c.l.b16 %v361
  %v1509 = vunpack.c.h.b16 %v361
  %v1510 = vunpack.c.l.b16 %v362
  %v1511 = vunpack.c.h.b16 %v362
  %v1512 = vunpack.c.l.b16 %v363
  %v1513 = vunpack.c.h.b16 %v363
  %v1514 = vunpack.c.l.b16 %v364
  %v1515 = vunpack.c.h.b16 %v364
  %v1516 = vunpack.c.l.b16 %v365
  %v1517 = vunpack.c.h.b16 %v365
  %v1518 = vunpack.c.l.b16 %v366
  %v1519 = vunpack.c.h.b16 %v366
  %v1520 = vunpack.c.l.b16 %v367
  %v1521 = vunpack.c.h.b16 %v367
  %v1522 = vunpack.c.l.b16 %v368
  %v1523 = vunpack.c.h.b16 %v368
  %v1524 = vunpack.c.l.b16 %v369
  %v1525 = vunpack.c.h.b16 %v369
  %v1526 = vunpack.c.l.b16 %v370
  %v1527 = vunpack.c.h.b16 %v370
  %v1528 = vunpack.c.l.b16 %v371
  %v1529 = vunpack.c.h.b16 %v371
  %v1530 = vunpack.c.l.b16 %v372
  %v1531 = vunpack.c.h.b16 %v372
  %v1532 = vunpack.c.l.b16 %v373
  %v1533 = vunpack.c.h.b16 %v373
  %v1534 = vunpack.c.l.b16 %v374
  %v1535 = vunpack.c.h.b16 %v374
  %v1536 = vunpack.c.l.b16 %v375
  %v1537 = vunpack.c.h.b16 %v375
  %v1538 = vunpack.c.l.b16 %v376
  %v1539 = vunpack.c.h.b16 %v376
  %v1540 = vpack.c.b16 %v840, %v836
  %v1541 = vpack.c.b16 %v841, %v837
  %v1542 = vpack.c.b16 %v842, %v838
  %v1543 = vpack.c.b16 %v843, %v839
  %v1544 = vpack.c.b16 %v848, %v844
  %v1545 = vpack.c.b16 %v849, %v845
  %v1546 = vpack.c.b16 %v850, %v846
  %v1547 = vpack.c.b16 %v851, %v847
  %v1548 = vpack.c.b16 %v856, %v852
  %v1549 = vpack.c.b16 %v857, %v853
  %v1550 = vpack.c.b16 %v858, %v854
  %v1551 = vpack.c.b16 %v859, %v855
  %v1552 = vpack.c.b16 %v864, %v860
  %v1553 = vpack.c.b16 %v865, %v861
  %v1554 = vpack.c.b16 %v866, %v862
  %v1555 = vpack.c.b16 %v867, %v863
  %v1556 = vpack.c.b16 %v872, %v868
  %v1557 = vpack.c.b16 %v873, %v869
  %v1558 = vpack.c.b16 %v874, %v870
  %v1559 = vpack.c.b16 %v875, %v871
  %v1560 = vpack.c.b16 %v880, %v876
  %v1561 = vpack.c.b16 %v881, %v877
  %v1562 = vpack.c.b16 %v882, %v878
  %v1563 = vpack.c.b16 %v883, %v879
  %v1564 = vpack.c.b16 %v888, %v884
  %v1565 = vpack.c.b16 %v889, %v885
  %v1566 = vpack.c.b16 %v890, %v886
  %v1567 = vpack.c.b16 %v891, %v887
  %v1568 = vpack.c.b16 %v896, %v892
  %v1569 = vpack.c.b16 %v897, %v893
  %v1570 = vpack.c.b16 %v898, %v894
  %v1571 = vpack.c.b16 %v899, %v895
  %v1572 = vpack.c.b16 %v904, %v900
  %v1573 = vpack.c.b16 %v905, %v901
  %v1574 = vpack.c.b16 %v906, %v902
  %v1575 = vpack.c.b16 %v907, %v903
  %v1576 = vpack.c.b16 %v912, %v908
  %v1577 = vpack.c.b16 %v913, %v909
  %v1578 = vpack.c.b16 %v914, %v910
  %v1579 = vpack.c.b16 %v915, %v911
  %v1580 = vpack.c.b16 %v920, %v916
  %v1581 = vpack.c.b16 %v921, %v917
  %v1582 = vpack.c.b16 %v922, %v918
  %v1583 = vpack.c.b16 %v923, %v919
  %v1584 = vpack.c.b16 %v928, %v924
  %v1585 = vpack.c.b16 %v929, %v925
  %v1586 = vpack.c.b16 %v930, %v926
  %v1587 = vpack.c.b16 %v931, %v927
  %v1588 = vpack.c.b16 %v936, %v932
  %v1589 = vpack.c.b16 %v937, %v933
  %v1590 = vpack.c.b16 %v938, %v934
  %v1591 = vpack.c.b16 %v939, %v935
  %v1592 = vpack.c.b16 %v944, %v940
  %v1593 = vpack.c.b16 %v945, %v941
  %v1594 = vpack.c.b16 %v946, %v942
  %v1595 = vpack.c.b16 %v947, %v943
  %v1596 = vpack.c.b16 %v952, %v948
  %v1597 = vpack.c.b16 %v953, %v949
  %v1598 = vpack.c.b16 %v954, %v950
  %v1599 = vpack.c.b16 %v955, %v951
  %v1600 = vpack.c.b16 %v960, %v956
  %v1601 = vpack.c.b16 %v961, %v957
  %v1602 = vpack.c.b16 %v962, %v958
  %v1603 = vpack.c.b16 %v963, %v959
  %v1604 = vpack.c.b16 %v968, %v964
  %v1605 = vpack.c.b16 %v969, %v965
  %v1606 = vpack.c.b16 %v970, %v966
  %v1607 = vpack.c.b16 %v971, %v967
  %v1608 = vpack.c.b16 %v976, %v972
  %v1609 = vpack.c.b16 %v977, %v973
  %v1610 = vpack.c.b16 %v978, %v974
  %v1611 = vpack.c.b16 %v979, %v975
  %v1612 = vpack.c.b16 %v984, %v980
  %v1613 = vpack.c.b16 %v985, %v981
  %v1614 = vpack.c.b16 %v986, %v982
  %v1615 = vpack.c.b16 %v987, %v983
  %v1616 = vpack.c.b16 %v992, %v988
  %v1617 = vpack.c.b16 %v993, %v989
  %v1618 = vpack.c.b16 %v994, %v990
  %v1619 = vpack.c.b16 %v995, %v991
  %v1620 = vpack.c.b16 %v1000, %v996
  %v1621 = vpack.c.b16 %v1001, %v997
  %v1622 = vpack.c.b16 %v1002, %v998
  %v1623 = vpack.c.b16 %v1003, %v999
  %v1624 = vpack.c.b16 %v1008, %v1004
  %v1625 = vpack.c.b16 %v1009, %v1005
  %v1626 = vpack.c.b16 %v1010, %v1006
  %v1627 = vpack.c.b16 %v1011, %v1007
  %v1628 = vpack.c.b16 %v1016, %v1012
  %v1629 = vpack.c.b16 %v1017, %v1013
  %v1630 = vpack.c.b16 %v1018, %v1014
  %v1631 = vpack.c.b16 %v1019, %v1015
  %v1632 = vpack.c.b16 %v1024, %v1020
  %v1633 = vpack.c.b16 %v1025, %v1021
  %v1634 = vpack.c.b16 %v1026, %v1022
  %v1635 = vpack.c.b16 %v1027, %v1023
  %v1636 = vpack.c.b16 %v1032, %v1028
  %v1637 = vpack.c.b16 %v1033, %v1029
  %v1638 = vpack.c.b16 %v1034, %v1030
  %v1639 = vpack.c.b16 %v1035, %v1031
  %v1640 = vpack.c.b16 %v1040, %v1036
  %v1641 = vpack.c.b16 %v1041, %v1037
  %v1642 = vpack.c.b16 %v1042, %v1038
  %v1643 = vpack.c.b16 %v1043, %v1039
  %v1644 = vpack.c.b16 %v1048, %v1044
  %v1645 = vpack.c.b16 %v1049, %v1045
  %v1646 = vpack.c.b16 %v1050, %v1046
  %v1647 = vpack.c.b16 %v1051, %v1047
  %v1648 = vpack.c.b16 %v1056, %v1052
  %v1649 = vpack.c.b16 %v1057, %v1053
  %v1650 = vpack.c.b16 %v1058, %v1054
  %v1651 = vpack.c.b16 %v1059, %v1055
  %v1652 = vpack.c.b16 %v1064, %v1060
  %v1653 = vpack.c.b16 %v1065, %v1061
  %v1654 = vpack.c.b16 %v1066, %v1062
  %v1655 = vpack.c.b16 %v1067, %v1063
  %v1656 = vpack.c.b16 %v1072, %v1068
  %v1657 = vpack.c.b16 %v1073, %v1069
  %v1658 = vpack.c.b16 %v1074, %v1070
  %v1659 = vpack.c.b16 %v1075, %v1071
  %v1660 = vpack.c.b16 %v1080, %v1076
  %v1661 = vpack.c.b16 %v1081, %v1077
  %v1662 = vpack.c.b16 %v1082, %v1078
  %v1663 = vpack.c.b16 %v1083, %v1079
  %v1664 = vpack.c.b16 %v1088, %v1084
  %v1665 = vpack.c.b16 %v1089, %v1085
  %v1666 = vpack.c.b16 %v1090, %v1086
  %v1667 = vpack.c.b16 %v1091, %v1087
  %v1668 = vpack.c.b16 %v1096, %v1092
  %v1669 = vpack.c.b16 %v1097, %v1093
  %v1670 = vpack.c.b16 %v1098, %v1094
  %v1671 = vpack.c.b16 %v1099, %v1095
  %v1672 = vpack.c.b16 %v1104, %v1100
  %v1673 = vpack.c.b16 %v1105, %v1101
  %v1674 = vpack.c.b16 %v1106, %v1102
  %v1675 = vpack.c.b16 %v1107, %v1103
  %v1676 = vpack.c.b16 %v1112, %v1108
  %v1677 = vpack.c.b16 %v1113, %v1109
  %v1678 = vpack.c.b16 %v1114, %v1110
  %v1679 = vpack.c.b16 %v1115, %v1111
  %v1680 = vpack.c.b16 %v1120, %v1116
  %v1681 = vpack.c.b16 %v1121, %v1117
  %v1682 = vpack.c.b16 %v1122, %v1118
  %v1683 = vpack.c.b16 %v1123, %v1119
  %v1684 = vpack.c.b16 %v1128, %v1124
  %v1685 = vpack.c.b16 %v1129, %v1125
  %v1686 = vpack.c.b16 %v1130, %v1126
  %v1687 = vpack.c.b16 %v1131, %v1127
  %v1688 = vpack.c.b16 %v1136, %v1132
  %v1689 = vpack.c.b16 %v1137, %v1133
  %v1690 = vpack.c.b16 %v1138, %v1134
  %v1691 = vpack.c.b16 %v1139, %v1135
  %v1692 = vpack.c.b16 %v1144, %v1140
  %v1693 = vpack.c.b16 %v1145, %v1141
  %v1694 = vpack.c.b16 %v1146, %v1142
  %v1695 = vpack.c.b16 %v1147, %v1143
  %v1696 = vpack.c.b16 %v1152, %v1148
  %v1697 = vpack.c.b16 %v1153, %v1149
  %v1698 = vpack.c.b16 %v1154, %v1150
  %v1699 = vpack.c.b16 %v1155, %v1151
  %v1700 = vpack.c.b16 %v1160, %v1156
  %v1701 = vpack.c.b16 %v1161, %v1157
  %v1702 = vpack.c.b16 %v1162, %v1158
  %v1703 = vpack.c.b16 %v1163, %v1159
  %v1704 = vpack.c.b16 %v1168, %v1164
  %v1705 = vpack.c.b16 %v1169, %v1165
  %v1706 = vpack.c.b16 %v1170, %v1166
  %v1707 = vpack.c.b16 %v1171, %v1167
  %v1708 = vpack.c.b16 %v1176, %v1172
  %v1709 = vpack.c.b16 %v1177, %v1173
  %v1710 = vpack.c.b16 %v1178, %v1174
  %v1711 = vpack.c.b16 %v1179, %v1175
  %v1712 = vpack.c.b16 %v1184, %v1180
  %v1713 = vpack.c.b16 %v1185, %v1181
  %v1714 = vpack.c.b16 %v1186, %v1182
  %v1715 = vpack.c.b16 %v1187, %v1183
  %v1716 = vpack.c.b16 %v1192, %v1188
  %v1717 = vpack.c.b16 %v1193, %v1189
  %v1718 = vpack.c.b16 %v1194, %v1190
  %v1719 = vpack.c.b16 %v1195, %v1191
  %v1720 = vpack.c.b16 %v1200, %v1196
  %v1721 = vpack.c.b16 %v1201, %v1197
  %v1722 = vpack.c.b16 %v1202, %v1198
  %v1723 = vpack.c.b16 %v1203, %v1199
  %v1724 = vpack.c.b16 %v1208, %v1204
  %v1725 = vpack.c.b16 %v1209, %v1205
  %v1726 = vpack.c.b16 %v1210, %v1206
  %v1727 = vpack.c.b16 %v1211, %v1207
  %v1728 = vpack.c.b16 %v1216, %v1212
  %v1729 = vpack.c.b16 %v1217, %v1213
  %v1730 = vpack.c.b16 %v1218, %v1214
  %v1731 = vpack.c.b16 %v1219, %v1215
  %v1732 = vpack.c.b16 %v1224, %v1220
  %v1733 = vpack.c.b16 %v1225, %v1221
  %v1734 = vpack.c.b16 %v1226, %v1222
  %v1735 = vpack.c.b16 %v1227, %v1223
  %v1736 = vpack.c.b16 %v1232, %v1228
  %v1737 = vpack.c.b16 %v1233, %v1229
  %v1738 = vpack.c.b16 %v1234, %v1230
  %v1739 = vpack.c.b16 %v1235, %v1231
  %v1740 = vpack.c.b16 %v1240, %v1236
  %v1741 = vpack.c.b16 %v1241, %v1237
  %v1742 = vpack.c.b16 %v1242, %v1238
  %v1743 = vpack.c.b16 %v1243, %v1239
  %v1744 = vpack.c.b16 %v1248, %v1244
  %v1745 = vpack.c.b16 %v1249, %v1245
  %v1746 = vpack.c.b16 %v1250, %v1246
  %v1747 = vpack.c.b16 %v1251, %v1247
  %v1748 = vpack.c.b16 %v1256, %v1252
  %v1749 = vpack.c.b16 %v1257, %v1253
  %v1750 = vpack.c.b16 %v1258, %v1254
  %v1751 = vpack.c.b16 %v1259, %v1255
  %v1752 = vpack.c.b16 %v1264, %v1260
  %v1753 = vpack.c.b16 %v1265, %v1261
  %v1754 = vpack.c.b16 %v1266, %v1262
  %v1755 = vpack.c.b16 %v1267, %v1263
  %v1756 = vpack.c.b16 %v1272, %v1268
  %v1757 = vpack.c.b16 %v1273, %v1269
  %v1758 = vpack.c.b16 %v1274, %v1270
  %v1759 = vpack.c.b16 %v1275, %v1271
  %v1760 = vpack.c.b16 %v1280, %v1276
  %v1761 = vpack.c.b16 %v1281, %v1277
  %v1762 = vpack.c.b16 %v1282, %v1278
  %v1763 = vpack.c.b16 %v1283, %v1279
  %v1764 = vpack.c.b16 %v1288, %v1284
  %v1765 = vpack.c.b16 %v1289, %v1285
  %v1766 = vpack.c.b16 %v1290, %v1286
  %v1767 = vpack.c.b16 %v1291, %v1287
  %v1768 = vpack.c.b16 %v1296, %v1292
  %v1769 = vpack.c.b16 %v1297, %v1293
  %v1770 = vpack.c.b16 %v1298, %v1294
  %v1771 = vpack.c.b16 %v1299, %v1295
  %v1772 = vpack.c.b16 %v1304, %v1300
  %v1773 = vpack.c.b16 %v1305, %v1301
  %v1774 = vpack.c.b16 %v1306, %v1302
  %v1775 = vpack.c.b16 %v1307, %v1303
  %v1776 = vpack.c.b16 %v1312, %v1308
  %v1777 = vpack.c.b16 %v1313, %v1309
  %v1778 = vpack.c.b16 %v1314, %v1310
  %v1779 = vpack.c.b16 %v1315, %v1311
  %v1780 = vpack.c.b16 %v1320, %v1316
  %v1781 = vpack.c.b16 %v1321, %v1317
  %v1782 = vpack.c.b16 %v1322, %v1318
  %v1783 = vpack.c.b16 %v1323, %v1319
  %v1784 = vpack.c.b16 %v1328, %v1324
  %v1785 = vpack.c.b16 %v1329, %v1325
  %v1786 = vpack.c.b16 %v1330, %v1326
  %v1787 = vpack.c.b16 %v1331, %v1327
  %v1788 = vpack.c.b16 %v1336, %v1332
  %v1789 = vpack.c.b16 %v1337, %v1333
  %v1790 = vpack.c.b16 %v1338, %v1334
  %v1791 = vpack.c.b16 %v1339, %v1335
  %v1792 = vpack.c.b16 %v1344, %v1340
  %v1793 = vpack.c.b16 %v1345, %v1341
  %v1794 = vpack.c.b16 %v1346, %v1342
  %v1795 = vpack.c.b16 %v1347, %v1343
  %v1796 = vpack.c.b16 %v1352, %v1348
  %v1797 = vpack.c.b16 %v1353, %v1349
  %v1798 = vpack.c.b16 %v1354, %v1350
  %v1799 = vpack.c.b16 %v1355, %v1351
  %v1800 = vpack.c.b16 %v1360, %v1356
  %v1801 = vpack.c.b16 %v1361, %v1357
  %v1802 = vpack.c.b16 %v1362, %v1358
  %v1803 = vpack.c.b16 %v1363, %v1359
  %v1804 = vpack.c.b16 %v1368, %v1364
  %v1805 = vpack.c.b16 %v1369, %v1365
  %v1806 = vpack.c.b16 %v1370, %v1366
  %v1807 = vpack.c.b16 %v1371, %v1367
  %v1808 = vpack.c.b16 %v1376, %v1372
  %v1809 = vpack.c.b16 %v1377, %v1373
  %v1810 = vpack.c.b16 %v1378, %v1374
  %v1811 = vpack.c.b16 %v1379, %v1375
  %v1812 = vpack.c.b16 %v1384, %v1380
  %v1813 = vpack.c.b16 %v1385, %v1381
  %v1814 = vpack.c.b16 %v1386, %v1382
  %v1815 = vpack.c.b16 %v1387, %v1383
  %v1816 = vpack.c.b16 %v1392, %v1388
  %v1817 = vpack.c.b16 %v1393, %v1389
  %v1818 = vpack.c.b16 %v1394, %v1390
  %v1819 = vpack.c.b16 %v1395, %v1391
  %v1820 = vpack.c.b16 %v1400, %v1396
  %v1821 = vpack.c.b16 %v1401, %v1397
  %v1822 = vpack.c.b16 %v1402, %v1398
  %v1823 = vpack.c.b16 %v1403, %v1399
  %v1824 = vpack.c.b16 %v1408, %v1404
  %v1825 = vpack.c.b16 %v1409, %v1405
  %v1826 = vpack.c.b16 %v1410, %v1406
  %v1827 = vpack.c.b16 %v1411, %v1407
  %v1828 = vpack.c.b16 %v1416, %v1412
  %v1829 = vpack.c.b16 %v1417, %v1413
  %v1830 = vpack.c.b16 %v1418, %v1414
  %v1831 = vpack.c.b16 %v1419, %v1415
  %v1832 = vpack.c.b16 %v1424, %v1420
  %v1833 = vpack.c.b16 %v1425, %v1421
  %v1834 = vpack.c.b16 %v1426, %v1422
  %v1835 = vpack.c.b16 %v1427, %v1423
  %v1836 = vpack.c.b16 %v1432, %v1428
  %v1837 = vpack.c.b16 %v1433, %v1429
  %v1838 = vpack.c.b16 %v1434, %v1430
  %v1839 = vpack.c.b16 %v1435, %v1431
  %v1840 = vpack.c.b16 %v1440, %v1436
  %v1841 = vpack.c.b16 %v1441, %v1437
  %v1842 = vpack.c.b16 %v1442, %v1438
  %v1843 = vpack.c.b16 %v1443, %v1439
  %v1844 = vpack.c.b16 %v1448, %v1444
  %v1845 = vpack.c.b16 %v1449, %v1445
  %v1846 = vpack.c.b16 %v1450, %v1446
  %v1847 = vpack.c.b16 %v1451, %v1447
  %v1848 = vpack.c.b16 %v1456, %v1452
  %v1849 = vpack.c.b16 %v1457, %v1453
  %v1850 = vpack.c.b16 %v1458, %v1454
  %v1851 = vpack.c.b16 %v1459, %v1455
  %v1852 = vpack.c.b16 %v1464, %v1460
  %v1853 = vpack.c.b16 %v1465, %v1461
  %v1854 = vpack.c.b16 %v1466, %v1462
  %v1855 = vpack.c.b16 %v1467, %v1463
  %v1856 = vpack.c.b16 %v1472, %v1468
  %v1857 = vpack.c.b16 %v1473, %v1469
  %v1858 = vpack.c.b16 %v1474, %v1470
  %v1859 = vpack.c.b16 %v1475, %v1471
  %v1860 = vpack.c.b16 %v1480, %v1476
  %v1861 = vpack.c.b16 %v1481, %v1477
  %v1862 = vpack.c.b16 %v1482, %v1478
  %v1863 = vpack.c.b16 %v1483, %v1479
  %v1864 = vpack.c.b16 %v1488, %v1484
  %v1865 = vpack.c.b16 %v1489, %v1485
  %v1866 = vpack.c.b16 %v1490, %v1486
  %v1867 = vpack.c.b16 %v1491, %v1487
  %v1868 = vpack.c.b16 %v1496, %v1492
  %v1869 = vpack.c.b16 %v1497, %v1493
  %v1870 = vpack.c.b16 %v1498, %v1494
  %v1871 = vpack.c.b16 %v1499, %v1495
  %v1872 = vpack.c.b16 %v1504, %v1500
  %v1873 = vpack.c.b16 %v1505, %v1501
  %v1874 = vpack.c.b16 %v1506, %v1502
  %v1875 = vpack.c.b16 %v1507, %v1503
  %v1876 = vpack.c.b16 %v1512, %v1508
  %v1877 = vpack.c.b16 %v1513, %v1509
  %v1878 = vpack.c.b16 %v1514, %v1510
  %v1879 = vpack.c.b16 %v1515, %v1511
  %v1880 = vpack.c.b16 %v1520, %v1516
  %v1881 = vpack.c.b16 %v1521, %v1517
  %v1882 = vpack.c.b16 %v1522, %v1518
  %v1883 = vpack.c.b16 %v1523, %v1519
  %v1884 = vpack.c.b16 %v1528, %v1524
  %v1885 = vpack.c.b16 %v1529, %v1525
  %v1886 = vpack.c.b16 %v1530, %v1526
  %v1887 = vpack.c.b16 %v1531, %v1527
  %v1888 = vpack.c.b16 %v1536, %v1532
  %v1889 = vpack.c.b16 %v1537, %v1533
  %v1890 = vpack.c.b16 %v1538, %v1534
  %v1891 = vpack.c.b16 %v1539, %v1535
  %2244 = vmatprep.subr.bf16.mxu0 %v1541
  %2245 = vmatpush1.bf16.msra.mxu0 %v1540
  %2246 = vmatprep.subr.bf16.mxu0 %v1545
  %2247 = vmatpush1.bf16.msra.mxu0 %v1544
  %2248 = vmatprep.subr.bf16.mxu0 %v1549
  %2249 = vmatpush1.bf16.msra.mxu0 %v1548
  %2250 = vmatprep.subr.bf16.mxu0 %v1553
  %2251 = vmatpush1.bf16.msra.mxu0 %v1552
  %2252 = vmatprep.subr.bf16.mxu0 %v1557
  %2253 = vmatpush1.bf16.msra.mxu0 %v1556
  %2254 = vmatprep.subr.bf16.mxu0 %v1561
  %2255 = vmatpush1.bf16.msra.mxu0 %v1560
  %2256 = vmatprep.subr.bf16.mxu0 %v1565
  %2257 = vmatpush1.bf16.msra.mxu0 %v1564
  %2258 = vmatprep.subr.bf16.mxu0 %v1569
  %2259 = vmatpush1.bf16.msra.mxu0 %v1568
  %2260 = vmatprep.subr.bf16.mxu0 %v1573
  %2261 = vmatpush1.bf16.msra.mxu0 %v1572
  %2262 = vmatprep.subr.bf16.mxu0 %v1577
  %2263 = vmatpush1.bf16.msra.mxu0 %v1576
  %2264 = vmatprep.subr.bf16.mxu0 %v1581
  %2265 = vmatpush1.bf16.msra.mxu0 %v1580
  %2266 = vmatprep.subr.bf16.mxu0 %v1585
  %2267 = vmatpush1.bf16.msra.mxu0 %v1584
  %2268 = vmatprep.subr.bf16.mxu0 %v1589
  %2269 = vmatpush1.bf16.msra.mxu0 %v1588
  %2270 = vmatprep.subr.bf16.mxu0 %v1593
  %2271 = vmatpush1.bf16.msra.mxu0 %v1592
  %2272 = vmatprep.subr.bf16.mxu0 %v1597
  %2273 = vmatpush1.bf16.msra.mxu0 %v1596
  %2274 = vmatprep.subr.bf16.mxu0 %v1601
  %2275 = vmatpush1.bf16.msra.mxu0 %v1600
  %2276 = vmatprep.mubr.bf16.mxu0 %v438
  %2277 = vmatmul.mubr.bf16.gmra.mrb[0].mxu0 %v424
  %v2278 = vpop.f32.mrb[0].mxu0
  %v2279 = vadd.f32 %v382, %v2278
  %v2280 = vpop.f32.mrb[0].mxu0
  %v2281 = vadd.f32 %v386, %v2280
  %v2282 = vpop.f32.mrb[0].mxu0
  %v2283 = vpop.f32.mrb[0].mxu0
  %2284 = vdwg.mxu0
  %2285 = vmatprep.subr.bf16.mxu0 %v1605
  %2286 = vmatpush1.bf16.msra.mxu0 %v1604
  %2287 = vmatprep.subr.bf16.mxu0 %v1609
  %2288 = vmatpush1.bf16.msra.mxu0 %v1608
  %2289 = vmatprep.subr.bf16.mxu0 %v1613
  %2290 = vmatpush1.bf16.msra.mxu0 %v1612
  %2291 = vmatprep.subr.bf16.mxu0 %v1617
  %2292 = vmatpush1.bf16.msra.mxu0 %v1616
  %2293 = vmatprep.subr.bf16.mxu0 %v1621
  %2294 = vmatpush1.bf16.msra.mxu0 %v1620
  %2295 = vmatprep.subr.bf16.mxu0 %v1625
  %2296 = vmatpush1.bf16.msra.mxu0 %v1624
  %2297 = vmatprep.subr.bf16.mxu0 %v1629
  %2298 = vmatpush1.bf16.msra.mxu0 %v1628
  %2299 = vmatprep.subr.bf16.mxu0 %v1633
  %2300 = vmatpush1.bf16.msra.mxu0 %v1632
  %2301 = vmatprep.subr.bf16.mxu0 %v1637
  %2302 = vmatpush1.bf16.msra.mxu0 %v1636
  %2303 = vmatprep.subr.bf16.mxu0 %v1641
  %2304 = vmatpush1.bf16.msra.mxu0 %v1640
  %2305 = vmatprep.subr.bf16.mxu0 %v1645
  %2306 = vmatpush1.bf16.msra.mxu0 %v1644
  %2307 = vmatprep.subr.bf16.mxu0 %v1649
  %2308 = vmatpush1.bf16.msra.mxu0 %v1648
  %2309 = vmatprep.subr.bf16.mxu0 %v1653
  %2310 = vmatpush1.bf16.msra.mxu0 %v1652
  %2311 = vmatprep.subr.bf16.mxu0 %v1657
  %2312 = vmatpush1.bf16.msra.mxu0 %v1656
  %2313 = vmatprep.subr.bf16.mxu0 %v1661
  %2314 = vmatpush1.bf16.msra.mxu0 %v1660
  %2315 = vmatprep.subr.bf16.mxu0 %v1665
  %2316 = vmatpush1.bf16.msra.mxu0 %v1664
  %2317 = vmatprep.mubr.bf16.mxu0 %v448
  %2318 = vmatmul.mubr.bf16.gmra.mrb[0].mxu0 %v446
  %v2319 = vpop.f32.mrb[0].mxu0
  %v2320 = vadd.f32 %v2279, %v2319
  %v2321 = vpop.f32.mrb[0].mxu0
  %v2322 = vadd.f32 %v2281, %v2321
  %v2323 = vpop.f32.mrb[0].mxu0
  %v2324 = vpop.f32.mrb[0].mxu0
  %2325 = vdwg.mxu0
  %2326 = vmatprep.subr.bf16.mxu0 %v1669
  %2327 = vmatpush1.bf16.msra.mxu0 %v1668
  %2328 = vmatprep.subr.bf16.mxu0 %v1673
  %2329 = vmatpush1.bf16.msra.mxu0 %v1672
  %2330 = vmatprep.subr.bf16.mxu0 %v1677
  %2331 = vmatpush1.bf16.msra.mxu0 %v1676
  %2332 = vmatprep.subr.bf16.mxu0 %v1681
  %2333 = vmatpush1.bf16.msra.mxu0 %v1680
  %2334 = vmatprep.subr.bf16.mxu0 %v1685
  %2335 = vmatpush1.bf16.msra.mxu0 %v1684
  %2336 = vmatprep.subr.bf16.mxu0 %v1689
  %2337 = vmatpush1.bf16.msra.mxu0 %v1688
  %2338 = vmatprep.subr.bf16.mxu0 %v1693
  %2339 = vmatpush1.bf16.msra.mxu0 %v1692
  %2340 = vmatprep.subr.bf16.mxu0 %v1697
  %2341 = vmatpush1.bf16.msra.mxu0 %v1696
  %2342 = vmatprep.subr.bf16.mxu0 %v1701
  %2343 = vmatpush1.bf16.msra.mxu0 %v1700
  %2344 = vmatprep.subr.bf16.mxu0 %v1705
  %2345 = vmatpush1.bf16.msra.mxu0 %v1704
  %2346 = vmatprep.subr.bf16.mxu0 %v1709
  %2347 = vmatpush1.bf16.msra.mxu0 %v1708
  %2348 = vmatprep.subr.bf16.mxu0 %v1713
  %2349 = vmatpush1.bf16.msra.mxu0 %v1712
  %2350 = vmatprep.subr.bf16.mxu0 %v1717
  %2351 = vmatpush1.bf16.msra.mxu0 %v1716
  %2352 = vmatprep.subr.bf16.mxu0 %v1721
  %2353 = vmatpush1.bf16.msra.mxu0 %v1720
  %2354 = vmatprep.subr.bf16.mxu0 %v1725
  %2355 = vmatpush1.bf16.msra.mxu0 %v1724
  %2356 = vmatprep.subr.bf16.mxu0 %v1729
  %2357 = vmatpush1.bf16.msra.mxu0 %v1728
  %2358 = vmatprep.mubr.bf16.mxu0 %v445
  %2359 = vmatmul.mubr.bf16.gmra.mrb[0].mxu0 %v431
  %v2360 = vpop.f32.mrb[0].mxu0
  %v2361 = vadd.f32 %v2320, %v2360
  %v2362 = vpop.f32.mrb[0].mxu0
  %v2363 = vadd.f32 %v2322, %v2362
  %v2364 = vpop.f32.mrb[0].mxu0
  %v2365 = vpop.f32.mrb[0].mxu0
  %2366 = vdwg.mxu0
  %2367 = vmatprep.subr.bf16.mxu0 %v1733
  %2368 = vmatpush1.bf16.msra.mxu0 %v1732
  %2369 = vmatprep.subr.bf16.mxu0 %v1737
  %2370 = vmatpush1.bf16.msra.mxu0 %v1736
  %2371 = vmatprep.subr.bf16.mxu0 %v1741
  %2372 = vmatpush1.bf16.msra.mxu0 %v1740
  %2373 = vmatprep.subr.bf16.mxu0 %v1745
  %2374 = vmatpush1.bf16.msra.mxu0 %v1744
  %2375 = vmatprep.subr.bf16.mxu0 %v1749
  %2376 = vmatpush1.bf16.msra.mxu0 %v1748
  %2377 = vmatprep.subr.bf16.mxu0 %v1753
  %2378 = vmatpush1.bf16.msra.mxu0 %v1752
  %2379 = vmatprep.subr.bf16.mxu0 %v1757
  %2380 = vmatpush1.bf16.msra.mxu0 %v1756
  %2381 = vmatprep.subr.bf16.mxu0 %v1761
  %2382 = vmatpush1.bf16.msra.mxu0 %v1760
  %2383 = vmatprep.subr.bf16.mxu0 %v1765
  %2384 = vmatpush1.bf16.msra.mxu0 %v1764
  %2385 = vmatprep.subr.bf16.mxu0 %v1769
  %2386 = vmatpush1.bf16.msra.mxu0 %v1768
  %2387 = vmatprep.subr.bf16.mxu0 %v1773
  %2388 = vmatpush1.bf16.msra.mxu0 %v1772
  %2389 = vmatprep.subr.bf16.mxu0 %v1777
  %2390 = vmatpush1.bf16.msra.mxu0 %v1776
  %2391 = vmatprep.subr.bf16.mxu0 %v1781
  %2392 = vmatpush1.bf16.msra.mxu0 %v1780
  %2393 = vmatprep.subr.bf16.mxu0 %v1785
  %2394 = vmatpush1.bf16.msra.mxu0 %v1784
  %2395 = vmatprep.subr.bf16.mxu0 %v1789
  %2396 = vmatpush1.bf16.msra.mxu0 %v1788
  %2397 = vmatprep.subr.bf16.mxu0 %v1793
  %2398 = vmatpush1.bf16.msra.mxu0 %v1792
  %2399 = vmatprep.mubr.bf16.mxu0 %v449
  %2400 = vmatmul.mubr.bf16.gmra.mrb[0].mxu0 %v447
  %v2401 = vpop.f32.mrb[0].mxu0
  %v2402 = vadd.f32 %v2361, %v2401
  %v2403 = vpop.f32.mrb[0].mxu0
  %v2404 = vadd.f32 %v2363, %v2403
  %v2405 = vpop.f32.mrb[0].mxu0
  %v2406 = vpop.f32.mrb[0].mxu0
  %2407 = vdwg.mxu0
  %2408 = vmatprep.subr.bf16.mxu0 %v1797
  %2409 = vmatpush1.bf16.msra.mxu0 %v1796
  %2410 = vmatprep.subr.bf16.mxu0 %v1801
  %2411 = vmatpush1.bf16.msra.mxu0 %v1800
  %2412 = vmatprep.subr.bf16.mxu0 %v1805
  %2413 = vmatpush1.bf16.msra.mxu0 %v1804
  %2414 = vmatprep.subr.bf16.mxu0 %v1809
  %2415 = vmatpush1.bf16.msra.mxu0 %v1808
  %2416 = vmatprep.subr.bf16.mxu0 %v1813
  %2417 = vmatpush1.bf16.msra.mxu0 %v1812
  %2418 = vmatprep.subr.bf16.mxu0 %v1817
  %2419 = vmatpush1.bf16.msra.mxu0 %v1816
  %2420 = vmatprep.subr.bf16.mxu0 %v1821
  %2421 = vmatpush1.bf16.msra.mxu0 %v1820
  %2422 = vmatprep.subr.bf16.mxu0 %v1825
  %2423 = vmatpush1.bf16.msra.mxu0 %v1824
  %2424 = vmatprep.subr.bf16.mxu0 %v1829
  %2425 = vmatpush1.bf16.msra.mxu0 %v1828
  %2426 = vmatprep.subr.bf16.mxu0 %v1833
  %2427 = vmatpush1.bf16.msra.mxu0 %v1832
  %2428 = vmatprep.subr.bf16.mxu0 %v1837
  %2429 = vmatpush1.bf16.msra.mxu0 %v1836
  %2430 = vmatprep.subr.bf16.mxu0 %v1841
  %2431 = vmatpush1.bf16.msra.mxu0 %v1840
  %2432 = vmatprep.subr.bf16.mxu0 %v1845
  %2433 = vmatpush1.bf16.msra.mxu0 %v1844
  %2434 = vmatprep.subr.bf16.mxu0 %v1849
  %2435 = vmatpush1.bf16.msra.mxu0 %v1848
  %2436 = vmatprep.subr.bf16.mxu0 %v1853
  %2437 = vmatpush1.bf16.msra.mxu0 %v1852
  %2438 = vmatprep.subr.bf16.mxu0 %v1857
  %2439 = vmatpush1.bf16.msra.mxu0 %v1856
  %2440 = vmatprep.mubr.bf16.mxu0 %v471
  %2441 = vmatmul.mubr.bf16.gmra.mrb[0].mxu0 %v464
  %v2442 = vpop.f32.mrb[0].mxu0
  %v2443 = vadd.f32 %v2402, %v2442
  %v2444 = vpop.f32.mrb[0].mxu0
  %v2445 = vadd.f32 %v2404, %v2444
  %v2446 = vpop.f32.mrb[0].mxu0
  %v2447 = vpop.f32.mrb[0].mxu0
  %2448 = vdwg.mxu0
  %2449 = vmatprep.subr.bf16.mxu0 %v1861
  %2450 = vmatpush1.bf16.msra.mxu0 %v1860
  %2451 = vmatprep.subr.bf16.mxu0 %v1865
  %2452 = vmatpush1.bf16.msra.mxu0 %v1864
  %2453 = vmatprep.subr.bf16.mxu0 %v1869
  %2454 = vmatpush1.bf16.msra.mxu0 %v1868
  %2455 = vmatprep.subr.bf16.mxu0 %v1873
  %2456 = vmatpush1.bf16.msra.mxu0 %v1872
  %2457 = vmatprep.subr.bf16.mxu0 %v1877
  %2458 = vmatpush1.bf16.msra.mxu0 %v1876
  %2459 = vmatprep.subr.bf16.mxu0 %v1881
  %2460 = vmatpush1.bf16.msra.mxu0 %v1880
  %2461 = vmatprep.subr.bf16.mxu0 %v1885
  %2462 = vmatpush1.bf16.msra.mxu0 %v1884
  %2463 = vmatprep.subr.bf16.mxu0 %v1889
  %2464 = vmatpush1.bf16.msra.mxu0 %v1888
  %2465 = vmatprep.subr.bf16.mxu0 0
  %2466 = vmatpush1.bf16.msra.mxu0 0
  %2467 = vmatprep.subr.bf16.mxu0 0
  %2468 = vmatpush1.bf16.msra.mxu0 0
  %2469 = vmatprep.subr.bf16.mxu0 0
  %2470 = vmatpush1.bf16.msra.mxu0 0
  %2471 = vmatprep.subr.bf16.mxu0 0
  %2472 = vmatpush1.bf16.msra.mxu0 0
  %2473 = vmatprep.subr.bf16.mxu0 0
  %2474 = vmatpush1.bf16.msra.mxu0 0
  %2475 = vmatprep.subr.bf16.mxu0 0
  %2476 = vmatpush1.bf16.msra.mxu0 0
  %2477 = vmatprep.subr.bf16.mxu0 0
  %2478 = vmatpush1.bf16.msra.mxu0 0
  %2479 = vmatprep.subr.bf16.mxu0 0
  %2480 = vmatpush1.bf16.msra.mxu0 0
  %2481 = vmatprep.mubr.bf16.mxu0 0
  %2482 = vmatmul.mubr.bf16.gmra.mrb[0].mxu0 %v472
  %v2483 = vpop.f32.mrb[0].mxu0
  %v2484 = vadd.f32 %v2443, %v2483
  %v2485 = vpop.f32.mrb[0].mxu0
  %v2486 = vadd.f32 %v2445, %v2485
  %v2487 = vpop.f32.mrb[0].mxu0
  %v2488 = vpop.f32.mrb[0].mxu0
  %2489 = vdwg.mxu0
  %2490 = vmatprep.subr.bf16.mxu0 %v1543
  %2491 = vmatpush1.bf16.msra.mxu0 %v1542
  %2492 = vmatprep.subr.bf16.mxu0 %v1547
  %2493 = vmatpush1.bf16.msra.mxu0 %v1546
  %2494 = vmatprep.subr.bf16.mxu0 %v1551
  %2495 = vmatpush1.bf16.msra.mxu0 %v1550
  %2496 = vmatprep.subr.bf16.mxu0 %v1555
  %2497 = vmatpush1.bf16.msra.mxu0 %v1554
  %2498 = vmatprep.subr.bf16.mxu0 %v1559
  %2499 = vmatpush1.bf16.msra.mxu0 %v1558
  %2500 = vmatprep.subr.bf16.mxu0 %v1563
  %2501 = vmatpush1.bf16.msra.mxu0 %v1562
  %2502 = vmatprep.subr.bf16.mxu0 %v1567
  %2503 = vmatpush1.bf16.msra.mxu0 %v1566
  %2504 = vmatprep.subr.bf16.mxu0 %v1571
  %2505 = vmatpush1.bf16.msra.mxu0 %v1570
  %2506 = vmatprep.subr.bf16.mxu0 %v1575
  %2507 = vmatpush1.bf16.msra.mxu0 %v1574
  %2508 = vmatprep.subr.bf16.mxu0 %v1579
  %2509 = vmatpush1.bf16.msra.mxu0 %v1578
  %2510 = vmatprep.subr.bf16.mxu0 %v1583
  %2511 = vmatpush1.bf16.msra.mxu0 %v1582
  %2512 = vmatprep.subr.bf16.mxu0 %v1587
  %2513 = vmatpush1.bf16.msra.mxu0 %v1586
  %2514 = vmatprep.subr.bf16.mxu0 %v1591
  %2515 = vmatpush1.bf16.msra.mxu0 %v1590
  %2516 = vmatprep.subr.bf16.mxu0 %v1595
  %2517 = vmatpush1.bf16.msra.mxu0 %v1594
  %2518 = vmatprep.subr.bf16.mxu0 %v1599
  %2519 = vmatpush1.bf16.msra.mxu0 %v1598
  %2520 = vmatprep.subr.bf16.mxu0 %v1603
  %2521 = vmatpush1.bf16.msra.mxu0 %v1602
  %2522 = vmatprep.mubr.bf16.mxu0 %v438
  %2523 = vmatmul.mubr.bf16.gmra.mrb[0].mxu0 %v424
  %v2524 = vpop.f32.mrb[0].mxu0
  %v2525 = vadd.f32 %v390, %v2524
  %v2526 = vpop.f32.mrb[0].mxu0
  %v2527 = vadd.f32 %v394, %v2526
  %v2528 = vpop.f32.mrb[0].mxu0
  %v2529 = vpop.f32.mrb[0].mxu0
  %2530 = vdwg.mxu0
  %2531 = vmatprep.subr.bf16.mxu0 %v1607
  %2532 = vmatpush1.bf16.msra.mxu0 %v1606
  %2533 = vmatprep.subr.bf16.mxu0 %v1611
  %2534 = vmatpush1.bf16.msra.mxu0 %v1610
  %2535 = vmatprep.subr.bf16.mxu0 %v1615
  %2536 = vmatpush1.bf16.msra.mxu0 %v1614
  %2537 = vmatprep.subr.bf16.mxu0 %v1619
  %2538 = vmatpush1.bf16.msra.mxu0 %v1618
  %2539 = vmatprep.subr.bf16.mxu0 %v1623
  %2540 = vmatpush1.bf16.msra.mxu0 %v1622
  %2541 = vmatprep.subr.bf16.mxu0 %v1627
  %2542 = vmatpush1.bf16.msra.mxu0 %v1626
  %2543 = vmatprep.subr.bf16.mxu0 %v1631
  %2544 = vmatpush1.bf16.msra.mxu0 %v1630
  %2545 = vmatprep.subr.bf16.mxu0 %v1635
  %2546 = vmatpush1.bf16.msra.mxu0 %v1634
  %2547 = vmatprep.subr.bf16.mxu0 %v1639
  %2548 = vmatpush1.bf16.msra.mxu0 %v1638
  %2549 = vmatprep.subr.bf16.mxu0 %v1643
  %2550 = vmatpush1.bf16.msra.mxu0 %v1642
  %2551 = vmatprep.subr.bf16.mxu0 %v1647
  %2552 = vmatpush1.bf16.msra.mxu0 %v1646
  %2553 = vmatprep.subr.bf16.mxu0 %v1651
  %2554 = vmatpush1.bf16.msra.mxu0 %v1650
  %2555 = vmatprep.subr.bf16.mxu0 %v1655
  %2556 = vmatpush1.bf16.msra.mxu0 %v1654
  %2557 = vmatprep.subr.bf16.mxu0 %v1659
  %2558 = vmatpush1.bf16.msra.mxu0 %v1658
  %2559 = vmatprep.subr.bf16.mxu0 %v1663
  %2560 = vmatpush1.bf16.msra.mxu0 %v1662
  %2561 = vmatprep.subr.bf16.mxu0 %v1667
  %2562 = vmatpush1.bf16.msra.mxu0 %v1666
  %2563 = vmatprep.mubr.bf16.mxu0 %v448
  %2564 = vmatmul.mubr.bf16.gmra.mrb[0].mxu0 %v446
  %v2565 = vpop.f32.mrb[0].mxu0
  %v2566 = vadd.f32 %v2525, %v2565
  %v2567 = vpop.f32.mrb[0].mxu0
  %v2568 = vadd.f32 %v2527, %v2567
  %v2569 = vpop.f32.mrb[0].mxu0
  %v2570 = vpop.f32.mrb[0].mxu0
  %2571 = vdwg.mxu0
  %2572 = vmatprep.subr.bf16.mxu0 %v1671
  %2573 = vmatpush1.bf16.msra.mxu0 %v1670
  %2574 = vmatprep.subr.bf16.mxu0 %v1675
  %2575 = vmatpush1.bf16.msra.mxu0 %v1674
  %2576 = vmatprep.subr.bf16.mxu0 %v1679
  %2577 = vmatpush1.bf16.msra.mxu0 %v1678
  %2578 = vmatprep.subr.bf16.mxu0 %v1683
  %2579 = vmatpush1.bf16.msra.mxu0 %v1682
  %2580 = vmatprep.subr.bf16.mxu0 %v1687
  %2581 = vmatpush1.bf16.msra.mxu0 %v1686
  %2582 = vmatprep.subr.bf16.mxu0 %v1691
  %2583 = vmatpush1.bf16.msra.mxu0 %v1690
  %2584 = vmatprep.subr.bf16.mxu0 %v1695
  %2585 = vmatpush1.bf16.msra.mxu0 %v1694
  %2586 = vmatprep.subr.bf16.mxu0 %v1699
  %2587 = vmatpush1.bf16.msra.mxu0 %v1698
  %2588 = vmatprep.subr.bf16.mxu0 %v1703
  %2589 = vmatpush1.bf16.msra.mxu0 %v1702
  %2590 = vmatprep.subr.bf16.mxu0 %v1707
  %2591 = vmatpush1.bf16.msra.mxu0 %v1706
  %2592 = vmatprep.subr.bf16.mxu0 %v1711
  %2593 = vmatpush1.bf16.msra.mxu0 %v1710
  %2594 = vmatprep.subr.bf16.mxu0 %v1715
  %2595 = vmatpush1.bf16.msra.mxu0 %v1714
  %2596 = vmatprep.subr.bf16.mxu0 %v1719
  %2597 = vmatpush1.bf16.msra.mxu0 %v1718
  %2598 = vmatprep.subr.bf16.mxu0 %v1723
  %2599 = vmatpush1.bf16.msra.mxu0 %v1722
  %2600 = vmatprep.subr.bf16.mxu0 %v1727
  %2601 = vmatpush1.bf16.msra.mxu0 %v1726
  %2602 = vmatprep.subr.bf16.mxu0 %v1731
  %2603 = vmatpush1.bf16.msra.mxu0 %v1730
  %2604 = vmatprep.mubr.bf16.mxu0 %v445
  %2605 = vmatmul.mubr.bf16.gmra.mrb[0].mxu0 %v431
  %v2606 = vpop.f32.mrb[0].mxu0
  %v2607 = vadd.f32 %v2566, %v2606
  %v2608 = vpop.f32.mrb[0].mxu0
  %v2609 = vadd.f32 %v2568, %v2608
  %v2610 = vpop.f32.mrb[0].mxu0
  %v2611 = vpop.f32.mrb[0].mxu0
  %2612 = vdwg.mxu0
  %2613 = vmatprep.subr.bf16.mxu0 %v1735
  %2614 = vmatpush1.bf16.msra.mxu0 %v1734
  %2615 = vmatprep.subr.bf16.mxu0 %v1739
  %2616 = vmatpush1.bf16.msra.mxu0 %v1738
  %2617 = vmatprep.subr.bf16.mxu0 %v1743
  %2618 = vmatpush1.bf16.msra.mxu0 %v1742
  %2619 = vmatprep.subr.bf16.mxu0 %v1747
  %2620 = vmatpush1.bf16.msra.mxu0 %v1746
  %2621 = vmatprep.subr.bf16.mxu0 %v1751
  %2622 = vmatpush1.bf16.msra.mxu0 %v1750
  %2623 = vmatprep.subr.bf16.mxu0 %v1755
  %2624 = vmatpush1.bf16.msra.mxu0 %v1754
  %2625 = vmatprep.subr.bf16.mxu0 %v1759
  %2626 = vmatpush1.bf16.msra.mxu0 %v1758
  %2627 = vmatprep.subr.bf16.mxu0 %v1763
  %2628 = vmatpush1.bf16.msra.mxu0 %v1762
  %2629 = vmatprep.subr.bf16.mxu0 %v1767
  %2630 = vmatpush1.bf16.msra.mxu0 %v1766
  %2631 = vmatprep.subr.bf16.mxu0 %v1771
  %2632 = vmatpush1.bf16.msra.mxu0 %v1770
  %2633 = vmatprep.subr.bf16.mxu0 %v1775
  %2634 = vmatpush1.bf16.msra.mxu0 %v1774
  %2635 = vmatprep.subr.bf16.mxu0 %v1779
  %2636 = vmatpush1.bf16.msra.mxu0 %v1778
  %2637 = vmatprep.subr.bf16.mxu0 %v1783
  %2638 = vmatpush1.bf16.msra.mxu0 %v1782
  %2639 = vmatprep.subr.bf16.mxu0 %v1787
  %2640 = vmatpush1.bf16.msra.mxu0 %v1786
  %2641 = vmatprep.subr.bf16.mxu0 %v1791
  %2642 = vmatpush1.bf16.msra.mxu0 %v1790
  %2643 = vmatprep.subr.bf16.mxu0 %v1795
  %2644 = vmatpush1.bf16.msra.mxu0 %v1794
  %2645 = vmatprep.mubr.bf16.mxu0 %v449
  %2646 = vmatmul.mubr.bf16.gmra.mrb[0].mxu0 %v447
  %v2647 = vpop.f32.mrb[0].mxu0
  %v2648 = vadd.f32 %v2607, %v2647
  %v2649 = vpop.f32.mrb[0].mxu0
  %v2650 = vadd.f32 %v2609, %v2649
  %v2651 = vpop.f32.mrb[0].mxu0
  %v2652 = vpop.f32.mrb[0].mxu0
  %2653 = vdwg.mxu0
  %2654 = vmatprep.subr.bf16.mxu0 %v1799
  %2655 = vmatpush1.bf16.msra.mxu0 %v1798
  %2656 = vmatprep.subr.bf16.mxu0 %v1803
  %2657 = vmatpush1.bf16.msra.mxu0 %v1802
  %2658 = vmatprep.subr.bf16.mxu0 %v1807
  %2659 = vmatpush1.bf16.msra.mxu0 %v1806
  %2660 = vmatprep.subr.bf16.mxu0 %v1811
  %2661 = vmatpush1.bf16.msra.mxu0 %v1810
  %2662 = vmatprep.subr.bf16.mxu0 %v1815
  %2663 = vmatpush1.bf16.msra.mxu0 %v1814
  %2664 = vmatprep.subr.bf16.mxu0 %v1819
  %2665 = vmatpush1.bf16.msra.mxu0 %v1818
  %2666 = vmatprep.subr.bf16.mxu0 %v1823
  %2667 = vmatpush1.bf16.msra.mxu0 %v1822
  %2668 = vmatprep.subr.bf16.mxu0 %v1827
  %2669 = vmatpush1.bf16.msra.mxu0 %v1826
  %2670 = vmatprep.subr.bf16.mxu0 %v1831
  %2671 = vmatpush1.bf16.msra.mxu0 %v1830
  %2672 = vmatprep.subr.bf16.mxu0 %v1835
  %2673 = vmatpush1.bf16.msra.mxu0 %v1834
  %2674 = vmatprep.subr.bf16.mxu0 %v1839
  %2675 = vmatpush1.bf16.msra.mxu0 %v1838
  %2676 = vmatprep.subr.bf16.mxu0 %v1843
  %2677 = vmatpush1.bf16.msra.mxu0 %v1842
  %2678 = vmatprep.subr.bf16.mxu0 %v1847
  %2679 = vmatpush1.bf16.msra.mxu0 %v1846
  %2680 = vmatprep.subr.bf16.mxu0 %v1851
  %2681 = vmatpush1.bf16.msra.mxu0 %v1850
  %2682 = vmatprep.subr.bf16.mxu0 %v1855
  %2683 = vmatpush1.bf16.msra.mxu0 %v1854
  %2684 = vmatprep.subr.bf16.mxu0 %v1859
  %2685 = vmatpush1.bf16.msra.mxu0 %v1858
  %2686 = vmatprep.mubr.bf16.mxu0 %v471
  %2687 = vmatmul.mubr.bf16.gmra.mrb[0].mxu0 %v464
  %v2688 = vpop.f32.mrb[0].mxu0
  %v2689 = vadd.f32 %v2648, %v2688
  %v2690 = vpop.f32.mrb[0].mxu0
  %v2691 = vadd.f32 %v2650, %v2690
  %v2692 = vpop.f32.mrb[0].mxu0
  %v2693 = vpop.f32.mrb[0].mxu0
  %2694 = vdwg.mxu0
  %2695 = vmatprep.subr.bf16.mxu0 %v1863
  %2696 = vmatpush1.bf16.msra.mxu0 %v1862
  %2697 = vmatprep.subr.bf16.mxu0 %v1867
  %2698 = vmatpush1.bf16.msra.mxu0 %v1866
  %2699 = vmatprep.subr.bf16.mxu0 %v1871
  %2700 = vmatpush1.bf16.msra.mxu0 %v1870
  %2701 = vmatprep.subr.bf16.mxu0 %v1875
  %2702 = vmatpush1.bf16.msra.mxu0 %v1874
  %2703 = vmatprep.subr.bf16.mxu0 %v1879
  %2704 = vmatpush1.bf16.msra.mxu0 %v1878
  %2705 = vmatprep.subr.bf16.mxu0 %v1883
  %2706 = vmatpush1.bf16.msra.mxu0 %v1882
  %2707 = vmatprep.subr.bf16.mxu0 %v1887
  %2708 = vmatpush1.bf16.msra.mxu0 %v1886
  %2709 = vmatprep.subr.bf16.mxu0 %v1891
  %2710 = vmatpush1.bf16.msra.mxu0 %v1890
  %2711 = vmatprep.subr.bf16.mxu0 0
  %2712 = vmatpush1.bf16.msra.mxu0 0
  %2713 = vmatprep.subr.bf16.mxu0 0
  %2714 = vmatpush1.bf16.msra.mxu0 0
  %2715 = vmatprep.subr.bf16.mxu0 0
  %2716 = vmatpush1.bf16.msra.mxu0 0
  %2717 = vmatprep.subr.bf16.mxu0 0
  %2718 = vmatpush1.bf16.msra.mxu0 0
  %2719 = vmatprep.subr.bf16.mxu0 0
  %2720 = vmatpush1.bf16.msra.mxu0 0
  %2721 = vmatprep.subr.bf16.mxu0 0
  %2722 = vmatpush1.bf16.msra.mxu0 0
  %2723 = vmatprep.subr.bf16.mxu0 0
  %2724 = vmatpush1.bf16.msra.mxu0 0
  %2725 = vmatprep.subr.bf16.mxu0 0
  %2726 = vmatpush1.bf16.msra.mxu0 0
  %2727 = vmatprep.mubr.bf16.mxu0 0
  %2728 = vmatmul.mubr.bf16.gmra.mrb[0].mxu0 %v472
  %v2729 = vpop.f32.mrb[0].mxu0
  %v2730 = vadd.f32 %v2689, %v2729
  %v2731 = vpop.f32.mrb[0].mxu0
  %v2732 = vadd.f32 %v2691, %v2731
  %v2733 = vpop.f32.mrb[0].mxu0
  %v2734 = vpop.f32.mrb[0].mxu0
  %2735 = vdwg.mxu0
  %v2736 = vtanh.pop %v2484
  %v2737 = vtanh.pop %v2486
  %v2738 = vtanh.pop %v2730
  %v2739 = vtanh.pop %v2732
  %v2740 = vld [vmem:[%s3] sm:$0xf]
  %v2741 = vunpack.c.l.bf16 %v2740
  %v2743 = vlaneseq
  %v2744 = vshrl.u32 %v2743, 7
  %v2745 = vsub.s32 0, %v2744
  %v2746 = vrot.slane %v2741, %v2745
  %v2747 = vlaneseq
  %v2748 = vshrl.u32 %v2747, 7
  %v2749 = vsub.s32 2, %v2748
  %v2750 = vrot.slane %v2741, %v2749
  %v2751 = vlaneseq
  %v2752 = vshrl.u32 %v2751, 7
  %v2753 = vsub.s32 4, %v2752
  %v2754 = vrot.slane %v2741, %v2753
  %v2755 = vlaneseq
  %v2756 = vshrl.u32 %v2755, 7
  %v2757 = vsub.s32 6, %v2756
  %v2758 = vrot.slane %v2741, %v2757
  %v2763 = vlaneseq
  %v2764 = vshrl.u32 %v2763, 7
  %v2765 = vsub.s32 0, %v2764
  %v2766 = vrot.slane %v2746, %v2765
  %v2767 = vlaneseq
  %v2768 = vshrl.u32 %v2767, 7
  %v2769 = vsub.s32 0, %v2768
  %v2770 = vrot.slane %v2750, %v2769
  %v2771 = vlaneseq
  %v2772 = vshrl.u32 %v2771, 7
  %v2773 = vsub.s32 0, %v2772
  %v2774 = vrot.slane %v2754, %v2773
  %v2775 = vlaneseq
  %v2776 = vshrl.u32 %v2775, 7
  %v2777 = vsub.s32 0, %v2776
  %v2778 = vrot.slane %v2758, %v2777
  %v2779 = vmul.f32 %v2736, %v2766
  %v2780 = vmul.f32 %v2737, %v2770
  %v2781 = vmul.f32 %v2738, %v2774
  %v2782 = vmul.f32 %v2739, %v2778
  %vm2783 = vcmask 1041408
  %v2784 = vsel %vm2783, %v2779, 0.0
  %v2785 = vsel %vm2783, %v2780, 0.0
  %v2786 = vadd.f32 %v2784, %v2785
  %v2787 = vsel %vm2783, %v2781, 0.0
  %v2788 = vadd.f32 %v2786, %v2787
  %v2789 = vsel %vm2783, %v2782, 0.0
  %v2790 = vadd.f32 %v2788, %v2789
  %2791 = vadd.xlane.f32.xlu0 %v2790
  %v2792 = vpop.xlane.xlu0 %2791
  %v2793 = vld [vmem:[#allocation2] sm:$0x1]
  %v2795 = vlaneseq
  %v2796 = vshrl.u32 %v2795, 7
  %v2797 = vsub.s32 0, %v2796
  %v2798 = vrot.slane %v2793, %v2797
  %v2800 = vadd.f32 %v2792, %v2798
  %vm2801 = vcmask 1024
  %2802 = vst.msk [vmem:[%s5] sm:$0x3] %vm2801, %v2800
  // Predicated region
  $region22: #{critic_forward.9} parent=0 // pred_check
    _
  $region23: #{critic_forward.9} parent=0 // pred_check_branch
    %2804 = sbr.rel (0) target = $region25
  $region24: #{critic_forward.9} parent=0 // pred_region
    _
  $region25: #{critic_forward.9} parent=0 // pred_fallthru
    _
  // Predicated region
  $region26: #{critic_forward.9} parent=0 // pred_check
    _
  $region27: #{critic_forward.9} parent=0 // pred_check_branch
    %2806 = sbr.rel (0) target = $region29
  $region28: #{critic_forward.9} parent=0 // pred_region
    _
  $region29: #{critic_forward.9} parent=0 // pred_fallthru
    _

</llo_original>
